<compile_context>
chip_gen: v6e
topology: v6e:2x2x1
jax: 0.10.0
libtpu: 0.0.40
codegen_flags: <defaults>
</compile_context>

<pallas_src>
import functools

import numpy as np
import jax
import jax.numpy as jnp
from jax.experimental import pallas as pl
from jax.experimental.pallas import tpu as pltpu

K = 4  # every ConvTranspose2d uses kernel_size=4, stride=2


def _left_pad_cols(c):
    """Zero columns on the left of a padded activation slab -> 128-lane offset."""
    return 128 // c if 128 % c == 0 else 1


# --------------------------------------------------------------------------- #
# wrapper-side weight preparation (folds taps + column gather + interleave)    #
# --------------------------------------------------------------------------- #
def _phase_dh_weight(w, s_in, ph, dh, lpad):
    """Banded matmul weights for one (output-row phase, input-row tap dh) of a
    k=4, s=2, p=1 ConvTranspose2d.

    w : (Cin, Cout, 4, 4) PyTorch weight; s_in: input spatial size (square).
    Returns M of shape ((lpad+s_in+1)*Cin, 2*s_in*Cout) so that
      out_rows(ph) = slab_rows(band ph+dh=0) @ M_dh0 + slab_rows(band ph+dh=1) @ M_dh1
    with slab rows = (padded col, channel)-flattened image rows and output
    lanes = fully interleaved output row (out col, channel).
    """
    cin, cout = w.shape[0], w.shape[1]
    ncols = lpad + s_in + 1
    P = np.zeros((ncols, 2 * s_in, K), np.float32)
    for n in range(s_in):
        for pw in (0, 1):
            j_out = 2 * n + pw
            for dw in (0, 1):
                kw = 3 - pw - 2 * dw
                j_col = lpad + n + pw + dw - 1      # real input col n+pw+dw-1
                P[j_col, j_out, kw] = 1.0
    kh = 3 - ph - 2 * dh
    m = jnp.einsum("cok,abk->acbo", w[:, :, kh, :], jnp.asarray(P))
    return m.reshape(ncols * cin, 2 * s_in * cout)


# --------------------------------------------------------------------------- #
# fused decoder kernel                                                         #
# --------------------------------------------------------------------------- #
def _decoder_kernel(x_ref,
                    w1_ref, s1_ref, r1_ref, g1_ref, be1_ref,
                    m2_ref, c2_ref, r2_ref, rs2_ref, g2_ref, be2_ref,
                    m3_ref, c3_ref, r3_ref, rs3_ref, g3_ref, be3_ref,
                    m4_ref, b4_ref,
                    out_ref, a1, a2, a3,
                    *, B, C1, C2, C3, L1, L2, L3, eps=1e-5):
    f32, bf16 = jnp.float32, jnp.bfloat16

    # Zero only the pad borders (interiors are fully overwritten below;
    # uninitialized VMEM may hold NaN, so every contraction lane must be written).
    def zero_borders(a, S, C, L):
        rows, width = a.shape
        a[pl.ds(0, B), :] = jnp.zeros((B, width), f32)               # top pad row
        a[pl.ds(rows - B, B), :] = jnp.zeros((B, width), f32)        # bottom pad row
        a[:, pl.ds(0, L * C)] = jnp.zeros((rows, L * C), f32)        # left pad cols
        a[:, pl.ds((L + S) * C, C)] = jnp.zeros((rows, C), f32)      # right pad col

    zero_borders(a1, 4, C1, L1)
    zero_borders(a2, 8, C2, L2)
    zero_borders(a3, 16, C3, L3)

    # ---------------- layer 1 : 1x1 -> 4x4, GroupNorm(C1) + ReLU ------------
    xb = x_ref[...].astype(bf16)                                     # (B, z2)
    o1 = jnp.dot(xb, w1_ref[...], preferred_element_type=f32)        # (B, 16*C1)
    sa = jnp.dot(o1.astype(bf16), s1_ref[...], preferred_element_type=f32)
    qa = jnp.dot((o1 * o1).astype(bf16), s1_ref[...], preferred_element_type=f32)
    mean = sa * (1.0 / 16.0)
    var = jnp.maximum(qa * (1.0 / 16.0) - mean * mean, 0.0)
    sc = jax.lax.rsqrt(var + eps) * g1_ref[...]                      # (B, C1)
    sh = be1_ref[...] - mean * sc
    sc_f = jnp.dot(sc.astype(bf16), r1_ref[...], preferred_element_type=f32)  # (B, 16*C1)
    sh_f = jnp.dot(sh.astype(bf16), r1_ref[...], preferred_element_type=f32)
    y1 = jnp.maximum(o1 * sc_f + sh_f, 0.0)
    KC1 = K * C1
    for kh in range(K):
        a1[pl.ds((kh + 1) * B, B), pl.ds(L1 * C1, KC1)] = y1[:, kh * KC1:(kh + 1) * KC1]

    # ---- stride-2 up-layer: per-phase conv = two accumulated matmuls (split
    #      along dh, no lane concat); GroupNorm stats + scale/shift broadcast
    #      via precomputed bf16 0/1 matrices on the MXU. ----------------------
    def up_norm_layer(src, dst, m_ref, c_ref, r_ref, rs_ref, g_ref, be_ref,
                      H, cout, dst_off):
        HB = H * B
        lout = 2 * H * cout
        rsum = rs_ref[...]                                           # (B, HB) bf16
        outs = []
        s_lane = jnp.zeros((B, lout), f32)
        q_lane = jnp.zeros((B, lout), f32)
        for ph in range(2):
            bandA = src[pl.ds(ph * B, HB), :].astype(bf16)
            bandB = src[pl.ds((ph + 1) * B, HB), :].astype(bf16)
            o = (jnp.dot(bandA, m_ref[2 * ph + 0], preferred_element_type=f32)
                 + jnp.dot(bandB, m_ref[2 * ph + 1], preferred_element_type=f32))
            outs.append(o)
            s_lane = s_lane + jnp.dot(rsum, o.astype(bf16),
                                      preferred_element_type=f32)
            q_lane = q_lane + jnp.dot(rsum, (o * o).astype(bf16),
                                      preferred_element_type=f32)
        csum = c_ref[...]                                            # (lout, cout) bf16
        sa = jnp.dot(s_lane.astype(bf16), csum, preferred_element_type=f32)
        qa = jnp.dot(q_lane.astype(bf16), csum, preferred_element_type=f32)
        inv_np = 1.0 / float(4 * H * H)
        mu = sa * inv_np
        vr = jnp.maximum(qa * inv_np - mu * mu, 0.0)
        sc = jax.lax.rsqrt(vr + eps) * g_ref[...]                    # (B, cout)
        sh = be_ref[...] - mu * sc
        sc_l = jnp.dot(sc.astype(bf16), r_ref[...], preferred_element_type=f32)  # (B, lout)
        sh_l = jnp.dot(sh.astype(bf16), r_ref[...], preferred_element_type=f32)
        for ph in range(2):
            o = outs[ph]
            for m in range(H):
                y = jnp.maximum(o[m * B:(m + 1) * B, :] * sc_l + sh_l, 0.0)
                dst[pl.ds((2 * m + ph + 1) * B, B), pl.ds(dst_off, lout)] = y

    up_norm_layer(a1, a2, m2_ref, c2_ref, r2_ref, rs2_ref, g2_ref, be2_ref,
                  H=4, cout=C2, dst_off=L2 * C2)
    up_norm_layer(a2, a3, m3_ref, c3_ref, r3_ref, rs3_ref, g3_ref, be3_ref,
                  H=8, cout=C3, dst_off=L3 * C3)

    # ------------------- layer 4 : 16x16 -> 32x32, bias + tanh --------------
    H = 16
    HB = H * B
    b4 = b4_ref[...]                                                 # (1, 128)
    for ph in range(2):
        bandA = a3[pl.ds(ph * B, HB), :].astype(bf16)
        bandB = a3[pl.ds((ph + 1) * B, HB), :].astype(bf16)
        o = (jnp.dot(bandA, m4_ref[2 * ph + 0], preferred_element_type=f32)
             + jnp.dot(bandB, m4_ref[2 * ph + 1], preferred_element_type=f32)) + b4
        out_ref[pl.ds(ph * HB, HB), :] = jnp.tanh(o)


# --------------------------------------------------------------------------- #
# wrapper: one pallas_call, grid over batch tiles                              #
# --------------------------------------------------------------------------- #
def decoder_forward(params, x, *, batch_tile=None):
    """x: (B, 2*z_dim) latent. Returns NCHW (B, 3, 32, 32), like PyTorch."""
    B, z2 = x.shape
    C1 = params["w1"].shape[1]
    C2 = params["w2"].shape[1]
    C3 = params["w3"].shape[1]
    L1, L2, L3 = _left_pad_cols(C1), _left_pad_cols(C2), _left_pad_cols(C3)
    # NOTE: dropping conv biases b1..b3 is valid only because GroupNorm here has
    # num_groups == num_channels (group size 1), exactly as in the PyTorch module.
    if batch_tile is None:
        Bt = min(32, ((B + 7) // 8) * 8)
    else:
        Bt = max(8, (int(batch_tile) // 8) * 8)
    Bp = ((B + Bt - 1) // Bt) * Bt
    nb = Bp // Bt
    bf16 = jnp.bfloat16

    # conv1 weights fused over kh: columns = (kh, kw, cout)
    w1m = jnp.concatenate(
        [jnp.transpose(params["w1"][:, :, kh, :], (0, 2, 1)).reshape(z2, K * C1)
         for kh in range(K)], axis=1).astype(bf16)                    # (z2, 16*C1)

    def stack_m(w, s_in, lpad):  # order: [ph0dh0, ph0dh1, ph1dh0, ph1dh1]
        return jnp.stack([_phase_dh_weight(w, s_in, ph, dh, lpad)
                          for ph in (0, 1) for dh in (0, 1)], axis=0).astype(bf16)

    m2 = stack_m(params["w2"], 4, L1)
    m3 = stack_m(params["w3"], 8, L2)
    w4p = jnp.pad(params["w4"], ((0, 0), (0, 1), (0, 0), (0, 0)))     # Cout 3 -> 4
    m4 = stack_m(w4p, 16, L3)
    b4 = jnp.tile(jnp.pad(params["b4"], (0, 1)).reshape(1, 4), (1, 32))  # (1, 128)

    # 0/1 bf16 reduction / replication matrices (stats + scale broadcast on MXU)
    def chan_sum(c, reps):
        return jnp.asarray(np.tile(np.eye(c, dtype=np.float32), (reps, 1)), bf16)

    def lane_rep(c, reps):
        return jnp.asarray(np.tile(np.eye(c, dtype=np.float32), (1, reps)), bf16)

    def row_sum(b, h):
        return jnp.asarray(np.tile(np.eye(b, dtype=np.float32), (1, h)), bf16)

    s1, r1 = chan_sum(C1, 16), lane_rep(C1, 16)
    c2, r2, rs2 = chan_sum(C2, 8), lane_rep(C2, 8), row_sum(Bt, 4)
    c3, r3, rs3 = chan_sum(C3, 16), lane_rep(C3, 16), row_sum(Bt, 8)

    g1, be1 = params["g1"].reshape(1, C1), params["be1"].reshape(1, C1)
    g2, be2 = params["g2"].reshape(1, C2), params["be2"].reshape(1, C2)
    g3, be3 = params["g3"].reshape(1, C3), params["be3"].reshape(1, C3)

    x_p = jnp.pad(x, ((0, Bp - B), (0, 0)))

    ops = [x_p, w1m, s1, r1, g1, be1,
           m2, c2, r2, rs2, g2, be2,
           m3, c3, r3, rs3, g3, be3,
           m4, b4]

    def const_spec(a):  # whole-array block, constant index map -> stays resident
        zeros = (0,) * a.ndim
        return pl.BlockSpec(a.shape, lambda i: zeros)

    in_specs = ([pl.BlockSpec((Bt, z2), lambda i: (i, 0))]
                + [const_spec(a) for a in ops[1:]])
    out_specs = pl.BlockSpec((None, 2 * 16 * Bt, 128), lambda i: (i, 0, 0))

    kernel = functools.partial(_decoder_kernel, B=Bt, C1=C1, C2=C2, C3=C3,
                               L1=L1, L2=L2, L3=L3)
    out3 = pl.pallas_call(
        kernel,
        grid=(nb,),
        out_shape=jax.ShapeDtypeStruct((nb, 2 * 16 * Bt, 128), jnp.float32),
        in_specs=in_specs,
        out_specs=out_specs,
        scratch_shapes=[
            pltpu.VMEM((6 * Bt, (L1 + 4 + 1) * C1), jnp.float32),    # 4x4 act (padded)
            pltpu.VMEM((10 * Bt, (L2 + 8 + 1) * C2), jnp.float32),   # 8x8 act (padded)
            pltpu.VMEM((18 * Bt, (L3 + 16 + 1) * C3), jnp.float32),  # 16x16 act (padded)
        ],
        compiler_params=pltpu.CompilerParams(
            dimension_semantics=("parallel",),
            vmem_limit_bytes=32 * 1024 * 1024),
    )(*ops)

    # rows = (phase, out_row // 2, batch-slot); lanes = (out col, channel 0..3)
    out = out3.reshape(nb, 2, 16, Bt, 32, 4)
    out = jnp.transpose(out, (0, 3, 5, 2, 1, 4)).reshape(Bp, 4, 32, 32)
    return out[:B, :3]


# --------------------------- plain-JAX reference ---------------------------- #
def _convT_ref(x_nhwc, w_pt, bias, stride, padding):
    rhs = jnp.transpose(w_pt, (2, 3, 0, 1))[::-1, ::-1, :, :]  # (K,K,Cin,Cout) flipped
    out = jax.lax.conv_general_dilated(
        x_nhwc, rhs, window_strides=(1, 1),
        padding=[(K - 1 - padding, K - 1 - padding)] * 2,
        lhs_dilation=(stride, stride),
        dimension_numbers=("NHWC", "HWIO", "NHWC"),
        precision=jax.lax.Precision.HIGHEST)
    return out + bias


def _group_norm_ref(x, gamma, beta, eps=1e-5):
    mu = jnp.mean(x, axis=(1, 2), keepdims=True)
    var = jnp.mean(jnp.square(x - mu), axis=(1, 2), keepdims=True)
    return (x - mu) * jax.lax.rsqrt(var + eps) * gamma + beta


def decoder_ref(params, x):
    B, C = x.shape
    h = x.reshape(B, 1, 1, C)
    h = jax.nn.relu(_group_norm_ref(
        _convT_ref(h, params["w1"], params["b1"], 2, 0), params["g1"], params["be1"]))
    h = jax.nn.relu(_group_norm_ref(
        _convT_ref(h, params["w2"], params["b2"], 2, 1), params["g2"], params["be2"]))
    h = jax.nn.relu(_group_norm_ref(
        _convT_ref(h, params["w3"], params["b3"], 2, 1), params["g3"], params["be3"]))
    h = jnp.tanh(_convT_ref(h, params["w4"], params["b4"], 2, 1))
    return jnp.transpose(h, (0, 3, 1, 2))


# ------------------------------- param init --------------------------------- #
def init_decoder_params(key, z_dim, nfilter):
    z2 = 2 * z_dim
    layer_io = [(z2, nfilter), (nfilter, nfilter // 2),
                (nfilter // 2, nfilter // 4), (nfilter // 4, 3)]
    keys = jax.random.split(key, 4 * len(layer_io))
    params = {}
    for i, (cin, cout) in enumerate(layer_io):
        k_w, k_b, k_g, k_be = keys[4 * i:4 * i + 4]
        params[f"w{i + 1}"] = 0.1 * jax.random.normal(k_w, (cin, cout, K, K), jnp.float32)
        params[f"b{i + 1}"] = 0.1 * jax.random.normal(k_b, (cout,), jnp.float32)
        if i < 3:  # GroupNorm affine params for layers 1..3
            params[f"g{i + 1}"] = 1.0 + 0.1 * jax.random.normal(k_g, (cout,), jnp.float32)
            params[f"be{i + 1}"] = 0.1 * jax.random.normal(k_be, (cout,), jnp.float32)
    return params


# ---------------------------------- main ------------------------------------ #
if __name__ == "__main__":
    z_dim, nfilter, batch = 8, 32, 2     # conv1 in_channels = 2*z_dim = 16
    key = jax.random.PRNGKey(0)
    pkey, xkey = jax.random.split(key)
    params = init_decoder_params(pkey, z_dim, nfilter)
    x = jax.random.normal(xkey, (batch, 2 * z_dim), jnp.float32)

    out = jax.jit(decoder_forward)(params, x)
    out = jax.block_until_ready(out)
    assert out.shape == (batch, 3, 32, 32), out.shape

    ref = decoder_ref(params, x)
    err = float(jnp.max(jnp.abs(out - ref)))
    assert err < 5e-2, f"max abs error vs reference: {err}"

    print("KERNEL_OK")
</pallas_src>

<mosaic_0001>
module attributes {stable_mosaic.version = 11 : i64} {
  func.func @_decoder_kernel(%arg0: i32, %arg1: memref<8x16xf32, #tpu.memory_space<vmem>>, %arg2: memref<16x512xbf16, #tpu.memory_space<vmem>>, %arg3: memref<512x32xbf16, #tpu.memory_space<vmem>>, %arg4: memref<32x512xbf16, #tpu.memory_space<vmem>>, %arg5: memref<1x32xf32, #tpu.memory_space<vmem>>, %arg6: memref<1x32xf32, #tpu.memory_space<vmem>>, %arg7: memref<4x288x128xbf16, #tpu.memory_space<vmem>>, %arg8: memref<128x16xbf16, #tpu.memory_space<vmem>>, %arg9: memref<16x128xbf16, #tpu.memory_space<vmem>>, %arg10: memref<8x32xbf16, #tpu.memory_space<vmem>>, %arg11: memref<1x16xf32, #tpu.memory_space<vmem>>, %arg12: memref<1x16xf32, #tpu.memory_space<vmem>>, %arg13: memref<4x272x128xbf16, #tpu.memory_space<vmem>>, %arg14: memref<128x8xbf16, #tpu.memory_space<vmem>>, %arg15: memref<8x128xbf16, #tpu.memory_space<vmem>>, %arg16: memref<8x64xbf16, #tpu.memory_space<vmem>>, %arg17: memref<1x8xf32, #tpu.memory_space<vmem>>, %arg18: memref<1x8xf32, #tpu.memory_space<vmem>>, %arg19: memref<4x264x128xbf16, #tpu.memory_space<vmem>>, %arg20: memref<1x128xf32, #tpu.memory_space<vmem>>, %arg21: memref<1x256x128xf32, #tpu.memory_space<vmem>>, %arg22: memref<48x288xf32, #tpu.memory_space<vmem>>, %arg23: memref<80x272xf32, #tpu.memory_space<vmem>>, %arg24: memref<144x264xf32, #tpu.memory_space<vmem>>) attributes {dimension_semantics = [#tpu.dimension_semantics<parallel>], iteration_bounds = array<i64: 1>, scalar_prefetch = 0 : i64, scratch_operands = 3 : i64, tpu.core_type = #tpu.core_type<tc>, window_params = [{transform_indices = @transform_0, window_bounds = array<i64: 8, 16>}, {pipeline_mode = #tpu.pipeline_mode<synchronous>, transform_indices = @transform_1, window_bounds = array<i64: 16, 512>}, {pipeline_mode = #tpu.pipeline_mode<synchronous>, transform_indices = @transform_2, window_bounds = array<i64: 512, 32>}, {pipeline_mode = #tpu.pipeline_mode<synchronous>, transform_indices = @transform_3, window_bounds = array<i64: 32, 512>}, {pipeline_mode = #tpu.pipeline_mode<synchronous>, transform_indices = @transform_4, window_bounds = array<i64: 1, 32>}, {pipeline_mode = #tpu.pipeline_mode<synchronous>, transform_indices = @transform_5, window_bounds = array<i64: 1, 32>}, {pipeline_mode = #tpu.pipeline_mode<synchronous>, transform_indices = @transform_6, window_bounds = array<i64: 4, 288, 128>}, {pipeline_mode = #tpu.pipeline_mode<synchronous>, transform_indices = @transform_7, window_bounds = array<i64: 128, 16>}, {pipeline_mode = #tpu.pipeline_mode<synchronous>, transform_indices = @transform_8, window_bounds = array<i64: 16, 128>}, {pipeline_mode = #tpu.pipeline_mode<synchronous>, transform_indices = @transform_9, window_bounds = array<i64: 8, 32>}, {pipeline_mode = #tpu.pipeline_mode<synchronous>, transform_indices = @transform_10, window_bounds = array<i64: 1, 16>}, {pipeline_mode = #tpu.pipeline_mode<synchronous>, transform_indices = @transform_11, window_bounds = array<i64: 1, 16>}, {pipeline_mode = #tpu.pipeline_mode<synchronous>, transform_indices = @transform_12, window_bounds = array<i64: 4, 272, 128>}, {pipeline_mode = #tpu.pipeline_mode<synchronous>, transform_indices = @transform_13, window_bounds = array<i64: 128, 8>}, {pipeline_mode = #tpu.pipeline_mode<synchronous>, transform_indices = @transform_14, window_bounds = array<i64: 8, 128>}, {pipeline_mode = #tpu.pipeline_mode<synchronous>, transform_indices = @transform_15, window_bounds = array<i64: 8, 64>}, {pipeline_mode = #tpu.pipeline_mode<synchronous>, transform_indices = @transform_16, window_bounds = array<i64: 1, 8>}, {pipeline_mode = #tpu.pipeline_mode<synchronous>, transform_indices = @transform_17, window_bounds = array<i64: 1, 8>}, {pipeline_mode = #tpu.pipeline_mode<synchronous>, transform_indices = @transform_18, window_bounds = array<i64: 4, 264, 128>}, {pipeline_mode = #tpu.pipeline_mode<synchronous>, transform_indices = @transform_19, window_bounds = array<i64: 1, 128>}, {transform_indices = @transform_20, window_bounds = array<i64: 1, 256, 128>}]} {
    %cst = arith.constant 0.000000e+00 : f32
    %0 = vector.broadcast %cst : f32 to vector<8x288xf32>
    %c0 = arith.constant 0 : index
    %c0_0 = arith.constant 0 : index
    %1 = vector.load %arg22[%c0, %c0_0] : memref<48x288xf32, #tpu.memory_space<vmem>>, vector<8x288xf32>
    tpu.vector_store %arg22[%c0, %c0_0], %0 {strides = array<i32>} : memref<48x288xf32, #tpu.memory_space<vmem>>, vector<8x288xf32>,
    %cst_1 = arith.constant 0.000000e+00 : f32
    %2 = vector.broadcast %cst_1 : f32 to vector<8x288xf32>
    %c40 = arith.constant 40 : index
    %c0_2 = arith.constant 0 : index
    %3 = vector.load %arg22[%c40, %c0_2] : memref<48x288xf32, #tpu.memory_space<vmem>>, vector<8x288xf32>
    tpu.vector_store %arg22[%c40, %c0_2], %2 {strides = array<i32>} : memref<48x288xf32, #tpu.memory_space<vmem>>, vector<8x288xf32>,
    %cst_3 = arith.constant 0.000000e+00 : f32
    %4 = vector.broadcast %cst_3 : f32 to vector<48x128xf32>
    %c0_4 = arith.constant 0 : index
    %c0_5 = arith.constant 0 : index
    %5 = vector.load %arg22[%c0_4, %c0_5] : memref<48x288xf32, #tpu.memory_space<vmem>>, vector<48x128xf32>
    tpu.vector_store %arg22[%c0_4, %c0_5], %4 {strides = array<i32>} : memref<48x288xf32, #tpu.memory_space<vmem>>, vector<48x128xf32>,
    %cst_6 = arith.constant 0.000000e+00 : f32
    %6 = vector.broadcast %cst_6 : f32 to vector<48x32xf32>
    %c0_7 = arith.constant 0 : index
    %c256 = arith.constant 256 : index
    %7 = vector.load %arg22[%c0_7, %c256] : memref<48x288xf32, #tpu.memory_space<vmem>>, vector<48x32xf32>
    tpu.vector_store %arg22[%c0_7, %c256], %6 {strides = array<i32>} : memref<48x288xf32, #tpu.memory_space<vmem>>, vector<48x32xf32>,
    %cst_8 = arith.constant 0.000000e+00 : f32
    %8 = vector.broadcast %cst_8 : f32 to vector<8x272xf32>
    %c0_9 = arith.constant 0 : index
    %c0_10 = arith.constant 0 : index
    %9 = vector.load %arg23[%c0_9, %c0_10] : memref<80x272xf32, #tpu.memory_space<vmem>>, vector<8x272xf32>
    tpu.vector_store %arg23[%c0_9, %c0_10], %8 {strides = array<i32>} : memref<80x272xf32, #tpu.memory_space<vmem>>, vector<8x272xf32>,
    %cst_11 = arith.constant 0.000000e+00 : f32
    %10 = vector.broadcast %cst_11 : f32 to vector<8x272xf32>
    %c72 = arith.constant 72 : index
    %c0_12 = arith.constant 0 : index
    %11 = vector.load %arg23[%c72, %c0_12] : memref<80x272xf32, #tpu.memory_space<vmem>>, vector<8x272xf32>
    tpu.vector_store %arg23[%c72, %c0_12], %10 {strides = array<i32>} : memref<80x272xf32, #tpu.memory_space<vmem>>, vector<8x272xf32>,
    %cst_13 = arith.constant 0.000000e+00 : f32
    %12 = vector.broadcast %cst_13 : f32 to vector<80x128xf32>
    %c0_14 = arith.constant 0 : index
    %c0_15 = arith.constant 0 : index
    %13 = vector.load %arg23[%c0_14, %c0_15] : memref<80x272xf32, #tpu.memory_space<vmem>>, vector<80x128xf32>
    tpu.vector_store %arg23[%c0_14, %c0_15], %12 {strides = array<i32>} : memref<80x272xf32, #tpu.memory_space<vmem>>, vector<80x128xf32>,
    %cst_16 = arith.constant 0.000000e+00 : f32
    %14 = vector.broadcast %cst_16 : f32 to vector<80x16xf32>
    %c0_17 = arith.constant 0 : index
    %c256_18 = arith.constant 256 : index
    %15 = vector.load %arg23[%c0_17, %c256_18] : memref<80x272xf32, #tpu.memory_space<vmem>>, vector<80x16xf32>
    tpu.vector_store %arg23[%c0_17, %c256_18], %14 {strides = array<i32>} : memref<80x272xf32, #tpu.memory_space<vmem>>, vector<80x16xf32>,
    %cst_19 = arith.constant 0.000000e+00 : f32
    %16 = vector.broadcast %cst_19 : f32 to vector<8x264xf32>
    %c0_20 = arith.constant 0 : index
    %c0_21 = arith.constant 0 : index
    %17 = vector.load %arg24[%c0_20, %c0_21] : memref<144x264xf32, #tpu.memory_space<vmem>>, vector<8x264xf32>
    tpu.vector_store %arg24[%c0_20, %c0_21], %16 {strides = array<i32>} : memref<144x264xf32, #tpu.memory_space<vmem>>, vector<8x264xf32>,
    %cst_22 = arith.constant 0.000000e+00 : f32
    %18 = vector.broadcast %cst_22 : f32 to vector<8x264xf32>
    %c136 = arith.constant 136 : index
    %c0_23 = arith.constant 0 : index
    %19 = vector.load %arg24[%c136, %c0_23] : memref<144x264xf32, #tpu.memory_space<vmem>>, vector<8x264xf32>
    tpu.vector_store %arg24[%c136, %c0_23], %18 {strides = array<i32>} : memref<144x264xf32, #tpu.memory_space<vmem>>, vector<8x264xf32>,
    %cst_24 = arith.constant 0.000000e+00 : f32
    %20 = vector.broadcast %cst_24 : f32 to vector<144x128xf32>
    %c0_25 = arith.constant 0 : index
    %c0_26 = arith.constant 0 : index
    %21 = vector.load %arg24[%c0_25, %c0_26] : memref<144x264xf32, #tpu.memory_space<vmem>>, vector<144x128xf32>
    tpu.vector_store %arg24[%c0_25, %c0_26], %20 {strides = array<i32>} : memref<144x264xf32, #tpu.memory_space<vmem>>, vector<144x128xf32>,
    %cst_27 = arith.constant 0.000000e+00 : f32
    %22 = vector.broadcast %cst_27 : f32 to vector<144x8xf32>
    %c0_28 = arith.constant 0 : index
    %c256_29 = arith.constant 256 : index
    %23 = vector.load %arg24[%c0_28, %c256_29] : memref<144x264xf32, #tpu.memory_space<vmem>>, vector<144x8xf32>
    tpu.vector_store %arg24[%c0_28, %c256_29], %22 {strides = array<i32>} : memref<144x264xf32, #tpu.memory_space<vmem>>, vector<144x8xf32>,
    %c0_30 = arith.constant 0 : index
    %c0_31 = arith.constant 0 : index
    %24 = vector.load %arg1[%c0_30, %c0_31] : memref<8x16xf32, #tpu.memory_space<vmem>>, vector<8x16xf32>
    %25 = arith.truncf %24 : vector<8x16xf32> to vector<8x16xbf16>
    %c0_32 = arith.constant 0 : index
    %c0_33 = arith.constant 0 : index
    %26 = vector.load %arg2[%c0_32, %c0_33] : memref<16x512xbf16, #tpu.memory_space<vmem>>, vector<16x512xbf16>
    %cst_34 = arith.constant dense<0.000000e+00> : vector<8x512xf32>
    %27 = tpu.matmul %25, %26, %cst_34 {dimension_numbers = #tpu.dot_dimension_numbers<[1], [0], [0], [1], [0, 0, 1, 1], [], []>} : vector<8x16xbf16>, vector<16x512xbf16>, vector<8x512xf32> -> vector<8x512xf32>
    %28 = arith.truncf %27 : vector<8x512xf32> to vector<8x512xbf16>
    %c0_35 = arith.constant 0 : index
    %c0_36 = arith.constant 0 : index
    %29 = vector.load %arg3[%c0_35, %c0_36] : memref<512x32xbf16, #tpu.memory_space<vmem>>, vector<512x32xbf16>
    %cst_37 = arith.constant dense<0.000000e+00> : vector<8x32xf32>
    %30 = tpu.matmul %28, %29, %cst_37 {dimension_numbers = #tpu.dot_dimension_numbers<[1], [0], [0], [1], [0, 0, 1, 1], [], []>} : vector<8x512xbf16>, vector<512x32xbf16>, vector<8x32xf32> -> vector<8x32xf32>
    %31 = arith.mulf %27, %27 : vector<8x512xf32>
    %32 = arith.truncf %31 : vector<8x512xf32> to vector<8x512xbf16>
    %c0_38 = arith.constant 0 : index
    %c0_39 = arith.constant 0 : index
    %33 = vector.load %arg3[%c0_38, %c0_39] : memref<512x32xbf16, #tpu.memory_space<vmem>>, vector<512x32xbf16>
    %cst_40 = arith.constant dense<0.000000e+00> : vector<8x32xf32>
    %34 = tpu.matmul %32, %33, %cst_40 {dimension_numbers = #tpu.dot_dimension_numbers<[1], [0], [0], [1], [0, 0, 1, 1], [], []>} : vector<8x512xbf16>, vector<512x32xbf16>, vector<8x32xf32> -> vector<8x32xf32>
    %cst_41 = arith.constant 6.250000e-02 : f32
    %35 = vector.broadcast %cst_41 : f32 to vector<8x32xf32>
    %36 = arith.mulf %30, %35 : vector<8x32xf32>
    %cst_42 = arith.constant 6.250000e-02 : f32
    %37 = vector.broadcast %cst_42 : f32 to vector<8x32xf32>
    %38 = arith.mulf %34, %37 : vector<8x32xf32>
    %39 = arith.mulf %36, %36 : vector<8x32xf32>
    %40 = arith.subf %38, %39 : vector<8x32xf32>
    %cst_43 = arith.constant 0.000000e+00 : f32
    %41 = vector.broadcast %cst_43 : f32 to vector<8x32xf32>
    %42 = arith.maximumf %40, %41 : vector<8x32xf32>
    %cst_44 = arith.constant 9.99999974E-6 : f32
    %43 = vector.broadcast %cst_44 : f32 to vector<8x32xf32>
    %44 = arith.addf %42, %43 : vector<8x32xf32>
    %45 = math.rsqrt %44 : vector<8x32xf32>
    %c0_45 = arith.constant 0 : index
    %c0_46 = arith.constant 0 : index
    %46 = vector.load %arg5[%c0_45, %c0_46] : memref<1x32xf32, #tpu.memory_space<vmem>>, vector<1x32xf32>
    %47 = vector.broadcast %46 : vector<1x32xf32> to vector<8x32xf32>
    %48 = arith.mulf %45, %47 : vector<8x32xf32>
    %c0_47 = arith.constant 0 : index
    %c0_48 = arith.constant 0 : index
    %49 = vector.load %arg6[%c0_47, %c0_48] : memref<1x32xf32, #tpu.memory_space<vmem>>, vector<1x32xf32>
    %50 = arith.mulf %36, %48 : vector<8x32xf32>
    %51 = vector.broadcast %49 : vector<1x32xf32> to vector<8x32xf32>
    %52 = arith.subf %51, %50 : vector<8x32xf32>
    %53 = arith.truncf %48 : vector<8x32xf32> to vector<8x32xbf16>
    %c0_49 = arith.constant 0 : index
    %c0_50 = arith.constant 0 : index
    %54 = vector.load %arg4[%c0_49, %c0_50] : memref<32x512xbf16, #tpu.memory_space<vmem>>, vector<32x512xbf16>
    %cst_51 = arith.constant dense<0.000000e+00> : vector<8x512xf32>
    %55 = tpu.matmul %53, %54, %cst_51 {dimension_numbers = #tpu.dot_dimension_numbers<[1], [0], [0], [1], [0, 0, 1, 1], [], []>} : vector<8x32xbf16>, vector<32x512xbf16>, vector<8x512xf32> -> vector<8x512xf32>
    %56 = arith.truncf %52 : vector<8x32xf32> to vector<8x32xbf16>
    %c0_52 = arith.constant 0 : index
    %c0_53 = arith.constant 0 : index
    %57 = vector.load %arg4[%c0_52, %c0_53] : memref<32x512xbf16, #tpu.memory_space<vmem>>, vector<32x512xbf16>
    %cst_54 = arith.constant dense<0.000000e+00> : vector<8x512xf32>
    %58 = tpu.matmul %56, %57, %cst_54 {dimension_numbers = #tpu.dot_dimension_numbers<[1], [0], [0], [1], [0, 0, 1, 1], [], []>} : vector<8x32xbf16>, vector<32x512xbf16>, vector<8x512xf32> -> vector<8x512xf32>
    %59 = arith.mulf %27, %55 : vector<8x512xf32>
    %60 = arith.addf %59, %58 : vector<8x512xf32>
    %cst_55 = arith.constant 0.000000e+00 : f32
    %61 = vector.broadcast %cst_55 : f32 to vector<8x512xf32>
    %62 = arith.maximumf %60, %61 : vector<8x512xf32>
    %63 = vector.extract_strided_slice %62 {offsets = [0, 0], sizes = [8, 128], strides = [1, 1]} : vector<8x512xf32> to vector<8x128xf32>
    %c8 = arith.constant 8 : index
    %c128 = arith.constant 128 : index
    %64 = vector.load %arg22[%c8, %c128] : memref<48x288xf32, #tpu.memory_space<vmem>>, vector<8x128xf32>
    tpu.vector_store %arg22[%c8, %c128], %63 {strides = array<i32>} : memref<48x288xf32, #tpu.memory_space<vmem>>, vector<8x128xf32>,
    %65 = vector.extract_strided_slice %62 {offsets = [0, 128], sizes = [8, 128], strides = [1, 1]} : vector<8x512xf32> to vector<8x128xf32>
    %c16 = arith.constant 16 : index
    %c128_56 = arith.constant 128 : index
    %66 = vector.load %arg22[%c16, %c128_56] : memref<48x288xf32, #tpu.memory_space<vmem>>, vector<8x128xf32>
    tpu.vector_store %arg22[%c16, %c128_56], %65 {strides = array<i32>} : memref<48x288xf32, #tpu.memory_space<vmem>>, vector<8x128xf32>,
    %67 = vector.extract_strided_slice %62 {offsets = [0, 256], sizes = [8, 128], strides = [1, 1]} : vector<8x512xf32> to vector<8x128xf32>
    %c24 = arith.constant 24 : index
    %c128_57 = arith.constant 128 : index
    %68 = vector.load %arg22[%c24, %c128_57] : memref<48x288xf32, #tpu.memory_space<vmem>>, vector<8x128xf32>
    tpu.vector_store %arg22[%c24, %c128_57], %67 {strides = array<i32>} : memref<48x288xf32, #tpu.memory_space<vmem>>, vector<8x128xf32>,
    %69 = vector.extract_strided_slice %62 {offsets = [0, 384], sizes = [8, 128], strides = [1, 1]} : vector<8x512xf32> to vector<8x128xf32>
    %c32 = arith.constant 32 : index
    %c128_58 = arith.constant 128 : index
    %70 = vector.load %arg22[%c32, %c128_58] : memref<48x288xf32, #tpu.memory_space<vmem>>, vector<8x128xf32>
    tpu.vector_store %arg22[%c32, %c128_58], %69 {strides = array<i32>} : memref<48x288xf32, #tpu.memory_space<vmem>>, vector<8x128xf32>,
    %c0_59 = arith.constant 0 : index
    %c0_60 = arith.constant 0 : index
    %71 = vector.load %arg10[%c0_59, %c0_60] : memref<8x32xbf16, #tpu.memory_space<vmem>>, vector<8x32xbf16>
    %cst_61 = arith.constant 0.000000e+00 : f32
    %72 = vector.broadcast %cst_61 : f32 to vector<8x128xf32>
    %cst_62 = arith.constant 0.000000e+00 : f32
    %73 = vector.broadcast %cst_62 : f32 to vector<8x128xf32>
    %c0_63 = arith.constant 0 : index
    %c0_64 = arith.constant 0 : index
    %74 = vector.load %arg22[%c0_63, %c0_64] : memref<48x288xf32, #tpu.memory_space<vmem>>, vector<32x288xf32>
    %75 = arith.truncf %74 : vector<32x288xf32> to vector<32x288xbf16>
    %c8_65 = arith.constant 8 : index
    %c0_66 = arith.constant 0 : index
    %76 = vector.load %arg22[%c8_65, %c0_66] : memref<48x288xf32, #tpu.memory_space<vmem>>, vector<32x288xf32>
    %77 = arith.truncf %76 : vector<32x288xf32> to vector<32x288xbf16>
    %c0_67 = arith.constant 0 : index
    %c0_68 = arith.constant 0 : index
    %c0_69 = arith.constant 0 : index
    %78 = vector.load %arg7[%c0_67, %c0_68, %c0_69] : memref<4x288x128xbf16, #tpu.memory_space<vmem>>, vector<1x288x128xbf16>
    %79 = vector.shape_cast %78 : vector<1x288x128xbf16> to vector<288x128xbf16>
    %cst_70 = arith.constant dense<0.000000e+00> : vector<32x128xf32>
    %80 = tpu.matmul %75, %79, %cst_70 {dimension_numbers = #tpu.dot_dimension_numbers<[1], [0], [0], [1], [0, 0, 1, 1], [], []>} : vector<32x288xbf16>, vector<288x128xbf16>, vector<32x128xf32> -> vector<32x128xf32>
    %c1 = arith.constant 1 : index
    %c0_71 = arith.constant 0 : index
    %c0_72 = arith.constant 0 : index
    %81 = vector.load %arg7[%c1, %c0_71, %c0_72] : memref<4x288x128xbf16, #tpu.memory_space<vmem>>, vector<1x288x128xbf16>
    %82 = vector.shape_cast %81 : vector<1x288x128xbf16> to vector<288x128xbf16>
    %cst_73 = arith.constant dense<0.000000e+00> : vector<32x128xf32>
    %83 = tpu.matmul %77, %82, %cst_73 {dimension_numbers = #tpu.dot_dimension_numbers<[1], [0], [0], [1], [0, 0, 1, 1], [], []>} : vector<32x288xbf16>, vector<288x128xbf16>, vector<32x128xf32> -> vector<32x128xf32>
    %84 = arith.addf %80, %83 : vector<32x128xf32>
    %85 = arith.truncf %84 : vector<32x128xf32> to vector<32x128xbf16>
    %cst_74 = arith.constant dense<0.000000e+00> : vector<8x128xf32>
    %86 = tpu.matmul %71, %85, %cst_74 {dimension_numbers = #tpu.dot_dimension_numbers<[1], [0], [0], [1], [0, 0, 1, 1], [], []>} : vector<8x32xbf16>, vector<32x128xbf16>, vector<8x128xf32> -> vector<8x128xf32>
    %87 = arith.addf %72, %86 : vector<8x128xf32>
    %88 = arith.mulf %84, %84 : vector<32x128xf32>
    %89 = arith.truncf %88 : vector<32x128xf32> to vector<32x128xbf16>
    %cst_75 = arith.constant dense<0.000000e+00> : vector<8x128xf32>
    %90 = tpu.matmul %71, %89, %cst_75 {dimension_numbers = #tpu.dot_dimension_numbers<[1], [0], [0], [1], [0, 0, 1, 1], [], []>} : vector<8x32xbf16>, vector<32x128xbf16>, vector<8x128xf32> -> vector<8x128xf32>
    %91 = arith.addf %73, %90 : vector<8x128xf32>
    %c8_76 = arith.constant 8 : index
    %c0_77 = arith.constant 0 : index
    %92 = vector.load %arg22[%c8_76, %c0_77] : memref<48x288xf32, #tpu.memory_space<vmem>>, vector<32x288xf32>
    %93 = arith.truncf %92 : vector<32x288xf32> to vector<32x288xbf16>
    %c16_78 = arith.constant 16 : index
    %c0_79 = arith.constant 0 : index
    %94 = vector.load %arg22[%c16_78, %c0_79] : memref<48x288xf32, #tpu.memory_space<vmem>>, vector<32x288xf32>
    %95 = arith.truncf %94 : vector<32x288xf32> to vector<32x288xbf16>
    %c2 = arith.constant 2 : index
    %c0_80 = arith.constant 0 : index
    %c0_81 = arith.constant 0 : index
    %96 = vector.load %arg7[%c2, %c0_80, %c0_81] : memref<4x288x128xbf16, #tpu.memory_space<vmem>>, vector<1x288x128xbf16>
    %97 = vector.shape_cast %96 : vector<1x288x128xbf16> to vector<288x128xbf16>
    %cst_82 = arith.constant dense<0.000000e+00> : vector<32x128xf32>
    %98 = tpu.matmul %93, %97, %cst_82 {dimension_numbers = #tpu.dot_dimension_numbers<[1], [0], [0], [1], [0, 0, 1, 1], [], []>} : vector<32x288xbf16>, vector<288x128xbf16>, vector<32x128xf32> -> vector<32x128xf32>
    %c3 = arith.constant 3 : index
    %c0_83 = arith.constant 0 : index
    %c0_84 = arith.constant 0 : index
    %99 = vector.load %arg7[%c3, %c0_83, %c0_84] : memref<4x288x128xbf16, #tpu.memory_space<vmem>>, vector<1x288x128xbf16>
    %100 = vector.shape_cast %99 : vector<1x288x128xbf16> to vector<288x128xbf16>
    %cst_85 = arith.constant dense<0.000000e+00> : vector<32x128xf32>
    %101 = tpu.matmul %95, %100, %cst_85 {dimension_numbers = #tpu.dot_dimension_numbers<[1], [0], [0], [1], [0, 0, 1, 1], [], []>} : vector<32x288xbf16>, vector<288x128xbf16>, vector<32x128xf32> -> vector<32x128xf32>
    %102 = arith.addf %98, %101 : vector<32x128xf32>
    %103 = arith.truncf %102 : vector<32x128xf32> to vector<32x128xbf16>
    %cst_86 = arith.constant dense<0.000000e+00> : vector<8x128xf32>
    %104 = tpu.matmul %71, %103, %cst_86 {dimension_numbers = #tpu.dot_dimension_numbers<[1], [0], [0], [1], [0, 0, 1, 1], [], []>} : vector<8x32xbf16>, vector<32x128xbf16>, vector<8x128xf32> -> vector<8x128xf32>
    %105 = arith.addf %87, %104 : vector<8x128xf32>
    %106 = arith.mulf %102, %102 : vector<32x128xf32>
    %107 = arith.truncf %106 : vector<32x128xf32> to vector<32x128xbf16>
    %cst_87 = arith.constant dense<0.000000e+00> : vector<8x128xf32>
    %108 = tpu.matmul %71, %107, %cst_87 {dimension_numbers = #tpu.dot_dimension_numbers<[1], [0], [0], [1], [0, 0, 1, 1], [], []>} : vector<8x32xbf16>, vector<32x128xbf16>, vector<8x128xf32> -> vector<8x128xf32>
    %109 = arith.addf %91, %108 : vector<8x128xf32>
    %c0_88 = arith.constant 0 : index
    %c0_89 = arith.constant 0 : index
    %110 = vector.load %arg8[%c0_88, %c0_89] : memref<128x16xbf16, #tpu.memory_space<vmem>>, vector<128x16xbf16>
    %111 = arith.truncf %105 : vector<8x128xf32> to vector<8x128xbf16>
    %cst_90 = arith.constant dense<0.000000e+00> : vector<8x16xf32>
    %112 = tpu.matmul %111, %110, %cst_90 {dimension_numbers = #tpu.dot_dimension_numbers<[1], [0], [0], [1], [0, 0, 1, 1], [], []>} : vector<8x128xbf16>, vector<128x16xbf16>, vector<8x16xf32> -> vector<8x16xf32>
    %113 = arith.truncf %109 : vector<8x128xf32> to vector<8x128xbf16>
    %cst_91 = arith.constant dense<0.000000e+00> : vector<8x16xf32>
    %114 = tpu.matmul %113, %110, %cst_91 {dimension_numbers = #tpu.dot_dimension_numbers<[1], [0], [0], [1], [0, 0, 1, 1], [], []>} : vector<8x128xbf16>, vector<128x16xbf16>, vector<8x16xf32> -> vector<8x16xf32>
    %cst_92 = arith.constant 1.562500e-02 : f32
    %115 = vector.broadcast %cst_92 : f32 to vector<8x16xf32>
    %116 = arith.mulf %112, %115 : vector<8x16xf32>
    %cst_93 = arith.constant 1.562500e-02 : f32
    %117 = vector.broadcast %cst_93 : f32 to vector<8x16xf32>
    %118 = arith.mulf %114, %117 : vector<8x16xf32>
    %119 = arith.mulf %116, %116 : vector<8x16xf32>
    %120 = arith.subf %118, %119 : vector<8x16xf32>
    %cst_94 = arith.constant 0.000000e+00 : f32
    %121 = vector.broadcast %cst_94 : f32 to vector<8x16xf32>
    %122 = arith.maximumf %120, %121 : vector<8x16xf32>
    %cst_95 = arith.constant 9.99999974E-6 : f32
    %123 = vector.broadcast %cst_95 : f32 to vector<8x16xf32>
    %124 = arith.addf %122, %123 : vector<8x16xf32>
    %125 = math.rsqrt %124 : vector<8x16xf32>
    %c0_96 = arith.constant 0 : index
    %c0_97 = arith.constant 0 : index
    %126 = vector.load %arg11[%c0_96, %c0_97] : memref<1x16xf32, #tpu.memory_space<vmem>>, vector<1x16xf32>
    %127 = vector.broadcast %126 : vector<1x16xf32> to vector<8x16xf32>
    %128 = arith.mulf %125, %127 : vector<8x16xf32>
    %c0_98 = arith.constant 0 : index
    %c0_99 = arith.constant 0 : index
    %129 = vector.load %arg12[%c0_98, %c0_99] : memref<1x16xf32, #tpu.memory_space<vmem>>, vector<1x16xf32>
    %130 = arith.mulf %116, %128 : vector<8x16xf32>
    %131 = vector.broadcast %129 : vector<1x16xf32> to vector<8x16xf32>
    %132 = arith.subf %131, %130 : vector<8x16xf32>
    %133 = arith.truncf %128 : vector<8x16xf32> to vector<8x16xbf16>
    %c0_100 = arith.constant 0 : index
    %c0_101 = arith.constant 0 : index
    %134 = vector.load %arg9[%c0_100, %c0_101] : memref<16x128xbf16, #tpu.memory_space<vmem>>, vector<16x128xbf16>
    %cst_102 = arith.constant dense<0.000000e+00> : vector<8x128xf32>
    %135 = tpu.matmul %133, %134, %cst_102 {dimension_numbers = #tpu.dot_dimension_numbers<[1], [0], [0], [1], [0, 0, 1, 1], [], []>} : vector<8x16xbf16>, vector<16x128xbf16>, vector<8x128xf32> -> vector<8x128xf32>
    %136 = arith.truncf %132 : vector<8x16xf32> to vector<8x16xbf16>
    %c0_103 = arith.constant 0 : index
    %c0_104 = arith.constant 0 : index
    %137 = vector.load %arg9[%c0_103, %c0_104] : memref<16x128xbf16, #tpu.memory_space<vmem>>, vector<16x128xbf16>
    %cst_105 = arith.constant dense<0.000000e+00> : vector<8x128xf32>
    %138 = tpu.matmul %136, %137, %cst_105 {dimension_numbers = #tpu.dot_dimension_numbers<[1], [0], [0], [1], [0, 0, 1, 1], [], []>} : vector<8x16xbf16>, vector<16x128xbf16>, vector<8x128xf32> -> vector<8x128xf32>
    %139 = vector.extract_strided_slice %84 {offsets = [0, 0], sizes = [8, 128], strides = [1, 1]} : vector<32x128xf32> to vector<8x128xf32>
    %140 = arith.mulf %139, %135 : vector<8x128xf32>
    %141 = arith.addf %140, %138 : vector<8x128xf32>
    %cst_106 = arith.constant 0.000000e+00 : f32
    %142 = vector.broadcast %cst_106 : f32 to vector<8x128xf32>
    %143 = arith.maximumf %141, %142 : vector<8x128xf32>
    %c8_107 = arith.constant 8 : index
    %c128_108 = arith.constant 128 : index
    %144 = vector.load %arg23[%c8_107, %c128_108] : memref<80x272xf32, #tpu.memory_space<vmem>>, vector<8x128xf32>
    tpu.vector_store %arg23[%c8_107, %c128_108], %143 {strides = array<i32>} : memref<80x272xf32, #tpu.memory_space<vmem>>, vector<8x128xf32>,
    %145 = vector.extract_strided_slice %84 {offsets = [8, 0], sizes = [8, 128], strides = [1, 1]} : vector<32x128xf32> to vector<8x128xf32>
    %146 = arith.mulf %145, %135 : vector<8x128xf32>
    %147 = arith.addf %146, %138 : vector<8x128xf32>
    %cst_109 = arith.constant 0.000000e+00 : f32
    %148 = vector.broadcast %cst_109 : f32 to vector<8x128xf32>
    %149 = arith.maximumf %147, %148 : vector<8x128xf32>
    %c24_110 = arith.constant 24 : index
    %c128_111 = arith.constant 128 : index
    %150 = vector.load %arg23[%c24_110, %c128_111] : memref<80x272xf32, #tpu.memory_space<vmem>>, vector<8x128xf32>
    tpu.vector_store %arg23[%c24_110, %c128_111], %149 {strides = array<i32>} : memref<80x272xf32, #tpu.memory_space<vmem>>, vector<8x128xf32>,
    %151 = vector.extract_strided_slice %84 {offsets = [16, 0], sizes = [8, 128], strides = [1, 1]} : vector<32x128xf32> to vector<8x128xf32>
    %152 = arith.mulf %151, %135 : vector<8x128xf32>
    %153 = arith.addf %152, %138 : vector<8x128xf32>
    %cst_112 = arith.constant 0.000000e+00 : f32
    %154 = vector.broadcast %cst_112 : f32 to vector<8x128xf32>
    %155 = arith.maximumf %153, %154 : vector<8x128xf32>
    %c40_113 = arith.constant 40 : index
    %c128_114 = arith.constant 128 : index
    %156 = vector.load %arg23[%c40_113, %c128_114] : memref<80x272xf32, #tpu.memory_space<vmem>>, vector<8x128xf32>
    tpu.vector_store %arg23[%c40_113, %c128_114], %155 {strides = array<i32>} : memref<80x272xf32, #tpu.memory_space<vmem>>, vector<8x128xf32>,
    %157 = vector.extract_strided_slice %84 {offsets = [24, 0], sizes = [8, 128], strides = [1, 1]} : vector<32x128xf32> to vector<8x128xf32>
    %158 = arith.mulf %157, %135 : vector<8x128xf32>
    %159 = arith.addf %158, %138 : vector<8x128xf32>
    %cst_115 = arith.constant 0.000000e+00 : f32
    %160 = vector.broadcast %cst_115 : f32 to vector<8x128xf32>
    %161 = arith.maximumf %159, %160 : vector<8x128xf32>
    %c56 = arith.constant 56 : index
    %c128_116 = arith.constant 128 : index
    %162 = vector.load %arg23[%c56, %c128_116] : memref<80x272xf32, #tpu.memory_space<vmem>>, vector<8x128xf32>
    tpu.vector_store %arg23[%c56, %c128_116], %161 {strides = array<i32>} : memref<80x272xf32, #tpu.memory_space<vmem>>, vector<8x128xf32>,
    %163 = vector.extract_strided_slice %102 {offsets = [0, 0], sizes = [8, 128], strides = [1, 1]} : vector<32x128xf32> to vector<8x128xf32>
    %164 = arith.mulf %163, %135 : vector<8x128xf32>
    %165 = arith.addf %164, %138 : vector<8x128xf32>
    %cst_117 = arith.constant 0.000000e+00 : f32
    %166 = vector.broadcast %cst_117 : f32 to vector<8x128xf32>
    %167 = arith.maximumf %165, %166 : vector<8x128xf32>
    %c16_118 = arith.constant 16 : index
    %c128_119 = arith.constant 128 : index
    %168 = vector.load %arg23[%c16_118, %c128_119] : memref<80x272xf32, #tpu.memory_space<vmem>>, vector<8x128xf32>
    tpu.vector_store %arg23[%c16_118, %c128_119], %167 {strides = array<i32>} : memref<80x272xf32, #tpu.memory_space<vmem>>, vector<8x128xf32>,
    %169 = vector.extract_strided_slice %102 {offsets = [8, 0], sizes = [8, 128], strides = [1, 1]} : vector<32x128xf32> to vector<8x128xf32>
    %170 = arith.mulf %169, %135 : vector<8x128xf32>
    %171 = arith.addf %170, %138 : vector<8x128xf32>
    %cst_120 = arith.constant 0.000000e+00 : f32
    %172 = vector.broadcast %cst_120 : f32 to vector<8x128xf32>
    %173 = arith.maximumf %171, %172 : vector<8x128xf32>
    %c32_121 = arith.constant 32 : index
    %c128_122 = arith.constant 128 : index
    %174 = vector.load %arg23[%c32_121, %c128_122] : memref<80x272xf32, #tpu.memory_space<vmem>>, vector<8x128xf32>
    tpu.vector_store %arg23[%c32_121, %c128_122], %173 {strides = array<i32>} : memref<80x272xf32, #tpu.memory_space<vmem>>, vector<8x128xf32>,
    %175 = vector.extract_strided_slice %102 {offsets = [16, 0], sizes = [8, 128], strides = [1, 1]} : vector<32x128xf32> to vector<8x128xf32>
    %176 = arith.mulf %175, %135 : vector<8x128xf32>
    %177 = arith.addf %176, %138 : vector<8x128xf32>
    %cst_123 = arith.constant 0.000000e+00 : f32
    %178 = vector.broadcast %cst_123 : f32 to vector<8x128xf32>
    %179 = arith.maximumf %177, %178 : vector<8x128xf32>
    %c48 = arith.constant 48 : index
    %c128_124 = arith.constant 128 : index
    %180 = vector.load %arg23[%c48, %c128_124] : memref<80x272xf32, #tpu.memory_space<vmem>>, vector<8x128xf32>
    tpu.vector_store %arg23[%c48, %c128_124], %179 {strides = array<i32>} : memref<80x272xf32, #tpu.memory_space<vmem>>, vector<8x128xf32>,
    %181 = vector.extract_strided_slice %102 {offsets = [24, 0], sizes = [8, 128], strides = [1, 1]} : vector<32x128xf32> to vector<8x128xf32>
    %182 = arith.mulf %181, %135 : vector<8x128xf32>
    %183 = arith.addf %182, %138 : vector<8x128xf32>
    %cst_125 = arith.constant 0.000000e+00 : f32
    %184 = vector.broadcast %cst_125 : f32 to vector<8x128xf32>
    %185 = arith.maximumf %183, %184 : vector<8x128xf32>
    %c64 = arith.constant 64 : index
    %c128_126 = arith.constant 128 : index
    %186 = vector.load %arg23[%c64, %c128_126] : memref<80x272xf32, #tpu.memory_space<vmem>>, vector<8x128xf32>
    tpu.vector_store %arg23[%c64, %c128_126], %185 {strides = array<i32>} : memref<80x272xf32, #tpu.memory_space<vmem>>, vector<8x128xf32>,
    %c0_127 = arith.constant 0 : index
    %c0_128 = arith.constant 0 : index
    %187 = vector.load %arg16[%c0_127, %c0_128] : memref<8x64xbf16, #tpu.memory_space<vmem>>, vector<8x64xbf16>
    %cst_129 = arith.constant 0.000000e+00 : f32
    %188 = vector.broadcast %cst_129 : f32 to vector<8x128xf32>
    %cst_130 = arith.constant 0.000000e+00 : f32
    %189 = vector.broadcast %cst_130 : f32 to vector<8x128xf32>
    %c0_131 = arith.constant 0 : index
    %c0_132 = arith.constant 0 : index
    %190 = vector.load %arg23[%c0_131, %c0_132] : memref<80x272xf32, #tpu.memory_space<vmem>>, vector<64x272xf32>
    %191 = arith.truncf %190 : vector<64x272xf32> to vector<64x272xbf16>
    %c8_133 = arith.constant 8 : index
    %c0_134 = arith.constant 0 : index
    %192 = vector.load %arg23[%c8_133, %c0_134] : memref<80x272xf32, #tpu.memory_space<vmem>>, vector<64x272xf32>
    %193 = arith.truncf %192 : vector<64x272xf32> to vector<64x272xbf16>
    %c0_135 = arith.constant 0 : index
    %c0_136 = arith.constant 0 : index
    %c0_137 = arith.constant 0 : index
    %194 = vector.load %arg13[%c0_135, %c0_136, %c0_137] : memref<4x272x128xbf16, #tpu.memory_space<vmem>>, vector<1x272x128xbf16>
    %195 = vector.shape_cast %194 : vector<1x272x128xbf16> to vector<272x128xbf16>
    %cst_138 = arith.constant dense<0.000000e+00> : vector<64x128xf32>
    %196 = tpu.matmul %191, %195, %cst_138 {dimension_numbers = #tpu.dot_dimension_numbers<[1], [0], [0], [1], [0, 0, 1, 1], [], []>} : vector<64x272xbf16>, vector<272x128xbf16>, vector<64x128xf32> -> vector<64x128xf32>
    %c1_139 = arith.constant 1 : index
    %c0_140 = arith.constant 0 : index
    %c0_141 = arith.constant 0 : index
    %197 = vector.load %arg13[%c1_139, %c0_140, %c0_141] : memref<4x272x128xbf16, #tpu.memory_space<vmem>>, vector<1x272x128xbf16>
    %198 = vector.shape_cast %197 : vector<1x272x128xbf16> to vector<272x128xbf16>
    %cst_142 = arith.constant dense<0.000000e+00> : vector<64x128xf32>
    %199 = tpu.matmul %193, %198, %cst_142 {dimension_numbers = #tpu.dot_dimension_numbers<[1], [0], [0], [1], [0, 0, 1, 1], [], []>} : vector<64x272xbf16>, vector<272x128xbf16>, vector<64x128xf32> -> vector<64x128xf32>
    %200 = arith.addf %196, %199 : vector<64x128xf32>
    %201 = arith.truncf %200 : vector<64x128xf32> to vector<64x128xbf16>
    %cst_143 = arith.constant dense<0.000000e+00> : vector<8x128xf32>
    %202 = tpu.matmul %187, %201, %cst_143 {dimension_numbers = #tpu.dot_dimension_numbers<[1], [0], [0], [1], [0, 0, 1, 1], [], []>} : vector<8x64xbf16>, vector<64x128xbf16>, vector<8x128xf32> -> vector<8x128xf32>
    %203 = arith.addf %188, %202 : vector<8x128xf32>
    %204 = arith.mulf %200, %200 : vector<64x128xf32>
    %205 = arith.truncf %204 : vector<64x128xf32> to vector<64x128xbf16>
    %cst_144 = arith.constant dense<0.000000e+00> : vector<8x128xf32>
    %206 = tpu.matmul %187, %205, %cst_144 {dimension_numbers = #tpu.dot_dimension_numbers<[1], [0], [0], [1], [0, 0, 1, 1], [], []>} : vector<8x64xbf16>, vector<64x128xbf16>, vector<8x128xf32> -> vector<8x128xf32>
    %207 = arith.addf %189, %206 : vector<8x128xf32>
    %c8_145 = arith.constant 8 : index
    %c0_146 = arith.constant 0 : index
    %208 = vector.load %arg23[%c8_145, %c0_146] : memref<80x272xf32, #tpu.memory_space<vmem>>, vector<64x272xf32>
    %209 = arith.truncf %208 : vector<64x272xf32> to vector<64x272xbf16>
    %c16_147 = arith.constant 16 : index
    %c0_148 = arith.constant 0 : index
    %210 = vector.load %arg23[%c16_147, %c0_148] : memref<80x272xf32, #tpu.memory_space<vmem>>, vector<64x272xf32>
    %211 = arith.truncf %210 : vector<64x272xf32> to vector<64x272xbf16>
    %c2_149 = arith.constant 2 : index
    %c0_150 = arith.constant 0 : index
    %c0_151 = arith.constant 0 : index
    %212 = vector.load %arg13[%c2_149, %c0_150, %c0_151] : memref<4x272x128xbf16, #tpu.memory_space<vmem>>, vector<1x272x128xbf16>
    %213 = vector.shape_cast %212 : vector<1x272x128xbf16> to vector<272x128xbf16>
    %cst_152 = arith.constant dense<0.000000e+00> : vector<64x128xf32>
    %214 = tpu.matmul %209, %213, %cst_152 {dimension_numbers = #tpu.dot_dimension_numbers<[1], [0], [0], [1], [0, 0, 1, 1], [], []>} : vector<64x272xbf16>, vector<272x128xbf16>, vector<64x128xf32> -> vector<64x128xf32>
    %c3_153 = arith.constant 3 : index
    %c0_154 = arith.constant 0 : index
    %c0_155 = arith.constant 0 : index
    %215 = vector.load %arg13[%c3_153, %c0_154, %c0_155] : memref<4x272x128xbf16, #tpu.memory_space<vmem>>, vector<1x272x128xbf16>
    %216 = vector.shape_cast %215 : vector<1x272x128xbf16> to vector<272x128xbf16>
    %cst_156 = arith.constant dense<0.000000e+00> : vector<64x128xf32>
    %217 = tpu.matmul %211, %216, %cst_156 {dimension_numbers = #tpu.dot_dimension_numbers<[1], [0], [0], [1], [0, 0, 1, 1], [], []>} : vector<64x272xbf16>, vector<272x128xbf16>, vector<64x128xf32> -> vector<64x128xf32>
    %218 = arith.addf %214, %217 : vector<64x128xf32>
    %219 = arith.truncf %218 : vector<64x128xf32> to vector<64x128xbf16>
    %cst_157 = arith.constant dense<0.000000e+00> : vector<8x128xf32>
    %220 = tpu.matmul %187, %219, %cst_157 {dimension_numbers = #tpu.dot_dimension_numbers<[1], [0], [0], [1], [0, 0, 1, 1], [], []>} : vector<8x64xbf16>, vector<64x128xbf16>, vector<8x128xf32> -> vector<8x128xf32>
    %221 = arith.addf %203, %220 : vector<8x128xf32>
    %222 = arith.mulf %218, %218 : vector<64x128xf32>
    %223 = arith.truncf %222 : vector<64x128xf32> to vector<64x128xbf16>
    %cst_158 = arith.constant dense<0.000000e+00> : vector<8x128xf32>
    %224 = tpu.matmul %187, %223, %cst_158 {dimension_numbers = #tpu.dot_dimension_numbers<[1], [0], [0], [1], [0, 0, 1, 1], [], []>} : vector<8x64xbf16>, vector<64x128xbf16>, vector<8x128xf32> -> vector<8x128xf32>
    %225 = arith.addf %207, %224 : vector<8x128xf32>
    %c0_159 = arith.constant 0 : index
    %c0_160 = arith.constant 0 : index
    %226 = vector.load %arg14[%c0_159, %c0_160] : memref<128x8xbf16, #tpu.memory_space<vmem>>, vector<128x8xbf16>
    %227 = arith.truncf %221 : vector<8x128xf32> to vector<8x128xbf16>
    %cst_161 = arith.constant dense<0.000000e+00> : vector<8x8xf32>
    %228 = tpu.matmul %227, %226, %cst_161 {dimension_numbers = #tpu.dot_dimension_numbers<[1], [0], [0], [1], [0, 0, 1, 1], [], []>} : vector<8x128xbf16>, vector<128x8xbf16>, vector<8x8xf32> -> vector<8x8xf32>
    %229 = arith.truncf %225 : vector<8x128xf32> to vector<8x128xbf16>
    %cst_162 = arith.constant dense<0.000000e+00> : vector<8x8xf32>
    %230 = tpu.matmul %229, %226, %cst_162 {dimension_numbers = #tpu.dot_dimension_numbers<[1], [0], [0], [1], [0, 0, 1, 1], [], []>} : vector<8x128xbf16>, vector<128x8xbf16>, vector<8x8xf32> -> vector<8x8xf32>
    %cst_163 = arith.constant 3.906250e-03 : f32
    %231 = vector.broadcast %cst_163 : f32 to vector<8x8xf32>
    %232 = arith.mulf %228, %231 : vector<8x8xf32>
    %cst_164 = arith.constant 3.906250e-03 : f32
    %233 = vector.broadcast %cst_164 : f32 to vector<8x8xf32>
    %234 = arith.mulf %230, %233 : vector<8x8xf32>
    %235 = arith.mulf %232, %232 : vector<8x8xf32>
    %236 = arith.subf %234, %235 : vector<8x8xf32>
    %cst_165 = arith.constant 0.000000e+00 : f32
    %237 = vector.broadcast %cst_165 : f32 to vector<8x8xf32>
    %238 = arith.maximumf %236, %237 : vector<8x8xf32>
    %cst_166 = arith.constant 9.99999974E-6 : f32
    %239 = vector.broadcast %cst_166 : f32 to vector<8x8xf32>
    %240 = arith.addf %238, %239 : vector<8x8xf32>
    %241 = math.rsqrt %240 : vector<8x8xf32>
    %c0_167 = arith.constant 0 : index
    %c0_168 = arith.constant 0 : index
    %242 = vector.load %arg17[%c0_167, %c0_168] : memref<1x8xf32, #tpu.memory_space<vmem>>, vector<1x8xf32>
    %243 = vector.broadcast %242 : vector<1x8xf32> to vector<8x8xf32>
    %244 = arith.mulf %241, %243 : vector<8x8xf32>
    %c0_169 = arith.constant 0 : index
    %c0_170 = arith.constant 0 : index
    %245 = vector.load %arg18[%c0_169, %c0_170] : memref<1x8xf32, #tpu.memory_space<vmem>>, vector<1x8xf32>
    %246 = arith.mulf %232, %244 : vector<8x8xf32>
    %247 = vector.broadcast %245 : vector<1x8xf32> to vector<8x8xf32>
    %248 = arith.subf %247, %246 : vector<8x8xf32>
    %249 = arith.truncf %244 : vector<8x8xf32> to vector<8x8xbf16>
    %c0_171 = arith.constant 0 : index
    %c0_172 = arith.constant 0 : index
    %250 = vector.load %arg15[%c0_171, %c0_172] : memref<8x128xbf16, #tpu.memory_space<vmem>>, vector<8x128xbf16>
    %cst_173 = arith.constant dense<0.000000e+00> : vector<8x128xf32>
    %251 = tpu.matmul %249, %250, %cst_173 {dimension_numbers = #tpu.dot_dimension_numbers<[1], [0], [0], [1], [0, 0, 1, 1], [], []>} : vector<8x8xbf16>, vector<8x128xbf16>, vector<8x128xf32> -> vector<8x128xf32>
    %252 = arith.truncf %248 : vector<8x8xf32> to vector<8x8xbf16>
    %c0_174 = arith.constant 0 : index
    %c0_175 = arith.constant 0 : index
    %253 = vector.load %arg15[%c0_174, %c0_175] : memref<8x128xbf16, #tpu.memory_space<vmem>>, vector<8x128xbf16>
    %cst_176 = arith.constant dense<0.000000e+00> : vector<8x128xf32>
    %254 = tpu.matmul %252, %253, %cst_176 {dimension_numbers = #tpu.dot_dimension_numbers<[1], [0], [0], [1], [0, 0, 1, 1], [], []>} : vector<8x8xbf16>, vector<8x128xbf16>, vector<8x128xf32> -> vector<8x128xf32>
    %255 = vector.extract_strided_slice %200 {offsets = [0, 0], sizes = [8, 128], strides = [1, 1]} : vector<64x128xf32> to vector<8x128xf32>
    %256 = arith.mulf %255, %251 : vector<8x128xf32>
    %257 = arith.addf %256, %254 : vector<8x128xf32>
    %cst_177 = arith.constant 0.000000e+00 : f32
    %258 = vector.broadcast %cst_177 : f32 to vector<8x128xf32>
    %259 = arith.maximumf %257, %258 : vector<8x128xf32>
    %c8_178 = arith.constant 8 : index
    %c128_179 = arith.constant 128 : index
    %260 = vector.load %arg24[%c8_178, %c128_179] : memref<144x264xf32, #tpu.memory_space<vmem>>, vector<8x128xf32>
    tpu.vector_store %arg24[%c8_178, %c128_179], %259 {strides = array<i32>} : memref<144x264xf32, #tpu.memory_space<vmem>>, vector<8x128xf32>,
    %261 = vector.extract_strided_slice %200 {offsets = [8, 0], sizes = [8, 128], strides = [1, 1]} : vector<64x128xf32> to vector<8x128xf32>
    %262 = arith.mulf %261, %251 : vector<8x128xf32>
    %263 = arith.addf %262, %254 : vector<8x128xf32>
    %cst_180 = arith.constant 0.000000e+00 : f32
    %264 = vector.broadcast %cst_180 : f32 to vector<8x128xf32>
    %265 = arith.maximumf %263, %264 : vector<8x128xf32>
    %c24_181 = arith.constant 24 : index
    %c128_182 = arith.constant 128 : index
    %266 = vector.load %arg24[%c24_181, %c128_182] : memref<144x264xf32, #tpu.memory_space<vmem>>, vector<8x128xf32>
    tpu.vector_store %arg24[%c24_181, %c128_182], %265 {strides = array<i32>} : memref<144x264xf32, #tpu.memory_space<vmem>>, vector<8x128xf32>,
    %267 = vector.extract_strided_slice %200 {offsets = [16, 0], sizes = [8, 128], strides = [1, 1]} : vector<64x128xf32> to vector<8x128xf32>
    %268 = arith.mulf %267, %251 : vector<8x128xf32>
    %269 = arith.addf %268, %254 : vector<8x128xf32>
    %cst_183 = arith.constant 0.000000e+00 : f32
    %270 = vector.broadcast %cst_183 : f32 to vector<8x128xf32>
    %271 = arith.maximumf %269, %270 : vector<8x128xf32>
    %c40_184 = arith.constant 40 : index
    %c128_185 = arith.constant 128 : index
    %272 = vector.load %arg24[%c40_184, %c128_185] : memref<144x264xf32, #tpu.memory_space<vmem>>, vector<8x128xf32>
    tpu.vector_store %arg24[%c40_184, %c128_185], %271 {strides = array<i32>} : memref<144x264xf32, #tpu.memory_space<vmem>>, vector<8x128xf32>,
    %273 = vector.extract_strided_slice %200 {offsets = [24, 0], sizes = [8, 128], strides = [1, 1]} : vector<64x128xf32> to vector<8x128xf32>
    %274 = arith.mulf %273, %251 : vector<8x128xf32>
    %275 = arith.addf %274, %254 : vector<8x128xf32>
    %cst_186 = arith.constant 0.000000e+00 : f32
    %276 = vector.broadcast %cst_186 : f32 to vector<8x128xf32>
    %277 = arith.maximumf %275, %276 : vector<8x128xf32>
    %c56_187 = arith.constant 56 : index
    %c128_188 = arith.constant 128 : index
    %278 = vector.load %arg24[%c56_187, %c128_188] : memref<144x264xf32, #tpu.memory_space<vmem>>, vector<8x128xf32>
    tpu.vector_store %arg24[%c56_187, %c128_188], %277 {strides = array<i32>} : memref<144x264xf32, #tpu.memory_space<vmem>>, vector<8x128xf32>,
    %279 = vector.extract_strided_slice %200 {offsets = [32, 0], sizes = [8, 128], strides = [1, 1]} : vector<64x128xf32> to vector<8x128xf32>
    %280 = arith.mulf %279, %251 : vector<8x128xf32>
    %281 = arith.addf %280, %254 : vector<8x128xf32>
    %cst_189 = arith.constant 0.000000e+00 : f32
    %282 = vector.broadcast %cst_189 : f32 to vector<8x128xf32>
    %283 = arith.maximumf %281, %282 : vector<8x128xf32>
    %c72_190 = arith.constant 72 : index
    %c128_191 = arith.constant 128 : index
    %284 = vector.load %arg24[%c72_190, %c128_191] : memref<144x264xf32, #tpu.memory_space<vmem>>, vector<8x128xf32>
    tpu.vector_store %arg24[%c72_190, %c128_191], %283 {strides = array<i32>} : memref<144x264xf32, #tpu.memory_space<vmem>>, vector<8x128xf32>,
    %285 = vector.extract_strided_slice %200 {offsets = [40, 0], sizes = [8, 128], strides = [1, 1]} : vector<64x128xf32> to vector<8x128xf32>
    %286 = arith.mulf %285, %251 : vector<8x128xf32>
    %287 = arith.addf %286, %254 : vector<8x128xf32>
    %cst_192 = arith.constant 0.000000e+00 : f32
    %288 = vector.broadcast %cst_192 : f32 to vector<8x128xf32>
    %289 = arith.maximumf %287, %288 : vector<8x128xf32>
    %c88 = arith.constant 88 : index
    %c128_193 = arith.constant 128 : index
    %290 = vector.load %arg24[%c88, %c128_193] : memref<144x264xf32, #tpu.memory_space<vmem>>, vector<8x128xf32>
    tpu.vector_store %arg24[%c88, %c128_193], %289 {strides = array<i32>} : memref<144x264xf32, #tpu.memory_space<vmem>>, vector<8x128xf32>,
    %291 = vector.extract_strided_slice %200 {offsets = [48, 0], sizes = [8, 128], strides = [1, 1]} : vector<64x128xf32> to vector<8x128xf32>
    %292 = arith.mulf %291, %251 : vector<8x128xf32>
    %293 = arith.addf %292, %254 : vector<8x128xf32>
    %cst_194 = arith.constant 0.000000e+00 : f32
    %294 = vector.broadcast %cst_194 : f32 to vector<8x128xf32>
    %295 = arith.maximumf %293, %294 : vector<8x128xf32>
    %c104 = arith.constant 104 : index
    %c128_195 = arith.constant 128 : index
    %296 = vector.load %arg24[%c104, %c128_195] : memref<144x264xf32, #tpu.memory_space<vmem>>, vector<8x128xf32>
    tpu.vector_store %arg24[%c104, %c128_195], %295 {strides = array<i32>} : memref<144x264xf32, #tpu.memory_space<vmem>>, vector<8x128xf32>,
    %297 = vector.extract_strided_slice %200 {offsets = [56, 0], sizes = [8, 128], strides = [1, 1]} : vector<64x128xf32> to vector<8x128xf32>
    %298 = arith.mulf %297, %251 : vector<8x128xf32>
    %299 = arith.addf %298, %254 : vector<8x128xf32>
    %cst_196 = arith.constant 0.000000e+00 : f32
    %300 = vector.broadcast %cst_196 : f32 to vector<8x128xf32>
    %301 = arith.maximumf %299, %300 : vector<8x128xf32>
    %c120 = arith.constant 120 : index
    %c128_197 = arith.constant 128 : index
    %302 = vector.load %arg24[%c120, %c128_197] : memref<144x264xf32, #tpu.memory_space<vmem>>, vector<8x128xf32>
    tpu.vector_store %arg24[%c120, %c128_197], %301 {strides = array<i32>} : memref<144x264xf32, #tpu.memory_space<vmem>>, vector<8x128xf32>,
    %303 = vector.extract_strided_slice %218 {offsets = [0, 0], sizes = [8, 128], strides = [1, 1]} : vector<64x128xf32> to vector<8x128xf32>
    %304 = arith.mulf %303, %251 : vector<8x128xf32>
    %305 = arith.addf %304, %254 : vector<8x128xf32>
    %cst_198 = arith.constant 0.000000e+00 : f32
    %306 = vector.broadcast %cst_198 : f32 to vector<8x128xf32>
    %307 = arith.maximumf %305, %306 : vector<8x128xf32>
    %c16_199 = arith.constant 16 : index
    %c128_200 = arith.constant 128 : index
    %308 = vector.load %arg24[%c16_199, %c128_200] : memref<144x264xf32, #tpu.memory_space<vmem>>, vector<8x128xf32>
    tpu.vector_store %arg24[%c16_199, %c128_200], %307 {strides = array<i32>} : memref<144x264xf32, #tpu.memory_space<vmem>>, vector<8x128xf32>,
    %309 = vector.extract_strided_slice %218 {offsets = [8, 0], sizes = [8, 128], strides = [1, 1]} : vector<64x128xf32> to vector<8x128xf32>
    %310 = arith.mulf %309, %251 : vector<8x128xf32>
    %311 = arith.addf %310, %254 : vector<8x128xf32>
    %cst_201 = arith.constant 0.000000e+00 : f32
    %312 = vector.broadcast %cst_201 : f32 to vector<8x128xf32>
    %313 = arith.maximumf %311, %312 : vector<8x128xf32>
    %c32_202 = arith.constant 32 : index
    %c128_203 = arith.constant 128 : index
    %314 = vector.load %arg24[%c32_202, %c128_203] : memref<144x264xf32, #tpu.memory_space<vmem>>, vector<8x128xf32>
    tpu.vector_store %arg24[%c32_202, %c128_203], %313 {strides = array<i32>} : memref<144x264xf32, #tpu.memory_space<vmem>>, vector<8x128xf32>,
    %315 = vector.extract_strided_slice %218 {offsets = [16, 0], sizes = [8, 128], strides = [1, 1]} : vector<64x128xf32> to vector<8x128xf32>
    %316 = arith.mulf %315, %251 : vector<8x128xf32>
    %317 = arith.addf %316, %254 : vector<8x128xf32>
    %cst_204 = arith.constant 0.000000e+00 : f32
    %318 = vector.broadcast %cst_204 : f32 to vector<8x128xf32>
    %319 = arith.maximumf %317, %318 : vector<8x128xf32>
    %c48_205 = arith.constant 48 : index
    %c128_206 = arith.constant 128 : index
    %320 = vector.load %arg24[%c48_205, %c128_206] : memref<144x264xf32, #tpu.memory_space<vmem>>, vector<8x128xf32>
    tpu.vector_store %arg24[%c48_205, %c128_206], %319 {strides = array<i32>} : memref<144x264xf32, #tpu.memory_space<vmem>>, vector<8x128xf32>,
    %321 = vector.extract_strided_slice %218 {offsets = [24, 0], sizes = [8, 128], strides = [1, 1]} : vector<64x128xf32> to vector<8x128xf32>
    %322 = arith.mulf %321, %251 : vector<8x128xf32>
    %323 = arith.addf %322, %254 : vector<8x128xf32>
    %cst_207 = arith.constant 0.000000e+00 : f32
    %324 = vector.broadcast %cst_207 : f32 to vector<8x128xf32>
    %325 = arith.maximumf %323, %324 : vector<8x128xf32>
    %c64_208 = arith.constant 64 : index
    %c128_209 = arith.constant 128 : index
    %326 = vector.load %arg24[%c64_208, %c128_209] : memref<144x264xf32, #tpu.memory_space<vmem>>, vector<8x128xf32>
    tpu.vector_store %arg24[%c64_208, %c128_209], %325 {strides = array<i32>} : memref<144x264xf32, #tpu.memory_space<vmem>>, vector<8x128xf32>,
    %327 = vector.extract_strided_slice %218 {offsets = [32, 0], sizes = [8, 128], strides = [1, 1]} : vector<64x128xf32> to vector<8x128xf32>
    %328 = arith.mulf %327, %251 : vector<8x128xf32>
    %329 = arith.addf %328, %254 : vector<8x128xf32>
    %cst_210 = arith.constant 0.000000e+00 : f32
    %330 = vector.broadcast %cst_210 : f32 to vector<8x128xf32>
    %331 = arith.maximumf %329, %330 : vector<8x128xf32>
    %c80 = arith.constant 80 : index
    %c128_211 = arith.constant 128 : index
    %332 = vector.load %arg24[%c80, %c128_211] : memref<144x264xf32, #tpu.memory_space<vmem>>, vector<8x128xf32>
    tpu.vector_store %arg24[%c80, %c128_211], %331 {strides = array<i32>} : memref<144x264xf32, #tpu.memory_space<vmem>>, vector<8x128xf32>,
    %333 = vector.extract_strided_slice %218 {offsets = [40, 0], sizes = [8, 128], strides = [1, 1]} : vector<64x128xf32> to vector<8x128xf32>
    %334 = arith.mulf %333, %251 : vector<8x128xf32>
    %335 = arith.addf %334, %254 : vector<8x128xf32>
    %cst_212 = arith.constant 0.000000e+00 : f32
    %336 = vector.broadcast %cst_212 : f32 to vector<8x128xf32>
    %337 = arith.maximumf %335, %336 : vector<8x128xf32>
    %c96 = arith.constant 96 : index
    %c128_213 = arith.constant 128 : index
    %338 = vector.load %arg24[%c96, %c128_213] : memref<144x264xf32, #tpu.memory_space<vmem>>, vector<8x128xf32>
    tpu.vector_store %arg24[%c96, %c128_213], %337 {strides = array<i32>} : memref<144x264xf32, #tpu.memory_space<vmem>>, vector<8x128xf32>,
    %339 = vector.extract_strided_slice %218 {offsets = [48, 0], sizes = [8, 128], strides = [1, 1]} : vector<64x128xf32> to vector<8x128xf32>
    %340 = arith.mulf %339, %251 : vector<8x128xf32>
    %341 = arith.addf %340, %254 : vector<8x128xf32>
    %cst_214 = arith.constant 0.000000e+00 : f32
    %342 = vector.broadcast %cst_214 : f32 to vector<8x128xf32>
    %343 = arith.maximumf %341, %342 : vector<8x128xf32>
    %c112 = arith.constant 112 : index
    %c128_215 = arith.constant 128 : index
    %344 = vector.load %arg24[%c112, %c128_215] : memref<144x264xf32, #tpu.memory_space<vmem>>, vector<8x128xf32>
    tpu.vector_store %arg24[%c112, %c128_215], %343 {strides = array<i32>} : memref<144x264xf32, #tpu.memory_space<vmem>>, vector<8x128xf32>,
    %345 = vector.extract_strided_slice %218 {offsets = [56, 0], sizes = [8, 128], strides = [1, 1]} : vector<64x128xf32> to vector<8x128xf32>
    %346 = arith.mulf %345, %251 : vector<8x128xf32>
    %347 = arith.addf %346, %254 : vector<8x128xf32>
    %cst_216 = arith.constant 0.000000e+00 : f32
    %348 = vector.broadcast %cst_216 : f32 to vector<8x128xf32>
    %349 = arith.maximumf %347, %348 : vector<8x128xf32>
    %c128_217 = arith.constant 128 : index
    %c128_218 = arith.constant 128 : index
    %350 = vector.load %arg24[%c128_217, %c128_218] : memref<144x264xf32, #tpu.memory_space<vmem>>, vector<8x128xf32>
    tpu.vector_store %arg24[%c128_217, %c128_218], %349 {strides = array<i32>} : memref<144x264xf32, #tpu.memory_space<vmem>>, vector<8x128xf32>,
    %c0_219 = arith.constant 0 : index
    %c0_220 = arith.constant 0 : index
    %351 = vector.load %arg20[%c0_219, %c0_220] : memref<1x128xf32, #tpu.memory_space<vmem>>, vector<1x128xf32>
    %c0_221 = arith.constant 0 : index
    %c0_222 = arith.constant 0 : index
    %352 = vector.load %arg24[%c0_221, %c0_222] : memref<144x264xf32, #tpu.memory_space<vmem>>, vector<128x264xf32>
    %353 = arith.truncf %352 : vector<128x264xf32> to vector<128x264xbf16>
    %c8_223 = arith.constant 8 : index
    %c0_224 = arith.constant 0 : index
    %354 = vector.load %arg24[%c8_223, %c0_224] : memref<144x264xf32, #tpu.memory_space<vmem>>, vector<128x264xf32>
    %355 = arith.truncf %354 : vector<128x264xf32> to vector<128x264xbf16>
    %c0_225 = arith.constant 0 : index
    %c0_226 = arith.constant 0 : index
    %c0_227 = arith.constant 0 : index
    %356 = vector.load %arg19[%c0_225, %c0_226, %c0_227] : memref<4x264x128xbf16, #tpu.memory_space<vmem>>, vector<1x264x128xbf16>
    %357 = vector.shape_cast %356 : vector<1x264x128xbf16> to vector<264x128xbf16>
    %cst_228 = arith.constant dense<0.000000e+00> : vector<128x128xf32>
    %358 = tpu.matmul %353, %357, %cst_228 {dimension_numbers = #tpu.dot_dimension_numbers<[1], [0], [0], [1], [0, 0, 1, 1], [], []>} : vector<128x264xbf16>, vector<264x128xbf16>, vector<128x128xf32> -> vector<128x128xf32>
    %c1_229 = arith.constant 1 : index
    %c0_230 = arith.constant 0 : index
    %c0_231 = arith.constant 0 : index
    %359 = vector.load %arg19[%c1_229, %c0_230, %c0_231] : memref<4x264x128xbf16, #tpu.memory_space<vmem>>, vector<1x264x128xbf16>
    %360 = vector.shape_cast %359 : vector<1x264x128xbf16> to vector<264x128xbf16>
    %cst_232 = arith.constant dense<0.000000e+00> : vector<128x128xf32>
    %361 = tpu.matmul %355, %360, %cst_232 {dimension_numbers = #tpu.dot_dimension_numbers<[1], [0], [0], [1], [0, 0, 1, 1], [], []>} : vector<128x264xbf16>, vector<264x128xbf16>, vector<128x128xf32> -> vector<128x128xf32>
    %362 = arith.addf %358, %361 : vector<128x128xf32>
    %363 = vector.broadcast %351 : vector<1x128xf32> to vector<128x128xf32>
    %364 = arith.addf %362, %363 : vector<128x128xf32>
    %365 = math.tanh %364 : vector<128x128xf32>
    %c0_233 = arith.constant 0 : index
    %c0_234 = arith.constant 0 : index
    %c0_235 = arith.constant 0 : index
    %366 = vector.load %arg21[%c0_233, %c0_234, %c0_235] : memref<1x256x128xf32, #tpu.memory_space<vmem>>, vector<1x128x128xf32>
    %367 = vector.shape_cast %366 : vector<1x128x128xf32> to vector<128x128xf32>
    %368 = vector.shape_cast %365 : vector<128x128xf32> to vector<1x128x128xf32>
    tpu.vector_store %arg21[%c0_233, %c0_234, %c0_235], %368 {strides = array<i32>} : memref<1x256x128xf32, #tpu.memory_space<vmem>>, vector<1x128x128xf32>,
    %c8_236 = arith.constant 8 : index
    %c0_237 = arith.constant 0 : index
    %369 = vector.load %arg24[%c8_236, %c0_237] : memref<144x264xf32, #tpu.memory_space<vmem>>, vector<128x264xf32>
    %370 = arith.truncf %369 : vector<128x264xf32> to vector<128x264xbf16>
    %c16_238 = arith.constant 16 : index
    %c0_239 = arith.constant 0 : index
    %371 = vector.load %arg24[%c16_238, %c0_239] : memref<144x264xf32, #tpu.memory_space<vmem>>, vector<128x264xf32>
    %372 = arith.truncf %371 : vector<128x264xf32> to vector<128x264xbf16>
    %c2_240 = arith.constant 2 : index
    %c0_241 = arith.constant 0 : index
    %c0_242 = arith.constant 0 : index
    %373 = vector.load %arg19[%c2_240, %c0_241, %c0_242] : memref<4x264x128xbf16, #tpu.memory_space<vmem>>, vector<1x264x128xbf16>
    %374 = vector.shape_cast %373 : vector<1x264x128xbf16> to vector<264x128xbf16>
    %cst_243 = arith.constant dense<0.000000e+00> : vector<128x128xf32>
    %375 = tpu.matmul %370, %374, %cst_243 {dimension_numbers = #tpu.dot_dimension_numbers<[1], [0], [0], [1], [0, 0, 1, 1], [], []>} : vector<128x264xbf16>, vector<264x128xbf16>, vector<128x128xf32> -> vector<128x128xf32>
    %c3_244 = arith.constant 3 : index
    %c0_245 = arith.constant 0 : index
    %c0_246 = arith.constant 0 : index
    %376 = vector.load %arg19[%c3_244, %c0_245, %c0_246] : memref<4x264x128xbf16, #tpu.memory_space<vmem>>, vector<1x264x128xbf16>
    %377 = vector.shape_cast %376 : vector<1x264x128xbf16> to vector<264x128xbf16>
    %cst_247 = arith.constant dense<0.000000e+00> : vector<128x128xf32>
    %378 = tpu.matmul %372, %377, %cst_247 {dimension_numbers = #tpu.dot_dimension_numbers<[1], [0], [0], [1], [0, 0, 1, 1], [], []>} : vector<128x264xbf16>, vector<264x128xbf16>, vector<128x128xf32> -> vector<128x128xf32>
    %379 = arith.addf %375, %378 : vector<128x128xf32>
    %380 = vector.broadcast %351 : vector<1x128xf32> to vector<128x128xf32>
    %381 = arith.addf %379, %380 : vector<128x128xf32>
    %382 = math.tanh %381 : vector<128x128xf32>
    %c0_248 = arith.constant 0 : index
    %c128_249 = arith.constant 128 : index
    %c0_250 = arith.constant 0 : index
    %383 = vector.load %arg21[%c0_248, %c128_249, %c0_250] : memref<1x256x128xf32, #tpu.memory_space<vmem>>, vector<1x128x128xf32>
    %384 = vector.shape_cast %383 : vector<1x128x128xf32> to vector<128x128xf32>
    %385 = vector.shape_cast %382 : vector<128x128xf32> to vector<1x128x128xf32>
    tpu.vector_store %arg21[%c0_248, %c128_249, %c0_250], %385 {strides = array<i32>} : memref<1x256x128xf32, #tpu.memory_space<vmem>>, vector<1x128x128xf32>,
    return
  }
  func.func @transform_0(%arg0: i32) -> (i32, i32) {
    %c0_i32 = arith.constant 0 : i32
    %c0_i32_0 = arith.constant 0 : i32
    return %arg0, %c0_i32 : i32, i32
  }
  func.func @transform_1(%arg0: i32) -> (i32, i32) {
    %c0_i32 = arith.constant 0 : i32
    %c0_i32_0 = arith.constant 0 : i32
    %c0_i32_1 = arith.constant 0 : i32
    return %c0_i32, %c0_i32_0 : i32, i32
  }
  func.func @transform_2(%arg0: i32) -> (i32, i32) {
    %c0_i32 = arith.constant 0 : i32
    %c0_i32_0 = arith.constant 0 : i32
    %c0_i32_1 = arith.constant 0 : i32
    return %c0_i32, %c0_i32_0 : i32, i32
  }
  func.func @transform_3(%arg0: i32) -> (i32, i32) {
    %c0_i32 = arith.constant 0 : i32
    %c0_i32_0 = arith.constant 0 : i32
    %c0_i32_1 = arith.constant 0 : i32
    return %c0_i32, %c0_i32_0 : i32, i32
  }
  func.func @transform_4(%arg0: i32) -> (i32, i32) {
    %c0_i32 = arith.constant 0 : i32
    %c0_i32_0 = arith.constant 0 : i32
    %c0_i32_1 = arith.constant 0 : i32
    return %c0_i32, %c0_i32_0 : i32, i32
  }
  func.func @transform_5(%arg0: i32) -> (i32, i32) {
    %c0_i32 = arith.constant 0 : i32
    %c0_i32_0 = arith.constant 0 : i32
    %c0_i32_1 = arith.constant 0 : i32
    return %c0_i32, %c0_i32_0 : i32, i32
  }
  func.func @transform_6(%arg0: i32) -> (i32, i32, i32) {
    %c0_i32 = arith.constant 0 : i32
    %c0_i32_0 = arith.constant 0 : i32
    %c0_i32_1 = arith.constant 0 : i32
    %c0_i32_2 = arith.constant 0 : i32
    return %c0_i32, %c0_i32_0, %c0_i32_1 : i32, i32, i32
  }
  func.func @transform_7(%arg0: i32) -> (i32, i32) {
    %c0_i32 = arith.constant 0 : i32
    %c0_i32_0 = arith.constant 0 : i32
    %c0_i32_1 = arith.constant 0 : i32
    return %c0_i32, %c0_i32_0 : i32, i32
  }
  func.func @transform_8(%arg0: i32) -> (i32, i32) {
    %c0_i32 = arith.constant 0 : i32
    %c0_i32_0 = arith.constant 0 : i32
    %c0_i32_1 = arith.constant 0 : i32
    return %c0_i32, %c0_i32_0 : i32, i32
  }
  func.func @transform_9(%arg0: i32) -> (i32, i32) {
    %c0_i32 = arith.constant 0 : i32
    %c0_i32_0 = arith.constant 0 : i32
    %c0_i32_1 = arith.constant 0 : i32
    return %c0_i32, %c0_i32_0 : i32, i32
  }
  func.func @transform_10(%arg0: i32) -> (i32, i32) {
    %c0_i32 = arith.constant 0 : i32
    %c0_i32_0 = arith.constant 0 : i32
    %c0_i32_1 = arith.constant 0 : i32
    return %c0_i32, %c0_i32_0 : i32, i32
  }
  func.func @transform_11(%arg0: i32) -> (i32, i32) {
    %c0_i32 = arith.constant 0 : i32
    %c0_i32_0 = arith.constant 0 : i32
    %c0_i32_1 = arith.constant 0 : i32
    return %c0_i32, %c0_i32_0 : i32, i32
  }
  func.func @transform_12(%arg0: i32) -> (i32, i32, i32) {
    %c0_i32 = arith.constant 0 : i32
    %c0_i32_0 = arith.constant 0 : i32
    %c0_i32_1 = arith.constant 0 : i32
    %c0_i32_2 = arith.constant 0 : i32
    return %c0_i32, %c0_i32_0, %c0_i32_1 : i32, i32, i32
  }
  func.func @transform_13(%arg0: i32) -> (i32, i32) {
    %c0_i32 = arith.constant 0 : i32
    %c0_i32_0 = arith.constant 0 : i32
    %c0_i32_1 = arith.constant 0 : i32
    return %c0_i32, %c0_i32_0 : i32, i32
  }
  func.func @transform_14(%arg0: i32) -> (i32, i32) {
    %c0_i32 = arith.constant 0 : i32
    %c0_i32_0 = arith.constant 0 : i32
    %c0_i32_1 = arith.constant 0 : i32
    return %c0_i32, %c0_i32_0 : i32, i32
  }
  func.func @transform_15(%arg0: i32) -> (i32, i32) {
    %c0_i32 = arith.constant 0 : i32
    %c0_i32_0 = arith.constant 0 : i32
    %c0_i32_1 = arith.constant 0 : i32
    return %c0_i32, %c0_i32_0 : i32, i32
  }
  func.func @transform_16(%arg0: i32) -> (i32, i32) {
    %c0_i32 = arith.constant 0 : i32
    %c0_i32_0 = arith.constant 0 : i32
    %c0_i32_1 = arith.constant 0 : i32
    return %c0_i32, %c0_i32_0 : i32, i32
  }
  func.func @transform_17(%arg0: i32) -> (i32, i32) {
    %c0_i32 = arith.constant 0 : i32
    %c0_i32_0 = arith.constant 0 : i32
    %c0_i32_1 = arith.constant 0 : i32
    return %c0_i32, %c0_i32_0 : i32, i32
  }
  func.func @transform_18(%arg0: i32) -> (i32, i32, i32) {
    %c0_i32 = arith.constant 0 : i32
    %c0_i32_0 = arith.constant 0 : i32
    %c0_i32_1 = arith.constant 0 : i32
    %c0_i32_2 = arith.constant 0 : i32
    return %c0_i32, %c0_i32_0, %c0_i32_1 : i32, i32, i32
  }
  func.func @transform_19(%arg0: i32) -> (i32, i32) {
    %c0_i32 = arith.constant 0 : i32
    %c0_i32_0 = arith.constant 0 : i32
    %c0_i32_1 = arith.constant 0 : i32
    return %c0_i32, %c0_i32_0 : i32, i32
  }
  func.func @transform_20(%arg0: i32) -> (i32, i32, i32) {
    %c0_i32 = arith.constant 0 : i32
    %c0_i32_0 = arith.constant 0 : i32
    %c0_i32_1 = arith.constant 0 : i32
    return %arg0, %c0_i32, %c0_i32_0 : i32, i32, i32
  }
}

</mosaic_0001>

<llo_original>
// kernel: decoder_forward.1
$region0: #{decoder_forward.1}
  #allocation0 [shape = 'u32[]', space=smem, size = 0x4, offset = 0x4, fixed_abs, tag = 'smem constant byte address 0x4 - core index']
  #allocation1 [shape = 'u32[144,128]{1,0:T(1,128)}', space=vmem, size = 0x12000, scoped, tag = 'internal scratch']
  #allocation2 [shape = 'f32[48,288]{1,0:T(8,128)}', space=vmem, size = 0x12000, scoped, tag = 'scratch operand']
  #allocation3 [shape = 'f32[80,272]{1,0:T(8,128)}', space=vmem, size = 0x1e000, scoped, tag = 'scratch operand']
  #allocation4 [shape = 'f32[144,264]{1,0:T(8,128)}', space=vmem, size = 0x36000, scoped, tag = 'scratch operand']
  %s0 = inlined_call_operand.vmem [shape: f32[8,16], index: 0, kind: input, shape index: {}]
  %s1 = inlined_call_operand.vmem [shape: bf16[16,512], index: 1, kind: input, shape index: {}]
  %s2 = inlined_call_operand.vmem [shape: bf16[512,32], index: 2, kind: input, shape index: {}]
  %s3 = inlined_call_operand.vmem [shape: bf16[32,512], index: 3, kind: input, shape index: {}]
  %s4 = inlined_call_operand.vmem [shape: f32[1,32], index: 4, kind: input, shape index: {}]
  %s5 = inlined_call_operand.vmem [shape: f32[1,32], index: 5, kind: input, shape index: {}]
  %s6 = inlined_call_operand.vmem [shape: bf16[4,288,128], index: 6, kind: input, shape index: {}]
  %s7 = inlined_call_operand.vmem [shape: bf16[128,16], index: 7, kind: input, shape index: {}]
  %s8 = inlined_call_operand.vmem [shape: bf16[16,128], index: 8, kind: input, shape index: {}]
  %s9 = inlined_call_operand.vmem [shape: bf16[8,32], index: 9, kind: input, shape index: {}]
  %s10 = inlined_call_operand.vmem [shape: f32[1,16], index: 10, kind: input, shape index: {}]
  %s11 = inlined_call_operand.vmem [shape: f32[1,16], index: 11, kind: input, shape index: {}]
  %s12 = inlined_call_operand.vmem [shape: bf16[4,272,128], index: 12, kind: input, shape index: {}]
  %s13 = inlined_call_operand.vmem [shape: bf16[128,8], index: 13, kind: input, shape index: {}]
  %s14 = inlined_call_operand.vmem [shape: bf16[8,128], index: 14, kind: input, shape index: {}]
  %s15 = inlined_call_operand.vmem [shape: bf16[8,64], index: 15, kind: input, shape index: {}]
  %s16 = inlined_call_operand.vmem [shape: f32[1,8], index: 16, kind: input, shape index: {}]
  %s17 = inlined_call_operand.vmem [shape: f32[1,8], index: 17, kind: input, shape index: {}]
  %s18 = inlined_call_operand.vmem [shape: bf16[4,264,128], index: 18, kind: input, shape index: {}]
  %s19 = inlined_call_operand.vmem [shape: f32[1,128], index: 19, kind: input, shape index: {}]
  %s20 = inlined_call_operand.vmem [shape: f32[1,256,128], index: 20, kind: output, shape index: {}]
  %s21 = sld [smem:[#allocation0]]
  $region90: #{decoder_forward.1} parent=0
    _
  %s23 = ssub.s32 1, %s21
  %s24 = scalar_select 0, %s23, %s21
  // Predicated region
  $region2: #{decoder_forward.1} parent=0 // pred_check
    _
  $region3: #{decoder_forward.1} parent=0 // pred_check_branch
    %26 = sbr.rel (0) target = $region5
  $region4: #{decoder_forward.1} parent=0 // pred_region
    _
  $region5: #{decoder_forward.1} parent=0 // pred_fallthru
    _
  // Predicated region
  $region6: #{decoder_forward.1} parent=0 // pred_check
    _
  $region7: #{decoder_forward.1} parent=0 // pred_check_branch
    %28 = sbr.rel (0) target = $region9
  $region8: #{decoder_forward.1} parent=0 // pred_region
    _
  $region9: #{decoder_forward.1} parent=0 // pred_fallthru
    _
  // Predicated region
  $region10: #{decoder_forward.1} parent=0 // pred_check
    _
  $region11: #{decoder_forward.1} parent=0 // pred_check_branch
    %30 = sbr.rel (0) target = $region13
  $region12: #{decoder_forward.1} parent=0 // pred_region
    _
  $region13: #{decoder_forward.1} parent=0 // pred_fallthru
    _
  // Predicated region
  $region14: #{decoder_forward.1} parent=0 // pred_check
    _
  $region15: #{decoder_forward.1} parent=0 // pred_check_branch
    %32 = sbr.rel (0) target = $region17
  $region16: #{decoder_forward.1} parent=0 // pred_region
    _
  $region17: #{decoder_forward.1} parent=0 // pred_fallthru
    _
  // Predicated region
  $region18: #{decoder_forward.1} parent=0 // pred_check
    _
  $region19: #{decoder_forward.1} parent=0 // pred_check_branch
    %34 = sbr.rel (0) target = $region21
  $region20: #{decoder_forward.1} parent=0 // pred_region
    _
  $region21: #{decoder_forward.1} parent=0 // pred_fallthru
    _
  // Predicated region
  $region22: #{decoder_forward.1} parent=0 // pred_check
    _
  $region23: #{decoder_forward.1} parent=0 // pred_check_branch
    %36 = sbr.rel (0) target = $region25
  $region24: #{decoder_forward.1} parent=0 // pred_region
    _
  $region25: #{decoder_forward.1} parent=0 // pred_fallthru
    _
  // Predicated region
  $region26: #{decoder_forward.1} parent=0 // pred_check
    _
  $region27: #{decoder_forward.1} parent=0 // pred_check_branch
    %38 = sbr.rel (0) target = $region29
  $region28: #{decoder_forward.1} parent=0 // pred_region
    _
  $region29: #{decoder_forward.1} parent=0 // pred_fallthru
    _
  // Predicated region
  $region30: #{decoder_forward.1} parent=0 // pred_check
    _
  $region31: #{decoder_forward.1} parent=0 // pred_check_branch
    %40 = sbr.rel (0) target = $region33
  $region32: #{decoder_forward.1} parent=0 // pred_region
    _
  $region33: #{decoder_forward.1} parent=0 // pred_fallthru
    _
  // Predicated region
  $region34: #{decoder_forward.1} parent=0 // pred_check
    _
  $region35: #{decoder_forward.1} parent=0 // pred_check_branch
    %42 = sbr.rel (0) target = $region37
  $region36: #{decoder_forward.1} parent=0 // pred_region
    _
  $region37: #{decoder_forward.1} parent=0 // pred_fallthru
    _
  // Predicated region
  $region38: #{decoder_forward.1} parent=0 // pred_check
    _
  $region39: #{decoder_forward.1} parent=0 // pred_check_branch
    %44 = sbr.rel (0) target = $region41
  $region40: #{decoder_forward.1} parent=0 // pred_region
    _
  $region41: #{decoder_forward.1} parent=0 // pred_fallthru
    _
  // Predicated region
  $region42: #{decoder_forward.1} parent=0 // pred_check
    _
  $region43: #{decoder_forward.1} parent=0 // pred_check_branch
    %46 = sbr.rel (0) target = $region45
  $region44: #{decoder_forward.1} parent=0 // pred_region
    _
  $region45: #{decoder_forward.1} parent=0 // pred_fallthru
    _
  // Predicated region
  $region46: #{decoder_forward.1} parent=0 // pred_check
    _
  $region47: #{decoder_forward.1} parent=0 // pred_check_branch
    %48 = sbr.rel (0) target = $region49
  $region48: #{decoder_forward.1} parent=0 // pred_region
    _
  $region49: #{decoder_forward.1} parent=0 // pred_fallthru
    _
  // Predicated region
  $region50: #{decoder_forward.1} parent=0 // pred_check
    _
  $region51: #{decoder_forward.1} parent=0 // pred_check_branch
    %50 = sbr.rel (0) target = $region53
  $region52: #{decoder_forward.1} parent=0 // pred_region
    _
  $region53: #{decoder_forward.1} parent=0 // pred_fallthru
    _
  // Predicated region
  $region54: #{decoder_forward.1} parent=0 // pred_check
    _
  $region55: #{decoder_forward.1} parent=0 // pred_check_branch
    %52 = sbr.rel (0) target = $region57
  $region56: #{decoder_forward.1} parent=0 // pred_region
    _
  $region57: #{decoder_forward.1} parent=0 // pred_fallthru
    _
  // Predicated region
  $region58: #{decoder_forward.1} parent=0 // pred_check
    _
  $region59: #{decoder_forward.1} parent=0 // pred_check_branch
    %54 = sbr.rel (0) target = $region61
  $region60: #{decoder_forward.1} parent=0 // pred_region
    _
  $region61: #{decoder_forward.1} parent=0 // pred_fallthru
    _
  // Predicated region
  $region62: #{decoder_forward.1} parent=0 // pred_check
    _
  $region63: #{decoder_forward.1} parent=0 // pred_check_branch
    %56 = sbr.rel (0) target = $region65
  $region64: #{decoder_forward.1} parent=0 // pred_region
    _
  $region65: #{decoder_forward.1} parent=0 // pred_fallthru
    _
  // Predicated region
  $region66: #{decoder_forward.1} parent=0 // pred_check
    _
  $region67: #{decoder_forward.1} parent=0 // pred_check_branch
    %58 = sbr.rel (0) target = $region69
  $region68: #{decoder_forward.1} parent=0 // pred_region
    _
  $region69: #{decoder_forward.1} parent=0 // pred_fallthru
    _
  // Predicated region
  $region70: #{decoder_forward.1} parent=0 // pred_check
    _
  $region71: #{decoder_forward.1} parent=0 // pred_check_branch
    %60 = sbr.rel (0) target = $region73
  $region72: #{decoder_forward.1} parent=0 // pred_region
    _
  $region73: #{decoder_forward.1} parent=0 // pred_fallthru
    _
  // Predicated region
  $region74: #{decoder_forward.1} parent=0 // pred_check
    _
  $region75: #{decoder_forward.1} parent=0 // pred_check_branch
    %62 = sbr.rel (0) target = $region77
  $region76: #{decoder_forward.1} parent=0 // pred_region
    _
  $region77: #{decoder_forward.1} parent=0 // pred_fallthru
    _
  // Predicated region
  $region78: #{decoder_forward.1} parent=0 // pred_check
    _
  $region79: #{decoder_forward.1} parent=0 // pred_check_branch
    %64 = sbr.rel (0) target = $region81
  $region80: #{decoder_forward.1} parent=0 // pred_region
    _
  $region81: #{decoder_forward.1} parent=0 // pred_fallthru
    _
  %66 = vst [vmem:[#allocation2] sm:$0xff] 0.0
  %67 = vst [vmem:[#allocation2 + $0x8] sm:$0xff] 0.0
  %vm68 = vcmask 261120
  %69 = vst.msk [vmem:[#allocation2 + $0x10] sm:$0xff] %vm68, 0.0
  %70 = vst [vmem:[#allocation2 + $0x78] sm:$0xff] 0.0
  %71 = vst [vmem:[#allocation2 + $0x80] sm:$0xff] 0.0
  %72 = vst.msk [vmem:[#allocation2 + $0x88] sm:$0xff] %vm68, 0.0
  %73 = vst [vmem:[#allocation2] sm:$0xff] 0.0
  %74 = vst [vmem:[#allocation2 + $0x18] sm:$0xff] 0.0
  %75 = vst [vmem:[#allocation2 + $0x30] sm:$0xff] 0.0
  %76 = vst [vmem:[#allocation2 + $0x48] sm:$0xff] 0.0
  %77 = vst [vmem:[#allocation2 + $0x60] sm:$0xff] 0.0
  %78 = vst [vmem:[#allocation2 + $0x78] sm:$0xff] 0.0
  %79 = vst.msk [vmem:[#allocation2 + $0x10] sm:$0xff] %vm68, 0.0
  %80 = vst.msk [vmem:[#allocation2 + $0x28] sm:$0xff] %vm68, 0.0
  %81 = vst.msk [vmem:[#allocation2 + $0x40] sm:$0xff] %vm68, 0.0
  %82 = vst.msk [vmem:[#allocation2 + $0x58] sm:$0xff] %vm68, 0.0
  %83 = vst.msk [vmem:[#allocation2 + $0x70] sm:$0xff] %vm68, 0.0
  %84 = vst.msk [vmem:[#allocation2 + $0x88] sm:$0xff] %vm68, 0.0
  %85 = vst [vmem:[#allocation3] sm:$0xff] 0.0
  %86 = vst [vmem:[#allocation3 + $0x8] sm:$0xff] 0.0
  %vm87 = vcmask 130048
  %88 = vst.msk [vmem:[#allocation3 + $0x10] sm:$0xff] %vm87, 0.0
  %89 = vst [vmem:[#allocation3 + $0xd8] sm:$0xff] 0.0
  %90 = vst [vmem:[#allocation3 + $0xe0] sm:$0xff] 0.0
  %91 = vst.msk [vmem:[#allocation3 + $0xe8] sm:$0xff] %vm87, 0.0
  %92 = vst [vmem:[#allocation3] sm:$0xff] 0.0
  %93 = vst [vmem:[#allocation3 + $0x18] sm:$0xff] 0.0
  %94 = vst [vmem:[#allocation3 + $0x30] sm:$0xff] 0.0
  %95 = vst [vmem:[#allocation3 + $0x48] sm:$0xff] 0.0
  %96 = vst [vmem:[#allocation3 + $0x60] sm:$0xff] 0.0
  %97 = vst [vmem:[#allocation3 + $0x78] sm:$0xff] 0.0
  %98 = vst [vmem:[#allocation3 + $0x90] sm:$0xff] 0.0
  %99 = vst [vmem:[#allocation3 + $0xa8] sm:$0xff] 0.0
  %100 = vst [vmem:[#allocation3 + $0xc0] sm:$0xff] 0.0
  %101 = vst [vmem:[#allocation3 + $0xd8] sm:$0xff] 0.0
  %102 = vst.msk [vmem:[#allocation3 + $0x10] sm:$0xff] %vm87, 0.0
  %103 = vst.msk [vmem:[#allocation3 + $0x28] sm:$0xff] %vm87, 0.0
  %104 = vst.msk [vmem:[#allocation3 + $0x40] sm:$0xff] %vm87, 0.0
  %105 = vst.msk [vmem:[#allocation3 + $0x58] sm:$0xff] %vm87, 0.0
  %106 = vst.msk [vmem:[#allocation3 + $0x70] sm:$0xff] %vm87, 0.0
  %107 = vst.msk [vmem:[#allocation3 + $0x88] sm:$0xff] %vm87, 0.0
  %108 = vst.msk [vmem:[#allocation3 + $0xa0] sm:$0xff] %vm87, 0.0
  %109 = vst.msk [vmem:[#allocation3 + $0xb8] sm:$0xff] %vm87, 0.0
  %110 = vst.msk [vmem:[#allocation3 + $0xd0] sm:$0xff] %vm87, 0.0
  %111 = vst.msk [vmem:[#allocation3 + $0xe8] sm:$0xff] %vm87, 0.0
  %112 = vst [vmem:[#allocation4] sm:$0xff] 0.0
  %113 = vst [vmem:[#allocation4 + $0x8] sm:$0xff] 0.0
  %vm114 = vcmask 64512
  %115 = vst.msk [vmem:[#allocation4 + $0x10] sm:$0xff] %vm114, 0.0
  %116 = vst [vmem:[#allocation4 + $0x198] sm:$0xff] 0.0
  %117 = vst [vmem:[#allocation4 + $0x1a0] sm:$0xff] 0.0
  %118 = vst.msk [vmem:[#allocation4 + $0x1a8] sm:$0xff] %vm114, 0.0
  %119 = vst [vmem:[#allocation4] sm:$0xff] 0.0
  %120 = vst [vmem:[#allocation4 + $0x18] sm:$0xff] 0.0
  %121 = vst [vmem:[#allocation4 + $0x30] sm:$0xff] 0.0
  %122 = vst [vmem:[#allocation4 + $0x48] sm:$0xff] 0.0
  %123 = vst [vmem:[#allocation4 + $0x60] sm:$0xff] 0.0
  %124 = vst [vmem:[#allocation4 + $0x78] sm:$0xff] 0.0
  %125 = vst [vmem:[#allocation4 + $0x90] sm:$0xff] 0.0
  %126 = vst [vmem:[#allocation4 + $0xa8] sm:$0xff] 0.0
  %127 = vst [vmem:[#allocation4 + $0xc0] sm:$0xff] 0.0
  %128 = vst [vmem:[#allocation4 + $0xd8] sm:$0xff] 0.0
  %129 = vst [vmem:[#allocation4 + $0xf0] sm:$0xff] 0.0
  %130 = vst [vmem:[#allocation4 + $0x108] sm:$0xff] 0.0
  %131 = vst [vmem:[#allocation4 + $0x120] sm:$0xff] 0.0
  %132 = vst [vmem:[#allocation4 + $0x138] sm:$0xff] 0.0
  %133 = vst [vmem:[#allocation4 + $0x150] sm:$0xff] 0.0
  %134 = vst [vmem:[#allocation4 + $0x168] sm:$0xff] 0.0
  %135 = vst [vmem:[#allocation4 + $0x180] sm:$0xff] 0.0
  %136 = vst [vmem:[#allocation4 + $0x198] sm:$0xff] 0.0
  %137 = vst.msk [vmem:[#allocation4 + $0x10] sm:$0xff] %vm114, 0.0
  %138 = vst.msk [vmem:[#allocation4 + $0x28] sm:$0xff] %vm114, 0.0
  %139 = vst.msk [vmem:[#allocation4 + $0x40] sm:$0xff] %vm114, 0.0
  %140 = vst.msk [vmem:[#allocation4 + $0x58] sm:$0xff] %vm114, 0.0
  %141 = vst.msk [vmem:[#allocation4 + $0x70] sm:$0xff] %vm114, 0.0
  %142 = vst.msk [vmem:[#allocation4 + $0x88] sm:$0xff] %vm114, 0.0
  %143 = vst.msk [vmem:[#allocation4 + $0xa0] sm:$0xff] %vm114, 0.0
  %144 = vst.msk [vmem:[#allocation4 + $0xb8] sm:$0xff] %vm114, 0.0
  %145 = vst.msk [vmem:[#allocation4 + $0xd0] sm:$0xff] %vm114, 0.0
  %146 = vst.msk [vmem:[#allocation4 + $0xe8] sm:$0xff] %vm114, 0.0
  %147 = vst.msk [vmem:[#allocation4 + $0x100] sm:$0xff] %vm114, 0.0
  %148 = vst.msk [vmem:[#allocation4 + $0x118] sm:$0xff] %vm114, 0.0
  %149 = vst.msk [vmem:[#allocation4 + $0x130] sm:$0xff] %vm114, 0.0
  %150 = vst.msk [vmem:[#allocation4 + $0x148] sm:$0xff] %vm114, 0.0
  %151 = vst.msk [vmem:[#allocation4 + $0x160] sm:$0xff] %vm114, 0.0
  %152 = vst.msk [vmem:[#allocation4 + $0x178] sm:$0xff] %vm114, 0.0
  %153 = vst.msk [vmem:[#allocation4 + $0x190] sm:$0xff] %vm114, 0.0
  %154 = vst.msk [vmem:[#allocation4 + $0x1a8] sm:$0xff] %vm114, 0.0
  %v155 = vld [vmem:[%s0] sm:$0xff]
  %v156 = vpack.c.bf16 %v155, %v155
  %v157 = vld [vmem:[%s1] sm:$0xff]
  %v158 = vld [vmem:[%s1 + $0x8] sm:$0xff]
  %v159 = vld [vmem:[%s1 + $0x10] sm:$0xff]
  %v160 = vld [vmem:[%s1 + $0x18] sm:$0xff]
  %v165 = vunpack.c.l.b16 %v157
  %v166 = vunpack.c.h.b16 %v157
  %v167 = vunpack.c.l.b16 %v158
  %v168 = vunpack.c.h.b16 %v158
  %v169 = vunpack.c.l.b16 %v159
  %v170 = vunpack.c.h.b16 %v159
  %v171 = vunpack.c.l.b16 %v160
  %v172 = vunpack.c.h.b16 %v160
  %v173 = vpack.c.b16 %v169, %v165
  %v174 = vpack.c.b16 %v170, %v166
  %v175 = vpack.c.b16 %v171, %v167
  %v176 = vpack.c.b16 %v172, %v168
  %v182 = vsel %vm87, %v156, 0
  %184 = vmatprep.subr.bf16.mxu0 0
  %185 = vmatpush1.bf16.msra.mxu0 0
  %186 = vmatprep.subr.bf16.mxu0 0
  %187 = vmatpush1.bf16.msra.mxu0 0
  %188 = vmatprep.subr.bf16.mxu0 0
  %189 = vmatpush1.bf16.msra.mxu0 0
  %190 = vmatprep.subr.bf16.mxu0 0
  %191 = vmatpush1.bf16.msra.mxu0 0
  %192 = vmatprep.subr.bf16.mxu0 0
  %193 = vmatpush1.bf16.msra.mxu0 0
  %194 = vmatprep.subr.bf16.mxu0 0
  %195 = vmatpush1.bf16.msra.mxu0 0
  %196 = vmatprep.subr.bf16.mxu0 0
  %197 = vmatpush1.bf16.msra.mxu0 0
  %198 = vmatprep.subr.bf16.mxu0 %v174
  %199 = vmatpush1.bf16.msra.mxu0 %v173
  %200 = vmatprep.subr.bf16.mxu0 0
  %201 = vmatpush2.bf16.msra.mxu0 0
  %202 = vmatprep.subr.bf16.mxu0 0
  %203 = vmatpush2.bf16.msra.mxu0 0
  %204 = vmatprep.subr.bf16.mxu0 0
  %205 = vmatpush2.bf16.msra.mxu0 0
  %206 = vmatprep.subr.bf16.mxu0 0
  %207 = vmatpush2.bf16.msra.mxu0 0
  %208 = vmatprep.subr.bf16.mxu0 0
  %209 = vmatpush2.bf16.msra.mxu0 0
  %210 = vmatprep.subr.bf16.mxu0 0
  %211 = vmatpush2.bf16.msra.mxu0 0
  %212 = vmatprep.subr.bf16.mxu0 0
  %213 = vmatpush2.bf16.msra.mxu0 0
  %214 = vmatprep.subr.bf16.mxu0 0
  %215 = vmatpush2.bf16.msra.mxu0 0
  %216 = vmatprep.mubr.bf16.mxu0 0
  %217 = vmatmul.mubr.bf16.gmra.mxu0 %v182
  %v218 = vpop.f32.mrf.mxu0
  %v219 = vadd.f32 0.0, %v218
  %v220 = vpop.f32.mrf.mxu0
  %v221 = vadd.f32 0.0, %v220
  %v222 = vpop.f32.mrf.mxu0
  %v223 = vpop.f32.mrf.mxu0
  %224 = vdwg.mxu0
  %225 = vmatprep.subr.bf16.mxu0 0
  %226 = vmatpush1.bf16.msra.mxu0 0
  %227 = vmatprep.subr.bf16.mxu0 0
  %228 = vmatpush1.bf16.msra.mxu0 0
  %229 = vmatprep.subr.bf16.mxu0 0
  %230 = vmatpush1.bf16.msra.mxu0 0
  %231 = vmatprep.subr.bf16.mxu0 0
  %232 = vmatpush1.bf16.msra.mxu0 0
  %233 = vmatprep.subr.bf16.mxu0 0
  %234 = vmatpush1.bf16.msra.mxu0 0
  %235 = vmatprep.subr.bf16.mxu0 0
  %236 = vmatpush1.bf16.msra.mxu0 0
  %237 = vmatprep.subr.bf16.mxu0 0
  %238 = vmatpush1.bf16.msra.mxu0 0
  %239 = vmatprep.subr.bf16.mxu0 %v176
  %240 = vmatpush1.bf16.msra.mxu0 %v175
  %241 = vmatprep.subr.bf16.mxu0 0
  %242 = vmatpush2.bf16.msra.mxu0 0
  %243 = vmatprep.subr.bf16.mxu0 0
  %244 = vmatpush2.bf16.msra.mxu0 0
  %245 = vmatprep.subr.bf16.mxu0 0
  %246 = vmatpush2.bf16.msra.mxu0 0
  %247 = vmatprep.subr.bf16.mxu0 0
  %248 = vmatpush2.bf16.msra.mxu0 0
  %249 = vmatprep.subr.bf16.mxu0 0
  %250 = vmatpush2.bf16.msra.mxu0 0
  %251 = vmatprep.subr.bf16.mxu0 0
  %252 = vmatpush2.bf16.msra.mxu0 0
  %253 = vmatprep.subr.bf16.mxu0 0
  %254 = vmatpush2.bf16.msra.mxu0 0
  %255 = vmatprep.subr.bf16.mxu0 0
  %256 = vmatpush2.bf16.msra.mxu0 0
  %257 = vmatprep.mubr.bf16.mxu0 0
  %258 = vmatmul.mubr.bf16.gmra.mxu0 %v182
  %v259 = vpop.f32.mrf.mxu0
  %v260 = vadd.f32 0.0, %v259
  %v261 = vpop.f32.mrf.mxu0
  %v262 = vadd.f32 0.0, %v261
  %v263 = vpop.f32.mrf.mxu0
  %v264 = vpop.f32.mrf.mxu0
  %265 = vdwg.mxu0
  %v266 = vpack.c.bf16 %v219, %v219
  %v267 = vpack.c.bf16 %v221, %v221
  %v268 = vpack.c.bf16 %v260, %v260
  %v269 = vpack.c.bf16 %v262, %v262
  %v270 = vld [vmem:[%s2] sm:$0xf]
  %v271 = vld [vmem:[%s2 + $0x4] sm:$0xf]
  %v272 = vld [vmem:[%s2 + $0x8] sm:$0xf]
  %v273 = vld [vmem:[%s2 + $0xc] sm:$0xf]
  %v274 = vld [vmem:[%s2 + $0x10] sm:$0xf]
  %v275 = vld [vmem:[%s2 + $0x14] sm:$0xf]
  %v276 = vld [vmem:[%s2 + $0x18] sm:$0xf]
  %v277 = vld [vmem:[%s2 + $0x1c] sm:$0xf]
  %v278 = vld [vmem:[%s2 + $0x20] sm:$0xf]
  %v279 = vld [vmem:[%s2 + $0x24] sm:$0xf]
  %v280 = vld [vmem:[%s2 + $0x28] sm:$0xf]
  %v281 = vld [vmem:[%s2 + $0x2c] sm:$0xf]
  %v282 = vld [vmem:[%s2 + $0x30] sm:$0xf]
  %v283 = vld [vmem:[%s2 + $0x34] sm:$0xf]
  %v284 = vld [vmem:[%s2 + $0x38] sm:$0xf]
  %v285 = vld [vmem:[%s2 + $0x3c] sm:$0xf]
  %v286 = vld [vmem:[%s2 + $0x40] sm:$0xf]
  %v287 = vld [vmem:[%s2 + $0x44] sm:$0xf]
  %v288 = vld [vmem:[%s2 + $0x48] sm:$0xf]
  %v289 = vld [vmem:[%s2 + $0x4c] sm:$0xf]
  %v290 = vld [vmem:[%s2 + $0x50] sm:$0xf]
  %v291 = vld [vmem:[%s2 + $0x54] sm:$0xf]
  %v292 = vld [vmem:[%s2 + $0x58] sm:$0xf]
  %v293 = vld [vmem:[%s2 + $0x5c] sm:$0xf]
  %v294 = vld [vmem:[%s2 + $0x60] sm:$0xf]
  %v295 = vld [vmem:[%s2 + $0x64] sm:$0xf]
  %v296 = vld [vmem:[%s2 + $0x68] sm:$0xf]
  %v297 = vld [vmem:[%s2 + $0x6c] sm:$0xf]
  %v298 = vld [vmem:[%s2 + $0x70] sm:$0xf]
  %v299 = vld [vmem:[%s2 + $0x74] sm:$0xf]
  %v300 = vld [vmem:[%s2 + $0x78] sm:$0xf]
  %v301 = vld [vmem:[%s2 + $0x7c] sm:$0xf]
  %v302 = vld [vmem:[%s2 + $0x80] sm:$0xf]
  %v303 = vld [vmem:[%s2 + $0x84] sm:$0xf]
  %v304 = vld [vmem:[%s2 + $0x88] sm:$0xf]
  %v305 = vld [vmem:[%s2 + $0x8c] sm:$0xf]
  %v306 = vld [vmem:[%s2 + $0x90] sm:$0xf]
  %v307 = vld [vmem:[%s2 + $0x94] sm:$0xf]
  %v308 = vld [vmem:[%s2 + $0x98] sm:$0xf]
  %v309 = vld [vmem:[%s2 + $0x9c] sm:$0xf]
  %v310 = vld [vmem:[%s2 + $0xa0] sm:$0xf]
  %v311 = vld [vmem:[%s2 + $0xa4] sm:$0xf]
  %v312 = vld [vmem:[%s2 + $0xa8] sm:$0xf]
  %v313 = vld [vmem:[%s2 + $0xac] sm:$0xf]
  %v314 = vld [vmem:[%s2 + $0xb0] sm:$0xf]
  %v315 = vld [vmem:[%s2 + $0xb4] sm:$0xf]
  %v316 = vld [vmem:[%s2 + $0xb8] sm:$0xf]
  %v317 = vld [vmem:[%s2 + $0xbc] sm:$0xf]
  %v318 = vld [vmem:[%s2 + $0xc0] sm:$0xf]
  %v319 = vld [vmem:[%s2 + $0xc4] sm:$0xf]
  %v320 = vld [vmem:[%s2 + $0xc8] sm:$0xf]
  %v321 = vld [vmem:[%s2 + $0xcc] sm:$0xf]
  %v322 = vld [vmem:[%s2 + $0xd0] sm:$0xf]
  %v323 = vld [vmem:[%s2 + $0xd4] sm:$0xf]
  %v324 = vld [vmem:[%s2 + $0xd8] sm:$0xf]
  %v325 = vld [vmem:[%s2 + $0xdc] sm:$0xf]
  %v326 = vld [vmem:[%s2 + $0xe0] sm:$0xf]
  %v327 = vld [vmem:[%s2 + $0xe4] sm:$0xf]
  %v328 = vld [vmem:[%s2 + $0xe8] sm:$0xf]
  %v329 = vld [vmem:[%s2 + $0xec] sm:$0xf]
  %v330 = vld [vmem:[%s2 + $0xf0] sm:$0xf]
  %v331 = vld [vmem:[%s2 + $0xf4] sm:$0xf]
  %v332 = vld [vmem:[%s2 + $0xf8] sm:$0xf]
  %v333 = vld [vmem:[%s2 + $0xfc] sm:$0xf]
  %v398 = vunpack.c.l.b16 %v270
  %v399 = vunpack.c.l.b16 %v271
  %v400 = vunpack.c.l.b16 %v272
  %v401 = vunpack.c.l.b16 %v273
  %v402 = vunpack.c.l.b16 %v274
  %v403 = vunpack.c.l.b16 %v275
  %v404 = vunpack.c.l.b16 %v276
  %v405 = vunpack.c.l.b16 %v277
  %v406 = vunpack.c.l.b16 %v278
  %v407 = vunpack.c.l.b16 %v279
  %v408 = vunpack.c.l.b16 %v280
  %v409 = vunpack.c.l.b16 %v281
  %v410 = vunpack.c.l.b16 %v282
  %v411 = vunpack.c.l.b16 %v283
  %v412 = vunpack.c.l.b16 %v284
  %v413 = vunpack.c.l.b16 %v285
  %v414 = vunpack.c.l.b16 %v286
  %v415 = vunpack.c.l.b16 %v287
  %v416 = vunpack.c.l.b16 %v288
  %v417 = vunpack.c.l.b16 %v289
  %v418 = vunpack.c.l.b16 %v290
  %v419 = vunpack.c.l.b16 %v291
  %v420 = vunpack.c.l.b16 %v292
  %v421 = vunpack.c.l.b16 %v293
  %v422 = vunpack.c.l.b16 %v294
  %v423 = vunpack.c.l.b16 %v295
  %v424 = vunpack.c.l.b16 %v296
  %v425 = vunpack.c.l.b16 %v297
  %v426 = vunpack.c.l.b16 %v298
  %v427 = vunpack.c.l.b16 %v299
  %v428 = vunpack.c.l.b16 %v300
  %v429 = vunpack.c.l.b16 %v301
  %v430 = vunpack.c.l.b16 %v302
  %v431 = vunpack.c.l.b16 %v303
  %v432 = vunpack.c.l.b16 %v304
  %v433 = vunpack.c.l.b16 %v305
  %v434 = vunpack.c.l.b16 %v306
  %v435 = vunpack.c.l.b16 %v307
  %v436 = vunpack.c.l.b16 %v308
  %v437 = vunpack.c.l.b16 %v309
  %v438 = vunpack.c.l.b16 %v310
  %v439 = vunpack.c.l.b16 %v311
  %v440 = vunpack.c.l.b16 %v312
  %v441 = vunpack.c.l.b16 %v313
  %v442 = vunpack.c.l.b16 %v314
  %v443 = vunpack.c.l.b16 %v315
  %v444 = vunpack.c.l.b16 %v316
  %v445 = vunpack.c.l.b16 %v317
  %v446 = vunpack.c.l.b16 %v318
  %v447 = vunpack.c.l.b16 %v319
  %v448 = vunpack.c.l.b16 %v320
  %v449 = vunpack.c.l.b16 %v321
  %v450 = vunpack.c.l.b16 %v322
  %v451 = vunpack.c.l.b16 %v323
  %v452 = vunpack.c.l.b16 %v324
  %v453 = vunpack.c.l.b16 %v325
  %v454 = vunpack.c.l.b16 %v326
  %v455 = vunpack.c.l.b16 %v327
  %v456 = vunpack.c.l.b16 %v328
  %v457 = vunpack.c.l.b16 %v329
  %v458 = vunpack.c.l.b16 %v330
  %v459 = vunpack.c.l.b16 %v331
  %v460 = vunpack.c.l.b16 %v332
  %v461 = vunpack.c.l.b16 %v333
  %v462 = vpack.c.b16 %v399, %v398
  %v463 = vpack.c.b16 %v401, %v400
  %v464 = vpack.c.b16 %v403, %v402
  %v465 = vpack.c.b16 %v405, %v404
  %v466 = vpack.c.b16 %v407, %v406
  %v467 = vpack.c.b16 %v409, %v408
  %v468 = vpack.c.b16 %v411, %v410
  %v469 = vpack.c.b16 %v413, %v412
  %v470 = vpack.c.b16 %v415, %v414
  %v471 = vpack.c.b16 %v417, %v416
  %v472 = vpack.c.b16 %v419, %v418
  %v473 = vpack.c.b16 %v421, %v420
  %v474 = vpack.c.b16 %v423, %v422
  %v475 = vpack.c.b16 %v425, %v424
  %v476 = vpack.c.b16 %v427, %v426
  %v477 = vpack.c.b16 %v429, %v428
  %v478 = vpack.c.b16 %v431, %v430
  %v479 = vpack.c.b16 %v433, %v432
  %v480 = vpack.c.b16 %v435, %v434
  %v481 = vpack.c.b16 %v437, %v436
  %v482 = vpack.c.b16 %v439, %v438
  %v483 = vpack.c.b16 %v441, %v440
  %v484 = vpack.c.b16 %v443, %v442
  %v485 = vpack.c.b16 %v445, %v444
  %v486 = vpack.c.b16 %v447, %v446
  %v487 = vpack.c.b16 %v449, %v448
  %v488 = vpack.c.b16 %v451, %v450
  %v489 = vpack.c.b16 %v453, %v452
  %v490 = vpack.c.b16 %v455, %v454
  %v491 = vpack.c.b16 %v457, %v456
  %v492 = vpack.c.b16 %v459, %v458
  %v493 = vpack.c.b16 %v461, %v460
  %526 = vmatprep.subr.bf16.mxu0 0
  %527 = vmatpush1.bf16.msra.mxu0 %v469
  %528 = vmatprep.subr.bf16.mxu0 0
  %529 = vmatpush1.bf16.msra.mxu0 %v468
  %530 = vmatprep.subr.bf16.mxu0 0
  %531 = vmatpush1.bf16.msra.mxu0 %v467
  %532 = vmatprep.subr.bf16.mxu0 0
  %533 = vmatpush1.bf16.msra.mxu0 %v466
  %534 = vmatprep.subr.bf16.mxu0 0
  %535 = vmatpush1.bf16.msra.mxu0 %v465
  %536 = vmatprep.subr.bf16.mxu0 0
  %537 = vmatpush1.bf16.msra.mxu0 %v464
  %538 = vmatprep.subr.bf16.mxu0 0
  %539 = vmatpush1.bf16.msra.mxu0 %v463
  %540 = vmatprep.subr.bf16.mxu0 0
  %541 = vmatpush1.bf16.msra.mxu0 %v462
  %542 = vmatprep.subr.bf16.mxu0 0
  %543 = vmatpush2.bf16.msra.mxu0 %v477
  %544 = vmatprep.subr.bf16.mxu0 0
  %545 = vmatpush2.bf16.msra.mxu0 %v476
  %546 = vmatprep.subr.bf16.mxu0 0
  %547 = vmatpush2.bf16.msra.mxu0 %v475
  %548 = vmatprep.subr.bf16.mxu0 0
  %549 = vmatpush2.bf16.msra.mxu0 %v474
  %550 = vmatprep.subr.bf16.mxu0 0
  %551 = vmatpush2.bf16.msra.mxu0 %v473
  %552 = vmatprep.subr.bf16.mxu0 0
  %553 = vmatpush2.bf16.msra.mxu0 %v472
  %554 = vmatprep.subr.bf16.mxu0 0
  %555 = vmatpush2.bf16.msra.mxu0 %v471
  %556 = vmatprep.subr.bf16.mxu0 0
  %557 = vmatpush2.bf16.msra.mxu0 %v470
  %558 = vmatprep.mubr.bf16.mxu0 %v267
  %559 = vmatmul.mubr.bf16.gmra.mxu0 %v266
  %v560 = vpop.f32.mrf.mxu0
  %v561 = vadd.f32 0.0, %v560
  %v562 = vpop.f32.mrf.mxu0
  %v563 = vpop.f32.mrf.mxu0
  %v564 = vpop.f32.mrf.mxu0
  %565 = vdwg.mxu0
  %566 = vmatprep.subr.bf16.mxu0 0
  %567 = vmatpush1.bf16.msra.mxu0 %v485
  %568 = vmatprep.subr.bf16.mxu0 0
  %569 = vmatpush1.bf16.msra.mxu0 %v484
  %570 = vmatprep.subr.bf16.mxu0 0
  %571 = vmatpush1.bf16.msra.mxu0 %v483
  %572 = vmatprep.subr.bf16.mxu0 0
  %573 = vmatpush1.bf16.msra.mxu0 %v482
  %574 = vmatprep.subr.bf16.mxu0 0
  %575 = vmatpush1.bf16.msra.mxu0 %v481
  %576 = vmatprep.subr.bf16.mxu0 0
  %577 = vmatpush1.bf16.msra.mxu0 %v480
  %578 = vmatprep.subr.bf16.mxu0 0
  %579 = vmatpush1.bf16.msra.mxu0 %v479
  %580 = vmatprep.subr.bf16.mxu0 0
  %581 = vmatpush1.bf16.msra.mxu0 %v478
  %582 = vmatprep.subr.bf16.mxu0 0
  %583 = vmatpush2.bf16.msra.mxu0 %v493
  %584 = vmatprep.subr.bf16.mxu0 0
  %585 = vmatpush2.bf16.msra.mxu0 %v492
  %586 = vmatprep.subr.bf16.mxu0 0
  %587 = vmatpush2.bf16.msra.mxu0 %v491
  %588 = vmatprep.subr.bf16.mxu0 0
  %589 = vmatpush2.bf16.msra.mxu0 %v490
  %590 = vmatprep.subr.bf16.mxu0 0
  %591 = vmatpush2.bf16.msra.mxu0 %v489
  %592 = vmatprep.subr.bf16.mxu0 0
  %593 = vmatpush2.bf16.msra.mxu0 %v488
  %594 = vmatprep.subr.bf16.mxu0 0
  %595 = vmatpush2.bf16.msra.mxu0 %v487
  %596 = vmatprep.subr.bf16.mxu0 0
  %597 = vmatpush2.bf16.msra.mxu0 %v486
  %598 = vmatprep.mubr.bf16.mxu0 %v269
  %599 = vmatmul.mubr.bf16.gmra.mxu0 %v268
  %v600 = vpop.f32.mrf.mxu0
  %v601 = vadd.f32 %v561, %v600
  %v602 = vpop.f32.mrf.mxu0
  %v603 = vpop.f32.mrf.mxu0
  %v604 = vpop.f32.mrf.mxu0
  %605 = vdwg.mxu0
  %v606 = vmul.f32 %v219, %v219
  %v607 = vmul.f32 %v221, %v221
  %v608 = vmul.f32 %v260, %v260
  %v609 = vmul.f32 %v262, %v262
  %v610 = vpack.c.bf16 %v606, %v606
  %v611 = vpack.c.bf16 %v607, %v607
  %v612 = vpack.c.bf16 %v608, %v608
  %v613 = vpack.c.bf16 %v609, %v609
  %614 = vmatprep.subr.bf16.mxu0 0
  %615 = vmatpush1.bf16.msra.mxu0 %v469
  %616 = vmatprep.subr.bf16.mxu0 0
  %617 = vmatpush1.bf16.msra.mxu0 %v468
  %618 = vmatprep.subr.bf16.mxu0 0
  %619 = vmatpush1.bf16.msra.mxu0 %v467
  %620 = vmatprep.subr.bf16.mxu0 0
  %621 = vmatpush1.bf16.msra.mxu0 %v466
  %622 = vmatprep.subr.bf16.mxu0 0
  %623 = vmatpush1.bf16.msra.mxu0 %v465
  %624 = vmatprep.subr.bf16.mxu0 0
  %625 = vmatpush1.bf16.msra.mxu0 %v464
  %626 = vmatprep.subr.bf16.mxu0 0
  %627 = vmatpush1.bf16.msra.mxu0 %v463
  %628 = vmatprep.subr.bf16.mxu0 0
  %629 = vmatpush1.bf16.msra.mxu0 %v462
  %630 = vmatprep.subr.bf16.mxu0 0
  %631 = vmatpush2.bf16.msra.mxu0 %v477
  %632 = vmatprep.subr.bf16.mxu0 0
  %633 = vmatpush2.bf16.msra.mxu0 %v476
  %634 = vmatprep.subr.bf16.mxu0 0
  %635 = vmatpush2.bf16.msra.mxu0 %v475
  %636 = vmatprep.subr.bf16.mxu0 0
  %637 = vmatpush2.bf16.msra.mxu0 %v474
  %638 = vmatprep.subr.bf16.mxu0 0
  %639 = vmatpush2.bf16.msra.mxu0 %v473
  %640 = vmatprep.subr.bf16.mxu0 0
  %641 = vmatpush2.bf16.msra.mxu0 %v472
  %642 = vmatprep.subr.bf16.mxu0 0
  %643 = vmatpush2.bf16.msra.mxu0 %v471
  %644 = vmatprep.subr.bf16.mxu0 0
  %645 = vmatpush2.bf16.msra.mxu0 %v470
  %646 = vmatprep.mubr.bf16.mxu0 %v611
  %647 = vmatmul.mubr.bf16.gmra.mxu0 %v610
  %v648 = vpop.f32.mrf.mxu0
  %v649 = vadd.f32 0.0, %v648
  %v650 = vpop.f32.mrf.mxu0
  %v651 = vpop.f32.mrf.mxu0
  %v652 = vpop.f32.mrf.mxu0
  %653 = vdwg.mxu0
  %654 = vmatprep.subr.bf16.mxu0 0
  %655 = vmatpush1.bf16.msra.mxu0 %v485
  %656 = vmatprep.subr.bf16.mxu0 0
  %657 = vmatpush1.bf16.msra.mxu0 %v484
  %658 = vmatprep.subr.bf16.mxu0 0
  %659 = vmatpush1.bf16.msra.mxu0 %v483
  %660 = vmatprep.subr.bf16.mxu0 0
  %661 = vmatpush1.bf16.msra.mxu0 %v482
  %662 = vmatprep.subr.bf16.mxu0 0
  %663 = vmatpush1.bf16.msra.mxu0 %v481
  %664 = vmatprep.subr.bf16.mxu0 0
  %665 = vmatpush1.bf16.msra.mxu0 %v480
  %666 = vmatprep.subr.bf16.mxu0 0
  %667 = vmatpush1.bf16.msra.mxu0 %v479
  %668 = vmatprep.subr.bf16.mxu0 0
  %669 = vmatpush1.bf16.msra.mxu0 %v478
  %670 = vmatprep.subr.bf16.mxu0 0
  %671 = vmatpush2.bf16.msra.mxu0 %v493
  %672 = vmatprep.subr.bf16.mxu0 0
  %673 = vmatpush2.bf16.msra.mxu0 %v492
  %674 = vmatprep.subr.bf16.mxu0 0
  %675 = vmatpush2.bf16.msra.mxu0 %v491
  %676 = vmatprep.subr.bf16.mxu0 0
  %677 = vmatpush2.bf16.msra.mxu0 %v490
  %678 = vmatprep.subr.bf16.mxu0 0
  %679 = vmatpush2.bf16.msra.mxu0 %v489
  %680 = vmatprep.subr.bf16.mxu0 0
  %681 = vmatpush2.bf16.msra.mxu0 %v488
  %682 = vmatprep.subr.bf16.mxu0 0
  %683 = vmatpush2.bf16.msra.mxu0 %v487
  %684 = vmatprep.subr.bf16.mxu0 0
  %685 = vmatpush2.bf16.msra.mxu0 %v486
  %686 = vmatprep.mubr.bf16.mxu0 %v613
  %687 = vmatmul.mubr.bf16.gmra.mxu0 %v612
  %v688 = vpop.f32.mrf.mxu0
  %v689 = vadd.f32 %v649, %v688
  %v690 = vpop.f32.mrf.mxu0
  %v691 = vpop.f32.mrf.mxu0
  %v692 = vpop.f32.mrf.mxu0
  %693 = vdwg.mxu0
  %v694 = vmul.f32 %v601, 0.0625
  %v695 = vmul.f32 %v689, 0.0625
  %v696 = vmul.f32 %v694, %v694
  %v697 = vsub.f32 %v695, %v696
  %v698 = vmax.f32 %v697, 0.0
  %v699 = vadd.f32 %v698, 1e-05
  %v700 = vrsqrt.pop %v699
  %v701 = vld [vmem:[%s4] sm:$0x1]
  %v703 = vlaneseq
  %v704 = vshrl.u32 %v703, 7
  %v705 = vsub.s32 0, %v704
  %v706 = vrot.slane %v701, %v705
  %v708 = vmul.f32 %v700, %v706
  %v709 = vld [vmem:[%s5] sm:$0x1]
  %v710 = vmul.f32 %v694, %v708
  %v712 = vlaneseq
  %v713 = vshrl.u32 %v712, 7
  %v714 = vsub.s32 0, %v713
  %v715 = vrot.slane %v709, %v714
  %v717 = vsub.f32 %v715, %v710
  %v718 = vpack.c.bf16 %v708, %v708
  %v719 = vld [vmem:[%s3] sm:$0xff]
  %v720 = vld [vmem:[%s3 + $0x8] sm:$0xff]
  %v721 = vld [vmem:[%s3 + $0x10] sm:$0xff]
  %v722 = vld [vmem:[%s3 + $0x18] sm:$0xff]
  %v723 = vld [vmem:[%s3 + $0x20] sm:$0xff]
  %v724 = vld [vmem:[%s3 + $0x28] sm:$0xff]
  %v725 = vld [vmem:[%s3 + $0x30] sm:$0xff]
  %v726 = vld [vmem:[%s3 + $0x38] sm:$0xff]
  %v735 = vunpack.c.l.b16 %v719
  %v736 = vunpack.c.h.b16 %v719
  %v737 = vunpack.c.l.b16 %v720
  %v738 = vunpack.c.h.b16 %v720
  %v739 = vunpack.c.l.b16 %v721
  %v740 = vunpack.c.h.b16 %v721
  %v741 = vunpack.c.l.b16 %v722
  %v742 = vunpack.c.h.b16 %v722
  %v743 = vunpack.c.l.b16 %v723
  %v744 = vunpack.c.h.b16 %v723
  %v745 = vunpack.c.l.b16 %v724
  %v746 = vunpack.c.h.b16 %v724
  %v747 = vunpack.c.l.b16 %v725
  %v748 = vunpack.c.h.b16 %v725
  %v749 = vunpack.c.l.b16 %v726
  %v750 = vunpack.c.h.b16 %v726
  %v751 = vpack.c.b16 %v739, %v735
  %v752 = vpack.c.b16 %v740, %v736
  %v753 = vpack.c.b16 %v741, %v737
  %v754 = vpack.c.b16 %v742, %v738
  %v755 = vpack.c.b16 %v747, %v743
  %v756 = vpack.c.b16 %v748, %v744
  %v757 = vpack.c.b16 %v749, %v745
  %v758 = vpack.c.b16 %v750, %v746
  %v768 = vsel %vm68, %v718, 0
  %770 = vmatprep.subr.bf16.mxu0 0
  %771 = vmatpush1.bf16.msra.mxu0 0
  %772 = vmatprep.subr.bf16.mxu0 0
  %773 = vmatpush1.bf16.msra.mxu0 0
  %774 = vmatprep.subr.bf16.mxu0 0
  %775 = vmatpush1.bf16.msra.mxu0 0
  %776 = vmatprep.subr.bf16.mxu0 0
  %777 = vmatpush1.bf16.msra.mxu0 0
  %778 = vmatprep.subr.bf16.mxu0 0
  %779 = vmatpush1.bf16.msra.mxu0 0
  %780 = vmatprep.subr.bf16.mxu0 0
  %781 = vmatpush1.bf16.msra.mxu0 0
  %782 = vmatprep.subr.bf16.mxu0 %v756
  %783 = vmatpush1.bf16.msra.mxu0 %v755
  %784 = vmatprep.subr.bf16.mxu0 %v752
  %785 = vmatpush1.bf16.msra.mxu0 %v751
  %786 = vmatprep.subr.bf16.mxu0 0
  %787 = vmatpush2.bf16.msra.mxu0 0
  %788 = vmatprep.subr.bf16.mxu0 0
  %789 = vmatpush2.bf16.msra.mxu0 0
  %790 = vmatprep.subr.bf16.mxu0 0
  %791 = vmatpush2.bf16.msra.mxu0 0
  %792 = vmatprep.subr.bf16.mxu0 0
  %793 = vmatpush2.bf16.msra.mxu0 0
  %794 = vmatprep.subr.bf16.mxu0 0
  %795 = vmatpush2.bf16.msra.mxu0 0
  %796 = vmatprep.subr.bf16.mxu0 0
  %797 = vmatpush2.bf16.msra.mxu0 0
  %798 = vmatprep.subr.bf16.mxu0 0
  %799 = vmatpush2.bf16.msra.mxu0 0
  %800 = vmatprep.subr.bf16.mxu0 0
  %801 = vmatpush2.bf16.msra.mxu0 0
  %802 = vmatprep.mubr.bf16.mxu0 0
  %803 = vmatmul.mubr.bf16.gmra.mxu0 %v768
  %v804 = vpop.f32.mrf.mxu0
  %v805 = vadd.f32 0.0, %v804
  %v806 = vpop.f32.mrf.mxu0
  %v807 = vadd.f32 0.0, %v806
  %v808 = vpop.f32.mrf.mxu0
  %v809 = vpop.f32.mrf.mxu0
  %810 = vdwg.mxu0
  %811 = vmatprep.subr.bf16.mxu0 0
  %812 = vmatpush1.bf16.msra.mxu0 0
  %813 = vmatprep.subr.bf16.mxu0 0
  %814 = vmatpush1.bf16.msra.mxu0 0
  %815 = vmatprep.subr.bf16.mxu0 0
  %816 = vmatpush1.bf16.msra.mxu0 0
  %817 = vmatprep.subr.bf16.mxu0 0
  %818 = vmatpush1.bf16.msra.mxu0 0
  %819 = vmatprep.subr.bf16.mxu0 0
  %820 = vmatpush1.bf16.msra.mxu0 0
  %821 = vmatprep.subr.bf16.mxu0 0
  %822 = vmatpush1.bf16.msra.mxu0 0
  %823 = vmatprep.subr.bf16.mxu0 %v758
  %824 = vmatpush1.bf16.msra.mxu0 %v757
  %825 = vmatprep.subr.bf16.mxu0 %v754
  %826 = vmatpush1.bf16.msra.mxu0 %v753
  %827 = vmatprep.subr.bf16.mxu0 0
  %828 = vmatpush2.bf16.msra.mxu0 0
  %829 = vmatprep.subr.bf16.mxu0 0
  %830 = vmatpush2.bf16.msra.mxu0 0
  %831 = vmatprep.subr.bf16.mxu0 0
  %832 = vmatpush2.bf16.msra.mxu0 0
  %833 = vmatprep.subr.bf16.mxu0 0
  %834 = vmatpush2.bf16.msra.mxu0 0
  %835 = vmatprep.subr.bf16.mxu0 0
  %836 = vmatpush2.bf16.msra.mxu0 0
  %837 = vmatprep.subr.bf16.mxu0 0
  %838 = vmatpush2.bf16.msra.mxu0 0
  %839 = vmatprep.subr.bf16.mxu0 0
  %840 = vmatpush2.bf16.msra.mxu0 0
  %841 = vmatprep.subr.bf16.mxu0 0
  %842 = vmatpush2.bf16.msra.mxu0 0
  %843 = vmatprep.mubr.bf16.mxu0 0
  %844 = vmatmul.mubr.bf16.gmra.mxu0 %v768
  %v845 = vpop.f32.mrf.mxu0
  %v846 = vadd.f32 0.0, %v845
  %v847 = vpop.f32.mrf.mxu0
  %v848 = vadd.f32 0.0, %v847
  %v849 = vpop.f32.mrf.mxu0
  %v850 = vpop.f32.mrf.mxu0
  %851 = vdwg.mxu0
  %v852 = vpack.c.bf16 %v717, %v717
  %v854 = vsel %vm68, %v852, 0
  %856 = vmatprep.subr.bf16.mxu0 0
  %857 = vmatpush1.bf16.msra.mxu0 0
  %858 = vmatprep.subr.bf16.mxu0 0
  %859 = vmatpush1.bf16.msra.mxu0 0
  %860 = vmatprep.subr.bf16.mxu0 0
  %861 = vmatpush1.bf16.msra.mxu0 0
  %862 = vmatprep.subr.bf16.mxu0 0
  %863 = vmatpush1.bf16.msra.mxu0 0
  %864 = vmatprep.subr.bf16.mxu0 0
  %865 = vmatpush1.bf16.msra.mxu0 0
  %866 = vmatprep.subr.bf16.mxu0 0
  %867 = vmatpush1.bf16.msra.mxu0 0
  %868 = vmatprep.subr.bf16.mxu0 %v756
  %869 = vmatpush1.bf16.msra.mxu0 %v755
  %870 = vmatprep.subr.bf16.mxu0 %v752
  %871 = vmatpush1.bf16.msra.mxu0 %v751
  %872 = vmatprep.subr.bf16.mxu0 0
  %873 = vmatpush2.bf16.msra.mxu0 0
  %874 = vmatprep.subr.bf16.mxu0 0
  %875 = vmatpush2.bf16.msra.mxu0 0
  %876 = vmatprep.subr.bf16.mxu0 0
  %877 = vmatpush2.bf16.msra.mxu0 0
  %878 = vmatprep.subr.bf16.mxu0 0
  %879 = vmatpush2.bf16.msra.mxu0 0
  %880 = vmatprep.subr.bf16.mxu0 0
  %881 = vmatpush2.bf16.msra.mxu0 0
  %882 = vmatprep.subr.bf16.mxu0 0
  %883 = vmatpush2.bf16.msra.mxu0 0
  %884 = vmatprep.subr.bf16.mxu0 0
  %885 = vmatpush2.bf16.msra.mxu0 0
  %886 = vmatprep.subr.bf16.mxu0 0
  %887 = vmatpush2.bf16.msra.mxu0 0
  %888 = vmatprep.mubr.bf16.mxu0 0
  %889 = vmatmul.mubr.bf16.gmra.mxu0 %v854
  %v890 = vpop.f32.mrf.mxu0
  %v891 = vadd.f32 0.0, %v890
  %v892 = vpop.f32.mrf.mxu0
  %v893 = vadd.f32 0.0, %v892
  %v894 = vpop.f32.mrf.mxu0
  %v895 = vpop.f32.mrf.mxu0
  %896 = vdwg.mxu0
  %897 = vmatprep.subr.bf16.mxu0 0
  %898 = vmatpush1.bf16.msra.mxu0 0
  %899 = vmatprep.subr.bf16.mxu0 0
  %900 = vmatpush1.bf16.msra.mxu0 0
  %901 = vmatprep.subr.bf16.mxu0 0
  %902 = vmatpush1.bf16.msra.mxu0 0
  %903 = vmatprep.subr.bf16.mxu0 0
  %904 = vmatpush1.bf16.msra.mxu0 0
  %905 = vmatprep.subr.bf16.mxu0 0
  %906 = vmatpush1.bf16.msra.mxu0 0
  %907 = vmatprep.subr.bf16.mxu0 0
  %908 = vmatpush1.bf16.msra.mxu0 0
  %909 = vmatprep.subr.bf16.mxu0 %v758
  %910 = vmatpush1.bf16.msra.mxu0 %v757
  %911 = vmatprep.subr.bf16.mxu0 %v754
  %912 = vmatpush1.bf16.msra.mxu0 %v753
  %913 = vmatprep.subr.bf16.mxu0 0
  %914 = vmatpush2.bf16.msra.mxu0 0
  %915 = vmatprep.subr.bf16.mxu0 0
  %916 = vmatpush2.bf16.msra.mxu0 0
  %917 = vmatprep.subr.bf16.mxu0 0
  %918 = vmatpush2.bf16.msra.mxu0 0
  %919 = vmatprep.subr.bf16.mxu0 0
  %920 = vmatpush2.bf16.msra.mxu0 0
  %921 = vmatprep.subr.bf16.mxu0 0
  %922 = vmatpush2.bf16.msra.mxu0 0
  %923 = vmatprep.subr.bf16.mxu0 0
  %924 = vmatpush2.bf16.msra.mxu0 0
  %925 = vmatprep.subr.bf16.mxu0 0
  %926 = vmatpush2.bf16.msra.mxu0 0
  %927 = vmatprep.subr.bf16.mxu0 0
  %928 = vmatpush2.bf16.msra.mxu0 0
  %929 = vmatprep.mubr.bf16.mxu0 0
  %930 = vmatmul.mubr.bf16.gmra.mxu0 %v854
  %v931 = vpop.f32.mrf.mxu0
  %v932 = vadd.f32 0.0, %v931
  %v933 = vpop.f32.mrf.mxu0
  %v934 = vadd.f32 0.0, %v933
  %v935 = vpop.f32.mrf.mxu0
  %v936 = vpop.f32.mrf.mxu0
  %937 = vdwg.mxu0
  %v938 = vmul.f32 %v219, %v805
  %v939 = vmul.f32 %v221, %v807
  %v940 = vmul.f32 %v260, %v846
  %v941 = vmul.f32 %v262, %v848
  %v942 = vadd.f32 %v938, %v891
  %v943 = vadd.f32 %v939, %v893
  %v944 = vadd.f32 %v940, %v932
  %v945 = vadd.f32 %v941, %v934
  %v946 = vmax.f32 %v942, 0.0
  %v947 = vmax.f32 %v943, 0.0
  %v948 = vmax.f32 %v944, 0.0
  %v949 = vmax.f32 %v945, 0.0
  %950 = vst [vmem:[#allocation2 + $0x20] sm:$0xff] %v946
  %951 = vst [vmem:[#allocation2 + $0x38] sm:$0xff] %v947
  %952 = vst [vmem:[#allocation2 + $0x50] sm:$0xff] %v948
  %953 = vst [vmem:[#allocation2 + $0x68] sm:$0xff] %v949
  %v954 = vld [vmem:[%s9] sm:$0xf]
  %v955 = vld [vmem:[#allocation2] sm:$0xff]
  %v956 = vld [vmem:[#allocation2 + $0x8] sm:$0xff]
  %v957 = vld [vmem:[#allocation2 + $0x10] sm:$0xff]
  %v958 = vld [vmem:[#allocation2 + $0x18] sm:$0xff]
  %v959 = vld [vmem:[#allocation2 + $0x20] sm:$0xff]
  %v960 = vld [vmem:[#allocation2 + $0x28] sm:$0xff]
  %v961 = vld [vmem:[#allocation2 + $0x30] sm:$0xff]
  %v962 = vld [vmem:[#allocation2 + $0x38] sm:$0xff]
  %v963 = vld [vmem:[#allocation2 + $0x40] sm:$0xff]
  %v964 = vld [vmem:[#allocation2 + $0x48] sm:$0xff]
  %v965 = vld [vmem:[#allocation2 + $0x50] sm:$0xff]
  %v966 = vld [vmem:[#allocation2 + $0x58] sm:$0xff]
  %v967 = vpack.c.bf16 %v958, %v955
  %v968 = vpack.c.bf16 %v959, %v956
  %v969 = vpack.c.bf16 %v960, %v957
  %v970 = vpack.c.bf16 %v964, %v961
  %v971 = vpack.c.bf16 %v965, %v962
  %v972 = vpack.c.bf16 %v966, %v963
  %v973 = vld [vmem:[#allocation2 + $0x60] sm:$0xff]
  %v974 = vld [vmem:[#allocation2 + $0x68] sm:$0xff]
  %v975 = vld [vmem:[#allocation2 + $0x70] sm:$0xff]
  %v976 = vpack.c.bf16 %v961, %v958
  %v977 = vpack.c.bf16 %v962, %v959
  %v978 = vpack.c.bf16 %v963, %v960
  %v979 = vpack.c.bf16 %v973, %v964
  %v980 = vpack.c.bf16 %v974, %v965
  %v981 = vpack.c.bf16 %v975, %v966
  %v982 = vld [vmem:[%s6] sm:$0xf]
  %v983 = vld [vmem:[%s6 + $0x4] sm:$0xf]
  %v984 = vld [vmem:[%s6 + $0x8] sm:$0xf]
  %v985 = vld [vmem:[%s6 + $0xc] sm:$0xf]
  %v986 = vld [vmem:[%s6 + $0x10] sm:$0xf]
  %v987 = vld [vmem:[%s6 + $0x14] sm:$0xf]
  %v988 = vld [vmem:[%s6 + $0x18] sm:$0xf]
  %v989 = vld [vmem:[%s6 + $0x1c] sm:$0xf]
  %v990 = vld [vmem:[%s6 + $0x20] sm:$0xf]
  %v991 = vld [vmem:[%s6 + $0x24] sm:$0xf]
  %v992 = vld [vmem:[%s6 + $0x28] sm:$0xf]
  %v993 = vld [vmem:[%s6 + $0x2c] sm:$0xf]
  %v994 = vld [vmem:[%s6 + $0x30] sm:$0xf]
  %v995 = vld [vmem:[%s6 + $0x34] sm:$0xf]
  %v996 = vld [vmem:[%s6 + $0x38] sm:$0xf]
  %v997 = vld [vmem:[%s6 + $0x3c] sm:$0xf]
  %v998 = vld [vmem:[%s6 + $0x40] sm:$0xf]
  %v999 = vld [vmem:[%s6 + $0x44] sm:$0xf]
  %v1000 = vld [vmem:[%s6 + $0x48] sm:$0xf]
  %v1001 = vld [vmem:[%s6 + $0x4c] sm:$0xf]
  %v1002 = vld [vmem:[%s6 + $0x50] sm:$0xf]
  %v1003 = vld [vmem:[%s6 + $0x54] sm:$0xf]
  %v1004 = vld [vmem:[%s6 + $0x58] sm:$0xf]
  %v1005 = vld [vmem:[%s6 + $0x5c] sm:$0xf]
  %v1006 = vld [vmem:[%s6 + $0x60] sm:$0xf]
  %v1007 = vld [vmem:[%s6 + $0x64] sm:$0xf]
  %v1008 = vld [vmem:[%s6 + $0x68] sm:$0xf]
  %v1009 = vld [vmem:[%s6 + $0x6c] sm:$0xf]
  %v1010 = vld [vmem:[%s6 + $0x70] sm:$0xf]
  %v1011 = vld [vmem:[%s6 + $0x74] sm:$0xf]
  %v1012 = vld [vmem:[%s6 + $0x78] sm:$0xf]
  %v1013 = vld [vmem:[%s6 + $0x7c] sm:$0xf]
  %v1014 = vld [vmem:[%s6 + $0x80] sm:$0xf]
  %v1015 = vld [vmem:[%s6 + $0x84] sm:$0xf]
  %v1016 = vld [vmem:[%s6 + $0x88] sm:$0xf]
  %v1017 = vld [vmem:[%s6 + $0x8c] sm:$0xf]
  %s1018 = scalar_lea.vmem %s6, 144
  %v1019 = vld [vmem:[%s1018] sm:$0xf]
  %v1020 = vld [vmem:[%s1018 + $0x4] sm:$0xf]
  %v1021 = vld [vmem:[%s1018 + $0x8] sm:$0xf]
  %v1022 = vld [vmem:[%s1018 + $0xc] sm:$0xf]
  %v1023 = vld [vmem:[%s1018 + $0x10] sm:$0xf]
  %v1024 = vld [vmem:[%s1018 + $0x14] sm:$0xf]
  %v1025 = vld [vmem:[%s1018 + $0x18] sm:$0xf]
  %v1026 = vld [vmem:[%s1018 + $0x1c] sm:$0xf]
  %v1027 = vld [vmem:[%s1018 + $0x20] sm:$0xf]
  %v1028 = vld [vmem:[%s1018 + $0x24] sm:$0xf]
  %v1029 = vld [vmem:[%s1018 + $0x28] sm:$0xf]
  %v1030 = vld [vmem:[%s1018 + $0x2c] sm:$0xf]
  %v1031 = vld [vmem:[%s1018 + $0x30] sm:$0xf]
  %v1032 = vld [vmem:[%s1018 + $0x34] sm:$0xf]
  %v1033 = vld [vmem:[%s1018 + $0x38] sm:$0xf]
  %v1034 = vld [vmem:[%s1018 + $0x3c] sm:$0xf]
  %v1035 = vld [vmem:[%s1018 + $0x40] sm:$0xf]
  %v1036 = vld [vmem:[%s1018 + $0x44] sm:$0xf]
  %v1037 = vld [vmem:[%s1018 + $0x48] sm:$0xf]
  %v1038 = vld [vmem:[%s1018 + $0x4c] sm:$0xf]
  %v1039 = vld [vmem:[%s1018 + $0x50] sm:$0xf]
  %v1040 = vld [vmem:[%s1018 + $0x54] sm:$0xf]
  %v1041 = vld [vmem:[%s1018 + $0x58] sm:$0xf]
  %v1042 = vld [vmem:[%s1018 + $0x5c] sm:$0xf]
  %v1043 = vld [vmem:[%s1018 + $0x60] sm:$0xf]
  %v1044 = vld [vmem:[%s1018 + $0x64] sm:$0xf]
  %v1045 = vld [vmem:[%s1018 + $0x68] sm:$0xf]
  %v1046 = vld [vmem:[%s1018 + $0x6c] sm:$0xf]
  %v1047 = vld [vmem:[%s1018 + $0x70] sm:$0xf]
  %v1048 = vld [vmem:[%s1018 + $0x74] sm:$0xf]
  %v1049 = vld [vmem:[%s1018 + $0x78] sm:$0xf]
  %v1050 = vld [vmem:[%s1018 + $0x7c] sm:$0xf]
  %v1051 = vld [vmem:[%s1018 + $0x80] sm:$0xf]
  %v1052 = vld [vmem:[%s1018 + $0x84] sm:$0xf]
  %v1053 = vld [vmem:[%s1018 + $0x88] sm:$0xf]
  %v1054 = vld [vmem:[%s1018 + $0x8c] sm:$0xf]
  %v1091 = vunpack.c.l.b16 %v1019
  %v1092 = vunpack.c.l.b16 %v1020
  %v1093 = vunpack.c.l.b16 %v1021
  %v1094 = vunpack.c.l.b16 %v1022
  %v1095 = vunpack.c.l.b16 %v1023
  %v1096 = vunpack.c.l.b16 %v1024
  %v1097 = vunpack.c.l.b16 %v1025
  %v1098 = vunpack.c.l.b16 %v1026
  %v1099 = vunpack.c.l.b16 %v1027
  %v1100 = vunpack.c.l.b16 %v1028
  %v1101 = vunpack.c.l.b16 %v1029
  %v1102 = vunpack.c.l.b16 %v1030
  %v1103 = vunpack.c.l.b16 %v1031
  %v1104 = vunpack.c.l.b16 %v1032
  %v1105 = vunpack.c.l.b16 %v1033
  %v1106 = vunpack.c.l.b16 %v1034
  %v1107 = vunpack.c.l.b16 %v1035
  %v1108 = vunpack.c.l.b16 %v1036
  %v1109 = vunpack.c.l.b16 %v1037
  %v1110 = vunpack.c.l.b16 %v1038
  %v1111 = vunpack.c.l.b16 %v1039
  %v1112 = vunpack.c.l.b16 %v1040
  %v1113 = vunpack.c.l.b16 %v1041
  %v1114 = vunpack.c.l.b16 %v1042
  %v1115 = vunpack.c.l.b16 %v1043
  %v1116 = vunpack.c.l.b16 %v1044
  %v1117 = vunpack.c.l.b16 %v1045
  %v1118 = vunpack.c.l.b16 %v1046
  %v1119 = vunpack.c.l.b16 %v1047
  %v1120 = vunpack.c.l.b16 %v1048
  %v1121 = vunpack.c.l.b16 %v1049
  %v1122 = vunpack.c.l.b16 %v1050
  %v1123 = vunpack.c.l.b16 %v1051
  %v1124 = vunpack.c.l.b16 %v1052
  %v1125 = vunpack.c.l.b16 %v1053
  %v1126 = vunpack.c.l.b16 %v1054
  %v1127 = vpack.c.b16 %v1092, %v1091
  %v1128 = vpack.c.b16 %v1094, %v1093
  %v1129 = vpack.c.b16 %v1096, %v1095
  %v1130 = vpack.c.b16 %v1098, %v1097
  %v1131 = vpack.c.b16 %v1100, %v1099
  %v1132 = vpack.c.b16 %v1102, %v1101
  %v1133 = vpack.c.b16 %v1104, %v1103
  %v1134 = vpack.c.b16 %v1106, %v1105
  %v1135 = vpack.c.b16 %v1108, %v1107
  %v1136 = vpack.c.b16 %v1110, %v1109
  %v1137 = vpack.c.b16 %v1112, %v1111
  %v1138 = vpack.c.b16 %v1114, %v1113
  %v1139 = vpack.c.b16 %v1116, %v1115
  %v1140 = vpack.c.b16 %v1118, %v1117
  %v1141 = vpack.c.b16 %v1120, %v1119
  %v1142 = vpack.c.b16 %v1122, %v1121
  %v1143 = vpack.c.b16 %v1124, %v1123
  %v1144 = vpack.c.b16 %v1126, %v1125
  %v1164 = vsel %vm68, %v978, 0
  %v1167 = vsel %vm68, %v981, 0
  %1169 = vmatprep.subr.bf16.mxu0 0
  %1170 = vmatpush1.bf16.msra.mxu0 %v1134
  %1171 = vmatprep.subr.bf16.mxu0 0
  %1172 = vmatpush1.bf16.msra.mxu0 %v1133
  %1173 = vmatprep.subr.bf16.mxu0 0
  %1174 = vmatpush1.bf16.msra.mxu0 %v1132
  %1175 = vmatprep.subr.bf16.mxu0 0
  %1176 = vmatpush1.bf16.msra.mxu0 %v1131
  %1177 = vmatprep.subr.bf16.mxu0 0
  %1178 = vmatpush1.bf16.msra.mxu0 %v1130
  %1179 = vmatprep.subr.bf16.mxu0 0
  %1180 = vmatpush1.bf16.msra.mxu0 %v1129
  %1181 = vmatprep.subr.bf16.mxu0 0
  %1182 = vmatpush1.bf16.msra.mxu0 %v1128
  %1183 = vmatprep.subr.bf16.mxu0 0
  %1184 = vmatpush1.bf16.msra.mxu0 %v1127
  %1185 = vmatprep.subr.bf16.mxu0 0
  %1186 = vmatpush2.bf16.msra.mxu0 %v1142
  %1187 = vmatprep.subr.bf16.mxu0 0
  %1188 = vmatpush2.bf16.msra.mxu0 %v1141
  %1189 = vmatprep.subr.bf16.mxu0 0
  %1190 = vmatpush2.bf16.msra.mxu0 %v1140
  %1191 = vmatprep.subr.bf16.mxu0 0
  %1192 = vmatpush2.bf16.msra.mxu0 %v1139
  %1193 = vmatprep.subr.bf16.mxu0 0
  %1194 = vmatpush2.bf16.msra.mxu0 %v1138
  %1195 = vmatprep.subr.bf16.mxu0 0
  %1196 = vmatpush2.bf16.msra.mxu0 %v1137
  %1197 = vmatprep.subr.bf16.mxu0 0
  %1198 = vmatpush2.bf16.msra.mxu0 %v1136
  %1199 = vmatprep.subr.bf16.mxu0 0
  %1200 = vmatpush2.bf16.msra.mxu0 %v1135
  %1201 = vmatprep.mubr.bf16.mxu0 %v977
  %1202 = vmatmul.mubr.bf16.gmra.mxu0 %v976
  %v1203 = vpop.f32.mrf.mxu0
  %v1204 = vadd.f32 0.0, %v1203
  %v1205 = vpop.f32.mrf.mxu0
  %v1206 = vpop.f32.mrf.mxu0
  %v1207 = vadd.f32 0.0, %v1206
  %v1208 = vpop.f32.mrf.mxu0
  %1209 = vmatprep.mubr.bf16.mxu0 %v980
  %1210 = vmatmul.mubr.bf16.gmra.mxu0 %v979
  %v1211 = vpop.f32.mrf.mxu0
  %v1212 = vadd.f32 0.0, %v1211
  %v1213 = vpop.f32.mrf.mxu0
  %v1214 = vpop.f32.mrf.mxu0
  %v1215 = vadd.f32 0.0, %v1214
  %v1216 = vpop.f32.mrf.mxu0
  %1217 = vdwg.mxu0
  %1218 = vmatprep.subr.bf16.mxu0 0
  %1219 = vmatpush1.bf16.msra.mxu0 0
  %1220 = vmatprep.subr.bf16.mxu0 0
  %1221 = vmatpush1.bf16.msra.mxu0 0
  %1222 = vmatprep.subr.bf16.mxu0 0
  %1223 = vmatpush1.bf16.msra.mxu0 0
  %1224 = vmatprep.subr.bf16.mxu0 0
  %1225 = vmatpush1.bf16.msra.mxu0 0
  %1226 = vmatprep.subr.bf16.mxu0 0
  %1227 = vmatpush1.bf16.msra.mxu0 0
  %1228 = vmatprep.subr.bf16.mxu0 0
  %1229 = vmatpush1.bf16.msra.mxu0 0
  %1230 = vmatprep.subr.bf16.mxu0 0
  %1231 = vmatpush1.bf16.msra.mxu0 %v1144
  %1232 = vmatprep.subr.bf16.mxu0 0
  %1233 = vmatpush1.bf16.msra.mxu0 %v1143
  %1234 = vmatprep.subr.bf16.mxu0 0
  %1235 = vmatpush2.bf16.msra.mxu0 0
  %1236 = vmatprep.subr.bf16.mxu0 0
  %1237 = vmatpush2.bf16.msra.mxu0 0
  %1238 = vmatprep.subr.bf16.mxu0 0
  %1239 = vmatpush2.bf16.msra.mxu0 0
  %1240 = vmatprep.subr.bf16.mxu0 0
  %1241 = vmatpush2.bf16.msra.mxu0 0
  %1242 = vmatprep.subr.bf16.mxu0 0
  %1243 = vmatpush2.bf16.msra.mxu0 0
  %1244 = vmatprep.subr.bf16.mxu0 0
  %1245 = vmatpush2.bf16.msra.mxu0 0
  %1246 = vmatprep.subr.bf16.mxu0 0
  %1247 = vmatpush2.bf16.msra.mxu0 0
  %1248 = vmatprep.subr.bf16.mxu0 0
  %1249 = vmatpush2.bf16.msra.mxu0 0
  %1250 = vmatprep.mubr.bf16.mxu0 0
  %1251 = vmatmul.mubr.bf16.gmra.mxu0 %v1164
  %v1252 = vpop.f32.mrf.mxu0
  %v1253 = vadd.f32 %v1204, %v1252
  %v1254 = vpop.f32.mrf.mxu0
  %v1255 = vpop.f32.mrf.mxu0
  %v1256 = vadd.f32 %v1207, %v1255
  %v1257 = vpop.f32.mrf.mxu0
  %1258 = vmatprep.mubr.bf16.mxu0 0
  %1259 = vmatmul.mubr.bf16.gmra.mxu0 %v1167
  %v1260 = vpop.f32.mrf.mxu0
  %v1261 = vadd.f32 %v1212, %v1260
  %v1262 = vpop.f32.mrf.mxu0
  %v1263 = vpop.f32.mrf.mxu0
  %v1264 = vadd.f32 %v1215, %v1263
  %v1265 = vpop.f32.mrf.mxu0
  %1266 = vdwg.mxu0
  %v1303 = vunpack.c.l.b16 %v982
  %v1304 = vunpack.c.l.b16 %v983
  %v1305 = vunpack.c.l.b16 %v984
  %v1306 = vunpack.c.l.b16 %v985
  %v1307 = vunpack.c.l.b16 %v986
  %v1308 = vunpack.c.l.b16 %v987
  %v1309 = vunpack.c.l.b16 %v988
  %v1310 = vunpack.c.l.b16 %v989
  %v1311 = vunpack.c.l.b16 %v990
  %v1312 = vunpack.c.l.b16 %v991
  %v1313 = vunpack.c.l.b16 %v992
  %v1314 = vunpack.c.l.b16 %v993
  %v1315 = vunpack.c.l.b16 %v994
  %v1316 = vunpack.c.l.b16 %v995
  %v1317 = vunpack.c.l.b16 %v996
  %v1318 = vunpack.c.l.b16 %v997
  %v1319 = vunpack.c.l.b16 %v998
  %v1320 = vunpack.c.l.b16 %v999
  %v1321 = vunpack.c.l.b16 %v1000
  %v1322 = vunpack.c.l.b16 %v1001
  %v1323 = vunpack.c.l.b16 %v1002
  %v1324 = vunpack.c.l.b16 %v1003
  %v1325 = vunpack.c.l.b16 %v1004
  %v1326 = vunpack.c.l.b16 %v1005
  %v1327 = vunpack.c.l.b16 %v1006
  %v1328 = vunpack.c.l.b16 %v1007
  %v1329 = vunpack.c.l.b16 %v1008
  %v1330 = vunpack.c.l.b16 %v1009
  %v1331 = vunpack.c.l.b16 %v1010
  %v1332 = vunpack.c.l.b16 %v1011
  %v1333 = vunpack.c.l.b16 %v1012
  %v1334 = vunpack.c.l.b16 %v1013
  %v1335 = vunpack.c.l.b16 %v1014
  %v1336 = vunpack.c.l.b16 %v1015
  %v1337 = vunpack.c.l.b16 %v1016
  %v1338 = vunpack.c.l.b16 %v1017
  %v1339 = vpack.c.b16 %v1304, %v1303
  %v1340 = vpack.c.b16 %v1306, %v1305
  %v1341 = vpack.c.b16 %v1308, %v1307
  %v1342 = vpack.c.b16 %v1310, %v1309
  %v1343 = vpack.c.b16 %v1312, %v1311
  %v1344 = vpack.c.b16 %v1314, %v1313
  %v1345 = vpack.c.b16 %v1316, %v1315
  %v1346 = vpack.c.b16 %v1318, %v1317
  %v1347 = vpack.c.b16 %v1320, %v1319
  %v1348 = vpack.c.b16 %v1322, %v1321
  %v1349 = vpack.c.b16 %v1324, %v1323
  %v1350 = vpack.c.b16 %v1326, %v1325
  %v1351 = vpack.c.b16 %v1328, %v1327
  %v1352 = vpack.c.b16 %v1330, %v1329
  %v1353 = vpack.c.b16 %v1332, %v1331
  %v1354 = vpack.c.b16 %v1334, %v1333
  %v1355 = vpack.c.b16 %v1336, %v1335
  %v1356 = vpack.c.b16 %v1338, %v1337
  %v1376 = vsel %vm68, %v969, 0
  %v1379 = vsel %vm68, %v972, 0
  %1381 = vmatprep.subr.bf16.mxu0 0
  %1382 = vmatpush1.bf16.msra.mxu0 %v1346
  %1383 = vmatprep.subr.bf16.mxu0 0
  %1384 = vmatpush1.bf16.msra.mxu0 %v1345
  %1385 = vmatprep.subr.bf16.mxu0 0
  %1386 = vmatpush1.bf16.msra.mxu0 %v1344
  %1387 = vmatprep.subr.bf16.mxu0 0
  %1388 = vmatpush1.bf16.msra.mxu0 %v1343
  %1389 = vmatprep.subr.bf16.mxu0 0
  %1390 = vmatpush1.bf16.msra.mxu0 %v1342
  %1391 = vmatprep.subr.bf16.mxu0 0
  %1392 = vmatpush1.bf16.msra.mxu0 %v1341
  %1393 = vmatprep.subr.bf16.mxu0 0
  %1394 = vmatpush1.bf16.msra.mxu0 %v1340
  %1395 = vmatprep.subr.bf16.mxu0 0
  %1396 = vmatpush1.bf16.msra.mxu0 %v1339
  %1397 = vmatprep.subr.bf16.mxu0 0
  %1398 = vmatpush2.bf16.msra.mxu0 %v1354
  %1399 = vmatprep.subr.bf16.mxu0 0
  %1400 = vmatpush2.bf16.msra.mxu0 %v1353
  %1401 = vmatprep.subr.bf16.mxu0 0
  %1402 = vmatpush2.bf16.msra.mxu0 %v1352
  %1403 = vmatprep.subr.bf16.mxu0 0
  %1404 = vmatpush2.bf16.msra.mxu0 %v1351
  %1405 = vmatprep.subr.bf16.mxu0 0
  %1406 = vmatpush2.bf16.msra.mxu0 %v1350
  %1407 = vmatprep.subr.bf16.mxu0 0
  %1408 = vmatpush2.bf16.msra.mxu0 %v1349
  %1409 = vmatprep.subr.bf16.mxu0 0
  %1410 = vmatpush2.bf16.msra.mxu0 %v1348
  %1411 = vmatprep.subr.bf16.mxu0 0
  %1412 = vmatpush2.bf16.msra.mxu0 %v1347
  %1413 = vmatprep.mubr.bf16.mxu0 %v968
  %1414 = vmatmul.mubr.bf16.gmra.mxu0 %v967
  %v1415 = vpop.f32.mrf.mxu0
  %v1416 = vadd.f32 %v1253, %v1415
  %v1417 = vpop.f32.mrf.mxu0
  %v1418 = vpop.f32.mrf.mxu0
  %v1419 = vadd.f32 %v1256, %v1418
  %v1420 = vpop.f32.mrf.mxu0
  %1421 = vmatprep.mubr.bf16.mxu0 %v971
  %1422 = vmatmul.mubr.bf16.gmra.mxu0 %v970
  %v1423 = vpop.f32.mrf.mxu0
  %v1424 = vadd.f32 %v1261, %v1423
  %v1425 = vpop.f32.mrf.mxu0
  %v1426 = vpop.f32.mrf.mxu0
  %v1427 = vadd.f32 %v1264, %v1426
  %v1428 = vpop.f32.mrf.mxu0
  %1429 = vdwg.mxu0
  %1430 = vmatprep.subr.bf16.mxu0 0
  %1431 = vmatpush1.bf16.msra.mxu0 0
  %1432 = vmatprep.subr.bf16.mxu0 0
  %1433 = vmatpush1.bf16.msra.mxu0 0
  %1434 = vmatprep.subr.bf16.mxu0 0
  %1435 = vmatpush1.bf16.msra.mxu0 0
  %1436 = vmatprep.subr.bf16.mxu0 0
  %1437 = vmatpush1.bf16.msra.mxu0 0
  %1438 = vmatprep.subr.bf16.mxu0 0
  %1439 = vmatpush1.bf16.msra.mxu0 0
  %1440 = vmatprep.subr.bf16.mxu0 0
  %1441 = vmatpush1.bf16.msra.mxu0 0
  %1442 = vmatprep.subr.bf16.mxu0 0
  %1443 = vmatpush1.bf16.msra.mxu0 %v1356
  %1444 = vmatprep.subr.bf16.mxu0 0
  %1445 = vmatpush1.bf16.msra.mxu0 %v1355
  %1446 = vmatprep.subr.bf16.mxu0 0
  %1447 = vmatpush2.bf16.msra.mxu0 0
  %1448 = vmatprep.subr.bf16.mxu0 0
  %1449 = vmatpush2.bf16.msra.mxu0 0
  %1450 = vmatprep.subr.bf16.mxu0 0
  %1451 = vmatpush2.bf16.msra.mxu0 0
  %1452 = vmatprep.subr.bf16.mxu0 0
  %1453 = vmatpush2.bf16.msra.mxu0 0
  %1454 = vmatprep.subr.bf16.mxu0 0
  %1455 = vmatpush2.bf16.msra.mxu0 0
  %1456 = vmatprep.subr.bf16.mxu0 0
  %1457 = vmatpush2.bf16.msra.mxu0 0
  %1458 = vmatprep.subr.bf16.mxu0 0
  %1459 = vmatpush2.bf16.msra.mxu0 0
  %1460 = vmatprep.subr.bf16.mxu0 0
  %1461 = vmatpush2.bf16.msra.mxu0 0
  %1462 = vmatprep.mubr.bf16.mxu0 0
  %1463 = vmatmul.mubr.bf16.gmra.mxu0 %v1376
  %v1464 = vpop.f32.mrf.mxu0
  %v1465 = vadd.f32 %v1416, %v1464
  %v1466 = vpop.f32.mrf.mxu0
  %v1467 = vpop.f32.mrf.mxu0
  %v1468 = vadd.f32 %v1419, %v1467
  %v1469 = vpop.f32.mrf.mxu0
  %1470 = vmatprep.mubr.bf16.mxu0 0
  %1471 = vmatmul.mubr.bf16.gmra.mxu0 %v1379
  %v1472 = vpop.f32.mrf.mxu0
  %v1473 = vadd.f32 %v1424, %v1472
  %v1474 = vpop.f32.mrf.mxu0
  %v1475 = vpop.f32.mrf.mxu0
  %v1476 = vadd.f32 %v1427, %v1475
  %v1477 = vpop.f32.mrf.mxu0
  %1478 = vdwg.mxu0
  %v1479 = vpack.c.bf16 %v1468, %v1465
  %v1480 = vpack.c.bf16 %v1476, %v1473
  %v1481 = vmul.f32 %v1465, %v1465
  %v1482 = vmul.f32 %v1468, %v1468
  %v1483 = vmul.f32 %v1473, %v1473
  %v1484 = vmul.f32 %v1476, %v1476
  %v1485 = vpack.c.bf16 %v1482, %v1481
  %v1486 = vpack.c.bf16 %v1484, %v1483
  %v1487 = vld [vmem:[#allocation2 + $0x30] sm:$0xff]
  %v1488 = vld [vmem:[#allocation2 + $0x38] sm:$0xff]
  %v1489 = vld [vmem:[#allocation2 + $0x40] sm:$0xff]
  %v1490 = vld [vmem:[#allocation2 + $0x48] sm:$0xff]
  %v1491 = vld [vmem:[#allocation2 + $0x50] sm:$0xff]
  %v1492 = vld [vmem:[#allocation2 + $0x58] sm:$0xff]
  %v1493 = vld [vmem:[#allocation2 + $0x60] sm:$0xff]
  %v1494 = vld [vmem:[#allocation2 + $0x68] sm:$0xff]
  %v1495 = vld [vmem:[#allocation2 + $0x70] sm:$0xff]
  %v1496 = vld [vmem:[#allocation2 + $0x78] sm:$0xff]
  %v1497 = vld [vmem:[#allocation2 + $0x80] sm:$0xff]
  %v1498 = vld [vmem:[#allocation2 + $0x88] sm:$0xff]
  %v1499 = vpack.c.bf16 %v1490, %v1487
  %v1500 = vpack.c.bf16 %v1491, %v1488
  %v1501 = vpack.c.bf16 %v1492, %v1489
  %v1502 = vpack.c.bf16 %v1496, %v1493
  %v1503 = vpack.c.bf16 %v1497, %v1494
  %v1504 = vpack.c.bf16 %v1498, %v1495
  %s1505 = scalar_lea.vmem %s6, 288
  %v1506 = vld [vmem:[%s1505] sm:$0xf]
  %v1507 = vld [vmem:[%s1505 + $0x4] sm:$0xf]
  %v1508 = vld [vmem:[%s1505 + $0x8] sm:$0xf]
  %v1509 = vld [vmem:[%s1505 + $0xc] sm:$0xf]
  %v1510 = vld [vmem:[%s1505 + $0x10] sm:$0xf]
  %v1511 = vld [vmem:[%s1505 + $0x14] sm:$0xf]
  %v1512 = vld [vmem:[%s1505 + $0x18] sm:$0xf]
  %v1513 = vld [vmem:[%s1505 + $0x1c] sm:$0xf]
  %v1514 = vld [vmem:[%s1505 + $0x20] sm:$0xf]
  %v1515 = vld [vmem:[%s1505 + $0x24] sm:$0xf]
  %v1516 = vld [vmem:[%s1505 + $0x28] sm:$0xf]
  %v1517 = vld [vmem:[%s1505 + $0x2c] sm:$0xf]
  %v1518 = vld [vmem:[%s1505 + $0x30] sm:$0xf]
  %v1519 = vld [vmem:[%s1505 + $0x34] sm:$0xf]
  %v1520 = vld [vmem:[%s1505 + $0x38] sm:$0xf]
  %v1521 = vld [vmem:[%s1505 + $0x3c] sm:$0xf]
  %v1522 = vld [vmem:[%s1505 + $0x40] sm:$0xf]
  %v1523 = vld [vmem:[%s1505 + $0x44] sm:$0xf]
  %v1524 = vld [vmem:[%s1505 + $0x48] sm:$0xf]
  %v1525 = vld [vmem:[%s1505 + $0x4c] sm:$0xf]
  %v1526 = vld [vmem:[%s1505 + $0x50] sm:$0xf]
  %v1527 = vld [vmem:[%s1505 + $0x54] sm:$0xf]
  %v1528 = vld [vmem:[%s1505 + $0x58] sm:$0xf]
  %v1529 = vld [vmem:[%s1505 + $0x5c] sm:$0xf]
  %v1530 = vld [vmem:[%s1505 + $0x60] sm:$0xf]
  %v1531 = vld [vmem:[%s1505 + $0x64] sm:$0xf]
  %v1532 = vld [vmem:[%s1505 + $0x68] sm:$0xf]
  %v1533 = vld [vmem:[%s1505 + $0x6c] sm:$0xf]
  %v1534 = vld [vmem:[%s1505 + $0x70] sm:$0xf]
  %v1535 = vld [vmem:[%s1505 + $0x74] sm:$0xf]
  %v1536 = vld [vmem:[%s1505 + $0x78] sm:$0xf]
  %v1537 = vld [vmem:[%s1505 + $0x7c] sm:$0xf]
  %v1538 = vld [vmem:[%s1505 + $0x80] sm:$0xf]
  %v1539 = vld [vmem:[%s1505 + $0x84] sm:$0xf]
  %v1540 = vld [vmem:[%s1505 + $0x88] sm:$0xf]
  %v1541 = vld [vmem:[%s1505 + $0x8c] sm:$0xf]
  %s1542 = scalar_lea.vmem %s6, 432
  %v1543 = vld [vmem:[%s1542] sm:$0xf]
  %v1544 = vld [vmem:[%s1542 + $0x4] sm:$0xf]
  %v1545 = vld [vmem:[%s1542 + $0x8] sm:$0xf]
  %v1546 = vld [vmem:[%s1542 + $0xc] sm:$0xf]
  %v1547 = vld [vmem:[%s1542 + $0x10] sm:$0xf]
  %v1548 = vld [vmem:[%s1542 + $0x14] sm:$0xf]
  %v1549 = vld [vmem:[%s1542 + $0x18] sm:$0xf]
  %v1550 = vld [vmem:[%s1542 + $0x1c] sm:$0xf]
  %v1551 = vld [vmem:[%s1542 + $0x20] sm:$0xf]
  %v1552 = vld [vmem:[%s1542 + $0x24] sm:$0xf]
  %v1553 = vld [vmem:[%s1542 + $0x28] sm:$0xf]
  %v1554 = vld [vmem:[%s1542 + $0x2c] sm:$0xf]
  %v1555 = vld [vmem:[%s1542 + $0x30] sm:$0xf]
  %v1556 = vld [vmem:[%s1542 + $0x34] sm:$0xf]
  %v1557 = vld [vmem:[%s1542 + $0x38] sm:$0xf]
  %v1558 = vld [vmem:[%s1542 + $0x3c] sm:$0xf]
  %v1559 = vld [vmem:[%s1542 + $0x40] sm:$0xf]
  %v1560 = vld [vmem:[%s1542 + $0x44] sm:$0xf]
  %v1561 = vld [vmem:[%s1542 + $0x48] sm:$0xf]
  %v1562 = vld [vmem:[%s1542 + $0x4c] sm:$0xf]
  %v1563 = vld [vmem:[%s1542 + $0x50] sm:$0xf]
  %v1564 = vld [vmem:[%s1542 + $0x54] sm:$0xf]
  %v1565 = vld [vmem:[%s1542 + $0x58] sm:$0xf]
  %v1566 = vld [vmem:[%s1542 + $0x5c] sm:$0xf]
  %v1567 = vld [vmem:[%s1542 + $0x60] sm:$0xf]
  %v1568 = vld [vmem:[%s1542 + $0x64] sm:$0xf]
  %v1569 = vld [vmem:[%s1542 + $0x68] sm:$0xf]
  %v1570 = vld [vmem:[%s1542 + $0x6c] sm:$0xf]
  %v1571 = vld [vmem:[%s1542 + $0x70] sm:$0xf]
  %v1572 = vld [vmem:[%s1542 + $0x74] sm:$0xf]
  %v1573 = vld [vmem:[%s1542 + $0x78] sm:$0xf]
  %v1574 = vld [vmem:[%s1542 + $0x7c] sm:$0xf]
  %v1575 = vld [vmem:[%s1542 + $0x80] sm:$0xf]
  %v1576 = vld [vmem:[%s1542 + $0x84] sm:$0xf]
  %v1577 = vld [vmem:[%s1542 + $0x88] sm:$0xf]
  %v1578 = vld [vmem:[%s1542 + $0x8c] sm:$0xf]
  %v1615 = vunpack.c.l.b16 %v1543
  %v1616 = vunpack.c.l.b16 %v1544
  %v1617 = vunpack.c.l.b16 %v1545
  %v1618 = vunpack.c.l.b16 %v1546
  %v1619 = vunpack.c.l.b16 %v1547
  %v1620 = vunpack.c.l.b16 %v1548
  %v1621 = vunpack.c.l.b16 %v1549
  %v1622 = vunpack.c.l.b16 %v1550
  %v1623 = vunpack.c.l.b16 %v1551
  %v1624 = vunpack.c.l.b16 %v1552
  %v1625 = vunpack.c.l.b16 %v1553
  %v1626 = vunpack.c.l.b16 %v1554
  %v1627 = vunpack.c.l.b16 %v1555
  %v1628 = vunpack.c.l.b16 %v1556
  %v1629 = vunpack.c.l.b16 %v1557
  %v1630 = vunpack.c.l.b16 %v1558
  %v1631 = vunpack.c.l.b16 %v1559
  %v1632 = vunpack.c.l.b16 %v1560
  %v1633 = vunpack.c.l.b16 %v1561
  %v1634 = vunpack.c.l.b16 %v1562
  %v1635 = vunpack.c.l.b16 %v1563
  %v1636 = vunpack.c.l.b16 %v1564
  %v1637 = vunpack.c.l.b16 %v1565
  %v1638 = vunpack.c.l.b16 %v1566
  %v1639 = vunpack.c.l.b16 %v1567
  %v1640 = vunpack.c.l.b16 %v1568
  %v1641 = vunpack.c.l.b16 %v1569
  %v1642 = vunpack.c.l.b16 %v1570
  %v1643 = vunpack.c.l.b16 %v1571
  %v1644 = vunpack.c.l.b16 %v1572
  %v1645 = vunpack.c.l.b16 %v1573
  %v1646 = vunpack.c.l.b16 %v1574
  %v1647 = vunpack.c.l.b16 %v1575
  %v1648 = vunpack.c.l.b16 %v1576
  %v1649 = vunpack.c.l.b16 %v1577
  %v1650 = vunpack.c.l.b16 %v1578
  %v1651 = vpack.c.b16 %v1616, %v1615
  %v1652 = vpack.c.b16 %v1618, %v1617
  %v1653 = vpack.c.b16 %v1620, %v1619
  %v1654 = vpack.c.b16 %v1622, %v1621
  %v1655 = vpack.c.b16 %v1624, %v1623
  %v1656 = vpack.c.b16 %v1626, %v1625
  %v1657 = vpack.c.b16 %v1628, %v1627
  %v1658 = vpack.c.b16 %v1630, %v1629
  %v1659 = vpack.c.b16 %v1632, %v1631
  %v1660 = vpack.c.b16 %v1634, %v1633
  %v1661 = vpack.c.b16 %v1636, %v1635
  %v1662 = vpack.c.b16 %v1638, %v1637
  %v1663 = vpack.c.b16 %v1640, %v1639
  %v1664 = vpack.c.b16 %v1642, %v1641
  %v1665 = vpack.c.b16 %v1644, %v1643
  %v1666 = vpack.c.b16 %v1646, %v1645
  %v1667 = vpack.c.b16 %v1648, %v1647
  %v1668 = vpack.c.b16 %v1650, %v1649
  %v1688 = vsel %vm68, %v1501, 0
  %v1691 = vsel %vm68, %v1504, 0
  %1693 = vmatprep.subr.bf16.mxu0 0
  %1694 = vmatpush1.bf16.msra.mxu0 %v1658
  %1695 = vmatprep.subr.bf16.mxu0 0
  %1696 = vmatpush1.bf16.msra.mxu0 %v1657
  %1697 = vmatprep.subr.bf16.mxu0 0
  %1698 = vmatpush1.bf16.msra.mxu0 %v1656
  %1699 = vmatprep.subr.bf16.mxu0 0
  %1700 = vmatpush1.bf16.msra.mxu0 %v1655
  %1701 = vmatprep.subr.bf16.mxu0 0
  %1702 = vmatpush1.bf16.msra.mxu0 %v1654
  %1703 = vmatprep.subr.bf16.mxu0 0
  %1704 = vmatpush1.bf16.msra.mxu0 %v1653
  %1705 = vmatprep.subr.bf16.mxu0 0
  %1706 = vmatpush1.bf16.msra.mxu0 %v1652
  %1707 = vmatprep.subr.bf16.mxu0 0
  %1708 = vmatpush1.bf16.msra.mxu0 %v1651
  %1709 = vmatprep.subr.bf16.mxu0 0
  %1710 = vmatpush2.bf16.msra.mxu0 %v1666
  %1711 = vmatprep.subr.bf16.mxu0 0
  %1712 = vmatpush2.bf16.msra.mxu0 %v1665
  %1713 = vmatprep.subr.bf16.mxu0 0
  %1714 = vmatpush2.bf16.msra.mxu0 %v1664
  %1715 = vmatprep.subr.bf16.mxu0 0
  %1716 = vmatpush2.bf16.msra.mxu0 %v1663
  %1717 = vmatprep.subr.bf16.mxu0 0
  %1718 = vmatpush2.bf16.msra.mxu0 %v1662
  %1719 = vmatprep.subr.bf16.mxu0 0
  %1720 = vmatpush2.bf16.msra.mxu0 %v1661
  %1721 = vmatprep.subr.bf16.mxu0 0
  %1722 = vmatpush2.bf16.msra.mxu0 %v1660
  %1723 = vmatprep.subr.bf16.mxu0 0
  %1724 = vmatpush2.bf16.msra.mxu0 %v1659
  %1725 = vmatprep.mubr.bf16.mxu0 %v1500
  %1726 = vmatmul.mubr.bf16.gmra.mxu0 %v1499
  %v1727 = vpop.f32.mrf.mxu0
  %v1728 = vadd.f32 0.0, %v1727
  %v1729 = vpop.f32.mrf.mxu0
  %v1730 = vpop.f32.mrf.mxu0
  %v1731 = vadd.f32 0.0, %v1730
  %v1732 = vpop.f32.mrf.mxu0
  %1733 = vmatprep.mubr.bf16.mxu0 %v1503
  %1734 = vmatmul.mubr.bf16.gmra.mxu0 %v1502
  %v1735 = vpop.f32.mrf.mxu0
  %v1736 = vadd.f32 0.0, %v1735
  %v1737 = vpop.f32.mrf.mxu0
  %v1738 = vpop.f32.mrf.mxu0
  %v1739 = vadd.f32 0.0, %v1738
  %v1740 = vpop.f32.mrf.mxu0
  %1741 = vdwg.mxu0
  %1742 = vmatprep.subr.bf16.mxu0 0
  %1743 = vmatpush1.bf16.msra.mxu0 0
  %1744 = vmatprep.subr.bf16.mxu0 0
  %1745 = vmatpush1.bf16.msra.mxu0 0
  %1746 = vmatprep.subr.bf16.mxu0 0
  %1747 = vmatpush1.bf16.msra.mxu0 0
  %1748 = vmatprep.subr.bf16.mxu0 0
  %1749 = vmatpush1.bf16.msra.mxu0 0
  %1750 = vmatprep.subr.bf16.mxu0 0
  %1751 = vmatpush1.bf16.msra.mxu0 0
  %1752 = vmatprep.subr.bf16.mxu0 0
  %1753 = vmatpush1.bf16.msra.mxu0 0
  %1754 = vmatprep.subr.bf16.mxu0 0
  %1755 = vmatpush1.bf16.msra.mxu0 %v1668
  %1756 = vmatprep.subr.bf16.mxu0 0
  %1757 = vmatpush1.bf16.msra.mxu0 %v1667
  %1758 = vmatprep.subr.bf16.mxu0 0
  %1759 = vmatpush2.bf16.msra.mxu0 0
  %1760 = vmatprep.subr.bf16.mxu0 0
  %1761 = vmatpush2.bf16.msra.mxu0 0
  %1762 = vmatprep.subr.bf16.mxu0 0
  %1763 = vmatpush2.bf16.msra.mxu0 0
  %1764 = vmatprep.subr.bf16.mxu0 0
  %1765 = vmatpush2.bf16.msra.mxu0 0
  %1766 = vmatprep.subr.bf16.mxu0 0
  %1767 = vmatpush2.bf16.msra.mxu0 0
  %1768 = vmatprep.subr.bf16.mxu0 0
  %1769 = vmatpush2.bf16.msra.mxu0 0
  %1770 = vmatprep.subr.bf16.mxu0 0
  %1771 = vmatpush2.bf16.msra.mxu0 0
  %1772 = vmatprep.subr.bf16.mxu0 0
  %1773 = vmatpush2.bf16.msra.mxu0 0
  %1774 = vmatprep.mubr.bf16.mxu0 0
  %1775 = vmatmul.mubr.bf16.gmra.mxu0 %v1688
  %v1776 = vpop.f32.mrf.mxu0
  %v1777 = vadd.f32 %v1728, %v1776
  %v1778 = vpop.f32.mrf.mxu0
  %v1779 = vpop.f32.mrf.mxu0
  %v1780 = vadd.f32 %v1731, %v1779
  %v1781 = vpop.f32.mrf.mxu0
  %1782 = vmatprep.mubr.bf16.mxu0 0
  %1783 = vmatmul.mubr.bf16.gmra.mxu0 %v1691
  %v1784 = vpop.f32.mrf.mxu0
  %v1785 = vadd.f32 %v1736, %v1784
  %v1786 = vpop.f32.mrf.mxu0
  %v1787 = vpop.f32.mrf.mxu0
  %v1788 = vadd.f32 %v1739, %v1787
  %v1789 = vpop.f32.mrf.mxu0
  %1790 = vdwg.mxu0
  %v1827 = vunpack.c.l.b16 %v1506
  %v1828 = vunpack.c.l.b16 %v1507
  %v1829 = vunpack.c.l.b16 %v1508
  %v1830 = vunpack.c.l.b16 %v1509
  %v1831 = vunpack.c.l.b16 %v1510
  %v1832 = vunpack.c.l.b16 %v1511
  %v1833 = vunpack.c.l.b16 %v1512
  %v1834 = vunpack.c.l.b16 %v1513
  %v1835 = vunpack.c.l.b16 %v1514
  %v1836 = vunpack.c.l.b16 %v1515
  %v1837 = vunpack.c.l.b16 %v1516
  %v1838 = vunpack.c.l.b16 %v1517
  %v1839 = vunpack.c.l.b16 %v1518
  %v1840 = vunpack.c.l.b16 %v1519
  %v1841 = vunpack.c.l.b16 %v1520
  %v1842 = vunpack.c.l.b16 %v1521
  %v1843 = vunpack.c.l.b16 %v1522
  %v1844 = vunpack.c.l.b16 %v1523
  %v1845 = vunpack.c.l.b16 %v1524
  %v1846 = vunpack.c.l.b16 %v1525
  %v1847 = vunpack.c.l.b16 %v1526
  %v1848 = vunpack.c.l.b16 %v1527
  %v1849 = vunpack.c.l.b16 %v1528
  %v1850 = vunpack.c.l.b16 %v1529
  %v1851 = vunpack.c.l.b16 %v1530
  %v1852 = vunpack.c.l.b16 %v1531
  %v1853 = vunpack.c.l.b16 %v1532
  %v1854 = vunpack.c.l.b16 %v1533
  %v1855 = vunpack.c.l.b16 %v1534
  %v1856 = vunpack.c.l.b16 %v1535
  %v1857 = vunpack.c.l.b16 %v1536
  %v1858 = vunpack.c.l.b16 %v1537
  %v1859 = vunpack.c.l.b16 %v1538
  %v1860 = vunpack.c.l.b16 %v1539
  %v1861 = vunpack.c.l.b16 %v1540
  %v1862 = vunpack.c.l.b16 %v1541
  %v1863 = vpack.c.b16 %v1828, %v1827
  %v1864 = vpack.c.b16 %v1830, %v1829
  %v1865 = vpack.c.b16 %v1832, %v1831
  %v1866 = vpack.c.b16 %v1834, %v1833
  %v1867 = vpack.c.b16 %v1836, %v1835
  %v1868 = vpack.c.b16 %v1838, %v1837
  %v1869 = vpack.c.b16 %v1840, %v1839
  %v1870 = vpack.c.b16 %v1842, %v1841
  %v1871 = vpack.c.b16 %v1844, %v1843
  %v1872 = vpack.c.b16 %v1846, %v1845
  %v1873 = vpack.c.b16 %v1848, %v1847
  %v1874 = vpack.c.b16 %v1850, %v1849
  %v1875 = vpack.c.b16 %v1852, %v1851
  %v1876 = vpack.c.b16 %v1854, %v1853
  %v1877 = vpack.c.b16 %v1856, %v1855
  %v1878 = vpack.c.b16 %v1858, %v1857
  %v1879 = vpack.c.b16 %v1860, %v1859
  %v1880 = vpack.c.b16 %v1862, %v1861
  %1899 = vmatprep.subr.bf16.mxu0 0
  %1900 = vmatpush1.bf16.msra.mxu0 %v1870
  %1901 = vmatprep.subr.bf16.mxu0 0
  %1902 = vmatpush1.bf16.msra.mxu0 %v1869
  %1903 = vmatprep.subr.bf16.mxu0 0
  %1904 = vmatpush1.bf16.msra.mxu0 %v1868
  %1905 = vmatprep.subr.bf16.mxu0 0
  %1906 = vmatpush1.bf16.msra.mxu0 %v1867
  %1907 = vmatprep.subr.bf16.mxu0 0
  %1908 = vmatpush1.bf16.msra.mxu0 %v1866
  %1909 = vmatprep.subr.bf16.mxu0 0
  %1910 = vmatpush1.bf16.msra.mxu0 %v1865
  %1911 = vmatprep.subr.bf16.mxu0 0
  %1912 = vmatpush1.bf16.msra.mxu0 %v1864
  %1913 = vmatprep.subr.bf16.mxu0 0
  %1914 = vmatpush1.bf16.msra.mxu0 %v1863
  %1915 = vmatprep.subr.bf16.mxu0 0
  %1916 = vmatpush2.bf16.msra.mxu0 %v1878
  %1917 = vmatprep.subr.bf16.mxu0 0
  %1918 = vmatpush2.bf16.msra.mxu0 %v1877
  %1919 = vmatprep.subr.bf16.mxu0 0
  %1920 = vmatpush2.bf16.msra.mxu0 %v1876
  %1921 = vmatprep.subr.bf16.mxu0 0
  %1922 = vmatpush2.bf16.msra.mxu0 %v1875
  %1923 = vmatprep.subr.bf16.mxu0 0
  %1924 = vmatpush2.bf16.msra.mxu0 %v1874
  %1925 = vmatprep.subr.bf16.mxu0 0
  %1926 = vmatpush2.bf16.msra.mxu0 %v1873
  %1927 = vmatprep.subr.bf16.mxu0 0
  %1928 = vmatpush2.bf16.msra.mxu0 %v1872
  %1929 = vmatprep.subr.bf16.mxu0 0
  %1930 = vmatpush2.bf16.msra.mxu0 %v1871
  %1931 = vmatprep.mubr.bf16.mxu0 %v977
  %1932 = vmatmul.mubr.bf16.gmra.mxu0 %v976
  %v1933 = vpop.f32.mrf.mxu0
  %v1934 = vadd.f32 %v1777, %v1933
  %v1935 = vpop.f32.mrf.mxu0
  %v1936 = vpop.f32.mrf.mxu0
  %v1937 = vadd.f32 %v1780, %v1936
  %v1938 = vpop.f32.mrf.mxu0
  %1939 = vmatprep.mubr.bf16.mxu0 %v980
  %1940 = vmatmul.mubr.bf16.gmra.mxu0 %v979
  %v1941 = vpop.f32.mrf.mxu0
  %v1942 = vadd.f32 %v1785, %v1941
  %v1943 = vpop.f32.mrf.mxu0
  %v1944 = vpop.f32.mrf.mxu0
  %v1945 = vadd.f32 %v1788, %v1944
  %v1946 = vpop.f32.mrf.mxu0
  %1947 = vdwg.mxu0
  %1948 = vmatprep.subr.bf16.mxu0 0
  %1949 = vmatpush1.bf16.msra.mxu0 0
  %1950 = vmatprep.subr.bf16.mxu0 0
  %1951 = vmatpush1.bf16.msra.mxu0 0
  %1952 = vmatprep.subr.bf16.mxu0 0
  %1953 = vmatpush1.bf16.msra.mxu0 0
  %1954 = vmatprep.subr.bf16.mxu0 0
  %1955 = vmatpush1.bf16.msra.mxu0 0
  %1956 = vmatprep.subr.bf16.mxu0 0
  %1957 = vmatpush1.bf16.msra.mxu0 0
  %1958 = vmatprep.subr.bf16.mxu0 0
  %1959 = vmatpush1.bf16.msra.mxu0 0
  %1960 = vmatprep.subr.bf16.mxu0 0
  %1961 = vmatpush1.bf16.msra.mxu0 %v1880
  %1962 = vmatprep.subr.bf16.mxu0 0
  %1963 = vmatpush1.bf16.msra.mxu0 %v1879
  %1964 = vmatprep.subr.bf16.mxu0 0
  %1965 = vmatpush2.bf16.msra.mxu0 0
  %1966 = vmatprep.subr.bf16.mxu0 0
  %1967 = vmatpush2.bf16.msra.mxu0 0
  %1968 = vmatprep.subr.bf16.mxu0 0
  %1969 = vmatpush2.bf16.msra.mxu0 0
  %1970 = vmatprep.subr.bf16.mxu0 0
  %1971 = vmatpush2.bf16.msra.mxu0 0
  %1972 = vmatprep.subr.bf16.mxu0 0
  %1973 = vmatpush2.bf16.msra.mxu0 0
  %1974 = vmatprep.subr.bf16.mxu0 0
  %1975 = vmatpush2.bf16.msra.mxu0 0
  %1976 = vmatprep.subr.bf16.mxu0 0
  %1977 = vmatpush2.bf16.msra.mxu0 0
  %1978 = vmatprep.subr.bf16.mxu0 0
  %1979 = vmatpush2.bf16.msra.mxu0 0
  %1980 = vmatprep.mubr.bf16.mxu0 0
  %1981 = vmatmul.mubr.bf16.gmra.mxu0 %v1164
  %v1982 = vpop.f32.mrf.mxu0
  %v1983 = vadd.f32 %v1934, %v1982
  %v1984 = vpop.f32.mrf.mxu0
  %v1985 = vpop.f32.mrf.mxu0
  %v1986 = vadd.f32 %v1937, %v1985
  %v1987 = vpop.f32.mrf.mxu0
  %1988 = vmatprep.mubr.bf16.mxu0 0
  %1989 = vmatmul.mubr.bf16.gmra.mxu0 %v1167
  %v1990 = vpop.f32.mrf.mxu0
  %v1991 = vadd.f32 %v1942, %v1990
  %v1992 = vpop.f32.mrf.mxu0
  %v1993 = vpop.f32.mrf.mxu0
  %v1994 = vadd.f32 %v1945, %v1993
  %v1995 = vpop.f32.mrf.mxu0
  %1996 = vdwg.mxu0
  %v1997 = vpack.c.bf16 %v1986, %v1983
  %v1998 = vpack.c.bf16 %v1994, %v1991
  %v2000 = vsel %vm68, %v954, 0
  %2002 = vmatprep.subr.bf16.mxu0 0
  %2003 = vmatpush1.bf16.msra.mxu0 0
  %2004 = vmatprep.subr.bf16.mxu0 0
  %2005 = vmatpush1.bf16.msra.mxu0 0
  %2006 = vmatprep.subr.bf16.mxu0 0
  %2007 = vmatpush1.bf16.msra.mxu0 0
  %2008 = vmatprep.subr.bf16.mxu0 0
  %2009 = vmatpush1.bf16.msra.mxu0 0
  %2010 = vmatprep.subr.bf16.mxu0 0
  %2011 = vmatpush1.bf16.msra.mxu0 0
  %2012 = vmatprep.subr.bf16.mxu0 0
  %2013 = vmatpush1.bf16.msra.mxu0 0
  %2014 = vmatprep.subr.bf16.mxu0 0
  %2015 = vmatpush1.bf16.msra.mxu0 %v1998
  %2016 = vmatprep.subr.bf16.mxu0 0
  %2017 = vmatpush1.bf16.msra.mxu0 %v1997
  %2018 = vmatprep.subr.bf16.mxu0 0
  %2019 = vmatpush2.bf16.msra.mxu0 0
  %2020 = vmatprep.subr.bf16.mxu0 0
  %2021 = vmatpush2.bf16.msra.mxu0 0
  %2022 = vmatprep.subr.bf16.mxu0 0
  %2023 = vmatpush2.bf16.msra.mxu0 0
  %2024 = vmatprep.subr.bf16.mxu0 0
  %2025 = vmatpush2.bf16.msra.mxu0 0
  %2026 = vmatprep.subr.bf16.mxu0 0
  %2027 = vmatpush2.bf16.msra.mxu0 0
  %2028 = vmatprep.subr.bf16.mxu0 0
  %2029 = vmatpush2.bf16.msra.mxu0 0
  %2030 = vmatprep.subr.bf16.mxu0 0
  %2031 = vmatpush2.bf16.msra.mxu0 0
  %2032 = vmatprep.subr.bf16.mxu0 0
  %2033 = vmatpush2.bf16.msra.mxu0 0
  %2034 = vmatprep.mubr.bf16.mxu0 0
  %2035 = vmatmul.mubr.bf16.gmra.mxu0 %v2000
  %v2036 = vpop.f32.mrf.mxu0
  %v2037 = vadd.f32 0.0, %v2036
  %v2038 = vpop.f32.mrf.mxu0
  %v2039 = vpop.f32.mrf.mxu0
  %v2040 = vpop.f32.mrf.mxu0
  %2041 = vdwg.mxu0
  %2042 = vmatprep.subr.bf16.mxu0 0
  %2043 = vmatpush1.bf16.msra.mxu0 0
  %2044 = vmatprep.subr.bf16.mxu0 0
  %2045 = vmatpush1.bf16.msra.mxu0 0
  %2046 = vmatprep.subr.bf16.mxu0 0
  %2047 = vmatpush1.bf16.msra.mxu0 0
  %2048 = vmatprep.subr.bf16.mxu0 0
  %2049 = vmatpush1.bf16.msra.mxu0 0
  %2050 = vmatprep.subr.bf16.mxu0 0
  %2051 = vmatpush1.bf16.msra.mxu0 0
  %2052 = vmatprep.subr.bf16.mxu0 0
  %2053 = vmatpush1.bf16.msra.mxu0 0
  %2054 = vmatprep.subr.bf16.mxu0 0
  %2055 = vmatpush1.bf16.msra.mxu0 %v1480
  %2056 = vmatprep.subr.bf16.mxu0 0
  %2057 = vmatpush1.bf16.msra.mxu0 %v1479
  %2058 = vmatprep.subr.bf16.mxu0 0
  %2059 = vmatpush2.bf16.msra.mxu0 0
  %2060 = vmatprep.subr.bf16.mxu0 0
  %2061 = vmatpush2.bf16.msra.mxu0 0
  %2062 = vmatprep.subr.bf16.mxu0 0
  %2063 = vmatpush2.bf16.msra.mxu0 0
  %2064 = vmatprep.subr.bf16.mxu0 0
  %2065 = vmatpush2.bf16.msra.mxu0 0
  %2066 = vmatprep.subr.bf16.mxu0 0
  %2067 = vmatpush2.bf16.msra.mxu0 0
  %2068 = vmatprep.subr.bf16.mxu0 0
  %2069 = vmatpush2.bf16.msra.mxu0 0
  %2070 = vmatprep.subr.bf16.mxu0 0
  %2071 = vmatpush2.bf16.msra.mxu0 0
  %2072 = vmatprep.subr.bf16.mxu0 0
  %2073 = vmatpush2.bf16.msra.mxu0 0
  %2074 = vmatprep.mubr.bf16.mxu0 0
  %2075 = vmatmul.mubr.bf16.gmra.mxu0 %v2000
  %v2076 = vpop.f32.mrf.mxu0
  %v2077 = vadd.f32 %v2037, %v2076
  %v2078 = vpop.f32.mrf.mxu0
  %v2079 = vpop.f32.mrf.mxu0
  %v2080 = vpop.f32.mrf.mxu0
  %2081 = vdwg.mxu0
  %v2082 = vmul.f32 %v1983, %v1983
  %v2083 = vmul.f32 %v1986, %v1986
  %v2084 = vmul.f32 %v1991, %v1991
  %v2085 = vmul.f32 %v1994, %v1994
  %v2086 = vpack.c.bf16 %v2083, %v2082
  %v2087 = vpack.c.bf16 %v2085, %v2084
  %2088 = vmatprep.subr.bf16.mxu0 0
  %2089 = vmatpush1.bf16.msra.mxu0 0
  %2090 = vmatprep.subr.bf16.mxu0 0
  %2091 = vmatpush1.bf16.msra.mxu0 0
  %2092 = vmatprep.subr.bf16.mxu0 0
  %2093 = vmatpush1.bf16.msra.mxu0 0
  %2094 = vmatprep.subr.bf16.mxu0 0
  %2095 = vmatpush1.bf16.msra.mxu0 0
  %2096 = vmatprep.subr.bf16.mxu0 0
  %2097 = vmatpush1.bf16.msra.mxu0 0
  %2098 = vmatprep.subr.bf16.mxu0 0
  %2099 = vmatpush1.bf16.msra.mxu0 0
  %2100 = vmatprep.subr.bf16.mxu0 0
  %2101 = vmatpush1.bf16.msra.mxu0 %v2087
  %2102 = vmatprep.subr.bf16.mxu0 0
  %2103 = vmatpush1.bf16.msra.mxu0 %v2086
  %2104 = vmatprep.subr.bf16.mxu0 0
  %2105 = vmatpush2.bf16.msra.mxu0 0
  %2106 = vmatprep.subr.bf16.mxu0 0
  %2107 = vmatpush2.bf16.msra.mxu0 0
  %2108 = vmatprep.subr.bf16.mxu0 0
  %2109 = vmatpush2.bf16.msra.mxu0 0
  %2110 = vmatprep.subr.bf16.mxu0 0
  %2111 = vmatpush2.bf16.msra.mxu0 0
  %2112 = vmatprep.subr.bf16.mxu0 0
  %2113 = vmatpush2.bf16.msra.mxu0 0
  %2114 = vmatprep.subr.bf16.mxu0 0
  %2115 = vmatpush2.bf16.msra.mxu0 0
  %2116 = vmatprep.subr.bf16.mxu0 0
  %2117 = vmatpush2.bf16.msra.mxu0 0
  %2118 = vmatprep.subr.bf16.mxu0 0
  %2119 = vmatpush2.bf16.msra.mxu0 0
  %2120 = vmatprep.mubr.bf16.mxu0 0
  %2121 = vmatmul.mubr.bf16.gmra.mxu0 %v2000
  %v2122 = vpop.f32.mrf.mxu0
  %v2123 = vadd.f32 0.0, %v2122
  %v2124 = vpop.f32.mrf.mxu0
  %v2125 = vpop.f32.mrf.mxu0
  %v2126 = vpop.f32.mrf.mxu0
  %2127 = vdwg.mxu0
  %2128 = vmatprep.subr.bf16.mxu0 0
  %2129 = vmatpush1.bf16.msra.mxu0 0
  %2130 = vmatprep.subr.bf16.mxu0 0
  %2131 = vmatpush1.bf16.msra.mxu0 0
  %2132 = vmatprep.subr.bf16.mxu0 0
  %2133 = vmatpush1.bf16.msra.mxu0 0
  %2134 = vmatprep.subr.bf16.mxu0 0
  %2135 = vmatpush1.bf16.msra.mxu0 0
  %2136 = vmatprep.subr.bf16.mxu0 0
  %2137 = vmatpush1.bf16.msra.mxu0 0
  %2138 = vmatprep.subr.bf16.mxu0 0
  %2139 = vmatpush1.bf16.msra.mxu0 0
  %2140 = vmatprep.subr.bf16.mxu0 0
  %2141 = vmatpush1.bf16.msra.mxu0 %v1486
  %2142 = vmatprep.subr.bf16.mxu0 0
  %2143 = vmatpush1.bf16.msra.mxu0 %v1485
  %2144 = vmatprep.subr.bf16.mxu0 0
  %2145 = vmatpush2.bf16.msra.mxu0 0
  %2146 = vmatprep.subr.bf16.mxu0 0
  %2147 = vmatpush2.bf16.msra.mxu0 0
  %2148 = vmatprep.subr.bf16.mxu0 0
  %2149 = vmatpush2.bf16.msra.mxu0 0
  %2150 = vmatprep.subr.bf16.mxu0 0
  %2151 = vmatpush2.bf16.msra.mxu0 0
  %2152 = vmatprep.subr.bf16.mxu0 0
  %2153 = vmatpush2.bf16.msra.mxu0 0
  %2154 = vmatprep.subr.bf16.mxu0 0
  %2155 = vmatpush2.bf16.msra.mxu0 0
  %2156 = vmatprep.subr.bf16.mxu0 0
  %2157 = vmatpush2.bf16.msra.mxu0 0
  %2158 = vmatprep.subr.bf16.mxu0 0
  %2159 = vmatpush2.bf16.msra.mxu0 0
  %2160 = vmatprep.mubr.bf16.mxu0 0
  %2161 = vmatmul.mubr.bf16.gmra.mxu0 %v2000
  %v2162 = vpop.f32.mrf.mxu0
  %v2163 = vadd.f32 %v2123, %v2162
  %v2164 = vpop.f32.mrf.mxu0
  %v2165 = vpop.f32.mrf.mxu0
  %v2166 = vpop.f32.mrf.mxu0
  %2167 = vdwg.mxu0
  %v2168 = vld [vmem:[%s7] sm:$0xf]
  %v2169 = vld [vmem:[%s7 + $0x4] sm:$0xf]
  %v2170 = vld [vmem:[%s7 + $0x8] sm:$0xf]
  %v2171 = vld [vmem:[%s7 + $0xc] sm:$0xf]
  %v2172 = vld [vmem:[%s7 + $0x10] sm:$0xf]
  %v2173 = vld [vmem:[%s7 + $0x14] sm:$0xf]
  %v2174 = vld [vmem:[%s7 + $0x18] sm:$0xf]
  %v2175 = vld [vmem:[%s7 + $0x1c] sm:$0xf]
  %v2176 = vld [vmem:[%s7 + $0x20] sm:$0xf]
  %v2177 = vld [vmem:[%s7 + $0x24] sm:$0xf]
  %v2178 = vld [vmem:[%s7 + $0x28] sm:$0xf]
  %v2179 = vld [vmem:[%s7 + $0x2c] sm:$0xf]
  %v2180 = vld [vmem:[%s7 + $0x30] sm:$0xf]
  %v2181 = vld [vmem:[%s7 + $0x34] sm:$0xf]
  %v2182 = vld [vmem:[%s7 + $0x38] sm:$0xf]
  %v2183 = vld [vmem:[%s7 + $0x3c] sm:$0xf]
  %v2184 = vpack.c.bf16 %v2077, %v2077
  %v2201 = vunpack.c.l.b16 %v2168
  %v2202 = vunpack.c.l.b16 %v2169
  %v2203 = vunpack.c.l.b16 %v2170
  %v2204 = vunpack.c.l.b16 %v2171
  %v2205 = vunpack.c.l.b16 %v2172
  %v2206 = vunpack.c.l.b16 %v2173
  %v2207 = vunpack.c.l.b16 %v2174
  %v2208 = vunpack.c.l.b16 %v2175
  %v2209 = vunpack.c.l.b16 %v2176
  %v2210 = vunpack.c.l.b16 %v2177
  %v2211 = vunpack.c.l.b16 %v2178
  %v2212 = vunpack.c.l.b16 %v2179
  %v2213 = vunpack.c.l.b16 %v2180
  %v2214 = vunpack.c.l.b16 %v2181
  %v2215 = vunpack.c.l.b16 %v2182
  %v2216 = vunpack.c.l.b16 %v2183
  %v2217 = vpack.c.b16 %v2202, %v2201
  %v2218 = vpack.c.b16 %v2204, %v2203
  %v2219 = vpack.c.b16 %v2206, %v2205
  %v2220 = vpack.c.b16 %v2208, %v2207
  %v2221 = vpack.c.b16 %v2210, %v2209
  %v2222 = vpack.c.b16 %v2212, %v2211
  %v2223 = vpack.c.b16 %v2214, %v2213
  %v2224 = vpack.c.b16 %v2216, %v2215
  %2233 = vmatprep.subr.bf16.mxu0 0
  %2234 = vmatpush1.bf16.msra.mxu0 %v2224
  %2235 = vmatprep.subr.bf16.mxu0 0
  %2236 = vmatpush1.bf16.msra.mxu0 %v2223
  %2237 = vmatprep.subr.bf16.mxu0 0
  %2238 = vmatpush1.bf16.msra.mxu0 %v2222
  %2239 = vmatprep.subr.bf16.mxu0 0
  %2240 = vmatpush1.bf16.msra.mxu0 %v2221
  %2241 = vmatprep.subr.bf16.mxu0 0
  %2242 = vmatpush1.bf16.msra.mxu0 %v2220
  %2243 = vmatprep.subr.bf16.mxu0 0
  %2244 = vmatpush1.bf16.msra.mxu0 %v2219
  %2245 = vmatprep.subr.bf16.mxu0 0
  %2246 = vmatpush1.bf16.msra.mxu0 %v2218
  %2247 = vmatprep.subr.bf16.mxu0 0
  %2248 = vmatpush1.bf16.msra.mxu0 %v2217
  %2249 = vmatprep.subr.bf16.mxu0 0
  %2250 = vmatpush2.bf16.msra.mxu0 0
  %2251 = vmatprep.subr.bf16.mxu0 0
  %2252 = vmatpush2.bf16.msra.mxu0 0
  %2253 = vmatprep.subr.bf16.mxu0 0
  %2254 = vmatpush2.bf16.msra.mxu0 0
  %2255 = vmatprep.subr.bf16.mxu0 0
  %2256 = vmatpush2.bf16.msra.mxu0 0
  %2257 = vmatprep.subr.bf16.mxu0 0
  %2258 = vmatpush2.bf16.msra.mxu0 0
  %2259 = vmatprep.subr.bf16.mxu0 0
  %2260 = vmatpush2.bf16.msra.mxu0 0
  %2261 = vmatprep.subr.bf16.mxu0 0
  %2262 = vmatpush2.bf16.msra.mxu0 0
  %2263 = vmatprep.subr.bf16.mxu0 0
  %2264 = vmatpush2.bf16.msra.mxu0 0
  %2265 = vmatprep.mubr.bf16.mxu0 0
  %2266 = vmatmul.mubr.bf16.gmra.mxu0 %v2184
  %v2267 = vpop.f32.mrf.mxu0
  %v2268 = vadd.f32 0.0, %v2267
  %v2269 = vpop.f32.mrf.mxu0
  %v2270 = vpop.f32.mrf.mxu0
  %v2271 = vpop.f32.mrf.mxu0
  %2272 = vdwg.mxu0
  %v2273 = vpack.c.bf16 %v2163, %v2163
  %2274 = vmatprep.subr.bf16.mxu0 0
  %2275 = vmatpush1.bf16.msra.mxu0 %v2224
  %2276 = vmatprep.subr.bf16.mxu0 0
  %2277 = vmatpush1.bf16.msra.mxu0 %v2223
  %2278 = vmatprep.subr.bf16.mxu0 0
  %2279 = vmatpush1.bf16.msra.mxu0 %v2222
  %2280 = vmatprep.subr.bf16.mxu0 0
  %2281 = vmatpush1.bf16.msra.mxu0 %v2221
  %2282 = vmatprep.subr.bf16.mxu0 0
  %2283 = vmatpush1.bf16.msra.mxu0 %v2220
  %2284 = vmatprep.subr.bf16.mxu0 0
  %2285 = vmatpush1.bf16.msra.mxu0 %v2219
  %2286 = vmatprep.subr.bf16.mxu0 0
  %2287 = vmatpush1.bf16.msra.mxu0 %v2218
  %2288 = vmatprep.subr.bf16.mxu0 0
  %2289 = vmatpush1.bf16.msra.mxu0 %v2217
  %2290 = vmatprep.subr.bf16.mxu0 0
  %2291 = vmatpush2.bf16.msra.mxu0 0
  %2292 = vmatprep.subr.bf16.mxu0 0
  %2293 = vmatpush2.bf16.msra.mxu0 0
  %2294 = vmatprep.subr.bf16.mxu0 0
  %2295 = vmatpush2.bf16.msra.mxu0 0
  %2296 = vmatprep.subr.bf16.mxu0 0
  %2297 = vmatpush2.bf16.msra.mxu0 0
  %2298 = vmatprep.subr.bf16.mxu0 0
  %2299 = vmatpush2.bf16.msra.mxu0 0
  %2300 = vmatprep.subr.bf16.mxu0 0
  %2301 = vmatpush2.bf16.msra.mxu0 0
  %2302 = vmatprep.subr.bf16.mxu0 0
  %2303 = vmatpush2.bf16.msra.mxu0 0
  %2304 = vmatprep.subr.bf16.mxu0 0
  %2305 = vmatpush2.bf16.msra.mxu0 0
  %2306 = vmatprep.mubr.bf16.mxu0 0
  %2307 = vmatmul.mubr.bf16.gmra.mxu0 %v2273
  %v2308 = vpop.f32.mrf.mxu0
  %v2309 = vadd.f32 0.0, %v2308
  %v2310 = vpop.f32.mrf.mxu0
  %v2311 = vpop.f32.mrf.mxu0
  %v2312 = vpop.f32.mrf.mxu0
  %2313 = vdwg.mxu0
  %v2314 = vmul.f32 %v2268, 0.015625
  %v2315 = vmul.f32 %v2309, 0.015625
  %v2316 = vmul.f32 %v2314, %v2314
  %v2317 = vsub.f32 %v2315, %v2316
  %v2318 = vmax.f32 %v2317, 0.0
  %v2319 = vadd.f32 %v2318, 1e-05
  %v2320 = vrsqrt.pop %v2319
  %v2321 = vld [vmem:[%s10] sm:$0x1]
  %v2323 = vlaneseq
  %v2324 = vshrl.u32 %v2323, 7
  %v2325 = vsub.s32 0, %v2324
  %v2326 = vrot.slane %v2321, %v2325
  %v2328 = vmul.f32 %v2320, %v2326
  %v2329 = vld [vmem:[%s11] sm:$0x1]
  %v2330 = vmul.f32 %v2314, %v2328
  %v2332 = vlaneseq
  %v2333 = vshrl.u32 %v2332, 7
  %v2334 = vsub.s32 0, %v2333
  %v2335 = vrot.slane %v2329, %v2334
  %v2337 = vsub.f32 %v2335, %v2330
  %v2338 = vpack.c.bf16 %v2328, %v2328
  %v2339 = vld [vmem:[%s8] sm:$0xf]
  %v2340 = vld [vmem:[%s8 + $0x4] sm:$0xf]
  %v2343 = vunpack.c.l.b16 %v2339
  %v2344 = vunpack.c.l.b16 %v2340
  %v2345 = vpack.c.b16 %v2344, %v2343
  %v2348 = vsel %vm87, %v2338, 0
  %2350 = vmatprep.subr.bf16.mxu0 0
  %2351 = vmatpush1.bf16.msra.mxu0 0
  %2352 = vmatprep.subr.bf16.mxu0 0
  %2353 = vmatpush1.bf16.msra.mxu0 0
  %2354 = vmatprep.subr.bf16.mxu0 0
  %2355 = vmatpush1.bf16.msra.mxu0 0
  %2356 = vmatprep.subr.bf16.mxu0 0
  %2357 = vmatpush1.bf16.msra.mxu0 0
  %2358 = vmatprep.subr.bf16.mxu0 0
  %2359 = vmatpush1.bf16.msra.mxu0 0
  %2360 = vmatprep.subr.bf16.mxu0 0
  %2361 = vmatpush1.bf16.msra.mxu0 0
  %2362 = vmatprep.subr.bf16.mxu0 0
  %2363 = vmatpush1.bf16.msra.mxu0 0
  %2364 = vmatprep.subr.bf16.mxu0 0
  %2365 = vmatpush1.bf16.msra.mxu0 %v2345
  %2366 = vmatprep.subr.bf16.mxu0 0
  %2367 = vmatpush2.bf16.msra.mxu0 0
  %2368 = vmatprep.subr.bf16.mxu0 0
  %2369 = vmatpush2.bf16.msra.mxu0 0
  %2370 = vmatprep.subr.bf16.mxu0 0
  %2371 = vmatpush2.bf16.msra.mxu0 0
  %2372 = vmatprep.subr.bf16.mxu0 0
  %2373 = vmatpush2.bf16.msra.mxu0 0
  %2374 = vmatprep.subr.bf16.mxu0 0
  %2375 = vmatpush2.bf16.msra.mxu0 0
  %2376 = vmatprep.subr.bf16.mxu0 0
  %2377 = vmatpush2.bf16.msra.mxu0 0
  %2378 = vmatprep.subr.bf16.mxu0 0
  %2379 = vmatpush2.bf16.msra.mxu0 0
  %2380 = vmatprep.subr.bf16.mxu0 0
  %2381 = vmatpush2.bf16.msra.mxu0 0
  %2382 = vmatprep.mubr.bf16.mxu0 0
  %2383 = vmatmul.mubr.bf16.gmra.mxu0 %v2348
  %v2384 = vpop.f32.mrf.mxu0
  %v2385 = vadd.f32 0.0, %v2384
  %v2386 = vpop.f32.mrf.mxu0
  %v2387 = vpop.f32.mrf.mxu0
  %v2388 = vpop.f32.mrf.mxu0
  %2389 = vdwg.mxu0
  %v2390 = vpack.c.bf16 %v2337, %v2337
  %v2392 = vsel %vm87, %v2390, 0
  %2394 = vmatprep.subr.bf16.mxu0 0
  %2395 = vmatpush1.bf16.msra.mxu0 0
  %2396 = vmatprep.subr.bf16.mxu0 0
  %2397 = vmatpush1.bf16.msra.mxu0 0
  %2398 = vmatprep.subr.bf16.mxu0 0
  %2399 = vmatpush1.bf16.msra.mxu0 0
  %2400 = vmatprep.subr.bf16.mxu0 0
  %2401 = vmatpush1.bf16.msra.mxu0 0
  %2402 = vmatprep.subr.bf16.mxu0 0
  %2403 = vmatpush1.bf16.msra.mxu0 0
  %2404 = vmatprep.subr.bf16.mxu0 0
  %2405 = vmatpush1.bf16.msra.mxu0 0
  %2406 = vmatprep.subr.bf16.mxu0 0
  %2407 = vmatpush1.bf16.msra.mxu0 0
  %2408 = vmatprep.subr.bf16.mxu0 0
  %2409 = vmatpush1.bf16.msra.mxu0 %v2345
  %2410 = vmatprep.subr.bf16.mxu0 0
  %2411 = vmatpush2.bf16.msra.mxu0 0
  %2412 = vmatprep.subr.bf16.mxu0 0
  %2413 = vmatpush2.bf16.msra.mxu0 0
  %2414 = vmatprep.subr.bf16.mxu0 0
  %2415 = vmatpush2.bf16.msra.mxu0 0
  %2416 = vmatprep.subr.bf16.mxu0 0
  %2417 = vmatpush2.bf16.msra.mxu0 0
  %2418 = vmatprep.subr.bf16.mxu0 0
  %2419 = vmatpush2.bf16.msra.mxu0 0
  %2420 = vmatprep.subr.bf16.mxu0 0
  %2421 = vmatpush2.bf16.msra.mxu0 0
  %2422 = vmatprep.subr.bf16.mxu0 0
  %2423 = vmatpush2.bf16.msra.mxu0 0
  %2424 = vmatprep.subr.bf16.mxu0 0
  %2425 = vmatpush2.bf16.msra.mxu0 0
  %2426 = vmatprep.mubr.bf16.mxu0 0
  %2427 = vmatmul.mubr.bf16.gmra.mxu0 %v2392
  %v2428 = vpop.f32.mrf.mxu0
  %v2429 = vadd.f32 0.0, %v2428
  %v2430 = vpop.f32.mrf.mxu0
  %v2431 = vpop.f32.mrf.mxu0
  %v2432 = vpop.f32.mrf.mxu0
  %2433 = vdwg.mxu0
  %v2434 = vmul.f32 %v1465, %v2385
  %v2435 = vadd.f32 %v2434, %v2429
  %v2436 = vmax.f32 %v2435, 0.0
  %2437 = vst [vmem:[#allocation3 + $0x20] sm:$0xff] %v2436
  %v2438 = vmul.f32 %v1468, %v2385
  %v2439 = vadd.f32 %v2438, %v2429
  %v2440 = vmax.f32 %v2439, 0.0
  %2441 = vst [vmem:[#allocation3 + $0x50] sm:$0xff] %v2440
  %v2442 = vmul.f32 %v1473, %v2385
  %v2443 = vadd.f32 %v2442, %v2429
  %v2444 = vmax.f32 %v2443, 0.0
  %2445 = vst [vmem:[#allocation3 + $0x80] sm:$0xff] %v2444
  %v2446 = vmul.f32 %v1476, %v2385
  %v2447 = vadd.f32 %v2446, %v2429
  %v2448 = vmax.f32 %v2447, 0.0
  %2449 = vst [vmem:[#allocation3 + $0xb0] sm:$0xff] %v2448
  %v2450 = vmul.f32 %v1983, %v2385
  %v2451 = vadd.f32 %v2450, %v2429
  %v2452 = vmax.f32 %v2451, 0.0
  %2453 = vst [vmem:[#allocation3 + $0x38] sm:$0xff] %v2452
  %v2454 = vmul.f32 %v1986, %v2385
  %v2455 = vadd.f32 %v2454, %v2429
  %v2456 = vmax.f32 %v2455, 0.0
  %2457 = vst [vmem:[#allocation3 + $0x68] sm:$0xff] %v2456
  %v2458 = vmul.f32 %v1991, %v2385
  %v2459 = vadd.f32 %v2458, %v2429
  %v2460 = vmax.f32 %v2459, 0.0
  %2461 = vst [vmem:[#allocation3 + $0x98] sm:$0xff] %v2460
  %v2462 = vmul.f32 %v1994, %v2385
  %v2463 = vadd.f32 %v2462, %v2429
  %v2464 = vmax.f32 %v2463, 0.0
  %2465 = vst [vmem:[#allocation3 + $0xc8] sm:$0xff] %v2464
  %v2466 = vld [vmem:[%s15] sm:$0xf]
  %v2467 = vld [vmem:[#allocation3] sm:$0xff]
  %v2468 = vld [vmem:[#allocation3 + $0x8] sm:$0xff]
  %v2469 = vld [vmem:[#allocation3 + $0x10] sm:$0xff]
  %v2470 = vld [vmem:[#allocation3 + $0x18] sm:$0xff]
  %v2471 = vld [vmem:[#allocation3 + $0x20] sm:$0xff]
  %v2472 = vld [vmem:[#allocation3 + $0x28] sm:$0xff]
  %v2473 = vld [vmem:[#allocation3 + $0x30] sm:$0xff]
  %v2474 = vld [vmem:[#allocation3 + $0x38] sm:$0xff]
  %v2475 = vld [vmem:[#allocation3 + $0x40] sm:$0xff]
  %v2476 = vld [vmem:[#allocation3 + $0x48] sm:$0xff]
  %v2477 = vld [vmem:[#allocation3 + $0x50] sm:$0xff]
  %v2478 = vld [vmem:[#allocation3 + $0x58] sm:$0xff]
  %v2479 = vld [vmem:[#allocation3 + $0x60] sm:$0xff]
  %v2480 = vld [vmem:[#allocation3 + $0x68] sm:$0xff]
  %v2481 = vld [vmem:[#allocation3 + $0x70] sm:$0xff]
  %v2482 = vld [vmem:[#allocation3 + $0x78] sm:$0xff]
  %v2483 = vld [vmem:[#allocation3 + $0x80] sm:$0xff]
  %v2484 = vld [vmem:[#allocation3 + $0x88] sm:$0xff]
  %v2485 = vld [vmem:[#allocation3 + $0x90] sm:$0xff]
  %v2486 = vld [vmem:[#allocation3 + $0x98] sm:$0xff]
  %v2487 = vld [vmem:[#allocation3 + $0xa0] sm:$0xff]
  %v2488 = vld [vmem:[#allocation3 + $0xa8] sm:$0xff]
  %v2489 = vld [vmem:[#allocation3 + $0xb0] sm:$0xff]
  %v2490 = vld [vmem:[#allocation3 + $0xb8] sm:$0xff]
  %v2491 = vpack.c.bf16 %v2470, %v2467
  %v2492 = vpack.c.bf16 %v2471, %v2468
  %v2493 = vpack.c.bf16 %v2472, %v2469
  %v2494 = vpack.c.bf16 %v2476, %v2473
  %v2495 = vpack.c.bf16 %v2477, %v2474
  %v2496 = vpack.c.bf16 %v2478, %v2475
  %v2497 = vpack.c.bf16 %v2482, %v2479
  %v2498 = vpack.c.bf16 %v2483, %v2480
  %v2499 = vpack.c.bf16 %v2484, %v2481
  %v2500 = vpack.c.bf16 %v2488, %v2485
  %v2501 = vpack.c.bf16 %v2489, %v2486
  %v2502 = vpack.c.bf16 %v2490, %v2487
  %v2503 = vld [vmem:[#allocation3 + $0xc0] sm:$0xff]
  %v2504 = vld [vmem:[#allocation3 + $0xc8] sm:$0xff]
  %v2505 = vld [vmem:[#allocation3 + $0xd0] sm:$0xff]
  %v2506 = vpack.c.bf16 %v2473, %v2470
  %v2507 = vpack.c.bf16 %v2474, %v2471
  %v2508 = vpack.c.bf16 %v2475, %v2472
  %v2509 = vpack.c.bf16 %v2479, %v2476
  %v2510 = vpack.c.bf16 %v2480, %v2477
  %v2511 = vpack.c.bf16 %v2481, %v2478
  %v2512 = vpack.c.bf16 %v2485, %v2482
  %v2513 = vpack.c.bf16 %v2486, %v2483
  %v2514 = vpack.c.bf16 %v2487, %v2484
  %v2515 = vpack.c.bf16 %v2503, %v2488
  %v2516 = vpack.c.bf16 %v2504, %v2489
  %v2517 = vpack.c.bf16 %v2505, %v2490
  %v2518 = vld [vmem:[%s12] sm:$0xf]
  %v2519 = vld [vmem:[%s12 + $0x4] sm:$0xf]
  %v2520 = vld [vmem:[%s12 + $0x8] sm:$0xf]
  %v2521 = vld [vmem:[%s12 + $0xc] sm:$0xf]
  %v2522 = vld [vmem:[%s12 + $0x10] sm:$0xf]
  %v2523 = vld [vmem:[%s12 + $0x14] sm:$0xf]
  %v2524 = vld [vmem:[%s12 + $0x18] sm:$0xf]
  %v2525 = vld [vmem:[%s12 + $0x1c] sm:$0xf]
  %v2526 = vld [vmem:[%s12 + $0x20] sm:$0xf]
  %v2527 = vld [vmem:[%s12 + $0x24] sm:$0xf]
  %v2528 = vld [vmem:[%s12 + $0x28] sm:$0xf]
  %v2529 = vld [vmem:[%s12 + $0x2c] sm:$0xf]
  %v2530 = vld [vmem:[%s12 + $0x30] sm:$0xf]
  %v2531 = vld [vmem:[%s12 + $0x34] sm:$0xf]
  %v2532 = vld [vmem:[%s12 + $0x38] sm:$0xf]
  %v2533 = vld [vmem:[%s12 + $0x3c] sm:$0xf]
  %v2534 = vld [vmem:[%s12 + $0x40] sm:$0xf]
  %v2535 = vld [vmem:[%s12 + $0x44] sm:$0xf]
  %v2536 = vld [vmem:[%s12 + $0x48] sm:$0xf]
  %v2537 = vld [vmem:[%s12 + $0x4c] sm:$0xf]
  %v2538 = vld [vmem:[%s12 + $0x50] sm:$0xf]
  %v2539 = vld [vmem:[%s12 + $0x54] sm:$0xf]
  %v2540 = vld [vmem:[%s12 + $0x58] sm:$0xf]
  %v2541 = vld [vmem:[%s12 + $0x5c] sm:$0xf]
  %v2542 = vld [vmem:[%s12 + $0x60] sm:$0xf]
  %v2543 = vld [vmem:[%s12 + $0x64] sm:$0xf]
  %v2544 = vld [vmem:[%s12 + $0x68] sm:$0xf]
  %v2545 = vld [vmem:[%s12 + $0x6c] sm:$0xf]
  %v2546 = vld [vmem:[%s12 + $0x70] sm:$0xf]
  %v2547 = vld [vmem:[%s12 + $0x74] sm:$0xf]
  %v2548 = vld [vmem:[%s12 + $0x78] sm:$0xf]
  %v2549 = vld [vmem:[%s12 + $0x7c] sm:$0xf]
  %v2550 = vld [vmem:[%s12 + $0x80] sm:$0xf]
  %v2551 = vld [vmem:[%s12 + $0x84] sm:$0xf]
  %s2552 = scalar_lea.vmem %s12, 136
  %v2553 = vld [vmem:[%s2552] sm:$0xf]
  %v2554 = vld [vmem:[%s2552 + $0x4] sm:$0xf]
  %v2555 = vld [vmem:[%s2552 + $0x8] sm:$0xf]
  %v2556 = vld [vmem:[%s2552 + $0xc] sm:$0xf]
  %v2557 = vld [vmem:[%s2552 + $0x10] sm:$0xf]
  %v2558 = vld [vmem:[%s2552 + $0x14] sm:$0xf]
  %v2559 = vld [vmem:[%s2552 + $0x18] sm:$0xf]
  %v2560 = vld [vmem:[%s2552 + $0x1c] sm:$0xf]
  %v2561 = vld [vmem:[%s2552 + $0x20] sm:$0xf]
  %v2562 = vld [vmem:[%s2552 + $0x24] sm:$0xf]
  %v2563 = vld [vmem:[%s2552 + $0x28] sm:$0xf]
  %v2564 = vld [vmem:[%s2552 + $0x2c] sm:$0xf]
  %v2565 = vld [vmem:[%s2552 + $0x30] sm:$0xf]
  %v2566 = vld [vmem:[%s2552 + $0x34] sm:$0xf]
  %v2567 = vld [vmem:[%s2552 + $0x38] sm:$0xf]
  %v2568 = vld [vmem:[%s2552 + $0x3c] sm:$0xf]
  %v2569 = vld [vmem:[%s2552 + $0x40] sm:$0xf]
  %v2570 = vld [vmem:[%s2552 + $0x44] sm:$0xf]
  %v2571 = vld [vmem:[%s2552 + $0x48] sm:$0xf]
  %v2572 = vld [vmem:[%s2552 + $0x4c] sm:$0xf]
  %v2573 = vld [vmem:[%s2552 + $0x50] sm:$0xf]
  %v2574 = vld [vmem:[%s2552 + $0x54] sm:$0xf]
  %v2575 = vld [vmem:[%s2552 + $0x58] sm:$0xf]
  %v2576 = vld [vmem:[%s2552 + $0x5c] sm:$0xf]
  %v2577 = vld [vmem:[%s2552 + $0x60] sm:$0xf]
  %v2578 = vld [vmem:[%s2552 + $0x64] sm:$0xf]
  %v2579 = vld [vmem:[%s2552 + $0x68] sm:$0xf]
  %v2580 = vld [vmem:[%s2552 + $0x6c] sm:$0xf]
  %v2581 = vld [vmem:[%s2552 + $0x70] sm:$0xf]
  %v2582 = vld [vmem:[%s2552 + $0x74] sm:$0xf]
  %v2583 = vld [vmem:[%s2552 + $0x78] sm:$0xf]
  %v2584 = vld [vmem:[%s2552 + $0x7c] sm:$0xf]
  %v2585 = vld [vmem:[%s2552 + $0x80] sm:$0xf]
  %v2586 = vld [vmem:[%s2552 + $0x84] sm:$0xf]
  %v2621 = vunpack.c.l.b16 %v2553
  %v2622 = vunpack.c.l.b16 %v2554
  %v2623 = vunpack.c.l.b16 %v2555
  %v2624 = vunpack.c.l.b16 %v2556
  %v2625 = vunpack.c.l.b16 %v2557
  %v2626 = vunpack.c.l.b16 %v2558
  %v2627 = vunpack.c.l.b16 %v2559
  %v2628 = vunpack.c.l.b16 %v2560
  %v2629 = vunpack.c.l.b16 %v2561
  %v2630 = vunpack.c.l.b16 %v2562
  %v2631 = vunpack.c.l.b16 %v2563
  %v2632 = vunpack.c.l.b16 %v2564
  %v2633 = vunpack.c.l.b16 %v2565
  %v2634 = vunpack.c.l.b16 %v2566
  %v2635 = vunpack.c.l.b16 %v2567
  %v2636 = vunpack.c.l.b16 %v2568
  %v2637 = vunpack.c.l.b16 %v2569
  %v2638 = vunpack.c.l.b16 %v2570
  %v2639 = vunpack.c.l.b16 %v2571
  %v2640 = vunpack.c.l.b16 %v2572
  %v2641 = vunpack.c.l.b16 %v2573
  %v2642 = vunpack.c.l.b16 %v2574
  %v2643 = vunpack.c.l.b16 %v2575
  %v2644 = vunpack.c.l.b16 %v2576
  %v2645 = vunpack.c.l.b16 %v2577
  %v2646 = vunpack.c.l.b16 %v2578
  %v2647 = vunpack.c.l.b16 %v2579
  %v2648 = vunpack.c.l.b16 %v2580
  %v2649 = vunpack.c.l.b16 %v2581
  %v2650 = vunpack.c.l.b16 %v2582
  %v2651 = vunpack.c.l.b16 %v2583
  %v2652 = vunpack.c.l.b16 %v2584
  %v2653 = vunpack.c.l.b16 %v2585
  %v2654 = vunpack.c.l.b16 %v2586
  %v2655 = vpack.c.b16 %v2622, %v2621
  %v2656 = vpack.c.b16 %v2624, %v2623
  %v2657 = vpack.c.b16 %v2626, %v2625
  %v2658 = vpack.c.b16 %v2628, %v2627
  %v2659 = vpack.c.b16 %v2630, %v2629
  %v2660 = vpack.c.b16 %v2632, %v2631
  %v2661 = vpack.c.b16 %v2634, %v2633
  %v2662 = vpack.c.b16 %v2636, %v2635
  %v2663 = vpack.c.b16 %v2638, %v2637
  %v2664 = vpack.c.b16 %v2640, %v2639
  %v2665 = vpack.c.b16 %v2642, %v2641
  %v2666 = vpack.c.b16 %v2644, %v2643
  %v2667 = vpack.c.b16 %v2646, %v2645
  %v2668 = vpack.c.b16 %v2648, %v2647
  %v2669 = vpack.c.b16 %v2650, %v2649
  %v2670 = vpack.c.b16 %v2652, %v2651
  %v2671 = vpack.c.b16 %v2654, %v2653
  %v2690 = vsel %vm87, %v2508, 0
  %v2693 = vsel %vm87, %v2511, 0
  %v2696 = vsel %vm87, %v2514, 0
  %v2699 = vsel %vm87, %v2517, 0
  %2701 = vmatprep.subr.bf16.mxu0 0
  %2702 = vmatpush1.bf16.msra.mxu0 %v2662
  %2703 = vmatprep.subr.bf16.mxu0 0
  %2704 = vmatpush1.bf16.msra.mxu0 %v2661
  %2705 = vmatprep.subr.bf16.mxu0 0
  %2706 = vmatpush1.bf16.msra.mxu0 %v2660
  %2707 = vmatprep.subr.bf16.mxu0 0
  %2708 = vmatpush1.bf16.msra.mxu0 %v2659
  %2709 = vmatprep.subr.bf16.mxu0 0
  %2710 = vmatpush1.bf16.msra.mxu0 %v2658
  %2711 = vmatprep.subr.bf16.mxu0 0
  %2712 = vmatpush1.bf16.msra.mxu0 %v2657
  %2713 = vmatprep.subr.bf16.mxu0 0
  %2714 = vmatpush1.bf16.msra.mxu0 %v2656
  %2715 = vmatprep.subr.bf16.mxu0 0
  %2716 = vmatpush1.bf16.msra.mxu0 %v2655
  %2717 = vmatprep.subr.bf16.mxu0 0
  %2718 = vmatpush2.bf16.msra.mxu0 %v2670
  %2719 = vmatprep.subr.bf16.mxu0 0
  %2720 = vmatpush2.bf16.msra.mxu0 %v2669
  %2721 = vmatprep.subr.bf16.mxu0 0
  %2722 = vmatpush2.bf16.msra.mxu0 %v2668
  %2723 = vmatprep.subr.bf16.mxu0 0
  %2724 = vmatpush2.bf16.msra.mxu0 %v2667
  %2725 = vmatprep.subr.bf16.mxu0 0
  %2726 = vmatpush2.bf16.msra.mxu0 %v2666
  %2727 = vmatprep.subr.bf16.mxu0 0
  %2728 = vmatpush2.bf16.msra.mxu0 %v2665
  %2729 = vmatprep.subr.bf16.mxu0 0
  %2730 = vmatpush2.bf16.msra.mxu0 %v2664
  %2731 = vmatprep.subr.bf16.mxu0 0
  %2732 = vmatpush2.bf16.msra.mxu0 %v2663
  %2733 = vmatprep.mubr.bf16.mxu0 %v2507
  %2734 = vmatmul.mubr.bf16.gmra.mxu0 %v2506
  %v2735 = vpop.f32.mrf.mxu0
  %v2736 = vadd.f32 0.0, %v2735
  %v2737 = vpop.f32.mrf.mxu0
  %v2738 = vpop.f32.mrf.mxu0
  %v2739 = vadd.f32 0.0, %v2738
  %v2740 = vpop.f32.mrf.mxu0
  %2741 = vmatprep.mubr.bf16.mxu0 %v2510
  %2742 = vmatmul.mubr.bf16.gmra.mxu0 %v2509
  %v2743 = vpop.f32.mrf.mxu0
  %v2744 = vadd.f32 0.0, %v2743
  %v2745 = vpop.f32.mrf.mxu0
  %v2746 = vpop.f32.mrf.mxu0
  %v2747 = vadd.f32 0.0, %v2746
  %v2748 = vpop.f32.mrf.mxu0
  %2749 = vmatprep.mubr.bf16.mxu0 %v2513
  %2750 = vmatmul.mubr.bf16.gmra.mxu0 %v2512
  %v2751 = vpop.f32.mrf.mxu0
  %v2752 = vadd.f32 0.0, %v2751
  %v2753 = vpop.f32.mrf.mxu0
  %v2754 = vpop.f32.mrf.mxu0
  %v2755 = vadd.f32 0.0, %v2754
  %v2756 = vpop.f32.mrf.mxu0
  %2757 = vmatprep.mubr.bf16.mxu0 %v2516
  %2758 = vmatmul.mubr.bf16.gmra.mxu0 %v2515
  %v2759 = vpop.f32.mrf.mxu0
  %v2760 = vadd.f32 0.0, %v2759
  %v2761 = vpop.f32.mrf.mxu0
  %v2762 = vpop.f32.mrf.mxu0
  %v2763 = vadd.f32 0.0, %v2762
  %v2764 = vpop.f32.mrf.mxu0
  %2765 = vdwg.mxu0
  %2766 = vmatprep.subr.bf16.mxu0 0
  %2767 = vmatpush1.bf16.msra.mxu0 0
  %2768 = vmatprep.subr.bf16.mxu0 0
  %2769 = vmatpush1.bf16.msra.mxu0 0
  %2770 = vmatprep.subr.bf16.mxu0 0
  %2771 = vmatpush1.bf16.msra.mxu0 0
  %2772 = vmatprep.subr.bf16.mxu0 0
  %2773 = vmatpush1.bf16.msra.mxu0 0
  %2774 = vmatprep.subr.bf16.mxu0 0
  %2775 = vmatpush1.bf16.msra.mxu0 0
  %2776 = vmatprep.subr.bf16.mxu0 0
  %2777 = vmatpush1.bf16.msra.mxu0 0
  %2778 = vmatprep.subr.bf16.mxu0 0
  %2779 = vmatpush1.bf16.msra.mxu0 0
  %2780 = vmatprep.subr.bf16.mxu0 0
  %2781 = vmatpush1.bf16.msra.mxu0 %v2671
  %2782 = vmatprep.subr.bf16.mxu0 0
  %2783 = vmatpush2.bf16.msra.mxu0 0
  %2784 = vmatprep.subr.bf16.mxu0 0
  %2785 = vmatpush2.bf16.msra.mxu0 0
  %2786 = vmatprep.subr.bf16.mxu0 0
  %2787 = vmatpush2.bf16.msra.mxu0 0
  %2788 = vmatprep.subr.bf16.mxu0 0
  %2789 = vmatpush2.bf16.msra.mxu0 0
  %2790 = vmatprep.subr.bf16.mxu0 0
  %2791 = vmatpush2.bf16.msra.mxu0 0
  %2792 = vmatprep.subr.bf16.mxu0 0
  %2793 = vmatpush2.bf16.msra.mxu0 0
  %2794 = vmatprep.subr.bf16.mxu0 0
  %2795 = vmatpush2.bf16.msra.mxu0 0
  %2796 = vmatprep.subr.bf16.mxu0 0
  %2797 = vmatpush2.bf16.msra.mxu0 0
  %2798 = vmatprep.mubr.bf16.mxu0 0
  %2799 = vmatmul.mubr.bf16.gmra.mxu0 %v2690
  %v2800 = vpop.f32.mrf.mxu0
  %v2801 = vadd.f32 %v2736, %v2800
  %v2802 = vpop.f32.mrf.mxu0
  %v2803 = vpop.f32.mrf.mxu0
  %v2804 = vadd.f32 %v2739, %v2803
  %v2805 = vpop.f32.mrf.mxu0
  %2806 = vmatprep.mubr.bf16.mxu0 0
  %2807 = vmatmul.mubr.bf16.gmra.mxu0 %v2693
  %v2808 = vpop.f32.mrf.mxu0
  %v2809 = vadd.f32 %v2744, %v2808
  %v2810 = vpop.f32.mrf.mxu0
  %v2811 = vpop.f32.mrf.mxu0
  %v2812 = vadd.f32 %v2747, %v2811
  %v2813 = vpop.f32.mrf.mxu0
  %2814 = vmatprep.mubr.bf16.mxu0 0
  %2815 = vmatmul.mubr.bf16.gmra.mxu0 %v2696
  %v2816 = vpop.f32.mrf.mxu0
  %v2817 = vadd.f32 %v2752, %v2816
  %v2818 = vpop.f32.mrf.mxu0
  %v2819 = vpop.f32.mrf.mxu0
  %v2820 = vadd.f32 %v2755, %v2819
  %v2821 = vpop.f32.mrf.mxu0
  %2822 = vmatprep.mubr.bf16.mxu0 0
  %2823 = vmatmul.mubr.bf16.gmra.mxu0 %v2699
  %v2824 = vpop.f32.mrf.mxu0
  %v2825 = vadd.f32 %v2760, %v2824
  %v2826 = vpop.f32.mrf.mxu0
  %v2827 = vpop.f32.mrf.mxu0
  %v2828 = vadd.f32 %v2763, %v2827
  %v2829 = vpop.f32.mrf.mxu0
  %2830 = vdwg.mxu0
  %v2865 = vunpack.c.l.b16 %v2518
  %v2866 = vunpack.c.l.b16 %v2519
  %v2867 = vunpack.c.l.b16 %v2520
  %v2868 = vunpack.c.l.b16 %v2521
  %v2869 = vunpack.c.l.b16 %v2522
  %v2870 = vunpack.c.l.b16 %v2523
  %v2871 = vunpack.c.l.b16 %v2524
  %v2872 = vunpack.c.l.b16 %v2525
  %v2873 = vunpack.c.l.b16 %v2526
  %v2874 = vunpack.c.l.b16 %v2527
  %v2875 = vunpack.c.l.b16 %v2528
  %v2876 = vunpack.c.l.b16 %v2529
  %v2877 = vunpack.c.l.b16 %v2530
  %v2878 = vunpack.c.l.b16 %v2531
  %v2879 = vunpack.c.l.b16 %v2532
  %v2880 = vunpack.c.l.b16 %v2533
  %v2881 = vunpack.c.l.b16 %v2534
  %v2882 = vunpack.c.l.b16 %v2535
  %v2883 = vunpack.c.l.b16 %v2536
  %v2884 = vunpack.c.l.b16 %v2537
  %v2885 = vunpack.c.l.b16 %v2538
  %v2886 = vunpack.c.l.b16 %v2539
  %v2887 = vunpack.c.l.b16 %v2540
  %v2888 = vunpack.c.l.b16 %v2541
  %v2889 = vunpack.c.l.b16 %v2542
  %v2890 = vunpack.c.l.b16 %v2543
  %v2891 = vunpack.c.l.b16 %v2544
  %v2892 = vunpack.c.l.b16 %v2545
  %v2893 = vunpack.c.l.b16 %v2546
  %v2894 = vunpack.c.l.b16 %v2547
  %v2895 = vunpack.c.l.b16 %v2548
  %v2896 = vunpack.c.l.b16 %v2549
  %v2897 = vunpack.c.l.b16 %v2550
  %v2898 = vunpack.c.l.b16 %v2551
  %v2899 = vpack.c.b16 %v2866, %v2865
  %v2900 = vpack.c.b16 %v2868, %v2867
  %v2901 = vpack.c.b16 %v2870, %v2869
  %v2902 = vpack.c.b16 %v2872, %v2871
  %v2903 = vpack.c.b16 %v2874, %v2873
  %v2904 = vpack.c.b16 %v2876, %v2875
  %v2905 = vpack.c.b16 %v2878, %v2877
  %v2906 = vpack.c.b16 %v2880, %v2879
  %v2907 = vpack.c.b16 %v2882, %v2881
  %v2908 = vpack.c.b16 %v2884, %v2883
  %v2909 = vpack.c.b16 %v2886, %v2885
  %v2910 = vpack.c.b16 %v2888, %v2887
  %v2911 = vpack.c.b16 %v2890, %v2889
  %v2912 = vpack.c.b16 %v2892, %v2891
  %v2913 = vpack.c.b16 %v2894, %v2893
  %v2914 = vpack.c.b16 %v2896, %v2895
  %v2915 = vpack.c.b16 %v2898, %v2897
  %v2934 = vsel %vm87, %v2493, 0
  %v2937 = vsel %vm87, %v2496, 0
  %v2940 = vsel %vm87, %v2499, 0
  %v2943 = vsel %vm87, %v2502, 0
  %2945 = vmatprep.subr.bf16.mxu0 0
  %2946 = vmatpush1.bf16.msra.mxu0 %v2906
  %2947 = vmatprep.subr.bf16.mxu0 0
  %2948 = vmatpush1.bf16.msra.mxu0 %v2905
  %2949 = vmatprep.subr.bf16.mxu0 0
  %2950 = vmatpush1.bf16.msra.mxu0 %v2904
  %2951 = vmatprep.subr.bf16.mxu0 0
  %2952 = vmatpush1.bf16.msra.mxu0 %v2903
  %2953 = vmatprep.subr.bf16.mxu0 0
  %2954 = vmatpush1.bf16.msra.mxu0 %v2902
  %2955 = vmatprep.subr.bf16.mxu0 0
  %2956 = vmatpush1.bf16.msra.mxu0 %v2901
  %2957 = vmatprep.subr.bf16.mxu0 0
  %2958 = vmatpush1.bf16.msra.mxu0 %v2900
  %2959 = vmatprep.subr.bf16.mxu0 0
  %2960 = vmatpush1.bf16.msra.mxu0 %v2899
  %2961 = vmatprep.subr.bf16.mxu0 0
  %2962 = vmatpush2.bf16.msra.mxu0 %v2914
  %2963 = vmatprep.subr.bf16.mxu0 0
  %2964 = vmatpush2.bf16.msra.mxu0 %v2913
  %2965 = vmatprep.subr.bf16.mxu0 0
  %2966 = vmatpush2.bf16.msra.mxu0 %v2912
  %2967 = vmatprep.subr.bf16.mxu0 0
  %2968 = vmatpush2.bf16.msra.mxu0 %v2911
  %2969 = vmatprep.subr.bf16.mxu0 0
  %2970 = vmatpush2.bf16.msra.mxu0 %v2910
  %2971 = vmatprep.subr.bf16.mxu0 0
  %2972 = vmatpush2.bf16.msra.mxu0 %v2909
  %2973 = vmatprep.subr.bf16.mxu0 0
  %2974 = vmatpush2.bf16.msra.mxu0 %v2908
  %2975 = vmatprep.subr.bf16.mxu0 0
  %2976 = vmatpush2.bf16.msra.mxu0 %v2907
  %2977 = vmatprep.mubr.bf16.mxu0 %v2492
  %2978 = vmatmul.mubr.bf16.gmra.mxu0 %v2491
  %v2979 = vpop.f32.mrf.mxu0
  %v2980 = vadd.f32 %v2801, %v2979
  %v2981 = vpop.f32.mrf.mxu0
  %v2982 = vpop.f32.mrf.mxu0
  %v2983 = vadd.f32 %v2804, %v2982
  %v2984 = vpop.f32.mrf.mxu0
  %2985 = vmatprep.mubr.bf16.mxu0 %v2495
  %2986 = vmatmul.mubr.bf16.gmra.mxu0 %v2494
  %v2987 = vpop.f32.mrf.mxu0
  %v2988 = vadd.f32 %v2809, %v2987
  %v2989 = vpop.f32.mrf.mxu0
  %v2990 = vpop.f32.mrf.mxu0
  %v2991 = vadd.f32 %v2812, %v2990
  %v2992 = vpop.f32.mrf.mxu0
  %2993 = vmatprep.mubr.bf16.mxu0 %v2498
  %2994 = vmatmul.mubr.bf16.gmra.mxu0 %v2497
  %v2995 = vpop.f32.mrf.mxu0
  %v2996 = vadd.f32 %v2817, %v2995
  %v2997 = vpop.f32.mrf.mxu0
  %v2998 = vpop.f32.mrf.mxu0
  %v2999 = vadd.f32 %v2820, %v2998
  %v3000 = vpop.f32.mrf.mxu0
  %3001 = vmatprep.mubr.bf16.mxu0 %v2501
  %3002 = vmatmul.mubr.bf16.gmra.mxu0 %v2500
  %v3003 = vpop.f32.mrf.mxu0
  %v3004 = vadd.f32 %v2825, %v3003
  %v3005 = vpop.f32.mrf.mxu0
  %v3006 = vpop.f32.mrf.mxu0
  %v3007 = vadd.f32 %v2828, %v3006
  %v3008 = vpop.f32.mrf.mxu0
  %3009 = vdwg.mxu0
  %3010 = vmatprep.subr.bf16.mxu0 0
  %3011 = vmatpush1.bf16.msra.mxu0 0
  %3012 = vmatprep.subr.bf16.mxu0 0
  %3013 = vmatpush1.bf16.msra.mxu0 0
  %3014 = vmatprep.subr.bf16.mxu0 0
  %3015 = vmatpush1.bf16.msra.mxu0 0
  %3016 = vmatprep.subr.bf16.mxu0 0
  %3017 = vmatpush1.bf16.msra.mxu0 0
  %3018 = vmatprep.subr.bf16.mxu0 0
  %3019 = vmatpush1.bf16.msra.mxu0 0
  %3020 = vmatprep.subr.bf16.mxu0 0
  %3021 = vmatpush1.bf16.msra.mxu0 0
  %3022 = vmatprep.subr.bf16.mxu0 0
  %3023 = vmatpush1.bf16.msra.mxu0 0
  %3024 = vmatprep.subr.bf16.mxu0 0
  %3025 = vmatpush1.bf16.msra.mxu0 %v2915
  %3026 = vmatprep.subr.bf16.mxu0 0
  %3027 = vmatpush2.bf16.msra.mxu0 0
  %3028 = vmatprep.subr.bf16.mxu0 0
  %3029 = vmatpush2.bf16.msra.mxu0 0
  %3030 = vmatprep.subr.bf16.mxu0 0
  %3031 = vmatpush2.bf16.msra.mxu0 0
  %3032 = vmatprep.subr.bf16.mxu0 0
  %3033 = vmatpush2.bf16.msra.mxu0 0
  %3034 = vmatprep.subr.bf16.mxu0 0
  %3035 = vmatpush2.bf16.msra.mxu0 0
  %3036 = vmatprep.subr.bf16.mxu0 0
  %3037 = vmatpush2.bf16.msra.mxu0 0
  %3038 = vmatprep.subr.bf16.mxu0 0
  %3039 = vmatpush2.bf16.msra.mxu0 0
  %3040 = vmatprep.subr.bf16.mxu0 0
  %3041 = vmatpush2.bf16.msra.mxu0 0
  %3042 = vmatprep.mubr.bf16.mxu0 0
  %3043 = vmatmul.mubr.bf16.gmra.mxu0 %v2934
  %v3044 = vpop.f32.mrf.mxu0
  %v3045 = vadd.f32 %v2980, %v3044
  %v3046 = vpop.f32.mrf.mxu0
  %v3047 = vpop.f32.mrf.mxu0
  %v3048 = vadd.f32 %v2983, %v3047
  %v3049 = vpop.f32.mrf.mxu0
  %3050 = vmatprep.mubr.bf16.mxu0 0
  %3051 = vmatmul.mubr.bf16.gmra.mxu0 %v2937
  %v3052 = vpop.f32.mrf.mxu0
  %v3053 = vadd.f32 %v2988, %v3052
  %v3054 = vpop.f32.mrf.mxu0
  %v3055 = vpop.f32.mrf.mxu0
  %v3056 = vadd.f32 %v2991, %v3055
  %v3057 = vpop.f32.mrf.mxu0
  %3058 = vmatprep.mubr.bf16.mxu0 0
  %3059 = vmatmul.mubr.bf16.gmra.mxu0 %v2940
  %v3060 = vpop.f32.mrf.mxu0
  %v3061 = vadd.f32 %v2996, %v3060
  %v3062 = vpop.f32.mrf.mxu0
  %v3063 = vpop.f32.mrf.mxu0
  %v3064 = vadd.f32 %v2999, %v3063
  %v3065 = vpop.f32.mrf.mxu0
  %3066 = vmatprep.mubr.bf16.mxu0 0
  %3067 = vmatmul.mubr.bf16.gmra.mxu0 %v2943
  %v3068 = vpop.f32.mrf.mxu0
  %v3069 = vadd.f32 %v3004, %v3068
  %v3070 = vpop.f32.mrf.mxu0
  %v3071 = vpop.f32.mrf.mxu0
  %v3072 = vadd.f32 %v3007, %v3071
  %v3073 = vpop.f32.mrf.mxu0
  %3074 = vdwg.mxu0
  %v3075 = vpack.c.bf16 %v3048, %v3045
  %v3076 = vpack.c.bf16 %v3056, %v3053
  %v3077 = vpack.c.bf16 %v3064, %v3061
  %v3078 = vpack.c.bf16 %v3072, %v3069
  %v3079 = vmul.f32 %v3045, %v3045
  %v3080 = vmul.f32 %v3048, %v3048
  %v3081 = vmul.f32 %v3053, %v3053
  %v3082 = vmul.f32 %v3056, %v3056
  %v3083 = vmul.f32 %v3061, %v3061
  %v3084 = vmul.f32 %v3064, %v3064
  %v3085 = vmul.f32 %v3069, %v3069
  %v3086 = vmul.f32 %v3072, %v3072
  %v3087 = vpack.c.bf16 %v3080, %v3079
  %v3088 = vpack.c.bf16 %v3082, %v3081
  %v3089 = vpack.c.bf16 %v3084, %v3083
  %v3090 = vpack.c.bf16 %v3086, %v3085
  %v3091 = vld [vmem:[#allocation3 + $0x30] sm:$0xff]
  %v3092 = vld [vmem:[#allocation3 + $0x38] sm:$0xff]
  %v3093 = vld [vmem:[#allocation3 + $0x40] sm:$0xff]
  %v3094 = vld [vmem:[#allocation3 + $0x48] sm:$0xff]
  %v3095 = vld [vmem:[#allocation3 + $0x50] sm:$0xff]
  %v3096 = vld [vmem:[#allocation3 + $0x58] sm:$0xff]
  %v3097 = vld [vmem:[#allocation3 + $0x60] sm:$0xff]
  %v3098 = vld [vmem:[#allocation3 + $0x68] sm:$0xff]
  %v3099 = vld [vmem:[#allocation3 + $0x70] sm:$0xff]
  %v3100 = vld [vmem:[#allocation3 + $0x78] sm:$0xff]
  %v3101 = vld [vmem:[#allocation3 + $0x80] sm:$0xff]
  %v3102 = vld [vmem:[#allocation3 + $0x88] sm:$0xff]
  %v3103 = vld [vmem:[#allocation3 + $0x90] sm:$0xff]
  %v3104 = vld [vmem:[#allocation3 + $0x98] sm:$0xff]
  %v3105 = vld [vmem:[#allocation3 + $0xa0] sm:$0xff]
  %v3106 = vld [vmem:[#allocation3 + $0xa8] sm:$0xff]
  %v3107 = vld [vmem:[#allocation3 + $0xb0] sm:$0xff]
  %v3108 = vld [vmem:[#allocation3 + $0xb8] sm:$0xff]
  %v3109 = vld [vmem:[#allocation3 + $0xc0] sm:$0xff]
  %v3110 = vld [vmem:[#allocation3 + $0xc8] sm:$0xff]
  %v3111 = vld [vmem:[#allocation3 + $0xd0] sm:$0xff]
  %v3112 = vld [vmem:[#allocation3 + $0xd8] sm:$0xff]
  %v3113 = vld [vmem:[#allocation3 + $0xe0] sm:$0xff]
  %v3114 = vld [vmem:[#allocation3 + $0xe8] sm:$0xff]
  %v3115 = vpack.c.bf16 %v3094, %v3091
  %v3116 = vpack.c.bf16 %v3095, %v3092
  %v3117 = vpack.c.bf16 %v3096, %v3093
  %v3118 = vpack.c.bf16 %v3100, %v3097
  %v3119 = vpack.c.bf16 %v3101, %v3098
  %v3120 = vpack.c.bf16 %v3102, %v3099
  %v3121 = vpack.c.bf16 %v3106, %v3103
  %v3122 = vpack.c.bf16 %v3107, %v3104
  %v3123 = vpack.c.bf16 %v3108, %v3105
  %v3124 = vpack.c.bf16 %v3112, %v3109
  %v3125 = vpack.c.bf16 %v3113, %v3110
  %v3126 = vpack.c.bf16 %v3114, %v3111
  %s3127 = scalar_lea.vmem %s12, 272
  %v3128 = vld [vmem:[%s3127] sm:$0xf]
  %v3129 = vld [vmem:[%s3127 + $0x4] sm:$0xf]
  %v3130 = vld [vmem:[%s3127 + $0x8] sm:$0xf]
  %v3131 = vld [vmem:[%s3127 + $0xc] sm:$0xf]
  %v3132 = vld [vmem:[%s3127 + $0x10] sm:$0xf]
  %v3133 = vld [vmem:[%s3127 + $0x14] sm:$0xf]
  %v3134 = vld [vmem:[%s3127 + $0x18] sm:$0xf]
  %v3135 = vld [vmem:[%s3127 + $0x1c] sm:$0xf]
  %v3136 = vld [vmem:[%s3127 + $0x20] sm:$0xf]
  %v3137 = vld [vmem:[%s3127 + $0x24] sm:$0xf]
  %v3138 = vld [vmem:[%s3127 + $0x28] sm:$0xf]
  %v3139 = vld [vmem:[%s3127 + $0x2c] sm:$0xf]
  %v3140 = vld [vmem:[%s3127 + $0x30] sm:$0xf]
  %v3141 = vld [vmem:[%s3127 + $0x34] sm:$0xf]
  %v3142 = vld [vmem:[%s3127 + $0x38] sm:$0xf]
  %v3143 = vld [vmem:[%s3127 + $0x3c] sm:$0xf]
  %v3144 = vld [vmem:[%s3127 + $0x40] sm:$0xf]
  %v3145 = vld [vmem:[%s3127 + $0x44] sm:$0xf]
  %v3146 = vld [vmem:[%s3127 + $0x48] sm:$0xf]
  %v3147 = vld [vmem:[%s3127 + $0x4c] sm:$0xf]
  %v3148 = vld [vmem:[%s3127 + $0x50] sm:$0xf]
  %v3149 = vld [vmem:[%s3127 + $0x54] sm:$0xf]
  %v3150 = vld [vmem:[%s3127 + $0x58] sm:$0xf]
  %v3151 = vld [vmem:[%s3127 + $0x5c] sm:$0xf]
  %v3152 = vld [vmem:[%s3127 + $0x60] sm:$0xf]
  %v3153 = vld [vmem:[%s3127 + $0x64] sm:$0xf]
  %v3154 = vld [vmem:[%s3127 + $0x68] sm:$0xf]
  %v3155 = vld [vmem:[%s3127 + $0x6c] sm:$0xf]
  %v3156 = vld [vmem:[%s3127 + $0x70] sm:$0xf]
  %v3157 = vld [vmem:[%s3127 + $0x74] sm:$0xf]
  %v3158 = vld [vmem:[%s3127 + $0x78] sm:$0xf]
  %v3159 = vld [vmem:[%s3127 + $0x7c] sm:$0xf]
  %v3160 = vld [vmem:[%s3127 + $0x80] sm:$0xf]
  %v3161 = vld [vmem:[%s3127 + $0x84] sm:$0xf]
  %s3162 = scalar_lea.vmem %s12, 408
  %v3163 = vld [vmem:[%s3162] sm:$0xf]
  %v3164 = vld [vmem:[%s3162 + $0x4] sm:$0xf]
  %v3165 = vld [vmem:[%s3162 + $0x8] sm:$0xf]
  %v3166 = vld [vmem:[%s3162 + $0xc] sm:$0xf]
  %v3167 = vld [vmem:[%s3162 + $0x10] sm:$0xf]
  %v3168 = vld [vmem:[%s3162 + $0x14] sm:$0xf]
  %v3169 = vld [vmem:[%s3162 + $0x18] sm:$0xf]
  %v3170 = vld [vmem:[%s3162 + $0x1c] sm:$0xf]
  %v3171 = vld [vmem:[%s3162 + $0x20] sm:$0xf]
  %v3172 = vld [vmem:[%s3162 + $0x24] sm:$0xf]
  %v3173 = vld [vmem:[%s3162 + $0x28] sm:$0xf]
  %v3174 = vld [vmem:[%s3162 + $0x2c] sm:$0xf]
  %v3175 = vld [vmem:[%s3162 + $0x30] sm:$0xf]
  %v3176 = vld [vmem:[%s3162 + $0x34] sm:$0xf]
  %v3177 = vld [vmem:[%s3162 + $0x38] sm:$0xf]
  %v3178 = vld [vmem:[%s3162 + $0x3c] sm:$0xf]
  %v3179 = vld [vmem:[%s3162 + $0x40] sm:$0xf]
  %v3180 = vld [vmem:[%s3162 + $0x44] sm:$0xf]
  %v3181 = vld [vmem:[%s3162 + $0x48] sm:$0xf]
  %v3182 = vld [vmem:[%s3162 + $0x4c] sm:$0xf]
  %v3183 = vld [vmem:[%s3162 + $0x50] sm:$0xf]
  %v3184 = vld [vmem:[%s3162 + $0x54] sm:$0xf]
  %v3185 = vld [vmem:[%s3162 + $0x58] sm:$0xf]
  %v3186 = vld [vmem:[%s3162 + $0x5c] sm:$0xf]
  %v3187 = vld [vmem:[%s3162 + $0x60] sm:$0xf]
  %v3188 = vld [vmem:[%s3162 + $0x64] sm:$0xf]
  %v3189 = vld [vmem:[%s3162 + $0x68] sm:$0xf]
  %v3190 = vld [vmem:[%s3162 + $0x6c] sm:$0xf]
  %v3191 = vld [vmem:[%s3162 + $0x70] sm:$0xf]
  %v3192 = vld [vmem:[%s3162 + $0x74] sm:$0xf]
  %v3193 = vld [vmem:[%s3162 + $0x78] sm:$0xf]
  %v3194 = vld [vmem:[%s3162 + $0x7c] sm:$0xf]
  %v3195 = vld [vmem:[%s3162 + $0x80] sm:$0xf]
  %v3196 = vld [vmem:[%s3162 + $0x84] sm:$0xf]
  %v3231 = vunpack.c.l.b16 %v3163
  %v3232 = vunpack.c.l.b16 %v3164
  %v3233 = vunpack.c.l.b16 %v3165
  %v3234 = vunpack.c.l.b16 %v3166
  %v3235 = vunpack.c.l.b16 %v3167
  %v3236 = vunpack.c.l.b16 %v3168
  %v3237 = vunpack.c.l.b16 %v3169
  %v3238 = vunpack.c.l.b16 %v3170
  %v3239 = vunpack.c.l.b16 %v3171
  %v3240 = vunpack.c.l.b16 %v3172
  %v3241 = vunpack.c.l.b16 %v3173
  %v3242 = vunpack.c.l.b16 %v3174
  %v3243 = vunpack.c.l.b16 %v3175
  %v3244 = vunpack.c.l.b16 %v3176
  %v3245 = vunpack.c.l.b16 %v3177
  %v3246 = vunpack.c.l.b16 %v3178
  %v3247 = vunpack.c.l.b16 %v3179
  %v3248 = vunpack.c.l.b16 %v3180
  %v3249 = vunpack.c.l.b16 %v3181
  %v3250 = vunpack.c.l.b16 %v3182
  %v3251 = vunpack.c.l.b16 %v3183
  %v3252 = vunpack.c.l.b16 %v3184
  %v3253 = vunpack.c.l.b16 %v3185
  %v3254 = vunpack.c.l.b16 %v3186
  %v3255 = vunpack.c.l.b16 %v3187
  %v3256 = vunpack.c.l.b16 %v3188
  %v3257 = vunpack.c.l.b16 %v3189
  %v3258 = vunpack.c.l.b16 %v3190
  %v3259 = vunpack.c.l.b16 %v3191
  %v3260 = vunpack.c.l.b16 %v3192
  %v3261 = vunpack.c.l.b16 %v3193
  %v3262 = vunpack.c.l.b16 %v3194
  %v3263 = vunpack.c.l.b16 %v3195
  %v3264 = vunpack.c.l.b16 %v3196
  %v3265 = vpack.c.b16 %v3232, %v3231
  %v3266 = vpack.c.b16 %v3234, %v3233
  %v3267 = vpack.c.b16 %v3236, %v3235
  %v3268 = vpack.c.b16 %v3238, %v3237
  %v3269 = vpack.c.b16 %v3240, %v3239
  %v3270 = vpack.c.b16 %v3242, %v3241
  %v3271 = vpack.c.b16 %v3244, %v3243
  %v3272 = vpack.c.b16 %v3246, %v3245
  %v3273 = vpack.c.b16 %v3248, %v3247
  %v3274 = vpack.c.b16 %v3250, %v3249
  %v3275 = vpack.c.b16 %v3252, %v3251
  %v3276 = vpack.c.b16 %v3254, %v3253
  %v3277 = vpack.c.b16 %v3256, %v3255
  %v3278 = vpack.c.b16 %v3258, %v3257
  %v3279 = vpack.c.b16 %v3260, %v3259
  %v3280 = vpack.c.b16 %v3262, %v3261
  %v3281 = vpack.c.b16 %v3264, %v3263
  %v3300 = vsel %vm87, %v3117, 0
  %v3303 = vsel %vm87, %v3120, 0
  %v3306 = vsel %vm87, %v3123, 0
  %v3309 = vsel %vm87, %v3126, 0
  %3311 = vmatprep.subr.bf16.mxu0 0
  %3312 = vmatpush1.bf16.msra.mxu0 %v3272
  %3313 = vmatprep.subr.bf16.mxu0 0
  %3314 = vmatpush1.bf16.msra.mxu0 %v3271
  %3315 = vmatprep.subr.bf16.mxu0 0
  %3316 = vmatpush1.bf16.msra.mxu0 %v3270
  %3317 = vmatprep.subr.bf16.mxu0 0
  %3318 = vmatpush1.bf16.msra.mxu0 %v3269
  %3319 = vmatprep.subr.bf16.mxu0 0
  %3320 = vmatpush1.bf16.msra.mxu0 %v3268
  %3321 = vmatprep.subr.bf16.mxu0 0
  %3322 = vmatpush1.bf16.msra.mxu0 %v3267
  %3323 = vmatprep.subr.bf16.mxu0 0
  %3324 = vmatpush1.bf16.msra.mxu0 %v3266
  %3325 = vmatprep.subr.bf16.mxu0 0
  %3326 = vmatpush1.bf16.msra.mxu0 %v3265
  %3327 = vmatprep.subr.bf16.mxu0 0
  %3328 = vmatpush2.bf16.msra.mxu0 %v3280
  %3329 = vmatprep.subr.bf16.mxu0 0
  %3330 = vmatpush2.bf16.msra.mxu0 %v3279
  %3331 = vmatprep.subr.bf16.mxu0 0
  %3332 = vmatpush2.bf16.msra.mxu0 %v3278
  %3333 = vmatprep.subr.bf16.mxu0 0
  %3334 = vmatpush2.bf16.msra.mxu0 %v3277
  %3335 = vmatprep.subr.bf16.mxu0 0
  %3336 = vmatpush2.bf16.msra.mxu0 %v3276
  %3337 = vmatprep.subr.bf16.mxu0 0
  %3338 = vmatpush2.bf16.msra.mxu0 %v3275
  %3339 = vmatprep.subr.bf16.mxu0 0
  %3340 = vmatpush2.bf16.msra.mxu0 %v3274
  %3341 = vmatprep.subr.bf16.mxu0 0
  %3342 = vmatpush2.bf16.msra.mxu0 %v3273
  %3343 = vmatprep.mubr.bf16.mxu0 %v3116
  %3344 = vmatmul.mubr.bf16.gmra.mxu0 %v3115
  %v3345 = vpop.f32.mrf.mxu0
  %v3346 = vadd.f32 0.0, %v3345
  %v3347 = vpop.f32.mrf.mxu0
  %v3348 = vpop.f32.mrf.mxu0
  %v3349 = vadd.f32 0.0, %v3348
  %v3350 = vpop.f32.mrf.mxu0
  %3351 = vmatprep.mubr.bf16.mxu0 %v3119
  %3352 = vmatmul.mubr.bf16.gmra.mxu0 %v3118
  %v3353 = vpop.f32.mrf.mxu0
  %v3354 = vadd.f32 0.0, %v3353
  %v3355 = vpop.f32.mrf.mxu0
  %v3356 = vpop.f32.mrf.mxu0
  %v3357 = vadd.f32 0.0, %v3356
  %v3358 = vpop.f32.mrf.mxu0
  %3359 = vmatprep.mubr.bf16.mxu0 %v3122
  %3360 = vmatmul.mubr.bf16.gmra.mxu0 %v3121
  %v3361 = vpop.f32.mrf.mxu0
  %v3362 = vadd.f32 0.0, %v3361
  %v3363 = vpop.f32.mrf.mxu0
  %v3364 = vpop.f32.mrf.mxu0
  %v3365 = vadd.f32 0.0, %v3364
  %v3366 = vpop.f32.mrf.mxu0
  %3367 = vmatprep.mubr.bf16.mxu0 %v3125
  %3368 = vmatmul.mubr.bf16.gmra.mxu0 %v3124
  %v3369 = vpop.f32.mrf.mxu0
  %v3370 = vadd.f32 0.0, %v3369
  %v3371 = vpop.f32.mrf.mxu0
  %v3372 = vpop.f32.mrf.mxu0
  %v3373 = vadd.f32 0.0, %v3372
  %v3374 = vpop.f32.mrf.mxu0
  %3375 = vdwg.mxu0
  %3376 = vmatprep.subr.bf16.mxu0 0
  %3377 = vmatpush1.bf16.msra.mxu0 0
  %3378 = vmatprep.subr.bf16.mxu0 0
  %3379 = vmatpush1.bf16.msra.mxu0 0
  %3380 = vmatprep.subr.bf16.mxu0 0
  %3381 = vmatpush1.bf16.msra.mxu0 0
  %3382 = vmatprep.subr.bf16.mxu0 0
  %3383 = vmatpush1.bf16.msra.mxu0 0
  %3384 = vmatprep.subr.bf16.mxu0 0
  %3385 = vmatpush1.bf16.msra.mxu0 0
  %3386 = vmatprep.subr.bf16.mxu0 0
  %3387 = vmatpush1.bf16.msra.mxu0 0
  %3388 = vmatprep.subr.bf16.mxu0 0
  %3389 = vmatpush1.bf16.msra.mxu0 0
  %3390 = vmatprep.subr.bf16.mxu0 0
  %3391 = vmatpush1.bf16.msra.mxu0 %v3281
  %3392 = vmatprep.subr.bf16.mxu0 0
  %3393 = vmatpush2.bf16.msra.mxu0 0
  %3394 = vmatprep.subr.bf16.mxu0 0
  %3395 = vmatpush2.bf16.msra.mxu0 0
  %3396 = vmatprep.subr.bf16.mxu0 0
  %3397 = vmatpush2.bf16.msra.mxu0 0
  %3398 = vmatprep.subr.bf16.mxu0 0
  %3399 = vmatpush2.bf16.msra.mxu0 0
  %3400 = vmatprep.subr.bf16.mxu0 0
  %3401 = vmatpush2.bf16.msra.mxu0 0
  %3402 = vmatprep.subr.bf16.mxu0 0
  %3403 = vmatpush2.bf16.msra.mxu0 0
  %3404 = vmatprep.subr.bf16.mxu0 0
  %3405 = vmatpush2.bf16.msra.mxu0 0
  %3406 = vmatprep.subr.bf16.mxu0 0
  %3407 = vmatpush2.bf16.msra.mxu0 0
  %3408 = vmatprep.mubr.bf16.mxu0 0
  %3409 = vmatmul.mubr.bf16.gmra.mxu0 %v3300
  %v3410 = vpop.f32.mrf.mxu0
  %v3411 = vadd.f32 %v3346, %v3410
  %v3412 = vpop.f32.mrf.mxu0
  %v3413 = vpop.f32.mrf.mxu0
  %v3414 = vadd.f32 %v3349, %v3413
  %v3415 = vpop.f32.mrf.mxu0
  %3416 = vmatprep.mubr.bf16.mxu0 0
  %3417 = vmatmul.mubr.bf16.gmra.mxu0 %v3303
  %v3418 = vpop.f32.mrf.mxu0
  %v3419 = vadd.f32 %v3354, %v3418
  %v3420 = vpop.f32.mrf.mxu0
  %v3421 = vpop.f32.mrf.mxu0
  %v3422 = vadd.f32 %v3357, %v3421
  %v3423 = vpop.f32.mrf.mxu0
  %3424 = vmatprep.mubr.bf16.mxu0 0
  %3425 = vmatmul.mubr.bf16.gmra.mxu0 %v3306
  %v3426 = vpop.f32.mrf.mxu0
  %v3427 = vadd.f32 %v3362, %v3426
  %v3428 = vpop.f32.mrf.mxu0
  %v3429 = vpop.f32.mrf.mxu0
  %v3430 = vadd.f32 %v3365, %v3429
  %v3431 = vpop.f32.mrf.mxu0
  %3432 = vmatprep.mubr.bf16.mxu0 0
  %3433 = vmatmul.mubr.bf16.gmra.mxu0 %v3309
  %v3434 = vpop.f32.mrf.mxu0
  %v3435 = vadd.f32 %v3370, %v3434
  %v3436 = vpop.f32.mrf.mxu0
  %v3437 = vpop.f32.mrf.mxu0
  %v3438 = vadd.f32 %v3373, %v3437
  %v3439 = vpop.f32.mrf.mxu0
  %3440 = vdwg.mxu0
  %v3475 = vunpack.c.l.b16 %v3128
  %v3476 = vunpack.c.l.b16 %v3129
  %v3477 = vunpack.c.l.b16 %v3130
  %v3478 = vunpack.c.l.b16 %v3131
  %v3479 = vunpack.c.l.b16 %v3132
  %v3480 = vunpack.c.l.b16 %v3133
  %v3481 = vunpack.c.l.b16 %v3134
  %v3482 = vunpack.c.l.b16 %v3135
  %v3483 = vunpack.c.l.b16 %v3136
  %v3484 = vunpack.c.l.b16 %v3137
  %v3485 = vunpack.c.l.b16 %v3138
  %v3486 = vunpack.c.l.b16 %v3139
  %v3487 = vunpack.c.l.b16 %v3140
  %v3488 = vunpack.c.l.b16 %v3141
  %v3489 = vunpack.c.l.b16 %v3142
  %v3490 = vunpack.c.l.b16 %v3143
  %v3491 = vunpack.c.l.b16 %v3144
  %v3492 = vunpack.c.l.b16 %v3145
  %v3493 = vunpack.c.l.b16 %v3146
  %v3494 = vunpack.c.l.b16 %v3147
  %v3495 = vunpack.c.l.b16 %v3148
  %v3496 = vunpack.c.l.b16 %v3149
  %v3497 = vunpack.c.l.b16 %v3150
  %v3498 = vunpack.c.l.b16 %v3151
  %v3499 = vunpack.c.l.b16 %v3152
  %v3500 = vunpack.c.l.b16 %v3153
  %v3501 = vunpack.c.l.b16 %v3154
  %v3502 = vunpack.c.l.b16 %v3155
  %v3503 = vunpack.c.l.b16 %v3156
  %v3504 = vunpack.c.l.b16 %v3157
  %v3505 = vunpack.c.l.b16 %v3158
  %v3506 = vunpack.c.l.b16 %v3159
  %v3507 = vunpack.c.l.b16 %v3160
  %v3508 = vunpack.c.l.b16 %v3161
  %v3509 = vpack.c.b16 %v3476, %v3475
  %v3510 = vpack.c.b16 %v3478, %v3477
  %v3511 = vpack.c.b16 %v3480, %v3479
  %v3512 = vpack.c.b16 %v3482, %v3481
  %v3513 = vpack.c.b16 %v3484, %v3483
  %v3514 = vpack.c.b16 %v3486, %v3485
  %v3515 = vpack.c.b16 %v3488, %v3487
  %v3516 = vpack.c.b16 %v3490, %v3489
  %v3517 = vpack.c.b16 %v3492, %v3491
  %v3518 = vpack.c.b16 %v3494, %v3493
  %v3519 = vpack.c.b16 %v3496, %v3495
  %v3520 = vpack.c.b16 %v3498, %v3497
  %v3521 = vpack.c.b16 %v3500, %v3499
  %v3522 = vpack.c.b16 %v3502, %v3501
  %v3523 = vpack.c.b16 %v3504, %v3503
  %v3524 = vpack.c.b16 %v3506, %v3505
  %v3525 = vpack.c.b16 %v3508, %v3507
  %3543 = vmatprep.subr.bf16.mxu0 0
  %3544 = vmatpush1.bf16.msra.mxu0 %v3516
  %3545 = vmatprep.subr.bf16.mxu0 0
  %3546 = vmatpush1.bf16.msra.mxu0 %v3515
  %3547 = vmatprep.subr.bf16.mxu0 0
  %3548 = vmatpush1.bf16.msra.mxu0 %v3514
  %3549 = vmatprep.subr.bf16.mxu0 0
  %3550 = vmatpush1.bf16.msra.mxu0 %v3513
  %3551 = vmatprep.subr.bf16.mxu0 0
  %3552 = vmatpush1.bf16.msra.mxu0 %v3512
  %3553 = vmatprep.subr.bf16.mxu0 0
  %3554 = vmatpush1.bf16.msra.mxu0 %v3511
  %3555 = vmatprep.subr.bf16.mxu0 0
  %3556 = vmatpush1.bf16.msra.mxu0 %v3510
  %3557 = vmatprep.subr.bf16.mxu0 0
  %3558 = vmatpush1.bf16.msra.mxu0 %v3509
  %3559 = vmatprep.subr.bf16.mxu0 0
  %3560 = vmatpush2.bf16.msra.mxu0 %v3524
  %3561 = vmatprep.subr.bf16.mxu0 0
  %3562 = vmatpush2.bf16.msra.mxu0 %v3523
  %3563 = vmatprep.subr.bf16.mxu0 0
  %3564 = vmatpush2.bf16.msra.mxu0 %v3522
  %3565 = vmatprep.subr.bf16.mxu0 0
  %3566 = vmatpush2.bf16.msra.mxu0 %v3521
  %3567 = vmatprep.subr.bf16.mxu0 0
  %3568 = vmatpush2.bf16.msra.mxu0 %v3520
  %3569 = vmatprep.subr.bf16.mxu0 0
  %3570 = vmatpush2.bf16.msra.mxu0 %v3519
  %3571 = vmatprep.subr.bf16.mxu0 0
  %3572 = vmatpush2.bf16.msra.mxu0 %v3518
  %3573 = vmatprep.subr.bf16.mxu0 0
  %3574 = vmatpush2.bf16.msra.mxu0 %v3517
  %3575 = vmatprep.mubr.bf16.mxu0 %v2507
  %3576 = vmatmul.mubr.bf16.gmra.mxu0 %v2506
  %v3577 = vpop.f32.mrf.mxu0
  %v3578 = vadd.f32 %v3411, %v3577
  %v3579 = vpop.f32.mrf.mxu0
  %v3580 = vpop.f32.mrf.mxu0
  %v3581 = vadd.f32 %v3414, %v3580
  %v3582 = vpop.f32.mrf.mxu0
  %3583 = vmatprep.mubr.bf16.mxu0 %v2510
  %3584 = vmatmul.mubr.bf16.gmra.mxu0 %v2509
  %v3585 = vpop.f32.mrf.mxu0
  %v3586 = vadd.f32 %v3419, %v3585
  %v3587 = vpop.f32.mrf.mxu0
  %v3588 = vpop.f32.mrf.mxu0
  %v3589 = vadd.f32 %v3422, %v3588
  %v3590 = vpop.f32.mrf.mxu0
  %3591 = vmatprep.mubr.bf16.mxu0 %v2513
  %3592 = vmatmul.mubr.bf16.gmra.mxu0 %v2512
  %v3593 = vpop.f32.mrf.mxu0
  %v3594 = vadd.f32 %v3427, %v3593
  %v3595 = vpop.f32.mrf.mxu0
  %v3596 = vpop.f32.mrf.mxu0
  %v3597 = vadd.f32 %v3430, %v3596
  %v3598 = vpop.f32.mrf.mxu0
  %3599 = vmatprep.mubr.bf16.mxu0 %v2516
  %3600 = vmatmul.mubr.bf16.gmra.mxu0 %v2515
  %v3601 = vpop.f32.mrf.mxu0
  %v3602 = vadd.f32 %v3435, %v3601
  %v3603 = vpop.f32.mrf.mxu0
  %v3604 = vpop.f32.mrf.mxu0
  %v3605 = vadd.f32 %v3438, %v3604
  %v3606 = vpop.f32.mrf.mxu0
  %3607 = vdwg.mxu0
  %3608 = vmatprep.subr.bf16.mxu0 0
  %3609 = vmatpush1.bf16.msra.mxu0 0
  %3610 = vmatprep.subr.bf16.mxu0 0
  %3611 = vmatpush1.bf16.msra.mxu0 0
  %3612 = vmatprep.subr.bf16.mxu0 0
  %3613 = vmatpush1.bf16.msra.mxu0 0
  %3614 = vmatprep.subr.bf16.mxu0 0
  %3615 = vmatpush1.bf16.msra.mxu0 0
  %3616 = vmatprep.subr.bf16.mxu0 0
  %3617 = vmatpush1.bf16.msra.mxu0 0
  %3618 = vmatprep.subr.bf16.mxu0 0
  %3619 = vmatpush1.bf16.msra.mxu0 0
  %3620 = vmatprep.subr.bf16.mxu0 0
  %3621 = vmatpush1.bf16.msra.mxu0 0
  %3622 = vmatprep.subr.bf16.mxu0 0
  %3623 = vmatpush1.bf16.msra.mxu0 %v3525
  %3624 = vmatprep.subr.bf16.mxu0 0
  %3625 = vmatpush2.bf16.msra.mxu0 0
  %3626 = vmatprep.subr.bf16.mxu0 0
  %3627 = vmatpush2.bf16.msra.mxu0 0
  %3628 = vmatprep.subr.bf16.mxu0 0
  %3629 = vmatpush2.bf16.msra.mxu0 0
  %3630 = vmatprep.subr.bf16.mxu0 0
  %3631 = vmatpush2.bf16.msra.mxu0 0
  %3632 = vmatprep.subr.bf16.mxu0 0
  %3633 = vmatpush2.bf16.msra.mxu0 0
  %3634 = vmatprep.subr.bf16.mxu0 0
  %3635 = vmatpush2.bf16.msra.mxu0 0
  %3636 = vmatprep.subr.bf16.mxu0 0
  %3637 = vmatpush2.bf16.msra.mxu0 0
  %3638 = vmatprep.subr.bf16.mxu0 0
  %3639 = vmatpush2.bf16.msra.mxu0 0
  %3640 = vmatprep.mubr.bf16.mxu0 0
  %3641 = vmatmul.mubr.bf16.gmra.mxu0 %v2690
  %v3642 = vpop.f32.mrf.mxu0
  %v3643 = vadd.f32 %v3578, %v3642
  %v3644 = vpop.f32.mrf.mxu0
  %v3645 = vpop.f32.mrf.mxu0
  %v3646 = vadd.f32 %v3581, %v3645
  %v3647 = vpop.f32.mrf.mxu0
  %3648 = vmatprep.mubr.bf16.mxu0 0
  %3649 = vmatmul.mubr.bf16.gmra.mxu0 %v2693
  %v3650 = vpop.f32.mrf.mxu0
  %v3651 = vadd.f32 %v3586, %v3650
  %v3652 = vpop.f32.mrf.mxu0
  %v3653 = vpop.f32.mrf.mxu0
  %v3654 = vadd.f32 %v3589, %v3653
  %v3655 = vpop.f32.mrf.mxu0
  %3656 = vmatprep.mubr.bf16.mxu0 0
  %3657 = vmatmul.mubr.bf16.gmra.mxu0 %v2696
  %v3658 = vpop.f32.mrf.mxu0
  %v3659 = vadd.f32 %v3594, %v3658
  %v3660 = vpop.f32.mrf.mxu0
  %v3661 = vpop.f32.mrf.mxu0
  %v3662 = vadd.f32 %v3597, %v3661
  %v3663 = vpop.f32.mrf.mxu0
  %3664 = vmatprep.mubr.bf16.mxu0 0
  %3665 = vmatmul.mubr.bf16.gmra.mxu0 %v2699
  %v3666 = vpop.f32.mrf.mxu0
  %v3667 = vadd.f32 %v3602, %v3666
  %v3668 = vpop.f32.mrf.mxu0
  %v3669 = vpop.f32.mrf.mxu0
  %v3670 = vadd.f32 %v3605, %v3669
  %v3671 = vpop.f32.mrf.mxu0
  %3672 = vdwg.mxu0
  %v3673 = vpack.c.bf16 %v3646, %v3643
  %v3674 = vpack.c.bf16 %v3654, %v3651
  %v3675 = vpack.c.bf16 %v3662, %v3659
  %v3676 = vpack.c.bf16 %v3670, %v3667
  %vm3677 = vcmask 523264
  %v3679 = vsel %vm3677, %v2466, 0
  %3681 = vmatprep.subr.bf16.mxu0 0
  %3682 = vmatpush1.bf16.msra.mxu0 0
  %3683 = vmatprep.subr.bf16.mxu0 0
  %3684 = vmatpush1.bf16.msra.mxu0 0
  %3685 = vmatprep.subr.bf16.mxu0 0
  %3686 = vmatpush1.bf16.msra.mxu0 0
  %3687 = vmatprep.subr.bf16.mxu0 0
  %3688 = vmatpush1.bf16.msra.mxu0 0
  %3689 = vmatprep.subr.bf16.mxu0 0
  %3690 = vmatpush1.bf16.msra.mxu0 %v3676
  %3691 = vmatprep.subr.bf16.mxu0 0
  %3692 = vmatpush1.bf16.msra.mxu0 %v3675
  %3693 = vmatprep.subr.bf16.mxu0 0
  %3694 = vmatpush1.bf16.msra.mxu0 %v3674
  %3695 = vmatprep.subr.bf16.mxu0 0
  %3696 = vmatpush1.bf16.msra.mxu0 %v3673
  %3697 = vmatprep.subr.bf16.mxu0 0
  %3698 = vmatpush2.bf16.msra.mxu0 0
  %3699 = vmatprep.subr.bf16.mxu0 0
  %3700 = vmatpush2.bf16.msra.mxu0 0
  %3701 = vmatprep.subr.bf16.mxu0 0
  %3702 = vmatpush2.bf16.msra.mxu0 0
  %3703 = vmatprep.subr.bf16.mxu0 0
  %3704 = vmatpush2.bf16.msra.mxu0 0
  %3705 = vmatprep.subr.bf16.mxu0 0
  %3706 = vmatpush2.bf16.msra.mxu0 0
  %3707 = vmatprep.subr.bf16.mxu0 0
  %3708 = vmatpush2.bf16.msra.mxu0 0
  %3709 = vmatprep.subr.bf16.mxu0 0
  %3710 = vmatpush2.bf16.msra.mxu0 0
  %3711 = vmatprep.subr.bf16.mxu0 0
  %3712 = vmatpush2.bf16.msra.mxu0 0
  %3713 = vmatprep.mubr.bf16.mxu0 0
  %3714 = vmatmul.mubr.bf16.gmra.mxu0 %v3679
  %v3715 = vpop.f32.mrf.mxu0
  %v3716 = vadd.f32 0.0, %v3715
  %v3717 = vpop.f32.mrf.mxu0
  %v3718 = vpop.f32.mrf.mxu0
  %v3719 = vpop.f32.mrf.mxu0
  %3720 = vdwg.mxu0
  %3721 = vmatprep.subr.bf16.mxu0 0
  %3722 = vmatpush1.bf16.msra.mxu0 0
  %3723 = vmatprep.subr.bf16.mxu0 0
  %3724 = vmatpush1.bf16.msra.mxu0 0
  %3725 = vmatprep.subr.bf16.mxu0 0
  %3726 = vmatpush1.bf16.msra.mxu0 0
  %3727 = vmatprep.subr.bf16.mxu0 0
  %3728 = vmatpush1.bf16.msra.mxu0 0
  %3729 = vmatprep.subr.bf16.mxu0 0
  %3730 = vmatpush1.bf16.msra.mxu0 %v3078
  %3731 = vmatprep.subr.bf16.mxu0 0
  %3732 = vmatpush1.bf16.msra.mxu0 %v3077
  %3733 = vmatprep.subr.bf16.mxu0 0
  %3734 = vmatpush1.bf16.msra.mxu0 %v3076
  %3735 = vmatprep.subr.bf16.mxu0 0
  %3736 = vmatpush1.bf16.msra.mxu0 %v3075
  %3737 = vmatprep.subr.bf16.mxu0 0
  %3738 = vmatpush2.bf16.msra.mxu0 0
  %3739 = vmatprep.subr.bf16.mxu0 0
  %3740 = vmatpush2.bf16.msra.mxu0 0
  %3741 = vmatprep.subr.bf16.mxu0 0
  %3742 = vmatpush2.bf16.msra.mxu0 0
  %3743 = vmatprep.subr.bf16.mxu0 0
  %3744 = vmatpush2.bf16.msra.mxu0 0
  %3745 = vmatprep.subr.bf16.mxu0 0
  %3746 = vmatpush2.bf16.msra.mxu0 0
  %3747 = vmatprep.subr.bf16.mxu0 0
  %3748 = vmatpush2.bf16.msra.mxu0 0
  %3749 = vmatprep.subr.bf16.mxu0 0
  %3750 = vmatpush2.bf16.msra.mxu0 0
  %3751 = vmatprep.subr.bf16.mxu0 0
  %3752 = vmatpush2.bf16.msra.mxu0 0
  %3753 = vmatprep.mubr.bf16.mxu0 0
  %3754 = vmatmul.mubr.bf16.gmra.mxu0 %v3679
  %v3755 = vpop.f32.mrf.mxu0
  %v3756 = vadd.f32 %v3716, %v3755
  %v3757 = vpop.f32.mrf.mxu0
  %v3758 = vpop.f32.mrf.mxu0
  %v3759 = vpop.f32.mrf.mxu0
  %3760 = vdwg.mxu0
  %v3761 = vmul.f32 %v3643, %v3643
  %v3762 = vmul.f32 %v3646, %v3646
  %v3763 = vmul.f32 %v3651, %v3651
  %v3764 = vmul.f32 %v3654, %v3654
  %v3765 = vmul.f32 %v3659, %v3659
  %v3766 = vmul.f32 %v3662, %v3662
  %v3767 = vmul.f32 %v3667, %v3667
  %v3768 = vmul.f32 %v3670, %v3670
  %v3769 = vpack.c.bf16 %v3762, %v3761
  %v3770 = vpack.c.bf16 %v3764, %v3763
  %v3771 = vpack.c.bf16 %v3766, %v3765
  %v3772 = vpack.c.bf16 %v3768, %v3767
  %3773 = vmatprep.subr.bf16.mxu0 0
  %3774 = vmatpush1.bf16.msra.mxu0 0
  %3775 = vmatprep.subr.bf16.mxu0 0
  %3776 = vmatpush1.bf16.msra.mxu0 0
  %3777 = vmatprep.subr.bf16.mxu0 0
  %3778 = vmatpush1.bf16.msra.mxu0 0
  %3779 = vmatprep.subr.bf16.mxu0 0
  %3780 = vmatpush1.bf16.msra.mxu0 0
  %3781 = vmatprep.subr.bf16.mxu0 0
  %3782 = vmatpush1.bf16.msra.mxu0 %v3772
  %3783 = vmatprep.subr.bf16.mxu0 0
  %3784 = vmatpush1.bf16.msra.mxu0 %v3771
  %3785 = vmatprep.subr.bf16.mxu0 0
  %3786 = vmatpush1.bf16.msra.mxu0 %v3770
  %3787 = vmatprep.subr.bf16.mxu0 0
  %3788 = vmatpush1.bf16.msra.mxu0 %v3769
  %3789 = vmatprep.subr.bf16.mxu0 0
  %3790 = vmatpush2.bf16.msra.mxu0 0
  %3791 = vmatprep.subr.bf16.mxu0 0
  %3792 = vmatpush2.bf16.msra.mxu0 0
  %3793 = vmatprep.subr.bf16.mxu0 0
  %3794 = vmatpush2.bf16.msra.mxu0 0
  %3795 = vmatprep.subr.bf16.mxu0 0
  %3796 = vmatpush2.bf16.msra.mxu0 0
  %3797 = vmatprep.subr.bf16.mxu0 0
  %3798 = vmatpush2.bf16.msra.mxu0 0
  %3799 = vmatprep.subr.bf16.mxu0 0
  %3800 = vmatpush2.bf16.msra.mxu0 0
  %3801 = vmatprep.subr.bf16.mxu0 0
  %3802 = vmatpush2.bf16.msra.mxu0 0
  %3803 = vmatprep.subr.bf16.mxu0 0
  %3804 = vmatpush2.bf16.msra.mxu0 0
  %3805 = vmatprep.mubr.bf16.mxu0 0
  %3806 = vmatmul.mubr.bf16.gmra.mxu0 %v3679
  %v3807 = vpop.f32.mrf.mxu0
  %v3808 = vadd.f32 0.0, %v3807
  %v3809 = vpop.f32.mrf.mxu0
  %v3810 = vpop.f32.mrf.mxu0
  %v3811 = vpop.f32.mrf.mxu0
  %3812 = vdwg.mxu0
  %3813 = vmatprep.subr.bf16.mxu0 0
  %3814 = vmatpush1.bf16.msra.mxu0 0
  %3815 = vmatprep.subr.bf16.mxu0 0
  %3816 = vmatpush1.bf16.msra.mxu0 0
  %3817 = vmatprep.subr.bf16.mxu0 0
  %3818 = vmatpush1.bf16.msra.mxu0 0
  %3819 = vmatprep.subr.bf16.mxu0 0
  %3820 = vmatpush1.bf16.msra.mxu0 0
  %3821 = vmatprep.subr.bf16.mxu0 0
  %3822 = vmatpush1.bf16.msra.mxu0 %v3090
  %3823 = vmatprep.subr.bf16.mxu0 0
  %3824 = vmatpush1.bf16.msra.mxu0 %v3089
  %3825 = vmatprep.subr.bf16.mxu0 0
  %3826 = vmatpush1.bf16.msra.mxu0 %v3088
  %3827 = vmatprep.subr.bf16.mxu0 0
  %3828 = vmatpush1.bf16.msra.mxu0 %v3087
  %3829 = vmatprep.subr.bf16.mxu0 0
  %3830 = vmatpush2.bf16.msra.mxu0 0
  %3831 = vmatprep.subr.bf16.mxu0 0
  %3832 = vmatpush2.bf16.msra.mxu0 0
  %3833 = vmatprep.subr.bf16.mxu0 0
  %3834 = vmatpush2.bf16.msra.mxu0 0
  %3835 = vmatprep.subr.bf16.mxu0 0
  %3836 = vmatpush2.bf16.msra.mxu0 0
  %3837 = vmatprep.subr.bf16.mxu0 0
  %3838 = vmatpush2.bf16.msra.mxu0 0
  %3839 = vmatprep.subr.bf16.mxu0 0
  %3840 = vmatpush2.bf16.msra.mxu0 0
  %3841 = vmatprep.subr.bf16.mxu0 0
  %3842 = vmatpush2.bf16.msra.mxu0 0
  %3843 = vmatprep.subr.bf16.mxu0 0
  %3844 = vmatpush2.bf16.msra.mxu0 0
  %3845 = vmatprep.mubr.bf16.mxu0 0
  %3846 = vmatmul.mubr.bf16.gmra.mxu0 %v3679
  %v3847 = vpop.f32.mrf.mxu0
  %v3848 = vadd.f32 %v3808, %v3847
  %v3849 = vpop.f32.mrf.mxu0
  %v3850 = vpop.f32.mrf.mxu0
  %v3851 = vpop.f32.mrf.mxu0
  %3852 = vdwg.mxu0
  %v3853 = vld [vmem:[%s13] sm:$0xf]
  %v3854 = vld [vmem:[%s13 + $0x4] sm:$0xf]
  %v3855 = vld [vmem:[%s13 + $0x8] sm:$0xf]
  %v3856 = vld [vmem:[%s13 + $0xc] sm:$0xf]
  %v3857 = vld [vmem:[%s13 + $0x10] sm:$0xf]
  %v3858 = vld [vmem:[%s13 + $0x14] sm:$0xf]
  %v3859 = vld [vmem:[%s13 + $0x18] sm:$0xf]
  %v3860 = vld [vmem:[%s13 + $0x1c] sm:$0xf]
  %v3861 = vld [vmem:[%s13 + $0x20] sm:$0xf]
  %v3862 = vld [vmem:[%s13 + $0x24] sm:$0xf]
  %v3863 = vld [vmem:[%s13 + $0x28] sm:$0xf]
  %v3864 = vld [vmem:[%s13 + $0x2c] sm:$0xf]
  %v3865 = vld [vmem:[%s13 + $0x30] sm:$0xf]
  %v3866 = vld [vmem:[%s13 + $0x34] sm:$0xf]
  %v3867 = vld [vmem:[%s13 + $0x38] sm:$0xf]
  %v3868 = vld [vmem:[%s13 + $0x3c] sm:$0xf]
  %v3869 = vpack.c.bf16 %v3756, %v3756
  %v3886 = vunpack.c.l.b16 %v3853
  %v3887 = vunpack.c.l.b16 %v3854
  %v3888 = vunpack.c.l.b16 %v3855
  %v3889 = vunpack.c.l.b16 %v3856
  %v3890 = vunpack.c.l.b16 %v3857
  %v3891 = vunpack.c.l.b16 %v3858
  %v3892 = vunpack.c.l.b16 %v3859
  %v3893 = vunpack.c.l.b16 %v3860
  %v3894 = vunpack.c.l.b16 %v3861
  %v3895 = vunpack.c.l.b16 %v3862
  %v3896 = vunpack.c.l.b16 %v3863
  %v3897 = vunpack.c.l.b16 %v3864
  %v3898 = vunpack.c.l.b16 %v3865
  %v3899 = vunpack.c.l.b16 %v3866
  %v3900 = vunpack.c.l.b16 %v3867
  %v3901 = vunpack.c.l.b16 %v3868
  %v3902 = vpack.c.b16 %v3887, %v3886
  %v3903 = vpack.c.b16 %v3889, %v3888
  %v3904 = vpack.c.b16 %v3891, %v3890
  %v3905 = vpack.c.b16 %v3893, %v3892
  %v3906 = vpack.c.b16 %v3895, %v3894
  %v3907 = vpack.c.b16 %v3897, %v3896
  %v3908 = vpack.c.b16 %v3899, %v3898
  %v3909 = vpack.c.b16 %v3901, %v3900
  %3918 = vmatprep.subr.bf16.mxu0 0
  %3919 = vmatpush1.bf16.msra.mxu0 %v3909
  %3920 = vmatprep.subr.bf16.mxu0 0
  %3921 = vmatpush1.bf16.msra.mxu0 %v3908
  %3922 = vmatprep.subr.bf16.mxu0 0
  %3923 = vmatpush1.bf16.msra.mxu0 %v3907
  %3924 = vmatprep.subr.bf16.mxu0 0
  %3925 = vmatpush1.bf16.msra.mxu0 %v3906
  %3926 = vmatprep.subr.bf16.mxu0 0
  %3927 = vmatpush1.bf16.msra.mxu0 %v3905
  %3928 = vmatprep.subr.bf16.mxu0 0
  %3929 = vmatpush1.bf16.msra.mxu0 %v3904
  %3930 = vmatprep.subr.bf16.mxu0 0
  %3931 = vmatpush1.bf16.msra.mxu0 %v3903
  %3932 = vmatprep.subr.bf16.mxu0 0
  %3933 = vmatpush1.bf16.msra.mxu0 %v3902
  %3934 = vmatprep.subr.bf16.mxu0 0
  %3935 = vmatpush2.bf16.msra.mxu0 0
  %3936 = vmatprep.subr.bf16.mxu0 0
  %3937 = vmatpush2.bf16.msra.mxu0 0
  %3938 = vmatprep.subr.bf16.mxu0 0
  %3939 = vmatpush2.bf16.msra.mxu0 0
  %3940 = vmatprep.subr.bf16.mxu0 0
  %3941 = vmatpush2.bf16.msra.mxu0 0
  %3942 = vmatprep.subr.bf16.mxu0 0
  %3943 = vmatpush2.bf16.msra.mxu0 0
  %3944 = vmatprep.subr.bf16.mxu0 0
  %3945 = vmatpush2.bf16.msra.mxu0 0
  %3946 = vmatprep.subr.bf16.mxu0 0
  %3947 = vmatpush2.bf16.msra.mxu0 0
  %3948 = vmatprep.subr.bf16.mxu0 0
  %3949 = vmatpush2.bf16.msra.mxu0 0
  %3950 = vmatprep.mubr.bf16.mxu0 0
  %3951 = vmatmul.mubr.bf16.gmra.mxu0 %v3869
  %v3952 = vpop.f32.mrf.mxu0
  %v3953 = vadd.f32 0.0, %v3952
  %v3954 = vpop.f32.mrf.mxu0
  %v3955 = vpop.f32.mrf.mxu0
  %v3956 = vpop.f32.mrf.mxu0
  %3957 = vdwg.mxu0
  %v3958 = vpack.c.bf16 %v3848, %v3848
  %3959 = vmatprep.subr.bf16.mxu0 0
  %3960 = vmatpush1.bf16.msra.mxu0 %v3909
  %3961 = vmatprep.subr.bf16.mxu0 0
  %3962 = vmatpush1.bf16.msra.mxu0 %v3908
  %3963 = vmatprep.subr.bf16.mxu0 0
  %3964 = vmatpush1.bf16.msra.mxu0 %v3907
  %3965 = vmatprep.subr.bf16.mxu0 0
  %3966 = vmatpush1.bf16.msra.mxu0 %v3906
  %3967 = vmatprep.subr.bf16.mxu0 0
  %3968 = vmatpush1.bf16.msra.mxu0 %v3905
  %3969 = vmatprep.subr.bf16.mxu0 0
  %3970 = vmatpush1.bf16.msra.mxu0 %v3904
  %3971 = vmatprep.subr.bf16.mxu0 0
  %3972 = vmatpush1.bf16.msra.mxu0 %v3903
  %3973 = vmatprep.subr.bf16.mxu0 0
  %3974 = vmatpush1.bf16.msra.mxu0 %v3902
  %3975 = vmatprep.subr.bf16.mxu0 0
  %3976 = vmatpush2.bf16.msra.mxu0 0
  %3977 = vmatprep.subr.bf16.mxu0 0
  %3978 = vmatpush2.bf16.msra.mxu0 0
  %3979 = vmatprep.subr.bf16.mxu0 0
  %3980 = vmatpush2.bf16.msra.mxu0 0
  %3981 = vmatprep.subr.bf16.mxu0 0
  %3982 = vmatpush2.bf16.msra.mxu0 0
  %3983 = vmatprep.subr.bf16.mxu0 0
  %3984 = vmatpush2.bf16.msra.mxu0 0
  %3985 = vmatprep.subr.bf16.mxu0 0
  %3986 = vmatpush2.bf16.msra.mxu0 0
  %3987 = vmatprep.subr.bf16.mxu0 0
  %3988 = vmatpush2.bf16.msra.mxu0 0
  %3989 = vmatprep.subr.bf16.mxu0 0
  %3990 = vmatpush2.bf16.msra.mxu0 0
  %3991 = vmatprep.mubr.bf16.mxu0 0
  %3992 = vmatmul.mubr.bf16.gmra.mxu0 %v3958
  %v3993 = vpop.f32.mrf.mxu0
  %v3994 = vadd.f32 0.0, %v3993
  %v3995 = vpop.f32.mrf.mxu0
  %v3996 = vpop.f32.mrf.mxu0
  %v3997 = vpop.f32.mrf.mxu0
  %3998 = vdwg.mxu0
  %v3999 = vmul.f32 %v3953, 0.00390625
  %v4000 = vmul.f32 %v3994, 0.00390625
  %v4001 = vmul.f32 %v3999, %v3999
  %v4002 = vsub.f32 %v4000, %v4001
  %v4003 = vmax.f32 %v4002, 0.0
  %v4004 = vadd.f32 %v4003, 1e-05
  %v4005 = vrsqrt.pop %v4004
  %v4006 = vld [vmem:[%s16] sm:$0x1]
  %v4008 = vlaneseq
  %v4009 = vshrl.u32 %v4008, 7
  %v4010 = vsub.s32 0, %v4009
  %v4011 = vrot.slane %v4006, %v4010
  %v4013 = vmul.f32 %v4005, %v4011
  %v4014 = vld [vmem:[%s17] sm:$0x1]
  %v4015 = vmul.f32 %v3999, %v4013
  %v4017 = vlaneseq
  %v4018 = vshrl.u32 %v4017, 7
  %v4019 = vsub.s32 0, %v4018
  %v4020 = vrot.slane %v4014, %v4019
  %v4022 = vsub.f32 %v4020, %v4015
  %v4023 = vpack.c.bf16 %v4013, %v4013
  %v4024 = vld [vmem:[%s14] sm:$0xf]
  %v4026 = vsel %vm114, %v4023, 0
  %vm4028 = vcmask 1043456
  %v4030 = vsel %vm4028, %v4024, 0
  %4032 = vmatprep.subr.bf16.mxu0 0
  %4033 = vmatpush1.bf16.msra.mxu0 0
  %4034 = vmatprep.subr.bf16.mxu0 0
  %4035 = vmatpush1.bf16.msra.mxu0 0
  %4036 = vmatprep.subr.bf16.mxu0 0
  %4037 = vmatpush1.bf16.msra.mxu0 0
  %4038 = vmatprep.subr.bf16.mxu0 0
  %4039 = vmatpush1.bf16.msra.mxu0 0
  %4040 = vmatprep.subr.bf16.mxu0 0
  %4041 = vmatpush1.bf16.msra.mxu0 0
  %4042 = vmatprep.subr.bf16.mxu0 0
  %4043 = vmatpush1.bf16.msra.mxu0 0
  %4044 = vmatprep.subr.bf16.mxu0 0
  %4045 = vmatpush1.bf16.msra.mxu0 0
  %4046 = vmatprep.subr.bf16.mxu0 0
  %4047 = vmatpush1.bf16.msra.mxu0 %v4030
  %4048 = vmatprep.subr.bf16.mxu0 0
  %4049 = vmatpush2.bf16.msra.mxu0 0
  %4050 = vmatprep.subr.bf16.mxu0 0
  %4051 = vmatpush2.bf16.msra.mxu0 0
  %4052 = vmatprep.subr.bf16.mxu0 0
  %4053 = vmatpush2.bf16.msra.mxu0 0
  %4054 = vmatprep.subr.bf16.mxu0 0
  %4055 = vmatpush2.bf16.msra.mxu0 0
  %4056 = vmatprep.subr.bf16.mxu0 0
  %4057 = vmatpush2.bf16.msra.mxu0 0
  %4058 = vmatprep.subr.bf16.mxu0 0
  %4059 = vmatpush2.bf16.msra.mxu0 0
  %4060 = vmatprep.subr.bf16.mxu0 0
  %4061 = vmatpush2.bf16.msra.mxu0 0
  %4062 = vmatprep.subr.bf16.mxu0 0
  %4063 = vmatpush2.bf16.msra.mxu0 0
  %4064 = vmatprep.mubr.bf16.mxu0 0
  %4065 = vmatmul.mubr.bf16.gmra.mxu0 %v4026
  %v4066 = vpop.f32.mrf.mxu0
  %v4067 = vadd.f32 0.0, %v4066
  %v4068 = vpop.f32.mrf.mxu0
  %v4069 = vpop.f32.mrf.mxu0
  %v4070 = vpop.f32.mrf.mxu0
  %4071 = vdwg.mxu0
  %v4072 = vpack.c.bf16 %v4022, %v4022
  %v4074 = vsel %vm114, %v4072, 0
  %4076 = vmatprep.subr.bf16.mxu0 0
  %4077 = vmatpush1.bf16.msra.mxu0 0
  %4078 = vmatprep.subr.bf16.mxu0 0
  %4079 = vmatpush1.bf16.msra.mxu0 0
  %4080 = vmatprep.subr.bf16.mxu0 0
  %4081 = vmatpush1.bf16.msra.mxu0 0
  %4082 = vmatprep.subr.bf16.mxu0 0
  %4083 = vmatpush1.bf16.msra.mxu0 0
  %4084 = vmatprep.subr.bf16.mxu0 0
  %4085 = vmatpush1.bf16.msra.mxu0 0
  %4086 = vmatprep.subr.bf16.mxu0 0
  %4087 = vmatpush1.bf16.msra.mxu0 0
  %4088 = vmatprep.subr.bf16.mxu0 0
  %4089 = vmatpush1.bf16.msra.mxu0 0
  %4090 = vmatprep.subr.bf16.mxu0 0
  %4091 = vmatpush1.bf16.msra.mxu0 %v4030
  %4092 = vmatprep.subr.bf16.mxu0 0
  %4093 = vmatpush2.bf16.msra.mxu0 0
  %4094 = vmatprep.subr.bf16.mxu0 0
  %4095 = vmatpush2.bf16.msra.mxu0 0
  %4096 = vmatprep.subr.bf16.mxu0 0
  %4097 = vmatpush2.bf16.msra.mxu0 0
  %4098 = vmatprep.subr.bf16.mxu0 0
  %4099 = vmatpush2.bf16.msra.mxu0 0
  %4100 = vmatprep.subr.bf16.mxu0 0
  %4101 = vmatpush2.bf16.msra.mxu0 0
  %4102 = vmatprep.subr.bf16.mxu0 0
  %4103 = vmatpush2.bf16.msra.mxu0 0
  %4104 = vmatprep.subr.bf16.mxu0 0
  %4105 = vmatpush2.bf16.msra.mxu0 0
  %4106 = vmatprep.subr.bf16.mxu0 0
  %4107 = vmatpush2.bf16.msra.mxu0 0
  %4108 = vmatprep.mubr.bf16.mxu0 0
  %4109 = vmatmul.mubr.bf16.gmra.mxu0 %v4074
  %v4110 = vpop.f32.mrf.mxu0
  %v4111 = vadd.f32 0.0, %v4110
  %v4112 = vpop.f32.mrf.mxu0
  %v4113 = vpop.f32.mrf.mxu0
  %v4114 = vpop.f32.mrf.mxu0
  %4115 = vdwg.mxu0
  %v4116 = vmul.f32 %v3045, %v4067
  %v4117 = vadd.f32 %v4116, %v4111
  %v4118 = vmax.f32 %v4117, 0.0
  %4119 = vst [vmem:[#allocation4 + $0x20] sm:$0xff] %v4118
  %v4120 = vmul.f32 %v3048, %v4067
  %v4121 = vadd.f32 %v4120, %v4111
  %v4122 = vmax.f32 %v4121, 0.0
  %4123 = vst [vmem:[#allocation4 + $0x50] sm:$0xff] %v4122
  %v4124 = vmul.f32 %v3053, %v4067
  %v4125 = vadd.f32 %v4124, %v4111
  %v4126 = vmax.f32 %v4125, 0.0
  %4127 = vst [vmem:[#allocation4 + $0x80] sm:$0xff] %v4126
  %v4128 = vmul.f32 %v3056, %v4067
  %v4129 = vadd.f32 %v4128, %v4111
  %v4130 = vmax.f32 %v4129, 0.0
  %4131 = vst [vmem:[#allocation4 + $0xb0] sm:$0xff] %v4130
  %v4132 = vmul.f32 %v3061, %v4067
  %v4133 = vadd.f32 %v4132, %v4111
  %v4134 = vmax.f32 %v4133, 0.0
  %4135 = vst [vmem:[#allocation4 + $0xe0] sm:$0xff] %v4134
  %v4136 = vmul.f32 %v3064, %v4067
  %v4137 = vadd.f32 %v4136, %v4111
  %v4138 = vmax.f32 %v4137, 0.0
  %4139 = vst [vmem:[#allocation4 + $0x110] sm:$0xff] %v4138
  %v4140 = vmul.f32 %v3069, %v4067
  %v4141 = vadd.f32 %v4140, %v4111
  %v4142 = vmax.f32 %v4141, 0.0
  %4143 = vst [vmem:[#allocation4 + $0x140] sm:$0xff] %v4142
  %v4144 = vmul.f32 %v3072, %v4067
  %v4145 = vadd.f32 %v4144, %v4111
  %v4146 = vmax.f32 %v4145, 0.0
  %4147 = vst [vmem:[#allocation4 + $0x170] sm:$0xff] %v4146
  %v4148 = vmul.f32 %v3643, %v4067
  %v4149 = vadd.f32 %v4148, %v4111
  %v4150 = vmax.f32 %v4149, 0.0
  %4151 = vst [vmem:[#allocation4 + $0x38] sm:$0xff] %v4150
  %v4152 = vmul.f32 %v3646, %v4067
  %v4153 = vadd.f32 %v4152, %v4111
  %v4154 = vmax.f32 %v4153, 0.0
  %4155 = vst [vmem:[#allocation4 + $0x68] sm:$0xff] %v4154
  %v4156 = vmul.f32 %v3651, %v4067
  %v4157 = vadd.f32 %v4156, %v4111
  %v4158 = vmax.f32 %v4157, 0.0
  %4159 = vst [vmem:[#allocation4 + $0x98] sm:$0xff] %v4158
  %v4160 = vmul.f32 %v3654, %v4067
  %v4161 = vadd.f32 %v4160, %v4111
  %v4162 = vmax.f32 %v4161, 0.0
  %4163 = vst [vmem:[#allocation4 + $0xc8] sm:$0xff] %v4162
  %v4164 = vmul.f32 %v3659, %v4067
  %v4165 = vadd.f32 %v4164, %v4111
  %v4166 = vmax.f32 %v4165, 0.0
  %4167 = vst [vmem:[#allocation4 + $0xf8] sm:$0xff] %v4166
  %v4168 = vmul.f32 %v3662, %v4067
  %v4169 = vadd.f32 %v4168, %v4111
  %v4170 = vmax.f32 %v4169, 0.0
  %4171 = vst [vmem:[#allocation4 + $0x128] sm:$0xff] %v4170
  %v4172 = vmul.f32 %v3667, %v4067
  %v4173 = vadd.f32 %v4172, %v4111
  %v4174 = vmax.f32 %v4173, 0.0
  %4175 = vst [vmem:[#allocation4 + $0x158] sm:$0xff] %v4174
  %v4176 = vmul.f32 %v3670, %v4067
  %v4177 = vadd.f32 %v4176, %v4111
  %v4178 = vmax.f32 %v4177, 0.0
  %4179 = vst [vmem:[#allocation4 + $0x188] sm:$0xff] %v4178
  %v4180 = vld [vmem:[%s19] sm:$0x1]
  %v4181 = vld [vmem:[#allocation4] sm:$0xff]
  %v4182 = vld [vmem:[#allocation4 + $0x8] sm:$0xff]
  %v4183 = vld [vmem:[#allocation4 + $0x10] sm:$0xff]
  %v4184 = vld [vmem:[#allocation4 + $0x18] sm:$0xff]
  %v4185 = vld [vmem:[#allocation4 + $0x20] sm:$0xff]
  %v4186 = vld [vmem:[#allocation4 + $0x28] sm:$0xff]
  %v4187 = vld [vmem:[#allocation4 + $0x30] sm:$0xff]
  %v4188 = vld [vmem:[#allocation4 + $0x38] sm:$0xff]
  %v4189 = vld [vmem:[#allocation4 + $0x40] sm:$0xff]
  %v4190 = vld [vmem:[#allocation4 + $0x48] sm:$0xff]
  %v4191 = vld [vmem:[#allocation4 + $0x50] sm:$0xff]
  %v4192 = vld [vmem:[#allocation4 + $0x58] sm:$0xff]
  %v4193 = vld [vmem:[#allocation4 + $0x60] sm:$0xff]
  %v4194 = vld [vmem:[#allocation4 + $0x68] sm:$0xff]
  %v4195 = vld [vmem:[#allocation4 + $0x70] sm:$0xff]
  %v4196 = vld [vmem:[#allocation4 + $0x78] sm:$0xff]
  %v4197 = vld [vmem:[#allocation4 + $0x80] sm:$0xff]
  %v4198 = vld [vmem:[#allocation4 + $0x88] sm:$0xff]
  %v4199 = vld [vmem:[#allocation4 + $0x90] sm:$0xff]
  %v4200 = vld [vmem:[#allocation4 + $0x98] sm:$0xff]
  %v4201 = vld [vmem:[#allocation4 + $0xa0] sm:$0xff]
  %v4202 = vld [vmem:[#allocation4 + $0xa8] sm:$0xff]
  %v4203 = vld [vmem:[#allocation4 + $0xb0] sm:$0xff]
  %v4204 = vld [vmem:[#allocation4 + $0xb8] sm:$0xff]
  %v4205 = vld [vmem:[#allocation4 + $0xc0] sm:$0xff]
  %v4206 = vld [vmem:[#allocation4 + $0xc8] sm:$0xff]
  %v4207 = vld [vmem:[#allocation4 + $0xd0] sm:$0xff]
  %v4208 = vld [vmem:[#allocation4 + $0xd8] sm:$0xff]
  %v4209 = vld [vmem:[#allocation4 + $0xe0] sm:$0xff]
  %v4210 = vld [vmem:[#allocation4 + $0xe8] sm:$0xff]
  %v4211 = vld [vmem:[#allocation4 + $0xf0] sm:$0xff]
  %v4212 = vld [vmem:[#allocation4 + $0xf8] sm:$0xff]
  %v4213 = vld [vmem:[#allocation4 + $0x100] sm:$0xff]
  %v4214 = vld [vmem:[#allocation4 + $0x108] sm:$0xff]
  %v4215 = vld [vmem:[#allocation4 + $0x110] sm:$0xff]
  %v4216 = vld [vmem:[#allocation4 + $0x118] sm:$0xff]
  %v4217 = vld [vmem:[#allocation4 + $0x120] sm:$0xff]
  %v4218 = vld [vmem:[#allocation4 + $0x128] sm:$0xff]
  %v4219 = vld [vmem:[#allocation4 + $0x130] sm:$0xff]
  %v4220 = vld [vmem:[#allocation4 + $0x138] sm:$0xff]
  %v4221 = vld [vmem:[#allocation4 + $0x140] sm:$0xff]
  %v4222 = vld [vmem:[#allocation4 + $0x148] sm:$0xff]
  %v4223 = vld [vmem:[#allocation4 + $0x150] sm:$0xff]
  %v4224 = vld [vmem:[#allocation4 + $0x158] sm:$0xff]
  %v4225 = vld [vmem:[#allocation4 + $0x160] sm:$0xff]
  %v4226 = vld [vmem:[#allocation4 + $0x168] sm:$0xff]
  %v4227 = vld [vmem:[#allocation4 + $0x170] sm:$0xff]
  %v4228 = vld [vmem:[#allocation4 + $0x178] sm:$0xff]
  %v4229 = vpack.c.bf16 %v4184, %v4181
  %v4230 = vpack.c.bf16 %v4185, %v4182
  %v4231 = vpack.c.bf16 %v4186, %v4183
  %v4232 = vpack.c.bf16 %v4190, %v4187
  %v4233 = vpack.c.bf16 %v4191, %v4188
  %v4234 = vpack.c.bf16 %v4192, %v4189
  %v4235 = vpack.c.bf16 %v4196, %v4193
  %v4236 = vpack.c.bf16 %v4197, %v4194
  %v4237 = vpack.c.bf16 %v4198, %v4195
  %v4238 = vpack.c.bf16 %v4202, %v4199
  %v4239 = vpack.c.bf16 %v4203, %v4200
  %v4240 = vpack.c.bf16 %v4204, %v4201
  %v4241 = vpack.c.bf16 %v4208, %v4205
  %v4242 = vpack.c.bf16 %v4209, %v4206
  %v4243 = vpack.c.bf16 %v4210, %v4207
  %v4244 = vpack.c.bf16 %v4214, %v4211
  %v4245 = vpack.c.bf16 %v4215, %v4212
  %v4246 = vpack.c.bf16 %v4216, %v4213
  %v4247 = vpack.c.bf16 %v4220, %v4217
  %v4248 = vpack.c.bf16 %v4221, %v4218
  %v4249 = vpack.c.bf16 %v4222, %v4219
  %v4250 = vpack.c.bf16 %v4226, %v4223
  %v4251 = vpack.c.bf16 %v4227, %v4224
  %v4252 = vpack.c.bf16 %v4228, %v4225
  %v4253 = vld [vmem:[#allocation4 + $0x180] sm:$0xff]
  %v4254 = vld [vmem:[#allocation4 + $0x188] sm:$0xff]
  %v4255 = vld [vmem:[#allocation4 + $0x190] sm:$0xff]
  %v4256 = vpack.c.bf16 %v4187, %v4184
  %v4257 = vpack.c.bf16 %v4188, %v4185
  %v4258 = vpack.c.bf16 %v4189, %v4186
  %v4259 = vpack.c.bf16 %v4193, %v4190
  %v4260 = vpack.c.bf16 %v4194, %v4191
  %v4261 = vpack.c.bf16 %v4195, %v4192
  %v4262 = vpack.c.bf16 %v4199, %v4196
  %v4263 = vpack.c.bf16 %v4200, %v4197
  %v4264 = vpack.c.bf16 %v4201, %v4198
  %v4265 = vpack.c.bf16 %v4205, %v4202
  %v4266 = vpack.c.bf16 %v4206, %v4203
  %v4267 = vpack.c.bf16 %v4207, %v4204
  %v4268 = vpack.c.bf16 %v4211, %v4208
  %v4269 = vpack.c.bf16 %v4212, %v4209
  %v4270 = vpack.c.bf16 %v4213, %v4210
  %v4271 = vpack.c.bf16 %v4217, %v4214
  %v4272 = vpack.c.bf16 %v4218, %v4215
  %v4273 = vpack.c.bf16 %v4219, %v4216
  %v4274 = vpack.c.bf16 %v4223, %v4220
  %v4275 = vpack.c.bf16 %v4224, %v4221
  %v4276 = vpack.c.bf16 %v4225, %v4222
  %v4277 = vpack.c.bf16 %v4253, %v4226
  %v4278 = vpack.c.bf16 %v4254, %v4227
  %v4279 = vpack.c.bf16 %v4255, %v4228
  %v4280 = vld [vmem:[%s18] sm:$0xf]
  %v4281 = vld [vmem:[%s18 + $0x4] sm:$0xf]
  %v4282 = vld [vmem:[%s18 + $0x8] sm:$0xf]
  %v4283 = vld [vmem:[%s18 + $0xc] sm:$0xf]
  %v4284 = vld [vmem:[%s18 + $0x10] sm:$0xf]
  %v4285 = vld [vmem:[%s18 + $0x14] sm:$0xf]
  %v4286 = vld [vmem:[%s18 + $0x18] sm:$0xf]
  %v4287 = vld [vmem:[%s18 + $0x1c] sm:$0xf]
  %v4288 = vld [vmem:[%s18 + $0x20] sm:$0xf]
  %v4289 = vld [vmem:[%s18 + $0x24] sm:$0xf]
  %v4290 = vld [vmem:[%s18 + $0x28] sm:$0xf]
  %v4291 = vld [vmem:[%s18 + $0x2c] sm:$0xf]
  %v4292 = vld [vmem:[%s18 + $0x30] sm:$0xf]
  %v4293 = vld [vmem:[%s18 + $0x34] sm:$0xf]
  %v4294 = vld [vmem:[%s18 + $0x38] sm:$0xf]
  %v4295 = vld [vmem:[%s18 + $0x3c] sm:$0xf]
  %v4296 = vld [vmem:[%s18 + $0x40] sm:$0xf]
  %v4297 = vld [vmem:[%s18 + $0x44] sm:$0xf]
  %v4298 = vld [vmem:[%s18 + $0x48] sm:$0xf]
  %v4299 = vld [vmem:[%s18 + $0x4c] sm:$0xf]
  %v4300 = vld [vmem:[%s18 + $0x50] sm:$0xf]
  %v4301 = vld [vmem:[%s18 + $0x54] sm:$0xf]
  %v4302 = vld [vmem:[%s18 + $0x58] sm:$0xf]
  %v4303 = vld [vmem:[%s18 + $0x5c] sm:$0xf]
  %v4304 = vld [vmem:[%s18 + $0x60] sm:$0xf]
  %v4305 = vld [vmem:[%s18 + $0x64] sm:$0xf]
  %v4306 = vld [vmem:[%s18 + $0x68] sm:$0xf]
  %v4307 = vld [vmem:[%s18 + $0x6c] sm:$0xf]
  %v4308 = vld [vmem:[%s18 + $0x70] sm:$0xf]
  %v4309 = vld [vmem:[%s18 + $0x74] sm:$0xf]
  %v4310 = vld [vmem:[%s18 + $0x78] sm:$0xf]
  %v4311 = vld [vmem:[%s18 + $0x7c] sm:$0xf]
  %v4312 = vld [vmem:[%s18 + $0x80] sm:$0xf]
  %s4313 = scalar_lea.vmem %s18, 132
  %v4314 = vld [vmem:[%s4313] sm:$0xf]
  %v4315 = vld [vmem:[%s4313 + $0x4] sm:$0xf]
  %v4316 = vld [vmem:[%s4313 + $0x8] sm:$0xf]
  %v4317 = vld [vmem:[%s4313 + $0xc] sm:$0xf]
  %v4318 = vld [vmem:[%s4313 + $0x10] sm:$0xf]
  %v4319 = vld [vmem:[%s4313 + $0x14] sm:$0xf]
  %v4320 = vld [vmem:[%s4313 + $0x18] sm:$0xf]
  %v4321 = vld [vmem:[%s4313 + $0x1c] sm:$0xf]
  %v4322 = vld [vmem:[%s4313 + $0x20] sm:$0xf]
  %v4323 = vld [vmem:[%s4313 + $0x24] sm:$0xf]
  %v4324 = vld [vmem:[%s4313 + $0x28] sm:$0xf]
  %v4325 = vld [vmem:[%s4313 + $0x2c] sm:$0xf]
  %v4326 = vld [vmem:[%s4313 + $0x30] sm:$0xf]
  %v4327 = vld [vmem:[%s4313 + $0x34] sm:$0xf]
  %v4328 = vld [vmem:[%s4313 + $0x38] sm:$0xf]
  %v4329 = vld [vmem:[%s4313 + $0x3c] sm:$0xf]
  %v4330 = vld [vmem:[%s4313 + $0x40] sm:$0xf]
  %v4331 = vld [vmem:[%s4313 + $0x44] sm:$0xf]
  %v4332 = vld [vmem:[%s4313 + $0x48] sm:$0xf]
  %v4333 = vld [vmem:[%s4313 + $0x4c] sm:$0xf]
  %v4334 = vld [vmem:[%s4313 + $0x50] sm:$0xf]
  %v4335 = vld [vmem:[%s4313 + $0x54] sm:$0xf]
  %v4336 = vld [vmem:[%s4313 + $0x58] sm:$0xf]
  %v4337 = vld [vmem:[%s4313 + $0x5c] sm:$0xf]
  %v4338 = vld [vmem:[%s4313 + $0x60] sm:$0xf]
  %v4339 = vld [vmem:[%s4313 + $0x64] sm:$0xf]
  %v4340 = vld [vmem:[%s4313 + $0x68] sm:$0xf]
  %v4341 = vld [vmem:[%s4313 + $0x6c] sm:$0xf]
  %v4342 = vld [vmem:[%s4313 + $0x70] sm:$0xf]
  %v4343 = vld [vmem:[%s4313 + $0x74] sm:$0xf]
  %v4344 = vld [vmem:[%s4313 + $0x78] sm:$0xf]
  %v4345 = vld [vmem:[%s4313 + $0x7c] sm:$0xf]
  %v4346 = vld [vmem:[%s4313 + $0x80] sm:$0xf]
  %v4380 = vunpack.c.l.b16 %v4314
  %v4381 = vunpack.c.l.b16 %v4315
  %v4382 = vunpack.c.l.b16 %v4316
  %v4383 = vunpack.c.l.b16 %v4317
  %v4384 = vunpack.c.l.b16 %v4318
  %v4385 = vunpack.c.l.b16 %v4319
  %v4386 = vunpack.c.l.b16 %v4320
  %v4387 = vunpack.c.l.b16 %v4321
  %v4388 = vunpack.c.l.b16 %v4322
  %v4389 = vunpack.c.l.b16 %v4323
  %v4390 = vunpack.c.l.b16 %v4324
  %v4391 = vunpack.c.l.b16 %v4325
  %v4392 = vunpack.c.l.b16 %v4326
  %v4393 = vunpack.c.l.b16 %v4327
  %v4394 = vunpack.c.l.b16 %v4328
  %v4395 = vunpack.c.l.b16 %v4329
  %v4396 = vunpack.c.l.b16 %v4330
  %v4397 = vunpack.c.l.b16 %v4331
  %v4398 = vunpack.c.l.b16 %v4332
  %v4399 = vunpack.c.l.b16 %v4333
  %v4400 = vunpack.c.l.b16 %v4334
  %v4401 = vunpack.c.l.b16 %v4335
  %v4402 = vunpack.c.l.b16 %v4336
  %v4403 = vunpack.c.l.b16 %v4337
  %v4404 = vunpack.c.l.b16 %v4338
  %v4405 = vunpack.c.l.b16 %v4339
  %v4406 = vunpack.c.l.b16 %v4340
  %v4407 = vunpack.c.l.b16 %v4341
  %v4408 = vunpack.c.l.b16 %v4342
  %v4409 = vunpack.c.l.b16 %v4343
  %v4410 = vunpack.c.l.b16 %v4344
  %v4411 = vunpack.c.l.b16 %v4345
  %v4412 = vunpack.c.l.b16 %v4346
  %v4413 = vpack.c.b16 %v4381, %v4380
  %v4414 = vpack.c.b16 %v4383, %v4382
  %v4415 = vpack.c.b16 %v4385, %v4384
  %v4416 = vpack.c.b16 %v4387, %v4386
  %v4417 = vpack.c.b16 %v4389, %v4388
  %v4418 = vpack.c.b16 %v4391, %v4390
  %v4419 = vpack.c.b16 %v4393, %v4392
  %v4420 = vpack.c.b16 %v4395, %v4394
  %v4421 = vpack.c.b16 %v4397, %v4396
  %v4422 = vpack.c.b16 %v4399, %v4398
  %v4423 = vpack.c.b16 %v4401, %v4400
  %v4424 = vpack.c.b16 %v4403, %v4402
  %v4425 = vpack.c.b16 %v4405, %v4404
  %v4426 = vpack.c.b16 %v4407, %v4406
  %v4427 = vpack.c.b16 %v4409, %v4408
  %v4428 = vpack.c.b16 %v4411, %v4410
  %v4429 = vpack.c.b16 %v4412, %v4412
  %v4447 = vsel %vm114, %v4258, 0
  %v4450 = vsel %vm114, %v4261, 0
  %v4453 = vsel %vm114, %v4264, 0
  %v4456 = vsel %vm114, %v4267, 0
  %v4459 = vsel %vm114, %v4270, 0
  %v4462 = vsel %vm114, %v4273, 0
  %v4465 = vsel %vm114, %v4276, 0
  %v4468 = vsel %vm114, %v4279, 0
  %v4471 = vsel %vm4028, %v4429, 0
  %4473 = vmatprep.subr.bf16.mxu0 0
  %4474 = vmatpush1.bf16.msra.mxu0 %v4420
  %4475 = vmatprep.subr.bf16.mxu0 0
  %4476 = vmatpush1.bf16.msra.mxu0 %v4419
  %4477 = vmatprep.subr.bf16.mxu0 0
  %4478 = vmatpush1.bf16.msra.mxu0 %v4418
  %4479 = vmatprep.subr.bf16.mxu0 0
  %4480 = vmatpush1.bf16.msra.mxu0 %v4417
  %4481 = vmatprep.subr.bf16.mxu0 0
  %4482 = vmatpush1.bf16.msra.mxu0 %v4416
  %4483 = vmatprep.subr.bf16.mxu0 0
  %4484 = vmatpush1.bf16.msra.mxu0 %v4415
  %4485 = vmatprep.subr.bf16.mxu0 0
  %4486 = vmatpush1.bf16.msra.mxu0 %v4414
  %4487 = vmatprep.subr.bf16.mxu0 0
  %4488 = vmatpush1.bf16.msra.mxu0 %v4413
  %4489 = vmatprep.subr.bf16.mxu0 0
  %4490 = vmatpush2.bf16.msra.mxu0 %v4428
  %4491 = vmatprep.subr.bf16.mxu0 0
  %4492 = vmatpush2.bf16.msra.mxu0 %v4427
  %4493 = vmatprep.subr.bf16.mxu0 0
  %4494 = vmatpush2.bf16.msra.mxu0 %v4426
  %4495 = vmatprep.subr.bf16.mxu0 0
  %4496 = vmatpush2.bf16.msra.mxu0 %v4425
  %4497 = vmatprep.subr.bf16.mxu0 0
  %4498 = vmatpush2.bf16.msra.mxu0 %v4424
  %4499 = vmatprep.subr.bf16.mxu0 0
  %4500 = vmatpush2.bf16.msra.mxu0 %v4423
  %4501 = vmatprep.subr.bf16.mxu0 0
  %4502 = vmatpush2.bf16.msra.mxu0 %v4422
  %4503 = vmatprep.subr.bf16.mxu0 0
  %4504 = vmatpush2.bf16.msra.mxu0 %v4421
  %4505 = vmatprep.mubr.bf16.mxu0 %v4257
  %4506 = vmatmul.mubr.bf16.gmra.mxu0 %v4256
  %v4507 = vpop.f32.mrf.mxu0
  %v4508 = vadd.f32 0.0, %v4507
  %v4509 = vpop.f32.mrf.mxu0
  %v4510 = vpop.f32.mrf.mxu0
  %v4511 = vadd.f32 0.0, %v4510
  %v4512 = vpop.f32.mrf.mxu0
  %4513 = vmatprep.mubr.bf16.mxu0 %v4260
  %4514 = vmatmul.mubr.bf16.gmra.mxu0 %v4259
  %v4515 = vpop.f32.mrf.mxu0
  %v4516 = vadd.f32 0.0, %v4515
  %v4517 = vpop.f32.mrf.mxu0
  %v4518 = vpop.f32.mrf.mxu0
  %v4519 = vadd.f32 0.0, %v4518
  %v4520 = vpop.f32.mrf.mxu0
  %4521 = vmatprep.mubr.bf16.mxu0 %v4263
  %4522 = vmatmul.mubr.bf16.gmra.mxu0 %v4262
  %v4523 = vpop.f32.mrf.mxu0
  %v4524 = vadd.f32 0.0, %v4523
  %v4525 = vpop.f32.mrf.mxu0
  %v4526 = vpop.f32.mrf.mxu0
  %v4527 = vadd.f32 0.0, %v4526
  %v4528 = vpop.f32.mrf.mxu0
  %4529 = vmatprep.mubr.bf16.mxu0 %v4266
  %4530 = vmatmul.mubr.bf16.gmra.mxu0 %v4265
  %v4531 = vpop.f32.mrf.mxu0
  %v4532 = vadd.f32 0.0, %v4531
  %v4533 = vpop.f32.mrf.mxu0
  %v4534 = vpop.f32.mrf.mxu0
  %v4535 = vadd.f32 0.0, %v4534
  %v4536 = vpop.f32.mrf.mxu0
  %4537 = vmatprep.mubr.bf16.mxu0 %v4269
  %4538 = vmatmul.mubr.bf16.gmra.mxu0 %v4268
  %v4539 = vpop.f32.mrf.mxu0
  %v4540 = vadd.f32 0.0, %v4539
  %v4541 = vpop.f32.mrf.mxu0
  %v4542 = vpop.f32.mrf.mxu0
  %v4543 = vadd.f32 0.0, %v4542
  %v4544 = vpop.f32.mrf.mxu0
  %4545 = vmatprep.mubr.bf16.mxu0 %v4272
  %4546 = vmatmul.mubr.bf16.gmra.mxu0 %v4271
  %v4547 = vpop.f32.mrf.mxu0
  %v4548 = vadd.f32 0.0, %v4547
  %v4549 = vpop.f32.mrf.mxu0
  %v4550 = vpop.f32.mrf.mxu0
  %v4551 = vadd.f32 0.0, %v4550
  %v4552 = vpop.f32.mrf.mxu0
  %4553 = vmatprep.mubr.bf16.mxu0 %v4275
  %4554 = vmatmul.mubr.bf16.gmra.mxu0 %v4274
  %v4555 = vpop.f32.mrf.mxu0
  %v4556 = vadd.f32 0.0, %v4555
  %v4557 = vpop.f32.mrf.mxu0
  %v4558 = vpop.f32.mrf.mxu0
  %v4559 = vadd.f32 0.0, %v4558
  %v4560 = vpop.f32.mrf.mxu0
  %4561 = vmatprep.mubr.bf16.mxu0 %v4278
  %4562 = vmatmul.mubr.bf16.gmra.mxu0 %v4277
  %v4563 = vpop.f32.mrf.mxu0
  %v4564 = vadd.f32 0.0, %v4563
  %v4565 = vpop.f32.mrf.mxu0
  %v4566 = vpop.f32.mrf.mxu0
  %v4567 = vadd.f32 0.0, %v4566
  %v4568 = vpop.f32.mrf.mxu0
  %4569 = vdwg.mxu0
  %4570 = vmatprep.subr.bf16.mxu0 0
  %4571 = vmatpush1.bf16.msra.mxu0 0
  %4572 = vmatprep.subr.bf16.mxu0 0
  %4573 = vmatpush1.bf16.msra.mxu0 0
  %4574 = vmatprep.subr.bf16.mxu0 0
  %4575 = vmatpush1.bf16.msra.mxu0 0
  %4576 = vmatprep.subr.bf16.mxu0 0
  %4577 = vmatpush1.bf16.msra.mxu0 0
  %4578 = vmatprep.subr.bf16.mxu0 0
  %4579 = vmatpush1.bf16.msra.mxu0 0
  %4580 = vmatprep.subr.bf16.mxu0 0
  %4581 = vmatpush1.bf16.msra.mxu0 0
  %4582 = vmatprep.subr.bf16.mxu0 0
  %4583 = vmatpush1.bf16.msra.mxu0 0
  %4584 = vmatprep.subr.bf16.mxu0 0
  %4585 = vmatpush1.bf16.msra.mxu0 %v4471
  %4586 = vmatprep.subr.bf16.mxu0 0
  %4587 = vmatpush2.bf16.msra.mxu0 0
  %4588 = vmatprep.subr.bf16.mxu0 0
  %4589 = vmatpush2.bf16.msra.mxu0 0
  %4590 = vmatprep.subr.bf16.mxu0 0
  %4591 = vmatpush2.bf16.msra.mxu0 0
  %4592 = vmatprep.subr.bf16.mxu0 0
  %4593 = vmatpush2.bf16.msra.mxu0 0
  %4594 = vmatprep.subr.bf16.mxu0 0
  %4595 = vmatpush2.bf16.msra.mxu0 0
  %4596 = vmatprep.subr.bf16.mxu0 0
  %4597 = vmatpush2.bf16.msra.mxu0 0
  %4598 = vmatprep.subr.bf16.mxu0 0
  %4599 = vmatpush2.bf16.msra.mxu0 0
  %4600 = vmatprep.subr.bf16.mxu0 0
  %4601 = vmatpush2.bf16.msra.mxu0 0
  %4602 = vmatprep.mubr.bf16.mxu0 0
  %4603 = vmatmul.mubr.bf16.gmra.mxu0 %v4447
  %v4604 = vpop.f32.mrf.mxu0
  %v4605 = vadd.f32 %v4508, %v4604
  %v4606 = vpop.f32.mrf.mxu0
  %v4607 = vpop.f32.mrf.mxu0
  %v4608 = vadd.f32 %v4511, %v4607
  %v4609 = vpop.f32.mrf.mxu0
  %4610 = vmatprep.mubr.bf16.mxu0 0
  %4611 = vmatmul.mubr.bf16.gmra.mxu0 %v4450
  %v4612 = vpop.f32.mrf.mxu0
  %v4613 = vadd.f32 %v4516, %v4612
  %v4614 = vpop.f32.mrf.mxu0
  %v4615 = vpop.f32.mrf.mxu0
  %v4616 = vadd.f32 %v4519, %v4615
  %v4617 = vpop.f32.mrf.mxu0
  %4618 = vmatprep.mubr.bf16.mxu0 0
  %4619 = vmatmul.mubr.bf16.gmra.mxu0 %v4453
  %v4620 = vpop.f32.mrf.mxu0
  %v4621 = vadd.f32 %v4524, %v4620
  %v4622 = vpop.f32.mrf.mxu0
  %v4623 = vpop.f32.mrf.mxu0
  %v4624 = vadd.f32 %v4527, %v4623
  %v4625 = vpop.f32.mrf.mxu0
  %4626 = vmatprep.mubr.bf16.mxu0 0
  %4627 = vmatmul.mubr.bf16.gmra.mxu0 %v4456
  %v4628 = vpop.f32.mrf.mxu0
  %v4629 = vadd.f32 %v4532, %v4628
  %v4630 = vpop.f32.mrf.mxu0
  %v4631 = vpop.f32.mrf.mxu0
  %v4632 = vadd.f32 %v4535, %v4631
  %v4633 = vpop.f32.mrf.mxu0
  %4634 = vmatprep.mubr.bf16.mxu0 0
  %4635 = vmatmul.mubr.bf16.gmra.mxu0 %v4459
  %v4636 = vpop.f32.mrf.mxu0
  %v4637 = vadd.f32 %v4540, %v4636
  %v4638 = vpop.f32.mrf.mxu0
  %v4639 = vpop.f32.mrf.mxu0
  %v4640 = vadd.f32 %v4543, %v4639
  %v4641 = vpop.f32.mrf.mxu0
  %4642 = vmatprep.mubr.bf16.mxu0 0
  %4643 = vmatmul.mubr.bf16.gmra.mxu0 %v4462
  %v4644 = vpop.f32.mrf.mxu0
  %v4645 = vadd.f32 %v4548, %v4644
  %v4646 = vpop.f32.mrf.mxu0
  %v4647 = vpop.f32.mrf.mxu0
  %v4648 = vadd.f32 %v4551, %v4647
  %v4649 = vpop.f32.mrf.mxu0
  %4650 = vmatprep.mubr.bf16.mxu0 0
  %4651 = vmatmul.mubr.bf16.gmra.mxu0 %v4465
  %v4652 = vpop.f32.mrf.mxu0
  %v4653 = vadd.f32 %v4556, %v4652
  %v4654 = vpop.f32.mrf.mxu0
  %v4655 = vpop.f32.mrf.mxu0
  %v4656 = vadd.f32 %v4559, %v4655
  %v4657 = vpop.f32.mrf.mxu0
  %4658 = vmatprep.mubr.bf16.mxu0 0
  %4659 = vmatmul.mubr.bf16.gmra.mxu0 %v4468
  %v4660 = vpop.f32.mrf.mxu0
  %v4661 = vadd.f32 %v4564, %v4660
  %v4662 = vpop.f32.mrf.mxu0
  %v4663 = vpop.f32.mrf.mxu0
  %v4664 = vadd.f32 %v4567, %v4663
  %v4665 = vpop.f32.mrf.mxu0
  %4666 = vdwg.mxu0
  %v4700 = vunpack.c.l.b16 %v4280
  %v4701 = vunpack.c.l.b16 %v4281
  %v4702 = vunpack.c.l.b16 %v4282
  %v4703 = vunpack.c.l.b16 %v4283
  %v4704 = vunpack.c.l.b16 %v4284
  %v4705 = vunpack.c.l.b16 %v4285
  %v4706 = vunpack.c.l.b16 %v4286
  %v4707 = vunpack.c.l.b16 %v4287
  %v4708 = vunpack.c.l.b16 %v4288
  %v4709 = vunpack.c.l.b16 %v4289
  %v4710 = vunpack.c.l.b16 %v4290
  %v4711 = vunpack.c.l.b16 %v4291
  %v4712 = vunpack.c.l.b16 %v4292
  %v4713 = vunpack.c.l.b16 %v4293
  %v4714 = vunpack.c.l.b16 %v4294
  %v4715 = vunpack.c.l.b16 %v4295
  %v4716 = vunpack.c.l.b16 %v4296
  %v4717 = vunpack.c.l.b16 %v4297
  %v4718 = vunpack.c.l.b16 %v4298
  %v4719 = vunpack.c.l.b16 %v4299
  %v4720 = vunpack.c.l.b16 %v4300
  %v4721 = vunpack.c.l.b16 %v4301
  %v4722 = vunpack.c.l.b16 %v4302
  %v4723 = vunpack.c.l.b16 %v4303
  %v4724 = vunpack.c.l.b16 %v4304
  %v4725 = vunpack.c.l.b16 %v4305
  %v4726 = vunpack.c.l.b16 %v4306
  %v4727 = vunpack.c.l.b16 %v4307
  %v4728 = vunpack.c.l.b16 %v4308
  %v4729 = vunpack.c.l.b16 %v4309
  %v4730 = vunpack.c.l.b16 %v4310
  %v4731 = vunpack.c.l.b16 %v4311
  %v4732 = vunpack.c.l.b16 %v4312
  %v4733 = vpack.c.b16 %v4701, %v4700
  %v4734 = vpack.c.b16 %v4703, %v4702
  %v4735 = vpack.c.b16 %v4705, %v4704
  %v4736 = vpack.c.b16 %v4707, %v4706
  %v4737 = vpack.c.b16 %v4709, %v4708
  %v4738 = vpack.c.b16 %v4711, %v4710
  %v4739 = vpack.c.b16 %v4713, %v4712
  %v4740 = vpack.c.b16 %v4715, %v4714
  %v4741 = vpack.c.b16 %v4717, %v4716
  %v4742 = vpack.c.b16 %v4719, %v4718
  %v4743 = vpack.c.b16 %v4721, %v4720
  %v4744 = vpack.c.b16 %v4723, %v4722
  %v4745 = vpack.c.b16 %v4725, %v4724
  %v4746 = vpack.c.b16 %v4727, %v4726
  %v4747 = vpack.c.b16 %v4729, %v4728
  %v4748 = vpack.c.b16 %v4731, %v4730
  %v4749 = vpack.c.b16 %v4732, %v4732
  %v4767 = vsel %vm114, %v4231, 0
  %v4770 = vsel %vm114, %v4234, 0
  %v4773 = vsel %vm114, %v4237, 0
  %v4776 = vsel %vm114, %v4240, 0
  %v4779 = vsel %vm114, %v4243, 0
  %v4782 = vsel %vm114, %v4246, 0
  %v4785 = vsel %vm114, %v4249, 0
  %v4788 = vsel %vm114, %v4252, 0
  %v4791 = vsel %vm4028, %v4749, 0
  %4793 = vmatprep.subr.bf16.mxu0 0
  %4794 = vmatpush1.bf16.msra.mxu0 %v4740
  %4795 = vmatprep.subr.bf16.mxu0 0
  %4796 = vmatpush1.bf16.msra.mxu0 %v4739
  %4797 = vmatprep.subr.bf16.mxu0 0
  %4798 = vmatpush1.bf16.msra.mxu0 %v4738
  %4799 = vmatprep.subr.bf16.mxu0 0
  %4800 = vmatpush1.bf16.msra.mxu0 %v4737
  %4801 = vmatprep.subr.bf16.mxu0 0
  %4802 = vmatpush1.bf16.msra.mxu0 %v4736
  %4803 = vmatprep.subr.bf16.mxu0 0
  %4804 = vmatpush1.bf16.msra.mxu0 %v4735
  %4805 = vmatprep.subr.bf16.mxu0 0
  %4806 = vmatpush1.bf16.msra.mxu0 %v4734
  %4807 = vmatprep.subr.bf16.mxu0 0
  %4808 = vmatpush1.bf16.msra.mxu0 %v4733
  %4809 = vmatprep.subr.bf16.mxu0 0
  %4810 = vmatpush2.bf16.msra.mxu0 %v4748
  %4811 = vmatprep.subr.bf16.mxu0 0
  %4812 = vmatpush2.bf16.msra.mxu0 %v4747
  %4813 = vmatprep.subr.bf16.mxu0 0
  %4814 = vmatpush2.bf16.msra.mxu0 %v4746
  %4815 = vmatprep.subr.bf16.mxu0 0
  %4816 = vmatpush2.bf16.msra.mxu0 %v4745
  %4817 = vmatprep.subr.bf16.mxu0 0
  %4818 = vmatpush2.bf16.msra.mxu0 %v4744
  %4819 = vmatprep.subr.bf16.mxu0 0
  %4820 = vmatpush2.bf16.msra.mxu0 %v4743
  %4821 = vmatprep.subr.bf16.mxu0 0
  %4822 = vmatpush2.bf16.msra.mxu0 %v4742
  %4823 = vmatprep.subr.bf16.mxu0 0
  %4824 = vmatpush2.bf16.msra.mxu0 %v4741
  %4825 = vmatprep.mubr.bf16.mxu0 %v4230
  %4826 = vmatmul.mubr.bf16.gmra.mxu0 %v4229
  %v4827 = vpop.f32.mrf.mxu0
  %v4828 = vadd.f32 %v4605, %v4827
  %v4829 = vpop.f32.mrf.mxu0
  %v4830 = vpop.f32.mrf.mxu0
  %v4831 = vadd.f32 %v4608, %v4830
  %v4832 = vpop.f32.mrf.mxu0
  %4833 = vmatprep.mubr.bf16.mxu0 %v4233
  %4834 = vmatmul.mubr.bf16.gmra.mxu0 %v4232
  %v4835 = vpop.f32.mrf.mxu0
  %v4836 = vadd.f32 %v4613, %v4835
  %v4837 = vpop.f32.mrf.mxu0
  %v4838 = vpop.f32.mrf.mxu0
  %v4839 = vadd.f32 %v4616, %v4838
  %v4840 = vpop.f32.mrf.mxu0
  %4841 = vmatprep.mubr.bf16.mxu0 %v4236
  %4842 = vmatmul.mubr.bf16.gmra.mxu0 %v4235
  %v4843 = vpop.f32.mrf.mxu0
  %v4844 = vadd.f32 %v4621, %v4843
  %v4845 = vpop.f32.mrf.mxu0
  %v4846 = vpop.f32.mrf.mxu0
  %v4847 = vadd.f32 %v4624, %v4846
  %v4848 = vpop.f32.mrf.mxu0
  %4849 = vmatprep.mubr.bf16.mxu0 %v4239
  %4850 = vmatmul.mubr.bf16.gmra.mxu0 %v4238
  %v4851 = vpop.f32.mrf.mxu0
  %v4852 = vadd.f32 %v4629, %v4851
  %v4853 = vpop.f32.mrf.mxu0
  %v4854 = vpop.f32.mrf.mxu0
  %v4855 = vadd.f32 %v4632, %v4854
  %v4856 = vpop.f32.mrf.mxu0
  %4857 = vmatprep.mubr.bf16.mxu0 %v4242
  %4858 = vmatmul.mubr.bf16.gmra.mxu0 %v4241
  %v4859 = vpop.f32.mrf.mxu0
  %v4860 = vadd.f32 %v4637, %v4859
  %v4861 = vpop.f32.mrf.mxu0
  %v4862 = vpop.f32.mrf.mxu0
  %v4863 = vadd.f32 %v4640, %v4862
  %v4864 = vpop.f32.mrf.mxu0
  %4865 = vmatprep.mubr.bf16.mxu0 %v4245
  %4866 = vmatmul.mubr.bf16.gmra.mxu0 %v4244
  %v4867 = vpop.f32.mrf.mxu0
  %v4868 = vadd.f32 %v4645, %v4867
  %v4869 = vpop.f32.mrf.mxu0
  %v4870 = vpop.f32.mrf.mxu0
  %v4871 = vadd.f32 %v4648, %v4870
  %v4872 = vpop.f32.mrf.mxu0
  %4873 = vmatprep.mubr.bf16.mxu0 %v4248
  %4874 = vmatmul.mubr.bf16.gmra.mxu0 %v4247
  %v4875 = vpop.f32.mrf.mxu0
  %v4876 = vadd.f32 %v4653, %v4875
  %v4877 = vpop.f32.mrf.mxu0
  %v4878 = vpop.f32.mrf.mxu0
  %v4879 = vadd.f32 %v4656, %v4878
  %v4880 = vpop.f32.mrf.mxu0
  %4881 = vmatprep.mubr.bf16.mxu0 %v4251
  %4882 = vmatmul.mubr.bf16.gmra.mxu0 %v4250
  %v4883 = vpop.f32.mrf.mxu0
  %v4884 = vadd.f32 %v4661, %v4883
  %v4885 = vpop.f32.mrf.mxu0
  %v4886 = vpop.f32.mrf.mxu0
  %v4887 = vadd.f32 %v4664, %v4886
  %v4888 = vpop.f32.mrf.mxu0
  %4889 = vdwg.mxu0
  %4890 = vmatprep.subr.bf16.mxu0 0
  %4891 = vmatpush1.bf16.msra.mxu0 0
  %4892 = vmatprep.subr.bf16.mxu0 0
  %4893 = vmatpush1.bf16.msra.mxu0 0
  %4894 = vmatprep.subr.bf16.mxu0 0
  %4895 = vmatpush1.bf16.msra.mxu0 0
  %4896 = vmatprep.subr.bf16.mxu0 0
  %4897 = vmatpush1.bf16.msra.mxu0 0
  %4898 = vmatprep.subr.bf16.mxu0 0
  %4899 = vmatpush1.bf16.msra.mxu0 0
  %4900 = vmatprep.subr.bf16.mxu0 0
  %4901 = vmatpush1.bf16.msra.mxu0 0
  %4902 = vmatprep.subr.bf16.mxu0 0
  %4903 = vmatpush1.bf16.msra.mxu0 0
  %4904 = vmatprep.subr.bf16.mxu0 0
  %4905 = vmatpush1.bf16.msra.mxu0 %v4791
  %4906 = vmatprep.subr.bf16.mxu0 0
  %4907 = vmatpush2.bf16.msra.mxu0 0
  %4908 = vmatprep.subr.bf16.mxu0 0
  %4909 = vmatpush2.bf16.msra.mxu0 0
  %4910 = vmatprep.subr.bf16.mxu0 0
  %4911 = vmatpush2.bf16.msra.mxu0 0
  %4912 = vmatprep.subr.bf16.mxu0 0
  %4913 = vmatpush2.bf16.msra.mxu0 0
  %4914 = vmatprep.subr.bf16.mxu0 0
  %4915 = vmatpush2.bf16.msra.mxu0 0
  %4916 = vmatprep.subr.bf16.mxu0 0
  %4917 = vmatpush2.bf16.msra.mxu0 0
  %4918 = vmatprep.subr.bf16.mxu0 0
  %4919 = vmatpush2.bf16.msra.mxu0 0
  %4920 = vmatprep.subr.bf16.mxu0 0
  %4921 = vmatpush2.bf16.msra.mxu0 0
  %4922 = vmatprep.mubr.bf16.mxu0 0
  %4923 = vmatmul.mubr.bf16.gmra.mxu0 %v4767
  %v4924 = vpop.f32.mrf.mxu0
  %v4925 = vadd.f32 %v4828, %v4924
  %v4926 = vpop.f32.mrf.mxu0
  %v4927 = vpop.f32.mrf.mxu0
  %v4928 = vadd.f32 %v4831, %v4927
  %v4929 = vpop.f32.mrf.mxu0
  %4930 = vmatprep.mubr.bf16.mxu0 0
  %4931 = vmatmul.mubr.bf16.gmra.mxu0 %v4770
  %v4932 = vpop.f32.mrf.mxu0
  %v4933 = vadd.f32 %v4836, %v4932
  %v4934 = vpop.f32.mrf.mxu0
  %v4935 = vpop.f32.mrf.mxu0
  %v4936 = vadd.f32 %v4839, %v4935
  %v4937 = vpop.f32.mrf.mxu0
  %4938 = vmatprep.mubr.bf16.mxu0 0
  %4939 = vmatmul.mubr.bf16.gmra.mxu0 %v4773
  %v4940 = vpop.f32.mrf.mxu0
  %v4941 = vadd.f32 %v4844, %v4940
  %v4942 = vpop.f32.mrf.mxu0
  %v4943 = vpop.f32.mrf.mxu0
  %v4944 = vadd.f32 %v4847, %v4943
  %v4945 = vpop.f32.mrf.mxu0
  %4946 = vmatprep.mubr.bf16.mxu0 0
  %4947 = vmatmul.mubr.bf16.gmra.mxu0 %v4776
  %v4948 = vpop.f32.mrf.mxu0
  %v4949 = vadd.f32 %v4852, %v4948
  %v4950 = vpop.f32.mrf.mxu0
  %v4951 = vpop.f32.mrf.mxu0
  %v4952 = vadd.f32 %v4855, %v4951
  %v4953 = vpop.f32.mrf.mxu0
  %4954 = vmatprep.mubr.bf16.mxu0 0
  %4955 = vmatmul.mubr.bf16.gmra.mxu0 %v4779
  %v4956 = vpop.f32.mrf.mxu0
  %v4957 = vadd.f32 %v4860, %v4956
  %v4958 = vpop.f32.mrf.mxu0
  %v4959 = vpop.f32.mrf.mxu0
  %v4960 = vadd.f32 %v4863, %v4959
  %v4961 = vpop.f32.mrf.mxu0
  %4962 = vmatprep.mubr.bf16.mxu0 0
  %4963 = vmatmul.mubr.bf16.gmra.mxu0 %v4782
  %v4964 = vpop.f32.mrf.mxu0
  %v4965 = vadd.f32 %v4868, %v4964
  %v4966 = vpop.f32.mrf.mxu0
  %v4967 = vpop.f32.mrf.mxu0
  %v4968 = vadd.f32 %v4871, %v4967
  %v4969 = vpop.f32.mrf.mxu0
  %4970 = vmatprep.mubr.bf16.mxu0 0
  %4971 = vmatmul.mubr.bf16.gmra.mxu0 %v4785
  %v4972 = vpop.f32.mrf.mxu0
  %v4973 = vadd.f32 %v4876, %v4972
  %v4974 = vpop.f32.mrf.mxu0
  %v4975 = vpop.f32.mrf.mxu0
  %v4976 = vadd.f32 %v4879, %v4975
  %v4977 = vpop.f32.mrf.mxu0
  %4978 = vmatprep.mubr.bf16.mxu0 0
  %4979 = vmatmul.mubr.bf16.gmra.mxu0 %v4788
  %v4980 = vpop.f32.mrf.mxu0
  %v4981 = vadd.f32 %v4884, %v4980
  %v4982 = vpop.f32.mrf.mxu0
  %v4983 = vpop.f32.mrf.mxu0
  %v4984 = vadd.f32 %v4887, %v4983
  %v4985 = vpop.f32.mrf.mxu0
  %4986 = vdwg.mxu0
  %v4988 = vlaneseq
  %v4989 = vshrl.u32 %v4988, 7
  %v4990 = vsub.s32 0, %v4989
  %v4991 = vrot.slane %v4180, %v4990
  %v4993 = vadd.f32 %v4925, %v4991
  %v4994 = vadd.f32 %v4928, %v4991
  %v4995 = vadd.f32 %v4933, %v4991
  %v4996 = vadd.f32 %v4936, %v4991
  %v4997 = vadd.f32 %v4941, %v4991
  %v4998 = vadd.f32 %v4944, %v4991
  %v4999 = vadd.f32 %v4949, %v4991
  %v5000 = vadd.f32 %v4952, %v4991
  %v5001 = vadd.f32 %v4957, %v4991
  %v5002 = vadd.f32 %v4960, %v4991
  %v5003 = vadd.f32 %v4965, %v4991
  %v5004 = vadd.f32 %v4968, %v4991
  %v5005 = vadd.f32 %v4973, %v4991
  %v5006 = vadd.f32 %v4976, %v4991
  %v5007 = vadd.f32 %v4981, %v4991
  %v5008 = vadd.f32 %v4984, %v4991
  %v5009 = vtanh.pop %v4993
  %v5010 = vtanh.pop %v4994
  %v5011 = vtanh.pop %v4995
  %v5012 = vtanh.pop %v4996
  %v5013 = vtanh.pop %v4997
  %v5014 = vtanh.pop %v4998
  %v5015 = vtanh.pop %v4999
  %v5016 = vtanh.pop %v5000
  %v5017 = vtanh.pop %v5001
  %v5018 = vtanh.pop %v5002
  %v5019 = vtanh.pop %v5003
  %v5020 = vtanh.pop %v5004
  %v5021 = vtanh.pop %v5005
  %v5022 = vtanh.pop %v5006
  %v5023 = vtanh.pop %v5007
  %v5024 = vtanh.pop %v5008
  %5025 = vst [vmem:[%s20] sm:$0xff] %v5009
  %5026 = vst [vmem:[%s20 + $0x8] sm:$0xff] %v5010
  %5027 = vst [vmem:[%s20 + $0x10] sm:$0xff] %v5011
  %5028 = vst [vmem:[%s20 + $0x18] sm:$0xff] %v5012
  %5029 = vst [vmem:[%s20 + $0x20] sm:$0xff] %v5013
  %5030 = vst [vmem:[%s20 + $0x28] sm:$0xff] %v5014
  %5031 = vst [vmem:[%s20 + $0x30] sm:$0xff] %v5015
  %5032 = vst [vmem:[%s20 + $0x38] sm:$0xff] %v5016
  %5033 = vst [vmem:[%s20 + $0x40] sm:$0xff] %v5017
  %5034 = vst [vmem:[%s20 + $0x48] sm:$0xff] %v5018
  %5035 = vst [vmem:[%s20 + $0x50] sm:$0xff] %v5019
  %5036 = vst [vmem:[%s20 + $0x58] sm:$0xff] %v5020
  %5037 = vst [vmem:[%s20 + $0x60] sm:$0xff] %v5021
  %5038 = vst [vmem:[%s20 + $0x68] sm:$0xff] %v5022
  %5039 = vst [vmem:[%s20 + $0x70] sm:$0xff] %v5023
  %5040 = vst [vmem:[%s20 + $0x78] sm:$0xff] %v5024
  %v5041 = vld [vmem:[#allocation4 + $0x18] sm:$0xff]
  %v5042 = vld [vmem:[#allocation4 + $0x20] sm:$0xff]
  %v5043 = vld [vmem:[#allocation4 + $0x28] sm:$0xff]
  %v5044 = vld [vmem:[#allocation4 + $0x30] sm:$0xff]
  %v5045 = vld [vmem:[#allocation4 + $0x38] sm:$0xff]
  %v5046 = vld [vmem:[#allocation4 + $0x40] sm:$0xff]
  %v5047 = vld [vmem:[#allocation4 + $0x48] sm:$0xff]
  %v5048 = vld [vmem:[#allocation4 + $0x50] sm:$0xff]
  %v5049 = vld [vmem:[#allocation4 + $0x58] sm:$0xff]
  %v5050 = vld [vmem:[#allocation4 + $0x60] sm:$0xff]
  %v5051 = vld [vmem:[#allocation4 + $0x68] sm:$0xff]
  %v5052 = vld [vmem:[#allocation4 + $0x70] sm:$0xff]
  %v5053 = vld [vmem:[#allocation4 + $0x78] sm:$0xff]
  %v5054 = vld [vmem:[#allocation4 + $0x80] sm:$0xff]
  %v5055 = vld [vmem:[#allocation4 + $0x88] sm:$0xff]
  %v5056 = vld [vmem:[#allocation4 + $0x90] sm:$0xff]
  %v5057 = vld [vmem:[#allocation4 + $0x98] sm:$0xff]
  %v5058 = vld [vmem:[#allocation4 + $0xa0] sm:$0xff]
  %v5059 = vld [vmem:[#allocation4 + $0xa8] sm:$0xff]
  %v5060 = vld [vmem:[#allocation4 + $0xb0] sm:$0xff]
  %v5061 = vld [vmem:[#allocation4 + $0xb8] sm:$0xff]
  %v5062 = vld [vmem:[#allocation4 + $0xc0] sm:$0xff]
  %v5063 = vld [vmem:[#allocation4 + $0xc8] sm:$0xff]
  %v5064 = vld [vmem:[#allocation4 + $0xd0] sm:$0xff]
  %v5065 = vld [vmem:[#allocation4 + $0xd8] sm:$0xff]
  %v5066 = vld [vmem:[#allocation4 + $0xe0] sm:$0xff]
  %v5067 = vld [vmem:[#allocation4 + $0xe8] sm:$0xff]
  %v5068 = vld [vmem:[#allocation4 + $0xf0] sm:$0xff]
  %v5069 = vld [vmem:[#allocation4 + $0xf8] sm:$0xff]
  %v5070 = vld [vmem:[#allocation4 + $0x100] sm:$0xff]
  %v5071 = vld [vmem:[#allocation4 + $0x108] sm:$0xff]
  %v5072 = vld [vmem:[#allocation4 + $0x110] sm:$0xff]
  %v5073 = vld [vmem:[#allocation4 + $0x118] sm:$0xff]
  %v5074 = vld [vmem:[#allocation4 + $0x120] sm:$0xff]
  %v5075 = vld [vmem:[#allocation4 + $0x128] sm:$0xff]
  %v5076 = vld [vmem:[#allocation4 + $0x130] sm:$0xff]
  %v5077 = vld [vmem:[#allocation4 + $0x138] sm:$0xff]
  %v5078 = vld [vmem:[#allocation4 + $0x140] sm:$0xff]
  %v5079 = vld [vmem:[#allocation4 + $0x148] sm:$0xff]
  %v5080 = vld [vmem:[#allocation4 + $0x150] sm:$0xff]
  %v5081 = vld [vmem:[#allocation4 + $0x158] sm:$0xff]
  %v5082 = vld [vmem:[#allocation4 + $0x160] sm:$0xff]
  %v5083 = vld [vmem:[#allocation4 + $0x168] sm:$0xff]
  %v5084 = vld [vmem:[#allocation4 + $0x170] sm:$0xff]
  %v5085 = vld [vmem:[#allocation4 + $0x178] sm:$0xff]
  %v5086 = vld [vmem:[#allocation4 + $0x180] sm:$0xff]
  %v5087 = vld [vmem:[#allocation4 + $0x188] sm:$0xff]
  %v5088 = vld [vmem:[#allocation4 + $0x190] sm:$0xff]
  %v5089 = vpack.c.bf16 %v5044, %v5041
  %v5090 = vpack.c.bf16 %v5045, %v5042
  %v5091 = vpack.c.bf16 %v5046, %v5043
  %v5092 = vpack.c.bf16 %v5050, %v5047
  %v5093 = vpack.c.bf16 %v5051, %v5048
  %v5094 = vpack.c.bf16 %v5052, %v5049
  %v5095 = vpack.c.bf16 %v5056, %v5053
  %v5096 = vpack.c.bf16 %v5057, %v5054
  %v5097 = vpack.c.bf16 %v5058, %v5055
  %v5098 = vpack.c.bf16 %v5062, %v5059
  %v5099 = vpack.c.bf16 %v5063, %v5060
  %v5100 = vpack.c.bf16 %v5064, %v5061
  %v5101 = vpack.c.bf16 %v5068, %v5065
  %v5102 = vpack.c.bf16 %v5069, %v5066
  %v5103 = vpack.c.bf16 %v5070, %v5067
  %v5104 = vpack.c.bf16 %v5074, %v5071
  %v5105 = vpack.c.bf16 %v5075, %v5072
  %v5106 = vpack.c.bf16 %v5076, %v5073
  %v5107 = vpack.c.bf16 %v5080, %v5077
  %v5108 = vpack.c.bf16 %v5081, %v5078
  %v5109 = vpack.c.bf16 %v5082, %v5079
  %v5110 = vpack.c.bf16 %v5086, %v5083
  %v5111 = vpack.c.bf16 %v5087, %v5084
  %v5112 = vpack.c.bf16 %v5088, %v5085
  %v5113 = vld [vmem:[#allocation4 + $0x198] sm:$0xff]
  %v5114 = vld [vmem:[#allocation4 + $0x1a0] sm:$0xff]
  %v5115 = vld [vmem:[#allocation4 + $0x1a8] sm:$0xff]
  %v5116 = vpack.c.bf16 %v5047, %v5044
  %v5117 = vpack.c.bf16 %v5048, %v5045
  %v5118 = vpack.c.bf16 %v5049, %v5046
  %v5119 = vpack.c.bf16 %v5053, %v5050
  %v5120 = vpack.c.bf16 %v5054, %v5051
  %v5121 = vpack.c.bf16 %v5055, %v5052
  %v5122 = vpack.c.bf16 %v5059, %v5056
  %v5123 = vpack.c.bf16 %v5060, %v5057
  %v5124 = vpack.c.bf16 %v5061, %v5058
  %v5125 = vpack.c.bf16 %v5065, %v5062
  %v5126 = vpack.c.bf16 %v5066, %v5063
  %v5127 = vpack.c.bf16 %v5067, %v5064
  %v5128 = vpack.c.bf16 %v5071, %v5068
  %v5129 = vpack.c.bf16 %v5072, %v5069
  %v5130 = vpack.c.bf16 %v5073, %v5070
  %v5131 = vpack.c.bf16 %v5077, %v5074
  %v5132 = vpack.c.bf16 %v5078, %v5075
  %v5133 = vpack.c.bf16 %v5079, %v5076
  %v5134 = vpack.c.bf16 %v5083, %v5080
  %v5135 = vpack.c.bf16 %v5084, %v5081
  %v5136 = vpack.c.bf16 %v5085, %v5082
  %v5137 = vpack.c.bf16 %v5113, %v5086
  %v5138 = vpack.c.bf16 %v5114, %v5087
  %v5139 = vpack.c.bf16 %v5115, %v5088
  %s5140 = scalar_lea.vmem %s18, 264
  %v5141 = vld [vmem:[%s5140] sm:$0xf]
  %v5142 = vld [vmem:[%s5140 + $0x4] sm:$0xf]
  %v5143 = vld [vmem:[%s5140 + $0x8] sm:$0xf]
  %v5144 = vld [vmem:[%s5140 + $0xc] sm:$0xf]
  %v5145 = vld [vmem:[%s5140 + $0x10] sm:$0xf]
  %v5146 = vld [vmem:[%s5140 + $0x14] sm:$0xf]
  %v5147 = vld [vmem:[%s5140 + $0x18] sm:$0xf]
  %v5148 = vld [vmem:[%s5140 + $0x1c] sm:$0xf]
  %v5149 = vld [vmem:[%s5140 + $0x20] sm:$0xf]
  %v5150 = vld [vmem:[%s5140 + $0x24] sm:$0xf]
  %v5151 = vld [vmem:[%s5140 + $0x28] sm:$0xf]
  %v5152 = vld [vmem:[%s5140 + $0x2c] sm:$0xf]
  %v5153 = vld [vmem:[%s5140 + $0x30] sm:$0xf]
  %v5154 = vld [vmem:[%s5140 + $0x34] sm:$0xf]
  %v5155 = vld [vmem:[%s5140 + $0x38] sm:$0xf]
  %v5156 = vld [vmem:[%s5140 + $0x3c] sm:$0xf]
  %v5157 = vld [vmem:[%s5140 + $0x40] sm:$0xf]
  %v5158 = vld [vmem:[%s5140 + $0x44] sm:$0xf]
  %v5159 = vld [vmem:[%s5140 + $0x48] sm:$0xf]
  %v5160 = vld [vmem:[%s5140 + $0x4c] sm:$0xf]
  %v5161 = vld [vmem:[%s5140 + $0x50] sm:$0xf]
  %v5162 = vld [vmem:[%s5140 + $0x54] sm:$0xf]
  %v5163 = vld [vmem:[%s5140 + $0x58] sm:$0xf]
  %v5164 = vld [vmem:[%s5140 + $0x5c] sm:$0xf]
  %v5165 = vld [vmem:[%s5140 + $0x60] sm:$0xf]
  %v5166 = vld [vmem:[%s5140 + $0x64] sm:$0xf]
  %v5167 = vld [vmem:[%s5140 + $0x68] sm:$0xf]
  %v5168 = vld [vmem:[%s5140 + $0x6c] sm:$0xf]
  %v5169 = vld [vmem:[%s5140 + $0x70] sm:$0xf]
  %v5170 = vld [vmem:[%s5140 + $0x74] sm:$0xf]
  %v5171 = vld [vmem:[%s5140 + $0x78] sm:$0xf]
  %v5172 = vld [vmem:[%s5140 + $0x7c] sm:$0xf]
  %v5173 = vld [vmem:[%s5140 + $0x80] sm:$0xf]
  %s5174 = scalar_lea.vmem %s18, 396
  %v5175 = vld [vmem:[%s5174] sm:$0xf]
  %v5176 = vld [vmem:[%s5174 + $0x4] sm:$0xf]
  %v5177 = vld [vmem:[%s5174 + $0x8] sm:$0xf]
  %v5178 = vld [vmem:[%s5174 + $0xc] sm:$0xf]
  %v5179 = vld [vmem:[%s5174 + $0x10] sm:$0xf]
  %v5180 = vld [vmem:[%s5174 + $0x14] sm:$0xf]
  %v5181 = vld [vmem:[%s5174 + $0x18] sm:$0xf]
  %v5182 = vld [vmem:[%s5174 + $0x1c] sm:$0xf]
  %v5183 = vld [vmem:[%s5174 + $0x20] sm:$0xf]
  %v5184 = vld [vmem:[%s5174 + $0x24] sm:$0xf]
  %v5185 = vld [vmem:[%s5174 + $0x28] sm:$0xf]
  %v5186 = vld [vmem:[%s5174 + $0x2c] sm:$0xf]
  %v5187 = vld [vmem:[%s5174 + $0x30] sm:$0xf]
  %v5188 = vld [vmem:[%s5174 + $0x34] sm:$0xf]
  %v5189 = vld [vmem:[%s5174 + $0x38] sm:$0xf]
  %v5190 = vld [vmem:[%s5174 + $0x3c] sm:$0xf]
  %v5191 = vld [vmem:[%s5174 + $0x40] sm:$0xf]
  %v5192 = vld [vmem:[%s5174 + $0x44] sm:$0xf]
  %v5193 = vld [vmem:[%s5174 + $0x48] sm:$0xf]
  %v5194 = vld [vmem:[%s5174 + $0x4c] sm:$0xf]
  %v5195 = vld [vmem:[%s5174 + $0x50] sm:$0xf]
  %v5196 = vld [vmem:[%s5174 + $0x54] sm:$0xf]
  %v5197 = vld [vmem:[%s5174 + $0x58] sm:$0xf]
  %v5198 = vld [vmem:[%s5174 + $0x5c] sm:$0xf]
  %v5199 = vld [vmem:[%s5174 + $0x60] sm:$0xf]
  %v5200 = vld [vmem:[%s5174 + $0x64] sm:$0xf]
  %v5201 = vld [vmem:[%s5174 + $0x68] sm:$0xf]
  %v5202 = vld [vmem:[%s5174 + $0x6c] sm:$0xf]
  %v5203 = vld [vmem:[%s5174 + $0x70] sm:$0xf]
  %v5204 = vld [vmem:[%s5174 + $0x74] sm:$0xf]
  %v5205 = vld [vmem:[%s5174 + $0x78] sm:$0xf]
  %v5206 = vld [vmem:[%s5174 + $0x7c] sm:$0xf]
  %v5207 = vld [vmem:[%s5174 + $0x80] sm:$0xf]
  %v5241 = vunpack.c.l.b16 %v5175
  %v5242 = vunpack.c.l.b16 %v5176
  %v5243 = vunpack.c.l.b16 %v5177
  %v5244 = vunpack.c.l.b16 %v5178
  %v5245 = vunpack.c.l.b16 %v5179
  %v5246 = vunpack.c.l.b16 %v5180
  %v5247 = vunpack.c.l.b16 %v5181
  %v5248 = vunpack.c.l.b16 %v5182
  %v5249 = vunpack.c.l.b16 %v5183
  %v5250 = vunpack.c.l.b16 %v5184
  %v5251 = vunpack.c.l.b16 %v5185
  %v5252 = vunpack.c.l.b16 %v5186
  %v5253 = vunpack.c.l.b16 %v5187
  %v5254 = vunpack.c.l.b16 %v5188
  %v5255 = vunpack.c.l.b16 %v5189
  %v5256 = vunpack.c.l.b16 %v5190
  %v5257 = vunpack.c.l.b16 %v5191
  %v5258 = vunpack.c.l.b16 %v5192
  %v5259 = vunpack.c.l.b16 %v5193
  %v5260 = vunpack.c.l.b16 %v5194
  %v5261 = vunpack.c.l.b16 %v5195
  %v5262 = vunpack.c.l.b16 %v5196
  %v5263 = vunpack.c.l.b16 %v5197
  %v5264 = vunpack.c.l.b16 %v5198
  %v5265 = vunpack.c.l.b16 %v5199
  %v5266 = vunpack.c.l.b16 %v5200
  %v5267 = vunpack.c.l.b16 %v5201
  %v5268 = vunpack.c.l.b16 %v5202
  %v5269 = vunpack.c.l.b16 %v5203
  %v5270 = vunpack.c.l.b16 %v5204
  %v5271 = vunpack.c.l.b16 %v5205
  %v5272 = vunpack.c.l.b16 %v5206
  %v5273 = vunpack.c.l.b16 %v5207
  %v5274 = vpack.c.b16 %v5242, %v5241
  %v5275 = vpack.c.b16 %v5244, %v5243
  %v5276 = vpack.c.b16 %v5246, %v5245
  %v5277 = vpack.c.b16 %v5248, %v5247
  %v5278 = vpack.c.b16 %v5250, %v5249
  %v5279 = vpack.c.b16 %v5252, %v5251
  %v5280 = vpack.c.b16 %v5254, %v5253
  %v5281 = vpack.c.b16 %v5256, %v5255
  %v5282 = vpack.c.b16 %v5258, %v5257
  %v5283 = vpack.c.b16 %v5260, %v5259
  %v5284 = vpack.c.b16 %v5262, %v5261
  %v5285 = vpack.c.b16 %v5264, %v5263
  %v5286 = vpack.c.b16 %v5266, %v5265
  %v5287 = vpack.c.b16 %v5268, %v5267
  %v5288 = vpack.c.b16 %v5270, %v5269
  %v5289 = vpack.c.b16 %v5272, %v5271
  %v5290 = vpack.c.b16 %v5273, %v5273
  %v5308 = vsel %vm114, %v5118, 0
  %v5311 = vsel %vm114, %v5121, 0
  %v5314 = vsel %vm114, %v5124, 0
  %v5317 = vsel %vm114, %v5127, 0
  %v5320 = vsel %vm114, %v5130, 0
  %v5323 = vsel %vm114, %v5133, 0
  %v5326 = vsel %vm114, %v5136, 0
  %v5329 = vsel %vm114, %v5139, 0
  %v5332 = vsel %vm4028, %v5290, 0
  %5334 = vmatprep.subr.bf16.mxu0 0
  %5335 = vmatpush1.bf16.msra.mxu0 %v5281
  %5336 = vmatprep.subr.bf16.mxu0 0
  %5337 = vmatpush1.bf16.msra.mxu0 %v5280
  %5338 = vmatprep.subr.bf16.mxu0 0
  %5339 = vmatpush1.bf16.msra.mxu0 %v5279
  %5340 = vmatprep.subr.bf16.mxu0 0
  %5341 = vmatpush1.bf16.msra.mxu0 %v5278
  %5342 = vmatprep.subr.bf16.mxu0 0
  %5343 = vmatpush1.bf16.msra.mxu0 %v5277
  %5344 = vmatprep.subr.bf16.mxu0 0
  %5345 = vmatpush1.bf16.msra.mxu0 %v5276
  %5346 = vmatprep.subr.bf16.mxu0 0
  %5347 = vmatpush1.bf16.msra.mxu0 %v5275
  %5348 = vmatprep.subr.bf16.mxu0 0
  %5349 = vmatpush1.bf16.msra.mxu0 %v5274
  %5350 = vmatprep.subr.bf16.mxu0 0
  %5351 = vmatpush2.bf16.msra.mxu0 %v5289
  %5352 = vmatprep.subr.bf16.mxu0 0
  %5353 = vmatpush2.bf16.msra.mxu0 %v5288
  %5354 = vmatprep.subr.bf16.mxu0 0
  %5355 = vmatpush2.bf16.msra.mxu0 %v5287
  %5356 = vmatprep.subr.bf16.mxu0 0
  %5357 = vmatpush2.bf16.msra.mxu0 %v5286
  %5358 = vmatprep.subr.bf16.mxu0 0
  %5359 = vmatpush2.bf16.msra.mxu0 %v5285
  %5360 = vmatprep.subr.bf16.mxu0 0
  %5361 = vmatpush2.bf16.msra.mxu0 %v5284
  %5362 = vmatprep.subr.bf16.mxu0 0
  %5363 = vmatpush2.bf16.msra.mxu0 %v5283
  %5364 = vmatprep.subr.bf16.mxu0 0
  %5365 = vmatpush2.bf16.msra.mxu0 %v5282
  %5366 = vmatprep.mubr.bf16.mxu0 %v5117
  %5367 = vmatmul.mubr.bf16.gmra.mxu0 %v5116
  %v5368 = vpop.f32.mrf.mxu0
  %v5369 = vadd.f32 0.0, %v5368
  %v5370 = vpop.f32.mrf.mxu0
  %v5371 = vpop.f32.mrf.mxu0
  %v5372 = vadd.f32 0.0, %v5371
  %v5373 = vpop.f32.mrf.mxu0
  %5374 = vmatprep.mubr.bf16.mxu0 %v5120
  %5375 = vmatmul.mubr.bf16.gmra.mxu0 %v5119
  %v5376 = vpop.f32.mrf.mxu0
  %v5377 = vadd.f32 0.0, %v5376
  %v5378 = vpop.f32.mrf.mxu0
  %v5379 = vpop.f32.mrf.mxu0
  %v5380 = vadd.f32 0.0, %v5379
  %v5381 = vpop.f32.mrf.mxu0
  %5382 = vmatprep.mubr.bf16.mxu0 %v5123
  %5383 = vmatmul.mubr.bf16.gmra.mxu0 %v5122
  %v5384 = vpop.f32.mrf.mxu0
  %v5385 = vadd.f32 0.0, %v5384
  %v5386 = vpop.f32.mrf.mxu0
  %v5387 = vpop.f32.mrf.mxu0
  %v5388 = vadd.f32 0.0, %v5387
  %v5389 = vpop.f32.mrf.mxu0
  %5390 = vmatprep.mubr.bf16.mxu0 %v5126
  %5391 = vmatmul.mubr.bf16.gmra.mxu0 %v5125
  %v5392 = vpop.f32.mrf.mxu0
  %v5393 = vadd.f32 0.0, %v5392
  %v5394 = vpop.f32.mrf.mxu0
  %v5395 = vpop.f32.mrf.mxu0
  %v5396 = vadd.f32 0.0, %v5395
  %v5397 = vpop.f32.mrf.mxu0
  %5398 = vmatprep.mubr.bf16.mxu0 %v5129
  %5399 = vmatmul.mubr.bf16.gmra.mxu0 %v5128
  %v5400 = vpop.f32.mrf.mxu0
  %v5401 = vadd.f32 0.0, %v5400
  %v5402 = vpop.f32.mrf.mxu0
  %v5403 = vpop.f32.mrf.mxu0
  %v5404 = vadd.f32 0.0, %v5403
  %v5405 = vpop.f32.mrf.mxu0
  %5406 = vmatprep.mubr.bf16.mxu0 %v5132
  %5407 = vmatmul.mubr.bf16.gmra.mxu0 %v5131
  %v5408 = vpop.f32.mrf.mxu0
  %v5409 = vadd.f32 0.0, %v5408
  %v5410 = vpop.f32.mrf.mxu0
  %v5411 = vpop.f32.mrf.mxu0
  %v5412 = vadd.f32 0.0, %v5411
  %v5413 = vpop.f32.mrf.mxu0
  %5414 = vmatprep.mubr.bf16.mxu0 %v5135
  %5415 = vmatmul.mubr.bf16.gmra.mxu0 %v5134
  %v5416 = vpop.f32.mrf.mxu0
  %v5417 = vadd.f32 0.0, %v5416
  %v5418 = vpop.f32.mrf.mxu0
  %v5419 = vpop.f32.mrf.mxu0
  %v5420 = vadd.f32 0.0, %v5419
  %v5421 = vpop.f32.mrf.mxu0
  %5422 = vmatprep.mubr.bf16.mxu0 %v5138
  %5423 = vmatmul.mubr.bf16.gmra.mxu0 %v5137
  %v5424 = vpop.f32.mrf.mxu0
  %v5425 = vadd.f32 0.0, %v5424
  %v5426 = vpop.f32.mrf.mxu0
  %v5427 = vpop.f32.mrf.mxu0
  %v5428 = vadd.f32 0.0, %v5427
  %v5429 = vpop.f32.mrf.mxu0
  %5430 = vdwg.mxu0
  %5431 = vmatprep.subr.bf16.mxu0 0
  %5432 = vmatpush1.bf16.msra.mxu0 0
  %5433 = vmatprep.subr.bf16.mxu0 0
  %5434 = vmatpush1.bf16.msra.mxu0 0
  %5435 = vmatprep.subr.bf16.mxu0 0
  %5436 = vmatpush1.bf16.msra.mxu0 0
  %5437 = vmatprep.subr.bf16.mxu0 0
  %5438 = vmatpush1.bf16.msra.mxu0 0
  %5439 = vmatprep.subr.bf16.mxu0 0
  %5440 = vmatpush1.bf16.msra.mxu0 0
  %5441 = vmatprep.subr.bf16.mxu0 0
  %5442 = vmatpush1.bf16.msra.mxu0 0
  %5443 = vmatprep.subr.bf16.mxu0 0
  %5444 = vmatpush1.bf16.msra.mxu0 0
  %5445 = vmatprep.subr.bf16.mxu0 0
  %5446 = vmatpush1.bf16.msra.mxu0 %v5332
  %5447 = vmatprep.subr.bf16.mxu0 0
  %5448 = vmatpush2.bf16.msra.mxu0 0
  %5449 = vmatprep.subr.bf16.mxu0 0
  %5450 = vmatpush2.bf16.msra.mxu0 0
  %5451 = vmatprep.subr.bf16.mxu0 0
  %5452 = vmatpush2.bf16.msra.mxu0 0
  %5453 = vmatprep.subr.bf16.mxu0 0
  %5454 = vmatpush2.bf16.msra.mxu0 0
  %5455 = vmatprep.subr.bf16.mxu0 0
  %5456 = vmatpush2.bf16.msra.mxu0 0
  %5457 = vmatprep.subr.bf16.mxu0 0
  %5458 = vmatpush2.bf16.msra.mxu0 0
  %5459 = vmatprep.subr.bf16.mxu0 0
  %5460 = vmatpush2.bf16.msra.mxu0 0
  %5461 = vmatprep.subr.bf16.mxu0 0
  %5462 = vmatpush2.bf16.msra.mxu0 0
  %5463 = vmatprep.mubr.bf16.mxu0 0
  %5464 = vmatmul.mubr.bf16.gmra.mxu0 %v5308
  %v5465 = vpop.f32.mrf.mxu0
  %v5466 = vadd.f32 %v5369, %v5465
  %v5467 = vpop.f32.mrf.mxu0
  %v5468 = vpop.f32.mrf.mxu0
  %v5469 = vadd.f32 %v5372, %v5468
  %v5470 = vpop.f32.mrf.mxu0
  %5471 = vmatprep.mubr.bf16.mxu0 0
  %5472 = vmatmul.mubr.bf16.gmra.mxu0 %v5311
  %v5473 = vpop.f32.mrf.mxu0
  %v5474 = vadd.f32 %v5377, %v5473
  %v5475 = vpop.f32.mrf.mxu0
  %v5476 = vpop.f32.mrf.mxu0
  %v5477 = vadd.f32 %v5380, %v5476
  %v5478 = vpop.f32.mrf.mxu0
  %5479 = vmatprep.mubr.bf16.mxu0 0
  %5480 = vmatmul.mubr.bf16.gmra.mxu0 %v5314
  %v5481 = vpop.f32.mrf.mxu0
  %v5482 = vadd.f32 %v5385, %v5481
  %v5483 = vpop.f32.mrf.mxu0
  %v5484 = vpop.f32.mrf.mxu0
  %v5485 = vadd.f32 %v5388, %v5484
  %v5486 = vpop.f32.mrf.mxu0
  %5487 = vmatprep.mubr.bf16.mxu0 0
  %5488 = vmatmul.mubr.bf16.gmra.mxu0 %v5317
  %v5489 = vpop.f32.mrf.mxu0
  %v5490 = vadd.f32 %v5393, %v5489
  %v5491 = vpop.f32.mrf.mxu0
  %v5492 = vpop.f32.mrf.mxu0
  %v5493 = vadd.f32 %v5396, %v5492
  %v5494 = vpop.f32.mrf.mxu0
  %5495 = vmatprep.mubr.bf16.mxu0 0
  %5496 = vmatmul.mubr.bf16.gmra.mxu0 %v5320
  %v5497 = vpop.f32.mrf.mxu0
  %v5498 = vadd.f32 %v5401, %v5497
  %v5499 = vpop.f32.mrf.mxu0
  %v5500 = vpop.f32.mrf.mxu0
  %v5501 = vadd.f32 %v5404, %v5500
  %v5502 = vpop.f32.mrf.mxu0
  %5503 = vmatprep.mubr.bf16.mxu0 0
  %5504 = vmatmul.mubr.bf16.gmra.mxu0 %v5323
  %v5505 = vpop.f32.mrf.mxu0
  %v5506 = vadd.f32 %v5409, %v5505
  %v5507 = vpop.f32.mrf.mxu0
  %v5508 = vpop.f32.mrf.mxu0
  %v5509 = vadd.f32 %v5412, %v5508
  %v5510 = vpop.f32.mrf.mxu0
  %5511 = vmatprep.mubr.bf16.mxu0 0
  %5512 = vmatmul.mubr.bf16.gmra.mxu0 %v5326
  %v5513 = vpop.f32.mrf.mxu0
  %v5514 = vadd.f32 %v5417, %v5513
  %v5515 = vpop.f32.mrf.mxu0
  %v5516 = vpop.f32.mrf.mxu0
  %v5517 = vadd.f32 %v5420, %v5516
  %v5518 = vpop.f32.mrf.mxu0
  %5519 = vmatprep.mubr.bf16.mxu0 0
  %5520 = vmatmul.mubr.bf16.gmra.mxu0 %v5329
  %v5521 = vpop.f32.mrf.mxu0
  %v5522 = vadd.f32 %v5425, %v5521
  %v5523 = vpop.f32.mrf.mxu0
  %v5524 = vpop.f32.mrf.mxu0
  %v5525 = vadd.f32 %v5428, %v5524
  %v5526 = vpop.f32.mrf.mxu0
  %5527 = vdwg.mxu0
  %v5561 = vunpack.c.l.b16 %v5141
  %v5562 = vunpack.c.l.b16 %v5142
  %v5563 = vunpack.c.l.b16 %v5143
  %v5564 = vunpack.c.l.b16 %v5144
  %v5565 = vunpack.c.l.b16 %v5145
  %v5566 = vunpack.c.l.b16 %v5146
  %v5567 = vunpack.c.l.b16 %v5147
  %v5568 = vunpack.c.l.b16 %v5148
  %v5569 = vunpack.c.l.b16 %v5149
  %v5570 = vunpack.c.l.b16 %v5150
  %v5571 = vunpack.c.l.b16 %v5151
  %v5572 = vunpack.c.l.b16 %v5152
  %v5573 = vunpack.c.l.b16 %v5153
  %v5574 = vunpack.c.l.b16 %v5154
  %v5575 = vunpack.c.l.b16 %v5155
  %v5576 = vunpack.c.l.b16 %v5156
  %v5577 = vunpack.c.l.b16 %v5157
  %v5578 = vunpack.c.l.b16 %v5158
  %v5579 = vunpack.c.l.b16 %v5159
  %v5580 = vunpack.c.l.b16 %v5160
  %v5581 = vunpack.c.l.b16 %v5161
  %v5582 = vunpack.c.l.b16 %v5162
  %v5583 = vunpack.c.l.b16 %v5163
  %v5584 = vunpack.c.l.b16 %v5164
  %v5585 = vunpack.c.l.b16 %v5165
  %v5586 = vunpack.c.l.b16 %v5166
  %v5587 = vunpack.c.l.b16 %v5167
  %v5588 = vunpack.c.l.b16 %v5168
  %v5589 = vunpack.c.l.b16 %v5169
  %v5590 = vunpack.c.l.b16 %v5170
  %v5591 = vunpack.c.l.b16 %v5171
  %v5592 = vunpack.c.l.b16 %v5172
  %v5593 = vunpack.c.l.b16 %v5173
  %v5594 = vpack.c.b16 %v5562, %v5561
  %v5595 = vpack.c.b16 %v5564, %v5563
  %v5596 = vpack.c.b16 %v5566, %v5565
  %v5597 = vpack.c.b16 %v5568, %v5567
  %v5598 = vpack.c.b16 %v5570, %v5569
  %v5599 = vpack.c.b16 %v5572, %v5571
  %v5600 = vpack.c.b16 %v5574, %v5573
  %v5601 = vpack.c.b16 %v5576, %v5575
  %v5602 = vpack.c.b16 %v5578, %v5577
  %v5603 = vpack.c.b16 %v5580, %v5579
  %v5604 = vpack.c.b16 %v5582, %v5581
  %v5605 = vpack.c.b16 %v5584, %v5583
  %v5606 = vpack.c.b16 %v5586, %v5585
  %v5607 = vpack.c.b16 %v5588, %v5587
  %v5608 = vpack.c.b16 %v5590, %v5589
  %v5609 = vpack.c.b16 %v5592, %v5591
  %v5610 = vpack.c.b16 %v5593, %v5593
  %v5628 = vsel %vm114, %v5091, 0
  %v5631 = vsel %vm114, %v5094, 0
  %v5634 = vsel %vm114, %v5097, 0
  %v5637 = vsel %vm114, %v5100, 0
  %v5640 = vsel %vm114, %v5103, 0
  %v5643 = vsel %vm114, %v5106, 0
  %v5646 = vsel %vm114, %v5109, 0
  %v5649 = vsel %vm114, %v5112, 0
  %v5652 = vsel %vm4028, %v5610, 0
  %5654 = vmatprep.subr.bf16.mxu0 0
  %5655 = vmatpush1.bf16.msra.mxu0 %v5601
  %5656 = vmatprep.subr.bf16.mxu0 0
  %5657 = vmatpush1.bf16.msra.mxu0 %v5600
  %5658 = vmatprep.subr.bf16.mxu0 0
  %5659 = vmatpush1.bf16.msra.mxu0 %v5599
  %5660 = vmatprep.subr.bf16.mxu0 0
  %5661 = vmatpush1.bf16.msra.mxu0 %v5598
  %5662 = vmatprep.subr.bf16.mxu0 0
  %5663 = vmatpush1.bf16.msra.mxu0 %v5597
  %5664 = vmatprep.subr.bf16.mxu0 0
  %5665 = vmatpush1.bf16.msra.mxu0 %v5596
  %5666 = vmatprep.subr.bf16.mxu0 0
  %5667 = vmatpush1.bf16.msra.mxu0 %v5595
  %5668 = vmatprep.subr.bf16.mxu0 0
  %5669 = vmatpush1.bf16.msra.mxu0 %v5594
  %5670 = vmatprep.subr.bf16.mxu0 0
  %5671 = vmatpush2.bf16.msra.mxu0 %v5609
  %5672 = vmatprep.subr.bf16.mxu0 0
  %5673 = vmatpush2.bf16.msra.mxu0 %v5608
  %5674 = vmatprep.subr.bf16.mxu0 0
  %5675 = vmatpush2.bf16.msra.mxu0 %v5607
  %5676 = vmatprep.subr.bf16.mxu0 0
  %5677 = vmatpush2.bf16.msra.mxu0 %v5606
  %5678 = vmatprep.subr.bf16.mxu0 0
  %5679 = vmatpush2.bf16.msra.mxu0 %v5605
  %5680 = vmatprep.subr.bf16.mxu0 0
  %5681 = vmatpush2.bf16.msra.mxu0 %v5604
  %5682 = vmatprep.subr.bf16.mxu0 0
  %5683 = vmatpush2.bf16.msra.mxu0 %v5603
  %5684 = vmatprep.subr.bf16.mxu0 0
  %5685 = vmatpush2.bf16.msra.mxu0 %v5602
  %5686 = vmatprep.mubr.bf16.mxu0 %v5090
  %5687 = vmatmul.mubr.bf16.gmra.mxu0 %v5089
  %v5688 = vpop.f32.mrf.mxu0
  %v5689 = vadd.f32 %v5466, %v5688
  %v5690 = vpop.f32.mrf.mxu0
  %v5691 = vpop.f32.mrf.mxu0
  %v5692 = vadd.f32 %v5469, %v5691
  %v5693 = vpop.f32.mrf.mxu0
  %5694 = vmatprep.mubr.bf16.mxu0 %v5093
  %5695 = vmatmul.mubr.bf16.gmra.mxu0 %v5092
  %v5696 = vpop.f32.mrf.mxu0
  %v5697 = vadd.f32 %v5474, %v5696
  %v5698 = vpop.f32.mrf.mxu0
  %v5699 = vpop.f32.mrf.mxu0
  %v5700 = vadd.f32 %v5477, %v5699
  %v5701 = vpop.f32.mrf.mxu0
  %5702 = vmatprep.mubr.bf16.mxu0 %v5096
  %5703 = vmatmul.mubr.bf16.gmra.mxu0 %v5095
  %v5704 = vpop.f32.mrf.mxu0
  %v5705 = vadd.f32 %v5482, %v5704
  %v5706 = vpop.f32.mrf.mxu0
  %v5707 = vpop.f32.mrf.mxu0
  %v5708 = vadd.f32 %v5485, %v5707
  %v5709 = vpop.f32.mrf.mxu0
  %5710 = vmatprep.mubr.bf16.mxu0 %v5099
  %5711 = vmatmul.mubr.bf16.gmra.mxu0 %v5098
  %v5712 = vpop.f32.mrf.mxu0
  %v5713 = vadd.f32 %v5490, %v5712
  %v5714 = vpop.f32.mrf.mxu0
  %v5715 = vpop.f32.mrf.mxu0
  %v5716 = vadd.f32 %v5493, %v5715
  %v5717 = vpop.f32.mrf.mxu0
  %5718 = vmatprep.mubr.bf16.mxu0 %v5102
  %5719 = vmatmul.mubr.bf16.gmra.mxu0 %v5101
  %v5720 = vpop.f32.mrf.mxu0
  %v5721 = vadd.f32 %v5498, %v5720
  %v5722 = vpop.f32.mrf.mxu0
  %v5723 = vpop.f32.mrf.mxu0
  %v5724 = vadd.f32 %v5501, %v5723
  %v5725 = vpop.f32.mrf.mxu0
  %5726 = vmatprep.mubr.bf16.mxu0 %v5105
  %5727 = vmatmul.mubr.bf16.gmra.mxu0 %v5104
  %v5728 = vpop.f32.mrf.mxu0
  %v5729 = vadd.f32 %v5506, %v5728
  %v5730 = vpop.f32.mrf.mxu0
  %v5731 = vpop.f32.mrf.mxu0
  %v5732 = vadd.f32 %v5509, %v5731
  %v5733 = vpop.f32.mrf.mxu0
  %5734 = vmatprep.mubr.bf16.mxu0 %v5108
  %5735 = vmatmul.mubr.bf16.gmra.mxu0 %v5107
  %v5736 = vpop.f32.mrf.mxu0
  %v5737 = vadd.f32 %v5514, %v5736
  %v5738 = vpop.f32.mrf.mxu0
  %v5739 = vpop.f32.mrf.mxu0
  %v5740 = vadd.f32 %v5517, %v5739
  %v5741 = vpop.f32.mrf.mxu0
  %5742 = vmatprep.mubr.bf16.mxu0 %v5111
  %5743 = vmatmul.mubr.bf16.gmra.mxu0 %v5110
  %v5744 = vpop.f32.mrf.mxu0
  %v5745 = vadd.f32 %v5522, %v5744
  %v5746 = vpop.f32.mrf.mxu0
  %v5747 = vpop.f32.mrf.mxu0
  %v5748 = vadd.f32 %v5525, %v5747
  %v5749 = vpop.f32.mrf.mxu0
  %5750 = vdwg.mxu0
  %5751 = vmatprep.subr.bf16.mxu0 0
  %5752 = vmatpush1.bf16.msra.mxu0 0
  %5753 = vmatprep.subr.bf16.mxu0 0
  %5754 = vmatpush1.bf16.msra.mxu0 0
  %5755 = vmatprep.subr.bf16.mxu0 0
  %5756 = vmatpush1.bf16.msra.mxu0 0
  %5757 = vmatprep.subr.bf16.mxu0 0
  %5758 = vmatpush1.bf16.msra.mxu0 0
  %5759 = vmatprep.subr.bf16.mxu0 0
  %5760 = vmatpush1.bf16.msra.mxu0 0
  %5761 = vmatprep.subr.bf16.mxu0 0
  %5762 = vmatpush1.bf16.msra.mxu0 0
  %5763 = vmatprep.subr.bf16.mxu0 0
  %5764 = vmatpush1.bf16.msra.mxu0 0
  %5765 = vmatprep.subr.bf16.mxu0 0
  %5766 = vmatpush1.bf16.msra.mxu0 %v5652
  %5767 = vmatprep.subr.bf16.mxu0 0
  %5768 = vmatpush2.bf16.msra.mxu0 0
  %5769 = vmatprep.subr.bf16.mxu0 0
  %5770 = vmatpush2.bf16.msra.mxu0 0
  %5771 = vmatprep.subr.bf16.mxu0 0
  %5772 = vmatpush2.bf16.msra.mxu0 0
  %5773 = vmatprep.subr.bf16.mxu0 0
  %5774 = vmatpush2.bf16.msra.mxu0 0
  %5775 = vmatprep.subr.bf16.mxu0 0
  %5776 = vmatpush2.bf16.msra.mxu0 0
  %5777 = vmatprep.subr.bf16.mxu0 0
  %5778 = vmatpush2.bf16.msra.mxu0 0
  %5779 = vmatprep.subr.bf16.mxu0 0
  %5780 = vmatpush2.bf16.msra.mxu0 0
  %5781 = vmatprep.subr.bf16.mxu0 0
  %5782 = vmatpush2.bf16.msra.mxu0 0
  %5783 = vmatprep.mubr.bf16.mxu0 0
  %5784 = vmatmul.mubr.bf16.gmra.mxu0 %v5628
  %v5785 = vpop.f32.mrf.mxu0
  %v5786 = vadd.f32 %v5689, %v5785
  %v5787 = vpop.f32.mrf.mxu0
  %v5788 = vpop.f32.mrf.mxu0
  %v5789 = vadd.f32 %v5692, %v5788
  %v5790 = vpop.f32.mrf.mxu0
  %5791 = vmatprep.mubr.bf16.mxu0 0
  %5792 = vmatmul.mubr.bf16.gmra.mxu0 %v5631
  %v5793 = vpop.f32.mrf.mxu0
  %v5794 = vadd.f32 %v5697, %v5793
  %v5795 = vpop.f32.mrf.mxu0
  %v5796 = vpop.f32.mrf.mxu0
  %v5797 = vadd.f32 %v5700, %v5796
  %v5798 = vpop.f32.mrf.mxu0
  %5799 = vmatprep.mubr.bf16.mxu0 0
  %5800 = vmatmul.mubr.bf16.gmra.mxu0 %v5634
  %v5801 = vpop.f32.mrf.mxu0
  %v5802 = vadd.f32 %v5705, %v5801
  %v5803 = vpop.f32.mrf.mxu0
  %v5804 = vpop.f32.mrf.mxu0
  %v5805 = vadd.f32 %v5708, %v5804
  %v5806 = vpop.f32.mrf.mxu0
  %5807 = vmatprep.mubr.bf16.mxu0 0
  %5808 = vmatmul.mubr.bf16.gmra.mxu0 %v5637
  %v5809 = vpop.f32.mrf.mxu0
  %v5810 = vadd.f32 %v5713, %v5809
  %v5811 = vpop.f32.mrf.mxu0
  %v5812 = vpop.f32.mrf.mxu0
  %v5813 = vadd.f32 %v5716, %v5812
  %v5814 = vpop.f32.mrf.mxu0
  %5815 = vmatprep.mubr.bf16.mxu0 0
  %5816 = vmatmul.mubr.bf16.gmra.mxu0 %v5640
  %v5817 = vpop.f32.mrf.mxu0
  %v5818 = vadd.f32 %v5721, %v5817
  %v5819 = vpop.f32.mrf.mxu0
  %v5820 = vpop.f32.mrf.mxu0
  %v5821 = vadd.f32 %v5724, %v5820
  %v5822 = vpop.f32.mrf.mxu0
  %5823 = vmatprep.mubr.bf16.mxu0 0
  %5824 = vmatmul.mubr.bf16.gmra.mxu0 %v5643
  %v5825 = vpop.f32.mrf.mxu0
  %v5826 = vadd.f32 %v5729, %v5825
  %v5827 = vpop.f32.mrf.mxu0
  %v5828 = vpop.f32.mrf.mxu0
  %v5829 = vadd.f32 %v5732, %v5828
  %v5830 = vpop.f32.mrf.mxu0
  %5831 = vmatprep.mubr.bf16.mxu0 0
  %5832 = vmatmul.mubr.bf16.gmra.mxu0 %v5646
  %v5833 = vpop.f32.mrf.mxu0
  %v5834 = vadd.f32 %v5737, %v5833
  %v5835 = vpop.f32.mrf.mxu0
  %v5836 = vpop.f32.mrf.mxu0
  %v5837 = vadd.f32 %v5740, %v5836
  %v5838 = vpop.f32.mrf.mxu0
  %5839 = vmatprep.mubr.bf16.mxu0 0
  %5840 = vmatmul.mubr.bf16.gmra.mxu0 %v5649
  %v5841 = vpop.f32.mrf.mxu0
  %v5842 = vadd.f32 %v5745, %v5841
  %v5843 = vpop.f32.mrf.mxu0
  %v5844 = vpop.f32.mrf.mxu0
  %v5845 = vadd.f32 %v5748, %v5844
  %v5846 = vpop.f32.mrf.mxu0
  %5847 = vdwg.mxu0
  %v5848 = vadd.f32 %v5786, %v4991
  %v5849 = vadd.f32 %v5789, %v4991
  %v5850 = vadd.f32 %v5794, %v4991
  %v5851 = vadd.f32 %v5797, %v4991
  %v5852 = vadd.f32 %v5802, %v4991
  %v5853 = vadd.f32 %v5805, %v4991
  %v5854 = vadd.f32 %v5810, %v4991
  %v5855 = vadd.f32 %v5813, %v4991
  %v5856 = vadd.f32 %v5818, %v4991
  %v5857 = vadd.f32 %v5821, %v4991
  %v5858 = vadd.f32 %v5826, %v4991
  %v5859 = vadd.f32 %v5829, %v4991
  %v5860 = vadd.f32 %v5834, %v4991
  %v5861 = vadd.f32 %v5837, %v4991
  %v5862 = vadd.f32 %v5842, %v4991
  %v5863 = vadd.f32 %v5845, %v4991
  %v5864 = vtanh.pop %v5848
  %v5865 = vtanh.pop %v5849
  %v5866 = vtanh.pop %v5850
  %v5867 = vtanh.pop %v5851
  %v5868 = vtanh.pop %v5852
  %v5869 = vtanh.pop %v5853
  %v5870 = vtanh.pop %v5854
  %v5871 = vtanh.pop %v5855
  %v5872 = vtanh.pop %v5856
  %v5873 = vtanh.pop %v5857
  %v5874 = vtanh.pop %v5858
  %v5875 = vtanh.pop %v5859
  %v5876 = vtanh.pop %v5860
  %v5877 = vtanh.pop %v5861
  %v5878 = vtanh.pop %v5862
  %v5879 = vtanh.pop %v5863
  %5880 = vst [vmem:[%s20 + $0x80] sm:$0xff] %v5864
  %5881 = vst [vmem:[%s20 + $0x88] sm:$0xff] %v5865
  %5882 = vst [vmem:[%s20 + $0x90] sm:$0xff] %v5866
  %5883 = vst [vmem:[%s20 + $0x98] sm:$0xff] %v5867
  %5884 = vst [vmem:[%s20 + $0xa0] sm:$0xff] %v5868
  %5885 = vst [vmem:[%s20 + $0xa8] sm:$0xff] %v5869
  %5886 = vst [vmem:[%s20 + $0xb0] sm:$0xff] %v5870
  %5887 = vst [vmem:[%s20 + $0xb8] sm:$0xff] %v5871
  %5888 = vst [vmem:[%s20 + $0xc0] sm:$0xff] %v5872
  %5889 = vst [vmem:[%s20 + $0xc8] sm:$0xff] %v5873
  %5890 = vst [vmem:[%s20 + $0xd0] sm:$0xff] %v5874
  %5891 = vst [vmem:[%s20 + $0xd8] sm:$0xff] %v5875
  %5892 = vst [vmem:[%s20 + $0xe0] sm:$0xff] %v5876
  %5893 = vst [vmem:[%s20 + $0xe8] sm:$0xff] %v5877
  %5894 = vst [vmem:[%s20 + $0xf0] sm:$0xff] %v5878
  %5895 = vst [vmem:[%s20 + $0xf8] sm:$0xff] %v5879
  // Predicated region
  $region82: #{decoder_forward.1} parent=0 // pred_check
    _
  $region83: #{decoder_forward.1} parent=0 // pred_check_branch
    %5897 = sbr.rel (0) target = $region85
  $region84: #{decoder_forward.1} parent=0 // pred_region
    _
  $region85: #{decoder_forward.1} parent=0 // pred_fallthru
    _
  // Predicated region
  $region86: #{decoder_forward.1} parent=0 // pred_check
    _
  $region87: #{decoder_forward.1} parent=0 // pred_check_branch
    %5899 = sbr.rel (0) target = $region89
  $region88: #{decoder_forward.1} parent=0 // pred_region
    _
  $region89: #{decoder_forward.1} parent=0 // pred_fallthru
    _

</llo_original>
